<compile_context>
chip_gen: v5e
topology: v5e:2x2
jax: 0.10.0
libtpu: 0.0.40
codegen_flags: <defaults>
</compile_context>

<pallas_src>
import functools

import jax
import jax.numpy as jnp
from jax.experimental import pallas as pl
from jax.experimental.pallas import tpu as pltpu

Z_DIM = 100
BN_EPS = 1e-5


def _round_up(x, m):
    return ((x + m - 1) // m) * m


# ----------------------------------------------------------------------------
# Pallas kernel: fused (tm, K) @ (K, tn) matmul + per-channel affine + act
# ----------------------------------------------------------------------------
def _fused_matmul_kernel(a_ref, b_ref, scale_ref, shift_ref, o_ref, *, act):
    acc = jnp.dot(a_ref[...], b_ref[...], preferred_element_type=jnp.float32)
    y = acc * scale_ref[...] + shift_ref[...]            # (tm, tn) * (1, tn)
    if act == "relu":
        y = jnp.maximum(y, 0.0)
    else:                                                # "tanh"
        y = jnp.tanh(y)
    o_ref[...] = y.astype(o_ref.dtype)


def fused_matmul(a, b, scale, shift, act, *, out_dtype=jnp.bfloat16,
                 tm=256, tn=2048):
    """a: (P, M, K) bf16, b: (P, K, Coutp) bf16, scale/shift: (Coutp,) f32.

    Returns (P, M, Coutp) in `out_dtype`.  K and Coutp must be multiples of
    128 (callers pad); M is padded to the tile size here.
    """
    p, m, k = a.shape
    coutp = b.shape[-1]
    tm = min(tm, _round_up(m, 8))
    m_pad = _round_up(m, tm)
    tn = min(tn, coutp)
    if coutp % tn != 0:
        tn = coutp
    if m_pad != m:
        a = jnp.pad(a, ((0, 0), (0, m_pad - m), (0, 0)))

    out = pl.pallas_call(
        functools.partial(_fused_matmul_kernel, act=act),
        out_shape=jax.ShapeDtypeStruct((p, m_pad, coutp), out_dtype),
        grid_spec=pltpu.PrefetchScalarGridSpec(
            num_scalar_prefetch=0,
            grid=(p, m_pad // tm, coutp // tn),
            in_specs=[
                pl.BlockSpec((None, tm, k), lambda ph, i, j: (ph, i, 0)),
                pl.BlockSpec((None, k, tn), lambda ph, i, j: (ph, 0, j)),
                pl.BlockSpec((1, tn), lambda ph, i, j: (0, j)),
                pl.BlockSpec((1, tn), lambda ph, i, j: (0, j)),
            ],
            out_specs=pl.BlockSpec((None, tm, tn), lambda ph, i, j: (ph, i, j)),
        ),
        compiler_params=pltpu.CompilerParams(
            dimension_semantics=("parallel", "parallel", "parallel"),
        ),
    )(a, b,
      scale.reshape(1, coutp).astype(jnp.float32),
      shift.reshape(1, coutp).astype(jnp.float32))
    return out[:, :m]


# ----------------------------------------------------------------------------
# BatchNorm (inference-form affine)
# ----------------------------------------------------------------------------
# TODO(synk): BatchNorm is inference-form affine with PyTorch-default running
# stats (gamma=1, beta=0, mean=0, var=1), not train-mode batch statistics.
def _bn_affine(bn, c_out, cout_p):
    if bn is not None:
        gamma, beta, rmean, rvar = bn
        scale = gamma / jnp.sqrt(rvar + BN_EPS)
        shift = beta - rmean * scale
    else:
        scale = jnp.ones((c_out,), jnp.float32)
        shift = jnp.zeros((c_out,), jnp.float32)
    if cout_p != c_out:
        scale = jnp.pad(scale, (0, cout_p - c_out), constant_values=1.0)
        shift = jnp.pad(shift, (0, cout_p - c_out))
    return scale, shift


# ----------------------------------------------------------------------------
# Layer 1: ConvTranspose2d(100, 512, 4, stride=1, pad=0) on 1x1 input == dense
# ----------------------------------------------------------------------------
def project_layer1(z, w, bn, *, out_dtype=jnp.bfloat16):
    """z: (N, 100) f32, w: (100, 512, 4, 4) -> (N, 4, 4, 512) NHWC."""
    n = z.shape[0]
    c_out = w.shape[1]
    kh, kw = w.shape[2], w.shape[3]
    # columns ordered (kh, kw, co) so the result reshapes straight to NHWC
    w_mat = jnp.transpose(w, (0, 2, 3, 1)).reshape(Z_DIM, kh * kw * c_out)
    kp = _round_up(Z_DIM, 128)                      # lane-align K: 100 -> 128
    a = jnp.pad(z, ((0, 0), (0, kp - Z_DIM))).astype(jnp.bfloat16)[None]
    b = jnp.pad(w_mat, ((0, kp - Z_DIM), (0, 0))).astype(jnp.bfloat16)[None]
    scale, shift = _bn_affine(bn, c_out, c_out)
    out = fused_matmul(a, b, jnp.tile(scale, kh * kw), jnp.tile(shift, kh * kw),
                       "relu", out_dtype=out_dtype)
    return out[0].reshape(n, kh, kw, c_out)


# ----------------------------------------------------------------------------
# Layers 2-5: ConvTranspose2d(k=4, stride=2, pad=1) via phase decomposition
# ----------------------------------------------------------------------------
def _phase_im2col(x, w):
    """Sub-pixel decomposition of ConvTranspose2d(kernel=4, stride=2, pad=1).

    x: (N, H, W, Cin) ; w: (Cin, Cout, 4, 4) (PyTorch layout).
    Phase p = dy*2 + dx produces output pixels (2m+dy, 2k+dx):
        out_p[m,k] = sum_{r,c in {0,1}} xp[m+dy+r, k+dx+c] * w[..., 3-dy-2r, 3-dx-2c]
    with xp = x zero-padded by 1 on each spatial side.
    Returns A: (4, N*H*W, 4*Cin) bf16 and B: (4, 4*Cin, Cout) bf16.
    """
    n, h, wdt, c_in = x.shape
    a_list, b_list = [], []
    for dy in (0, 1):
        for dx in (0, 1):
            taps, b_taps = [], []
            for r in (0, 1):
                for c in (0, 1):
                    taps.append(None)       # placeholder, filled below
                    b_taps.append(w[:, :, 3 - dy - 2 * r, 3 - dx - 2 * c])
            xp = jnp.pad(x, ((0, 0), (1, 1), (1, 1), (0, 0)))
            taps = [xp[:, dy + r:dy + r + h, dx + c:dx + c + wdt, :]
                    for r in (0, 1) for c in (0, 1)]
            a_p = jnp.concatenate(taps, axis=-1).reshape(n * h * wdt, 4 * c_in)
            a_list.append(a_p)
            b_list.append(jnp.concatenate(b_taps, axis=0))
    a = jnp.stack(a_list, axis=0).astype(jnp.bfloat16)   # (4, M, 4*Cin)
    b = jnp.stack(b_list, axis=0).astype(jnp.bfloat16)   # (4, 4*Cin, Cout)
    return a, b


def conv_transpose_bn_act(x, w, bn, act, *, out_dtype=jnp.bfloat16):
    """x: (N, H, W, Cin) -> (N, 2H, 2W, Cout); fused BN affine + activation."""
    n, h, wdt, _ = x.shape
    c_out = w.shape[1]
    a, b = _phase_im2col(x, w)
    cout_p = _round_up(c_out, 128)                  # lane-dense output stores
    if cout_p != c_out:
        b = jnp.pad(b, ((0, 0), (0, 0), (0, cout_p - c_out)))
    scale, shift = _bn_affine(bn, c_out, cout_p)
    out = fused_matmul(a, b, scale, shift, act, out_dtype=out_dtype)
    out = out[..., :c_out]                          # drop Cout padding
    # interleave the four parities: (dy, dx, n, m, k, co) -> (n, 2m+dy, 2k+dx, co)
    out = out.reshape(2, 2, n, h, wdt, c_out)
    out = jnp.transpose(out, (2, 3, 0, 4, 1, 5)).reshape(n, 2 * h, 2 * wdt, c_out)
    return out


# ----------------------------------------------------------------------------
# Generator parameters (deterministic init, DCGAN-style N(0, 0.02) weights)
# ----------------------------------------------------------------------------
_LAYER_CFG = [
    # (C_in, C_out, stride, padding, has_bn, act)
    (Z_DIM, 512, 1, 0, True, "relu"),
    (512, 256, 2, 1, True, "relu"),
    (256, 128, 2, 1, True, "relu"),
    (128, 64, 2, 1, True, "relu"),
    (64, 3, 2, 1, False, "tanh"),
]


def init_params(key):
    params = []
    for (c_in, c_out, _, _, has_bn, _) in _LAYER_CFG:
        key, wk = jax.random.split(key)
        w = 0.02 * jax.random.normal(wk, (c_in, c_out, 4, 4), jnp.float32)
        if has_bn:
            bn = (jnp.ones((c_out,), jnp.float32),    # gamma
                  jnp.zeros((c_out,), jnp.float32),   # beta
                  jnp.zeros((c_out,), jnp.float32),   # running_mean
                  jnp.ones((c_out,), jnp.float32))    # running_var
        else:
            bn = None
        params.append((w, bn))
    return params


def generator_forward(z_nchw, params):
    """z: (N, 100, 1, 1) -> image (N, 3, 64, 64), matching the PyTorch module."""
    n = z_nchw.shape[0]
    w1, bn1 = params[0]
    x = project_layer1(z_nchw.reshape(n, Z_DIM), w1, bn1)
    last = len(params) - 1
    for li in range(1, len(params)):
        w, bn = params[li]
        act = _LAYER_CFG[li][5]
        out_dtype = jnp.float32 if li == last else jnp.bfloat16
        x = conv_transpose_bn_act(x, w, bn, act, out_dtype=out_dtype)
    return jnp.transpose(x, (0, 3, 1, 2)).astype(jnp.float32)   # NHWC -> NCHW


# ----------------------------------------------------------------------------
# Pure-JAX reference (lax conv with lhs_dilation == ConvTranspose), emulating
# the kernel's bf16-operand / f32-accumulate / bf16-interlayer dtype choices.
# ----------------------------------------------------------------------------
def _ref_forward(z_nchw, params):
    x = z_nchw
    for (w, bn), (_, _, stride, padding, _, act) in zip(params, _LAYER_CFG):
        xb = x.astype(jnp.bfloat16).astype(jnp.float32)
        wb = w.astype(jnp.bfloat16).astype(jnp.float32)
        k = w.shape[2]
        wf = jnp.transpose(wb[:, :, ::-1, ::-1], (1, 0, 2, 3))  # (Cout,Cin,kh,kw)
        y = jax.lax.conv_general_dilated(
            xb, wf, window_strides=(1, 1),
            padding=[(k - 1 - padding, k - 1 - padding)] * 2,
            lhs_dilation=(stride, stride),
            dimension_numbers=("NCHW", "OIHW", "NCHW"),
            preferred_element_type=jnp.float32)
        if bn is not None:
            gamma, beta, rmean, rvar = bn
            scale = gamma / jnp.sqrt(rvar + BN_EPS)
            shift = beta - rmean * scale
            y = y * scale[None, :, None, None] + shift[None, :, None, None]
        x = jnp.maximum(y, 0.0) if act == "relu" else jnp.tanh(y)
    return x.astype(jnp.float32)


if __name__ == "__main__":
    key = jax.random.PRNGKey(0)
    pkey, zkey = jax.random.split(key)
    params = init_params(pkey)
    z = jax.random.normal(zkey, (2, Z_DIM, 1, 1), jnp.float32)

    fwd = jax.jit(generator_forward)
    out = jax.block_until_ready(fwd(z, params))

    assert out.shape == (2, 3, 64, 64), out.shape
    assert bool(jnp.all(jnp.isfinite(out)))
    assert bool(jnp.all(jnp.abs(out) <= 1.0 + 1e-6))        # tanh range

    ref = jax.block_until_ready(jax.jit(_ref_forward)(z, params))
    max_err = float(jnp.max(jnp.abs(out - ref)))
    assert max_err < 2e-2, f"mismatch vs conv_transpose reference: {max_err}"

    print("KERNEL_OK")
</pallas_src>

<mosaic_0001>
module attributes {stable_mosaic.version = 11 : i64} {
  func.func @_fused_matmul_kernel(%arg0: i32, %arg1: i32, %arg2: i32, %arg3: memref<1x8x128xbf16, #tpu.memory_space<vmem>>, %arg4: memref<1x128x2048xbf16, #tpu.memory_space<vmem>>, %arg5: memref<1x2048xf32, #tpu.memory_space<vmem>>, %arg6: memref<1x2048xf32, #tpu.memory_space<vmem>>, %arg7: memref<1x8x2048xbf16, #tpu.memory_space<vmem>>) attributes {dimension_semantics = [#tpu.dimension_semantics<parallel>, #tpu.dimension_semantics<parallel>, #tpu.dimension_semantics<parallel>], iteration_bounds = array<i64: 1, 1, 4>, scalar_prefetch = 0 : i64, scratch_operands = 0 : i64, tpu.core_type = #tpu.core_type<tc>, window_params = [{transform_indices = @transform_0, window_bounds = array<i64: 1, 8, 128>}, {transform_indices = @transform_1, window_bounds = array<i64: 1, 128, 2048>}, {transform_indices = @transform_2, window_bounds = array<i64: 1, 2048>}, {transform_indices = @transform_3, window_bounds = array<i64: 1, 2048>}, {transform_indices = @transform_4, window_bounds = array<i64: 1, 8, 2048>}]} {
    %c0 = arith.constant 0 : index
    %c0_0 = arith.constant 0 : index
    %c0_1 = arith.constant 0 : index
    %0 = vector.load %arg3[%c0, %c0_0, %c0_1] : memref<1x8x128xbf16, #tpu.memory_space<vmem>>, vector<1x8x128xbf16>
    %1 = vector.shape_cast %0 : vector<1x8x128xbf16> to vector<8x128xbf16>
    %c0_2 = arith.constant 0 : index
    %c0_3 = arith.constant 0 : index
    %c0_4 = arith.constant 0 : index
    %2 = vector.load %arg4[%c0_2, %c0_3, %c0_4] : memref<1x128x2048xbf16, #tpu.memory_space<vmem>>, vector<1x128x2048xbf16>
    %3 = vector.shape_cast %2 : vector<1x128x2048xbf16> to vector<128x2048xbf16>
    %cst = arith.constant dense<0.000000e+00> : vector<8x2048xf32>
    %4 = tpu.matmul %1, %3, %cst {dimension_numbers = #tpu.dot_dimension_numbers<[1], [0], [0], [1], [0, 0, 1, 1], [], []>} : vector<8x128xbf16>, vector<128x2048xbf16>, vector<8x2048xf32> -> vector<8x2048xf32>
    %c0_5 = arith.constant 0 : index
    %c0_6 = arith.constant 0 : index
    %5 = vector.load %arg5[%c0_5, %c0_6] : memref<1x2048xf32, #tpu.memory_space<vmem>>, vector<1x2048xf32>
    %6 = vector.broadcast %5 : vector<1x2048xf32> to vector<8x2048xf32>
    %7 = arith.mulf %4, %6 : vector<8x2048xf32>
    %c0_7 = arith.constant 0 : index
    %c0_8 = arith.constant 0 : index
    %8 = vector.load %arg6[%c0_7, %c0_8] : memref<1x2048xf32, #tpu.memory_space<vmem>>, vector<1x2048xf32>
    %9 = vector.broadcast %8 : vector<1x2048xf32> to vector<8x2048xf32>
    %10 = arith.addf %7, %9 : vector<8x2048xf32>
    %cst_9 = arith.constant 0.000000e+00 : f32
    %11 = vector.broadcast %cst_9 : f32 to vector<8x2048xf32>
    %12 = arith.maximumf %10, %11 : vector<8x2048xf32>
    %13 = arith.truncf %12 : vector<8x2048xf32> to vector<8x2048xbf16>
    %c0_10 = arith.constant 0 : index
    %c0_11 = arith.constant 0 : index
    %c0_12 = arith.constant 0 : index
    %14 = vector.load %arg7[%c0_10, %c0_11, %c0_12] : memref<1x8x2048xbf16, #tpu.memory_space<vmem>>, vector<1x8x2048xbf16>
    %15 = vector.shape_cast %14 : vector<1x8x2048xbf16> to vector<8x2048xbf16>
    %16 = vector.shape_cast %13 : vector<8x2048xbf16> to vector<1x8x2048xbf16>
    tpu.vector_store %arg7[%c0_10, %c0_11, %c0_12], %16 {strides = array<i32>} : memref<1x8x2048xbf16, #tpu.memory_space<vmem>>, vector<1x8x2048xbf16>,
    return
  }
  func.func @transform_0(%arg0: i32, %arg1: i32, %arg2: i32) -> (i32, i32, i32) {
    %c0_i32 = arith.constant 0 : i32
    %c0_i32_0 = arith.constant 0 : i32
    return %arg0, %arg1, %c0_i32 : i32, i32, i32
  }
  func.func @transform_1(%arg0: i32, %arg1: i32, %arg2: i32) -> (i32, i32, i32) {
    %c0_i32 = arith.constant 0 : i32
    %c0_i32_0 = arith.constant 0 : i32
    return %arg0, %c0_i32, %arg2 : i32, i32, i32
  }
  func.func @transform_2(%arg0: i32, %arg1: i32, %arg2: i32) -> (i32, i32) {
    %c0_i32 = arith.constant 0 : i32
    %c0_i32_0 = arith.constant 0 : i32
    return %c0_i32, %arg2 : i32, i32
  }
  func.func @transform_3(%arg0: i32, %arg1: i32, %arg2: i32) -> (i32, i32) {
    %c0_i32 = arith.constant 0 : i32
    %c0_i32_0 = arith.constant 0 : i32
    return %c0_i32, %arg2 : i32, i32
  }
  func.func @transform_4(%arg0: i32, %arg1: i32, %arg2: i32) -> (i32, i32, i32) {
    %c0_i32 = arith.constant 0 : i32
    return %arg0, %arg1, %arg2 : i32, i32, i32
  }
}

module attributes {stable_mosaic.version = 11 : i64} {
  func.func @_fused_matmul_kernel(%arg0: i32, %arg1: i32, %arg2: i32, %arg3: memref<1x32x2048xbf16, #tpu.memory_space<vmem>>, %arg4: memref<1x2048x256xbf16, #tpu.memory_space<vmem>>, %arg5: memref<1x256xf32, #tpu.memory_space<vmem>>, %arg6: memref<1x256xf32, #tpu.memory_space<vmem>>, %arg7: memref<1x32x256xbf16, #tpu.memory_space<vmem>>) attributes {dimension_semantics = [#tpu.dimension_semantics<parallel>, #tpu.dimension_semantics<parallel>, #tpu.dimension_semantics<parallel>], iteration_bounds = array<i64: 4, 1, 1>, scalar_prefetch = 0 : i64, scratch_operands = 0 : i64, tpu.core_type = #tpu.core_type<tc>, window_params = [{transform_indices = @transform_0, window_bounds = array<i64: 1, 32, 2048>}, {transform_indices = @transform_1, window_bounds = array<i64: 1, 2048, 256>}, {transform_indices = @transform_2, window_bounds = array<i64: 1, 256>}, {transform_indices = @transform_3, window_bounds = array<i64: 1, 256>}, {transform_indices = @transform_4, window_bounds = array<i64: 1, 32, 256>}]} {
    %c0 = arith.constant 0 : index
    %c0_0 = arith.constant 0 : index
    %c0_1 = arith.constant 0 : index
    %0 = vector.load %arg3[%c0, %c0_0, %c0_1] : memref<1x32x2048xbf16, #tpu.memory_space<vmem>>, vector<1x32x2048xbf16>
    %1 = vector.shape_cast %0 : vector<1x32x2048xbf16> to vector<32x2048xbf16>
    %c0_2 = arith.constant 0 : index
    %c0_3 = arith.constant 0 : index
    %c0_4 = arith.constant 0 : index
    %2 = vector.load %arg4[%c0_2, %c0_3, %c0_4] : memref<1x2048x256xbf16, #tpu.memory_space<vmem>>, vector<1x2048x256xbf16>
    %3 = vector.shape_cast %2 : vector<1x2048x256xbf16> to vector<2048x256xbf16>
    %cst = arith.constant dense<0.000000e+00> : vector<32x256xf32>
    %4 = tpu.matmul %1, %3, %cst {dimension_numbers = #tpu.dot_dimension_numbers<[1], [0], [0], [1], [0, 0, 1, 1], [], []>} : vector<32x2048xbf16>, vector<2048x256xbf16>, vector<32x256xf32> -> vector<32x256xf32>
    %c0_5 = arith.constant 0 : index
    %c0_6 = arith.constant 0 : index
    %5 = vector.load %arg5[%c0_5, %c0_6] : memref<1x256xf32, #tpu.memory_space<vmem>>, vector<1x256xf32>
    %6 = vector.broadcast %5 : vector<1x256xf32> to vector<32x256xf32>
    %7 = arith.mulf %4, %6 : vector<32x256xf32>
    %c0_7 = arith.constant 0 : index
    %c0_8 = arith.constant 0 : index
    %8 = vector.load %arg6[%c0_7, %c0_8] : memref<1x256xf32, #tpu.memory_space<vmem>>, vector<1x256xf32>
    %9 = vector.broadcast %8 : vector<1x256xf32> to vector<32x256xf32>
    %10 = arith.addf %7, %9 : vector<32x256xf32>
    %cst_9 = arith.constant 0.000000e+00 : f32
    %11 = vector.broadcast %cst_9 : f32 to vector<32x256xf32>
    %12 = arith.maximumf %10, %11 : vector<32x256xf32>
    %13 = arith.truncf %12 : vector<32x256xf32> to vector<32x256xbf16>
    %c0_10 = arith.constant 0 : index
    %c0_11 = arith.constant 0 : index
    %c0_12 = arith.constant 0 : index
    %14 = vector.load %arg7[%c0_10, %c0_11, %c0_12] : memref<1x32x256xbf16, #tpu.memory_space<vmem>>, vector<1x32x256xbf16>
    %15 = vector.shape_cast %14 : vector<1x32x256xbf16> to vector<32x256xbf16>
    %16 = vector.shape_cast %13 : vector<32x256xbf16> to vector<1x32x256xbf16>
    tpu.vector_store %arg7[%c0_10, %c0_11, %c0_12], %16 {strides = array<i32>} : memref<1x32x256xbf16, #tpu.memory_space<vmem>>, vector<1x32x256xbf16>,
    return
  }
  func.func @transform_0(%arg0: i32, %arg1: i32, %arg2: i32) -> (i32, i32, i32) {
    %c0_i32 = arith.constant 0 : i32
    %c0_i32_0 = arith.constant 0 : i32
    return %arg0, %arg1, %c0_i32 : i32, i32, i32
  }
  func.func @transform_1(%arg0: i32, %arg1: i32, %arg2: i32) -> (i32, i32, i32) {
    %c0_i32 = arith.constant 0 : i32
    %c0_i32_0 = arith.constant 0 : i32
    return %arg0, %c0_i32, %arg2 : i32, i32, i32
  }
  func.func @transform_2(%arg0: i32, %arg1: i32, %arg2: i32) -> (i32, i32) {
    %c0_i32 = arith.constant 0 : i32
    %c0_i32_0 = arith.constant 0 : i32
    return %c0_i32, %arg2 : i32, i32
  }
  func.func @transform_3(%arg0: i32, %arg1: i32, %arg2: i32) -> (i32, i32) {
    %c0_i32 = arith.constant 0 : i32
    %c0_i32_0 = arith.constant 0 : i32
    return %c0_i32, %arg2 : i32, i32
  }
  func.func @transform_4(%arg0: i32, %arg1: i32, %arg2: i32) -> (i32, i32, i32) {
    %c0_i32 = arith.constant 0 : i32
    return %arg0, %arg1, %arg2 : i32, i32, i32
  }
}

module attributes {stable_mosaic.version = 11 : i64} {
  func.func @_fused_matmul_kernel(%arg0: i32, %arg1: i32, %arg2: i32, %arg3: memref<1x128x1024xbf16, #tpu.memory_space<vmem>>, %arg4: memref<1x1024x128xbf16, #tpu.memory_space<vmem>>, %arg5: memref<1x128xf32, #tpu.memory_space<vmem>>, %arg6: memref<1x128xf32, #tpu.memory_space<vmem>>, %arg7: memref<1x128x128xbf16, #tpu.memory_space<vmem>>) attributes {dimension_semantics = [#tpu.dimension_semantics<parallel>, #tpu.dimension_semantics<parallel>, #tpu.dimension_semantics<parallel>], iteration_bounds = array<i64: 4, 1, 1>, scalar_prefetch = 0 : i64, scratch_operands = 0 : i64, tpu.core_type = #tpu.core_type<tc>, window_params = [{transform_indices = @transform_0, window_bounds = array<i64: 1, 128, 1024>}, {transform_indices = @transform_1, window_bounds = array<i64: 1, 1024, 128>}, {transform_indices = @transform_2, window_bounds = array<i64: 1, 128>}, {transform_indices = @transform_3, window_bounds = array<i64: 1, 128>}, {transform_indices = @transform_4, window_bounds = array<i64: 1, 128, 128>}]} {
    %c0 = arith.constant 0 : index
    %c0_0 = arith.constant 0 : index
    %c0_1 = arith.constant 0 : index
    %0 = vector.load %arg3[%c0, %c0_0, %c0_1] : memref<1x128x1024xbf16, #tpu.memory_space<vmem>>, vector<1x128x1024xbf16>
    %1 = vector.shape_cast %0 : vector<1x128x1024xbf16> to vector<128x1024xbf16>
    %c0_2 = arith.constant 0 : index
    %c0_3 = arith.constant 0 : index
    %c0_4 = arith.constant 0 : index
    %2 = vector.load %arg4[%c0_2, %c0_3, %c0_4] : memref<1x1024x128xbf16, #tpu.memory_space<vmem>>, vector<1x1024x128xbf16>
    %3 = vector.shape_cast %2 : vector<1x1024x128xbf16> to vector<1024x128xbf16>
    %cst = arith.constant dense<0.000000e+00> : vector<128x128xf32>
    %4 = tpu.matmul %1, %3, %cst {dimension_numbers = #tpu.dot_dimension_numbers<[1], [0], [0], [1], [0, 0, 1, 1], [], []>} : vector<128x1024xbf16>, vector<1024x128xbf16>, vector<128x128xf32> -> vector<128x128xf32>
    %c0_5 = arith.constant 0 : index
    %c0_6 = arith.constant 0 : index
    %5 = vector.load %arg5[%c0_5, %c0_6] : memref<1x128xf32, #tpu.memory_space<vmem>>, vector<1x128xf32>
    %6 = vector.broadcast %5 : vector<1x128xf32> to vector<128x128xf32>
    %7 = arith.mulf %4, %6 : vector<128x128xf32>
    %c0_7 = arith.constant 0 : index
    %c0_8 = arith.constant 0 : index
    %8 = vector.load %arg6[%c0_7, %c0_8] : memref<1x128xf32, #tpu.memory_space<vmem>>, vector<1x128xf32>
    %9 = vector.broadcast %8 : vector<1x128xf32> to vector<128x128xf32>
    %10 = arith.addf %7, %9 : vector<128x128xf32>
    %cst_9 = arith.constant 0.000000e+00 : f32
    %11 = vector.broadcast %cst_9 : f32 to vector<128x128xf32>
    %12 = arith.maximumf %10, %11 : vector<128x128xf32>
    %13 = arith.truncf %12 : vector<128x128xf32> to vector<128x128xbf16>
    %c0_10 = arith.constant 0 : index
    %c0_11 = arith.constant 0 : index
    %c0_12 = arith.constant 0 : index
    %14 = vector.load %arg7[%c0_10, %c0_11, %c0_12] : memref<1x128x128xbf16, #tpu.memory_space<vmem>>, vector<1x128x128xbf16>
    %15 = vector.shape_cast %14 : vector<1x128x128xbf16> to vector<128x128xbf16>
    %16 = vector.shape_cast %13 : vector<128x128xbf16> to vector<1x128x128xbf16>
    tpu.vector_store %arg7[%c0_10, %c0_11, %c0_12], %16 {strides = array<i32>} : memref<1x128x128xbf16, #tpu.memory_space<vmem>>, vector<1x128x128xbf16>,
    return
  }
  func.func @transform_0(%arg0: i32, %arg1: i32, %arg2: i32) -> (i32, i32, i32) {
    %c0_i32 = arith.constant 0 : i32
    %c0_i32_0 = arith.constant 0 : i32
    return %arg0, %arg1, %c0_i32 : i32, i32, i32
  }
  func.func @transform_1(%arg0: i32, %arg1: i32, %arg2: i32) -> (i32, i32, i32) {
    %c0_i32 = arith.constant 0 : i32
    %c0_i32_0 = arith.constant 0 : i32
    return %arg0, %c0_i32, %arg2 : i32, i32, i32
  }
  func.func @transform_2(%arg0: i32, %arg1: i32, %arg2: i32) -> (i32, i32) {
    %c0_i32 = arith.constant 0 : i32
    %c0_i32_0 = arith.constant 0 : i32
    return %c0_i32, %arg2 : i32, i32
  }
  func.func @transform_3(%arg0: i32, %arg1: i32, %arg2: i32) -> (i32, i32) {
    %c0_i32 = arith.constant 0 : i32
    %c0_i32_0 = arith.constant 0 : i32
    return %c0_i32, %arg2 : i32, i32
  }
  func.func @transform_4(%arg0: i32, %arg1: i32, %arg2: i32) -> (i32, i32, i32) {
    %c0_i32 = arith.constant 0 : i32
    return %arg0, %arg1, %arg2 : i32, i32, i32
  }
}

module attributes {stable_mosaic.version = 11 : i64} {
  func.func @_fused_matmul_kernel(%arg0: i32, %arg1: i32, %arg2: i32, %arg3: memref<1x256x512xbf16, #tpu.memory_space<vmem>>, %arg4: memref<1x512x128xbf16, #tpu.memory_space<vmem>>, %arg5: memref<1x128xf32, #tpu.memory_space<vmem>>, %arg6: memref<1x128xf32, #tpu.memory_space<vmem>>, %arg7: memref<1x256x128xbf16, #tpu.memory_space<vmem>>) attributes {dimension_semantics = [#tpu.dimension_semantics<parallel>, #tpu.dimension_semantics<parallel>, #tpu.dimension_semantics<parallel>], iteration_bounds = array<i64: 4, 2, 1>, scalar_prefetch = 0 : i64, scratch_operands = 0 : i64, tpu.core_type = #tpu.core_type<tc>, window_params = [{transform_indices = @transform_0, window_bounds = array<i64: 1, 256, 512>}, {transform_indices = @transform_1, window_bounds = array<i64: 1, 512, 128>}, {transform_indices = @transform_2, window_bounds = array<i64: 1, 128>}, {transform_indices = @transform_3, window_bounds = array<i64: 1, 128>}, {transform_indices = @transform_4, window_bounds = array<i64: 1, 256, 128>}]} {
    %c0 = arith.constant 0 : index
    %c0_0 = arith.constant 0 : index
    %c0_1 = arith.constant 0 : index
    %0 = vector.load %arg3[%c0, %c0_0, %c0_1] : memref<1x256x512xbf16, #tpu.memory_space<vmem>>, vector<1x256x512xbf16>
    %1 = vector.shape_cast %0 : vector<1x256x512xbf16> to vector<256x512xbf16>
    %c0_2 = arith.constant 0 : index
    %c0_3 = arith.constant 0 : index
    %c0_4 = arith.constant 0 : index
    %2 = vector.load %arg4[%c0_2, %c0_3, %c0_4] : memref<1x512x128xbf16, #tpu.memory_space<vmem>>, vector<1x512x128xbf16>
    %3 = vector.shape_cast %2 : vector<1x512x128xbf16> to vector<512x128xbf16>
    %cst = arith.constant dense<0.000000e+00> : vector<256x128xf32>
    %4 = tpu.matmul %1, %3, %cst {dimension_numbers = #tpu.dot_dimension_numbers<[1], [0], [0], [1], [0, 0, 1, 1], [], []>} : vector<256x512xbf16>, vector<512x128xbf16>, vector<256x128xf32> -> vector<256x128xf32>
    %c0_5 = arith.constant 0 : index
    %c0_6 = arith.constant 0 : index
    %5 = vector.load %arg5[%c0_5, %c0_6] : memref<1x128xf32, #tpu.memory_space<vmem>>, vector<1x128xf32>
    %6 = vector.broadcast %5 : vector<1x128xf32> to vector<256x128xf32>
    %7 = arith.mulf %4, %6 : vector<256x128xf32>
    %c0_7 = arith.constant 0 : index
    %c0_8 = arith.constant 0 : index
    %8 = vector.load %arg6[%c0_7, %c0_8] : memref<1x128xf32, #tpu.memory_space<vmem>>, vector<1x128xf32>
    %9 = vector.broadcast %8 : vector<1x128xf32> to vector<256x128xf32>
    %10 = arith.addf %7, %9 : vector<256x128xf32>
    %cst_9 = arith.constant 0.000000e+00 : f32
    %11 = vector.broadcast %cst_9 : f32 to vector<256x128xf32>
    %12 = arith.maximumf %10, %11 : vector<256x128xf32>
    %13 = arith.truncf %12 : vector<256x128xf32> to vector<256x128xbf16>
    %c0_10 = arith.constant 0 : index
    %c0_11 = arith.constant 0 : index
    %c0_12 = arith.constant 0 : index
    %14 = vector.load %arg7[%c0_10, %c0_11, %c0_12] : memref<1x256x128xbf16, #tpu.memory_space<vmem>>, vector<1x256x128xbf16>
    %15 = vector.shape_cast %14 : vector<1x256x128xbf16> to vector<256x128xbf16>
    %16 = vector.shape_cast %13 : vector<256x128xbf16> to vector<1x256x128xbf16>
    tpu.vector_store %arg7[%c0_10, %c0_11, %c0_12], %16 {strides = array<i32>} : memref<1x256x128xbf16, #tpu.memory_space<vmem>>, vector<1x256x128xbf16>,
    return
  }
  func.func @transform_0(%arg0: i32, %arg1: i32, %arg2: i32) -> (i32, i32, i32) {
    %c0_i32 = arith.constant 0 : i32
    %c0_i32_0 = arith.constant 0 : i32
    return %arg0, %arg1, %c0_i32 : i32, i32, i32
  }
  func.func @transform_1(%arg0: i32, %arg1: i32, %arg2: i32) -> (i32, i32, i32) {
    %c0_i32 = arith.constant 0 : i32
    %c0_i32_0 = arith.constant 0 : i32
    return %arg0, %c0_i32, %arg2 : i32, i32, i32
  }
  func.func @transform_2(%arg0: i32, %arg1: i32, %arg2: i32) -> (i32, i32) {
    %c0_i32 = arith.constant 0 : i32
    %c0_i32_0 = arith.constant 0 : i32
    return %c0_i32, %arg2 : i32, i32
  }
  func.func @transform_3(%arg0: i32, %arg1: i32, %arg2: i32) -> (i32, i32) {
    %c0_i32 = arith.constant 0 : i32
    %c0_i32_0 = arith.constant 0 : i32
    return %c0_i32, %arg2 : i32, i32
  }
  func.func @transform_4(%arg0: i32, %arg1: i32, %arg2: i32) -> (i32, i32, i32) {
    %c0_i32 = arith.constant 0 : i32
    return %arg0, %arg1, %arg2 : i32, i32, i32
  }
}

module attributes {stable_mosaic.version = 11 : i64} {
  func.func @_fused_matmul_kernel(%arg0: i32, %arg1: i32, %arg2: i32, %arg3: memref<1x256x256xbf16, #tpu.memory_space<vmem>>, %arg4: memref<1x256x128xbf16, #tpu.memory_space<vmem>>, %arg5: memref<1x128xf32, #tpu.memory_space<vmem>>, %arg6: memref<1x128xf32, #tpu.memory_space<vmem>>, %arg7: memref<1x256x128xf32, #tpu.memory_space<vmem>>) attributes {dimension_semantics = [#tpu.dimension_semantics<parallel>, #tpu.dimension_semantics<parallel>, #tpu.dimension_semantics<parallel>], iteration_bounds = array<i64: 4, 8, 1>, scalar_prefetch = 0 : i64, scratch_operands = 0 : i64, tpu.core_type = #tpu.core_type<tc>, window_params = [{transform_indices = @transform_0, window_bounds = array<i64: 1, 256, 256>}, {transform_indices = @transform_1, window_bounds = array<i64: 1, 256, 128>}, {transform_indices = @transform_2, window_bounds = array<i64: 1, 128>}, {transform_indices = @transform_3, window_bounds = array<i64: 1, 128>}, {transform_indices = @transform_4, window_bounds = array<i64: 1, 256, 128>}]} {
    %c0 = arith.constant 0 : index
    %c0_0 = arith.constant 0 : index
    %c0_1 = arith.constant 0 : index
    %0 = vector.load %arg3[%c0, %c0_0, %c0_1] : memref<1x256x256xbf16, #tpu.memory_space<vmem>>, vector<1x256x256xbf16>
    %1 = vector.shape_cast %0 : vector<1x256x256xbf16> to vector<256x256xbf16>
    %c0_2 = arith.constant 0 : index
    %c0_3 = arith.constant 0 : index
    %c0_4 = arith.constant 0 : index
    %2 = vector.load %arg4[%c0_2, %c0_3, %c0_4] : memref<1x256x128xbf16, #tpu.memory_space<vmem>>, vector<1x256x128xbf16>
    %3 = vector.shape_cast %2 : vector<1x256x128xbf16> to vector<256x128xbf16>
    %cst = arith.constant dense<0.000000e+00> : vector<256x128xf32>
    %4 = tpu.matmul %1, %3, %cst {dimension_numbers = #tpu.dot_dimension_numbers<[1], [0], [0], [1], [0, 0, 1, 1], [], []>} : vector<256x256xbf16>, vector<256x128xbf16>, vector<256x128xf32> -> vector<256x128xf32>
    %c0_5 = arith.constant 0 : index
    %c0_6 = arith.constant 0 : index
    %5 = vector.load %arg5[%c0_5, %c0_6] : memref<1x128xf32, #tpu.memory_space<vmem>>, vector<1x128xf32>
    %6 = vector.broadcast %5 : vector<1x128xf32> to vector<256x128xf32>
    %7 = arith.mulf %4, %6 : vector<256x128xf32>
    %c0_7 = arith.constant 0 : index
    %c0_8 = arith.constant 0 : index
    %8 = vector.load %arg6[%c0_7, %c0_8] : memref<1x128xf32, #tpu.memory_space<vmem>>, vector<1x128xf32>
    %9 = vector.broadcast %8 : vector<1x128xf32> to vector<256x128xf32>
    %10 = arith.addf %7, %9 : vector<256x128xf32>
    %11 = math.tanh %10 : vector<256x128xf32>
    %c0_9 = arith.constant 0 : index
    %c0_10 = arith.constant 0 : index
    %c0_11 = arith.constant 0 : index
    %12 = vector.load %arg7[%c0_9, %c0_10, %c0_11] : memref<1x256x128xf32, #tpu.memory_space<vmem>>, vector<1x256x128xf32>
    %13 = vector.shape_cast %12 : vector<1x256x128xf32> to vector<256x128xf32>
    %14 = vector.shape_cast %11 : vector<256x128xf32> to vector<1x256x128xf32>
    tpu.vector_store %arg7[%c0_9, %c0_10, %c0_11], %14 {strides = array<i32>} : memref<1x256x128xf32, #tpu.memory_space<vmem>>, vector<1x256x128xf32>,
    return
  }
  func.func @transform_0(%arg0: i32, %arg1: i32, %arg2: i32) -> (i32, i32, i32) {
    %c0_i32 = arith.constant 0 : i32
    %c0_i32_0 = arith.constant 0 : i32
    return %arg0, %arg1, %c0_i32 : i32, i32, i32
  }
  func.func @transform_1(%arg0: i32, %arg1: i32, %arg2: i32) -> (i32, i32, i32) {
    %c0_i32 = arith.constant 0 : i32
    %c0_i32_0 = arith.constant 0 : i32
    return %arg0, %c0_i32, %arg2 : i32, i32, i32
  }
  func.func @transform_2(%arg0: i32, %arg1: i32, %arg2: i32) -> (i32, i32) {
    %c0_i32 = arith.constant 0 : i32
    %c0_i32_0 = arith.constant 0 : i32
    return %c0_i32, %arg2 : i32, i32
  }
  func.func @transform_3(%arg0: i32, %arg1: i32, %arg2: i32) -> (i32, i32) {
    %c0_i32 = arith.constant 0 : i32
    %c0_i32_0 = arith.constant 0 : i32
    return %c0_i32, %arg2 : i32, i32
  }
  func.func @transform_4(%arg0: i32, %arg1: i32, %arg2: i32) -> (i32, i32, i32) {
    %c0_i32 = arith.constant 0 : i32
    return %arg0, %arg1, %arg2 : i32, i32, i32
  }
}

</mosaic_0001>

<llo_original>
// kernel: squeeze.65
$region0: #{squeeze.65}
  %s0 = inlined_call_operand.vmem [shape: bf16[1,2,8192], index: 0, kind: input, shape index: {}]
  %s1 = inlined_call_operand.vmem [shape: bf16[2,4,4,512], index: 1, kind: output, shape index: {}]
  $region1: #{squeeze.65} parent=0
    #allocation0 [shape = 'u8[131072]{0}', space=vmem, size = 0x20000, scoped, tag = 'scoped mem for output reshape']
    #allocation1 [shape = 'u8[262144]{0}', space=vmem, size = 0x40000, scoped, tag = 'scoped mem for input reshape']
    %s3 = ssub.s32 4, 1
    %s4 = scalar_lea.vmem %s0, 63
    %s5 = sshrl.u32 %s3, 1
    %s6 = sor.u32 %s3, %s5
    %s7 = sand.u32 %s6, 85
    %s8 = sshrl.u32 %s7, 1
    %s9 = sor.u32 %s7, %s8
    %s10 = sand.u32 51, %s9
    %s11 = sshrl.u32 %s10, 2
    %s12 = sor.u32 %s10, %s11
    %s13 = sand.u32 15, %s12
    %v14 = vld [vmem:[%s4] sm:%s13]
    %v15 = vunpack.c.l.bf16 %v14
    %v16 = vunpack.c.h.bf16 %v14
    %s17 = scalar_lea.vmem [#allocation1], 504
    %18 = vst [vmem:[%s17] sm:%s3] %v15
    %s19 = scalar_lea.vmem %s0, 62
    %s20 = sshrl.u32 %s3, 1
    %s21 = sor.u32 %s3, %s20
    %s22 = sand.u32 %s21, 85
    %s23 = sshrl.u32 %s22, 1
    %s24 = sor.u32 %s22, %s23
    %s25 = sand.u32 51, %s24
    %s26 = sshrl.u32 %s25, 2
    %s27 = sor.u32 %s25, %s26
    %s28 = sand.u32 15, %s27
    %v29 = vld [vmem:[%s19] sm:%s28]
    %v30 = vunpack.c.l.bf16 %v29
    %v31 = vunpack.c.h.bf16 %v29
    %s32 = scalar_lea.vmem [#allocation1], 496
    %33 = vst [vmem:[%s32] sm:%s3] %v30
    %s34 = scalar_lea.vmem %s0, 61
    %s35 = sshrl.u32 %s3, 1
    %s36 = sor.u32 %s3, %s35
    %s37 = sand.u32 %s36, 85
    %s38 = sshrl.u32 %s37, 1
    %s39 = sor.u32 %s37, %s38
    %s40 = sand.u32 51, %s39
    %s41 = sshrl.u32 %s40, 2
    %s42 = sor.u32 %s40, %s41
    %s43 = sand.u32 15, %s42
    %v44 = vld [vmem:[%s34] sm:%s43]
    %v45 = vunpack.c.l.bf16 %v44
    %v46 = vunpack.c.h.bf16 %v44
    %s47 = scalar_lea.vmem [#allocation1], 488
    %48 = vst [vmem:[%s47] sm:%s3] %v45
    %s49 = scalar_lea.vmem %s0, 60
    %s50 = sshrl.u32 %s3, 1
    %s51 = sor.u32 %s3, %s50
    %s52 = sand.u32 %s51, 85
    %s53 = sshrl.u32 %s52, 1
    %s54 = sor.u32 %s52, %s53
    %s55 = sand.u32 51, %s54
    %s56 = sshrl.u32 %s55, 2
    %s57 = sor.u32 %s55, %s56
    %s58 = sand.u32 15, %s57
    %v59 = vld [vmem:[%s49] sm:%s58]
    %v60 = vunpack.c.l.bf16 %v59
    %v61 = vunpack.c.h.bf16 %v59
    %s62 = scalar_lea.vmem [#allocation1], 480
    %63 = vst [vmem:[%s62] sm:%s3] %v60
    %s64 = scalar_lea.vmem %s0, 59
    %s65 = sshrl.u32 %s3, 1
    %s66 = sor.u32 %s3, %s65
    %s67 = sand.u32 %s66, 85
    %s68 = sshrl.u32 %s67, 1
    %s69 = sor.u32 %s67, %s68
    %s70 = sand.u32 51, %s69
    %s71 = sshrl.u32 %s70, 2
    %s72 = sor.u32 %s70, %s71
    %s73 = sand.u32 15, %s72
    %v74 = vld [vmem:[%s64] sm:%s73]
    %v75 = vunpack.c.l.bf16 %v74
    %v76 = vunpack.c.h.bf16 %v74
    %s77 = scalar_lea.vmem [#allocation1], 472
    %78 = vst [vmem:[%s77] sm:%s3] %v75
    %s79 = scalar_lea.vmem %s0, 58
    %s80 = sshrl.u32 %s3, 1
    %s81 = sor.u32 %s3, %s80
    %s82 = sand.u32 %s81, 85
    %s83 = sshrl.u32 %s82, 1
    %s84 = sor.u32 %s82, %s83
    %s85 = sand.u32 51, %s84
    %s86 = sshrl.u32 %s85, 2
    %s87 = sor.u32 %s85, %s86
    %s88 = sand.u32 15, %s87
    %v89 = vld [vmem:[%s79] sm:%s88]
    %v90 = vunpack.c.l.bf16 %v89
    %v91 = vunpack.c.h.bf16 %v89
    %s92 = scalar_lea.vmem [#allocation1], 464
    %93 = vst [vmem:[%s92] sm:%s3] %v90
    %s94 = scalar_lea.vmem %s0, 57
    %s95 = sshrl.u32 %s3, 1
    %s96 = sor.u32 %s3, %s95
    %s97 = sand.u32 %s96, 85
    %s98 = sshrl.u32 %s97, 1
    %s99 = sor.u32 %s97, %s98
    %s100 = sand.u32 51, %s99
    %s101 = sshrl.u32 %s100, 2
    %s102 = sor.u32 %s100, %s101
    %s103 = sand.u32 15, %s102
    %v104 = vld [vmem:[%s94] sm:%s103]
    %v105 = vunpack.c.l.bf16 %v104
    %v106 = vunpack.c.h.bf16 %v104
    %s107 = scalar_lea.vmem [#allocation1], 456
    %108 = vst [vmem:[%s107] sm:%s3] %v105
    %s109 = scalar_lea.vmem %s0, 56
    %s110 = sshrl.u32 %s3, 1
    %s111 = sor.u32 %s3, %s110
    %s112 = sand.u32 %s111, 85
    %s113 = sshrl.u32 %s112, 1
    %s114 = sor.u32 %s112, %s113
    %s115 = sand.u32 51, %s114
    %s116 = sshrl.u32 %s115, 2
    %s117 = sor.u32 %s115, %s116
    %s118 = sand.u32 15, %s117
    %v119 = vld [vmem:[%s109] sm:%s118]
    %v120 = vunpack.c.l.bf16 %v119
    %v121 = vunpack.c.h.bf16 %v119
    %s122 = scalar_lea.vmem [#allocation1], 448
    %123 = vst [vmem:[%s122] sm:%s3] %v120
    %s124 = scalar_lea.vmem %s0, 55
    %s125 = sshrl.u32 %s3, 1
    %s126 = sor.u32 %s3, %s125
    %s127 = sand.u32 %s126, 85
    %s128 = sshrl.u32 %s127, 1
    %s129 = sor.u32 %s127, %s128
    %s130 = sand.u32 51, %s129
    %s131 = sshrl.u32 %s130, 2
    %s132 = sor.u32 %s130, %s131
    %s133 = sand.u32 15, %s132
    %v134 = vld [vmem:[%s124] sm:%s133]
    %v135 = vunpack.c.l.bf16 %v134
    %v136 = vunpack.c.h.bf16 %v134
    %s137 = scalar_lea.vmem [#allocation1], 440
    %138 = vst [vmem:[%s137] sm:%s3] %v135
    %s139 = scalar_lea.vmem %s0, 54
    %s140 = sshrl.u32 %s3, 1
    %s141 = sor.u32 %s3, %s140
    %s142 = sand.u32 %s141, 85
    %s143 = sshrl.u32 %s142, 1
    %s144 = sor.u32 %s142, %s143
    %s145 = sand.u32 51, %s144
    %s146 = sshrl.u32 %s145, 2
    %s147 = sor.u32 %s145, %s146
    %s148 = sand.u32 15, %s147
    %v149 = vld [vmem:[%s139] sm:%s148]
    %v150 = vunpack.c.l.bf16 %v149
    %v151 = vunpack.c.h.bf16 %v149
    %s152 = scalar_lea.vmem [#allocation1], 432
    %153 = vst [vmem:[%s152] sm:%s3] %v150
    %s154 = scalar_lea.vmem %s0, 53
    %s155 = sshrl.u32 %s3, 1
    %s156 = sor.u32 %s3, %s155
    %s157 = sand.u32 %s156, 85
    %s158 = sshrl.u32 %s157, 1
    %s159 = sor.u32 %s157, %s158
    %s160 = sand.u32 51, %s159
    %s161 = sshrl.u32 %s160, 2
    %s162 = sor.u32 %s160, %s161
    %s163 = sand.u32 15, %s162
    %v164 = vld [vmem:[%s154] sm:%s163]
    %v165 = vunpack.c.l.bf16 %v164
    %v166 = vunpack.c.h.bf16 %v164
    %s167 = scalar_lea.vmem [#allocation1], 424
    %168 = vst [vmem:[%s167] sm:%s3] %v165
    %s169 = scalar_lea.vmem %s0, 52
    %s170 = sshrl.u32 %s3, 1
    %s171 = sor.u32 %s3, %s170
    %s172 = sand.u32 %s171, 85
    %s173 = sshrl.u32 %s172, 1
    %s174 = sor.u32 %s172, %s173
    %s175 = sand.u32 51, %s174
    %s176 = sshrl.u32 %s175, 2
    %s177 = sor.u32 %s175, %s176
    %s178 = sand.u32 15, %s177
    %v179 = vld [vmem:[%s169] sm:%s178]
    %v180 = vunpack.c.l.bf16 %v179
    %v181 = vunpack.c.h.bf16 %v179
    %s182 = scalar_lea.vmem [#allocation1], 416
    %183 = vst [vmem:[%s182] sm:%s3] %v180
    %s184 = scalar_lea.vmem %s0, 51
    %s185 = sshrl.u32 %s3, 1
    %s186 = sor.u32 %s3, %s185
    %s187 = sand.u32 %s186, 85
    %s188 = sshrl.u32 %s187, 1
    %s189 = sor.u32 %s187, %s188
    %s190 = sand.u32 51, %s189
    %s191 = sshrl.u32 %s190, 2
    %s192 = sor.u32 %s190, %s191
    %s193 = sand.u32 15, %s192
    %v194 = vld [vmem:[%s184] sm:%s193]
    %v195 = vunpack.c.l.bf16 %v194
    %v196 = vunpack.c.h.bf16 %v194
    %s197 = scalar_lea.vmem [#allocation1], 408
    %198 = vst [vmem:[%s197] sm:%s3] %v195
    %s199 = scalar_lea.vmem %s0, 50
    %s200 = sshrl.u32 %s3, 1
    %s201 = sor.u32 %s3, %s200
    %s202 = sand.u32 %s201, 85
    %s203 = sshrl.u32 %s202, 1
    %s204 = sor.u32 %s202, %s203
    %s205 = sand.u32 51, %s204
    %s206 = sshrl.u32 %s205, 2
    %s207 = sor.u32 %s205, %s206
    %s208 = sand.u32 15, %s207
    %v209 = vld [vmem:[%s199] sm:%s208]
    %v210 = vunpack.c.l.bf16 %v209
    %v211 = vunpack.c.h.bf16 %v209
    %s212 = scalar_lea.vmem [#allocation1], 400
    %213 = vst [vmem:[%s212] sm:%s3] %v210
    %s214 = scalar_lea.vmem %s0, 49
    %s215 = sshrl.u32 %s3, 1
    %s216 = sor.u32 %s3, %s215
    %s217 = sand.u32 %s216, 85
    %s218 = sshrl.u32 %s217, 1
    %s219 = sor.u32 %s217, %s218
    %s220 = sand.u32 51, %s219
    %s221 = sshrl.u32 %s220, 2
    %s222 = sor.u32 %s220, %s221
    %s223 = sand.u32 15, %s222
    %v224 = vld [vmem:[%s214] sm:%s223]
    %v225 = vunpack.c.l.bf16 %v224
    %v226 = vunpack.c.h.bf16 %v224
    %s227 = scalar_lea.vmem [#allocation1], 392
    %228 = vst [vmem:[%s227] sm:%s3] %v225
    %s229 = scalar_lea.vmem %s0, 48
    %s230 = sshrl.u32 %s3, 1
    %s231 = sor.u32 %s3, %s230
    %s232 = sand.u32 %s231, 85
    %s233 = sshrl.u32 %s232, 1
    %s234 = sor.u32 %s232, %s233
    %s235 = sand.u32 51, %s234
    %s236 = sshrl.u32 %s235, 2
    %s237 = sor.u32 %s235, %s236
    %s238 = sand.u32 15, %s237
    %v239 = vld [vmem:[%s229] sm:%s238]
    %v240 = vunpack.c.l.bf16 %v239
    %v241 = vunpack.c.h.bf16 %v239
    %s242 = scalar_lea.vmem [#allocation1], 384
    %243 = vst [vmem:[%s242] sm:%s3] %v240
    %s244 = scalar_lea.vmem %s0, 47
    %s245 = sshrl.u32 %s3, 1
    %s246 = sor.u32 %s3, %s245
    %s247 = sand.u32 %s246, 85
    %s248 = sshrl.u32 %s247, 1
    %s249 = sor.u32 %s247, %s248
    %s250 = sand.u32 51, %s249
    %s251 = sshrl.u32 %s250, 2
    %s252 = sor.u32 %s250, %s251
    %s253 = sand.u32 15, %s252
    %v254 = vld [vmem:[%s244] sm:%s253]
    %v255 = vunpack.c.l.bf16 %v254
    %v256 = vunpack.c.h.bf16 %v254
    %s257 = scalar_lea.vmem [#allocation1], 376
    %258 = vst [vmem:[%s257] sm:%s3] %v255
    %s259 = scalar_lea.vmem %s0, 46
    %s260 = sshrl.u32 %s3, 1
    %s261 = sor.u32 %s3, %s260
    %s262 = sand.u32 %s261, 85
    %s263 = sshrl.u32 %s262, 1
    %s264 = sor.u32 %s262, %s263
    %s265 = sand.u32 51, %s264
    %s266 = sshrl.u32 %s265, 2
    %s267 = sor.u32 %s265, %s266
    %s268 = sand.u32 15, %s267
    %v269 = vld [vmem:[%s259] sm:%s268]
    %v270 = vunpack.c.l.bf16 %v269
    %v271 = vunpack.c.h.bf16 %v269
    %s272 = scalar_lea.vmem [#allocation1], 368
    %273 = vst [vmem:[%s272] sm:%s3] %v270
    %s274 = scalar_lea.vmem %s0, 45
    %s275 = sshrl.u32 %s3, 1
    %s276 = sor.u32 %s3, %s275
    %s277 = sand.u32 %s276, 85
    %s278 = sshrl.u32 %s277, 1
    %s279 = sor.u32 %s277, %s278
    %s280 = sand.u32 51, %s279
    %s281 = sshrl.u32 %s280, 2
    %s282 = sor.u32 %s280, %s281
    %s283 = sand.u32 15, %s282
    %v284 = vld [vmem:[%s274] sm:%s283]
    %v285 = vunpack.c.l.bf16 %v284
    %v286 = vunpack.c.h.bf16 %v284
    %s287 = scalar_lea.vmem [#allocation1], 360
    %288 = vst [vmem:[%s287] sm:%s3] %v285
    %s289 = scalar_lea.vmem %s0, 44
    %s290 = sshrl.u32 %s3, 1
    %s291 = sor.u32 %s3, %s290
    %s292 = sand.u32 %s291, 85
    %s293 = sshrl.u32 %s292, 1
    %s294 = sor.u32 %s292, %s293
    %s295 = sand.u32 51, %s294
    %s296 = sshrl.u32 %s295, 2
    %s297 = sor.u32 %s295, %s296
    %s298 = sand.u32 15, %s297
    %v299 = vld [vmem:[%s289] sm:%s298]
    %v300 = vunpack.c.l.bf16 %v299
    %v301 = vunpack.c.h.bf16 %v299
    %s302 = scalar_lea.vmem [#allocation1], 352
    %303 = vst [vmem:[%s302] sm:%s3] %v300
    %s304 = scalar_lea.vmem %s0, 43
    %s305 = sshrl.u32 %s3, 1
    %s306 = sor.u32 %s3, %s305
    %s307 = sand.u32 %s306, 85
    %s308 = sshrl.u32 %s307, 1
    %s309 = sor.u32 %s307, %s308
    %s310 = sand.u32 51, %s309
    %s311 = sshrl.u32 %s310, 2
    %s312 = sor.u32 %s310, %s311
    %s313 = sand.u32 15, %s312
    %v314 = vld [vmem:[%s304] sm:%s313]
    %v315 = vunpack.c.l.bf16 %v314
    %v316 = vunpack.c.h.bf16 %v314
    %s317 = scalar_lea.vmem [#allocation1], 344
    %318 = vst [vmem:[%s317] sm:%s3] %v315
    %s319 = scalar_lea.vmem %s0, 42
    %s320 = sshrl.u32 %s3, 1
    %s321 = sor.u32 %s3, %s320
    %s322 = sand.u32 %s321, 85
    %s323 = sshrl.u32 %s322, 1
    %s324 = sor.u32 %s322, %s323
    %s325 = sand.u32 51, %s324
    %s326 = sshrl.u32 %s325, 2
    %s327 = sor.u32 %s325, %s326
    %s328 = sand.u32 15, %s327
    %v329 = vld [vmem:[%s319] sm:%s328]
    %v330 = vunpack.c.l.bf16 %v329
    %v331 = vunpack.c.h.bf16 %v329
    %s332 = scalar_lea.vmem [#allocation1], 336
    %333 = vst [vmem:[%s332] sm:%s3] %v330
    %s334 = scalar_lea.vmem %s0, 41
    %s335 = sshrl.u32 %s3, 1
    %s336 = sor.u32 %s3, %s335
    %s337 = sand.u32 %s336, 85
    %s338 = sshrl.u32 %s337, 1
    %s339 = sor.u32 %s337, %s338
    %s340 = sand.u32 51, %s339
    %s341 = sshrl.u32 %s340, 2
    %s342 = sor.u32 %s340, %s341
    %s343 = sand.u32 15, %s342
    %v344 = vld [vmem:[%s334] sm:%s343]
    %v345 = vunpack.c.l.bf16 %v344
    %v346 = vunpack.c.h.bf16 %v344
    %s347 = scalar_lea.vmem [#allocation1], 328
    %348 = vst [vmem:[%s347] sm:%s3] %v345
    %s349 = scalar_lea.vmem %s0, 40
    %s350 = sshrl.u32 %s3, 1
    %s351 = sor.u32 %s3, %s350
    %s352 = sand.u32 %s351, 85
    %s353 = sshrl.u32 %s352, 1
    %s354 = sor.u32 %s352, %s353
    %s355 = sand.u32 51, %s354
    %s356 = sshrl.u32 %s355, 2
    %s357 = sor.u32 %s355, %s356
    %s358 = sand.u32 15, %s357
    %v359 = vld [vmem:[%s349] sm:%s358]
    %v360 = vunpack.c.l.bf16 %v359
    %v361 = vunpack.c.h.bf16 %v359
    %s362 = scalar_lea.vmem [#allocation1], 320
    %363 = vst [vmem:[%s362] sm:%s3] %v360
    %s364 = scalar_lea.vmem %s0, 39
    %s365 = sshrl.u32 %s3, 1
    %s366 = sor.u32 %s3, %s365
    %s367 = sand.u32 %s366, 85
    %s368 = sshrl.u32 %s367, 1
    %s369 = sor.u32 %s367, %s368
    %s370 = sand.u32 51, %s369
    %s371 = sshrl.u32 %s370, 2
    %s372 = sor.u32 %s370, %s371
    %s373 = sand.u32 15, %s372
    %v374 = vld [vmem:[%s364] sm:%s373]
    %v375 = vunpack.c.l.bf16 %v374
    %v376 = vunpack.c.h.bf16 %v374
    %s377 = scalar_lea.vmem [#allocation1], 312
    %378 = vst [vmem:[%s377] sm:%s3] %v375
    %s379 = scalar_lea.vmem %s0, 38
    %s380 = sshrl.u32 %s3, 1
    %s381 = sor.u32 %s3, %s380
    %s382 = sand.u32 %s381, 85
    %s383 = sshrl.u32 %s382, 1
    %s384 = sor.u32 %s382, %s383
    %s385 = sand.u32 51, %s384
    %s386 = sshrl.u32 %s385, 2
    %s387 = sor.u32 %s385, %s386
    %s388 = sand.u32 15, %s387
    %v389 = vld [vmem:[%s379] sm:%s388]
    %v390 = vunpack.c.l.bf16 %v389
    %v391 = vunpack.c.h.bf16 %v389
    %s392 = scalar_lea.vmem [#allocation1], 304
    %393 = vst [vmem:[%s392] sm:%s3] %v390
    %s394 = scalar_lea.vmem %s0, 37
    %s395 = sshrl.u32 %s3, 1
    %s396 = sor.u32 %s3, %s395
    %s397 = sand.u32 %s396, 85
    %s398 = sshrl.u32 %s397, 1
    %s399 = sor.u32 %s397, %s398
    %s400 = sand.u32 51, %s399
    %s401 = sshrl.u32 %s400, 2
    %s402 = sor.u32 %s400, %s401
    %s403 = sand.u32 15, %s402
    %v404 = vld [vmem:[%s394] sm:%s403]
    %v405 = vunpack.c.l.bf16 %v404
    %v406 = vunpack.c.h.bf16 %v404
    %s407 = scalar_lea.vmem [#allocation1], 296
    %408 = vst [vmem:[%s407] sm:%s3] %v405
    %s409 = scalar_lea.vmem %s0, 36
    %s410 = sshrl.u32 %s3, 1
    %s411 = sor.u32 %s3, %s410
    %s412 = sand.u32 %s411, 85
    %s413 = sshrl.u32 %s412, 1
    %s414 = sor.u32 %s412, %s413
    %s415 = sand.u32 51, %s414
    %s416 = sshrl.u32 %s415, 2
    %s417 = sor.u32 %s415, %s416
    %s418 = sand.u32 15, %s417
    %v419 = vld [vmem:[%s409] sm:%s418]
    %v420 = vunpack.c.l.bf16 %v419
    %v421 = vunpack.c.h.bf16 %v419
    %s422 = scalar_lea.vmem [#allocation1], 288
    %423 = vst [vmem:[%s422] sm:%s3] %v420
    %s424 = scalar_lea.vmem %s0, 35
    %s425 = sshrl.u32 %s3, 1
    %s426 = sor.u32 %s3, %s425
    %s427 = sand.u32 %s426, 85
    %s428 = sshrl.u32 %s427, 1
    %s429 = sor.u32 %s427, %s428
    %s430 = sand.u32 51, %s429
    %s431 = sshrl.u32 %s430, 2
    %s432 = sor.u32 %s430, %s431
    %s433 = sand.u32 15, %s432
    %v434 = vld [vmem:[%s424] sm:%s433]
    %v435 = vunpack.c.l.bf16 %v434
    %v436 = vunpack.c.h.bf16 %v434
    %s437 = scalar_lea.vmem [#allocation1], 280
    %438 = vst [vmem:[%s437] sm:%s3] %v435
    %s439 = scalar_lea.vmem %s0, 34
    %s440 = sshrl.u32 %s3, 1
    %s441 = sor.u32 %s3, %s440
    %s442 = sand.u32 %s441, 85
    %s443 = sshrl.u32 %s442, 1
    %s444 = sor.u32 %s442, %s443
    %s445 = sand.u32 51, %s444
    %s446 = sshrl.u32 %s445, 2
    %s447 = sor.u32 %s445, %s446
    %s448 = sand.u32 15, %s447
    %v449 = vld [vmem:[%s439] sm:%s448]
    %v450 = vunpack.c.l.bf16 %v449
    %v451 = vunpack.c.h.bf16 %v449
    %s452 = scalar_lea.vmem [#allocation1], 272
    %453 = vst [vmem:[%s452] sm:%s3] %v450
    %s454 = scalar_lea.vmem %s0, 33
    %s455 = sshrl.u32 %s3, 1
    %s456 = sor.u32 %s3, %s455
    %s457 = sand.u32 %s456, 85
    %s458 = sshrl.u32 %s457, 1
    %s459 = sor.u32 %s457, %s458
    %s460 = sand.u32 51, %s459
    %s461 = sshrl.u32 %s460, 2
    %s462 = sor.u32 %s460, %s461
    %s463 = sand.u32 15, %s462
    %v464 = vld [vmem:[%s454] sm:%s463]
    %v465 = vunpack.c.l.bf16 %v464
    %v466 = vunpack.c.h.bf16 %v464
    %s467 = scalar_lea.vmem [#allocation1], 264
    %468 = vst [vmem:[%s467] sm:%s3] %v465
    %s469 = scalar_lea.vmem %s0, 32
    %s470 = sshrl.u32 %s3, 1
    %s471 = sor.u32 %s3, %s470
    %s472 = sand.u32 %s471, 85
    %s473 = sshrl.u32 %s472, 1
    %s474 = sor.u32 %s472, %s473
    %s475 = sand.u32 51, %s474
    %s476 = sshrl.u32 %s475, 2
    %s477 = sor.u32 %s475, %s476
    %s478 = sand.u32 15, %s477
    %v479 = vld [vmem:[%s469] sm:%s478]
    %v480 = vunpack.c.l.bf16 %v479
    %v481 = vunpack.c.h.bf16 %v479
    %s482 = scalar_lea.vmem [#allocation1], 256
    %483 = vst [vmem:[%s482] sm:%s3] %v480
    %s484 = scalar_lea.vmem %s0, 31
    %s485 = sshrl.u32 %s3, 1
    %s486 = sor.u32 %s3, %s485
    %s487 = sand.u32 %s486, 85
    %s488 = sshrl.u32 %s487, 1
    %s489 = sor.u32 %s487, %s488
    %s490 = sand.u32 51, %s489
    %s491 = sshrl.u32 %s490, 2
    %s492 = sor.u32 %s490, %s491
    %s493 = sand.u32 15, %s492
    %v494 = vld [vmem:[%s484] sm:%s493]
    %v495 = vunpack.c.l.bf16 %v494
    %v496 = vunpack.c.h.bf16 %v494
    %s497 = scalar_lea.vmem [#allocation1], 248
    %498 = vst [vmem:[%s497] sm:%s3] %v495
    %s499 = scalar_lea.vmem %s0, 30
    %s500 = sshrl.u32 %s3, 1
    %s501 = sor.u32 %s3, %s500
    %s502 = sand.u32 %s501, 85
    %s503 = sshrl.u32 %s502, 1
    %s504 = sor.u32 %s502, %s503
    %s505 = sand.u32 51, %s504
    %s506 = sshrl.u32 %s505, 2
    %s507 = sor.u32 %s505, %s506
    %s508 = sand.u32 15, %s507
    %v509 = vld [vmem:[%s499] sm:%s508]
    %v510 = vunpack.c.l.bf16 %v509
    %v511 = vunpack.c.h.bf16 %v509
    %s512 = scalar_lea.vmem [#allocation1], 240
    %513 = vst [vmem:[%s512] sm:%s3] %v510
    %s514 = scalar_lea.vmem %s0, 29
    %s515 = sshrl.u32 %s3, 1
    %s516 = sor.u32 %s3, %s515
    %s517 = sand.u32 %s516, 85
    %s518 = sshrl.u32 %s517, 1
    %s519 = sor.u32 %s517, %s518
    %s520 = sand.u32 51, %s519
    %s521 = sshrl.u32 %s520, 2
    %s522 = sor.u32 %s520, %s521
    %s523 = sand.u32 15, %s522
    %v524 = vld [vmem:[%s514] sm:%s523]
    %v525 = vunpack.c.l.bf16 %v524
    %v526 = vunpack.c.h.bf16 %v524
    %s527 = scalar_lea.vmem [#allocation1], 232
    %528 = vst [vmem:[%s527] sm:%s3] %v525
    %s529 = scalar_lea.vmem %s0, 28
    %s530 = sshrl.u32 %s3, 1
    %s531 = sor.u32 %s3, %s530
    %s532 = sand.u32 %s531, 85
    %s533 = sshrl.u32 %s532, 1
    %s534 = sor.u32 %s532, %s533
    %s535 = sand.u32 51, %s534
    %s536 = sshrl.u32 %s535, 2
    %s537 = sor.u32 %s535, %s536
    %s538 = sand.u32 15, %s537
    %v539 = vld [vmem:[%s529] sm:%s538]
    %v540 = vunpack.c.l.bf16 %v539
    %v541 = vunpack.c.h.bf16 %v539
    %s542 = scalar_lea.vmem [#allocation1], 224
    %543 = vst [vmem:[%s542] sm:%s3] %v540
    %s544 = scalar_lea.vmem %s0, 27
    %s545 = sshrl.u32 %s3, 1
    %s546 = sor.u32 %s3, %s545
    %s547 = sand.u32 %s546, 85
    %s548 = sshrl.u32 %s547, 1
    %s549 = sor.u32 %s547, %s548
    %s550 = sand.u32 51, %s549
    %s551 = sshrl.u32 %s550, 2
    %s552 = sor.u32 %s550, %s551
    %s553 = sand.u32 15, %s552
    %v554 = vld [vmem:[%s544] sm:%s553]
    %v555 = vunpack.c.l.bf16 %v554
    %v556 = vunpack.c.h.bf16 %v554
    %s557 = scalar_lea.vmem [#allocation1], 216
    %558 = vst [vmem:[%s557] sm:%s3] %v555
    %s559 = scalar_lea.vmem %s0, 26
    %s560 = sshrl.u32 %s3, 1
    %s561 = sor.u32 %s3, %s560
    %s562 = sand.u32 %s561, 85
    %s563 = sshrl.u32 %s562, 1
    %s564 = sor.u32 %s562, %s563
    %s565 = sand.u32 51, %s564
    %s566 = sshrl.u32 %s565, 2
    %s567 = sor.u32 %s565, %s566
    %s568 = sand.u32 15, %s567
    %v569 = vld [vmem:[%s559] sm:%s568]
    %v570 = vunpack.c.l.bf16 %v569
    %v571 = vunpack.c.h.bf16 %v569
    %s572 = scalar_lea.vmem [#allocation1], 208
    %573 = vst [vmem:[%s572] sm:%s3] %v570
    %s574 = scalar_lea.vmem %s0, 25
    %s575 = sshrl.u32 %s3, 1
    %s576 = sor.u32 %s3, %s575
    %s577 = sand.u32 %s576, 85
    %s578 = sshrl.u32 %s577, 1
    %s579 = sor.u32 %s577, %s578
    %s580 = sand.u32 51, %s579
    %s581 = sshrl.u32 %s580, 2
    %s582 = sor.u32 %s580, %s581
    %s583 = sand.u32 15, %s582
    %v584 = vld [vmem:[%s574] sm:%s583]
    %v585 = vunpack.c.l.bf16 %v584
    %v586 = vunpack.c.h.bf16 %v584
    %s587 = scalar_lea.vmem [#allocation1], 200
    %588 = vst [vmem:[%s587] sm:%s3] %v585
    %s589 = scalar_lea.vmem %s0, 24
    %s590 = sshrl.u32 %s3, 1
    %s591 = sor.u32 %s3, %s590
    %s592 = sand.u32 %s591, 85
    %s593 = sshrl.u32 %s592, 1
    %s594 = sor.u32 %s592, %s593
    %s595 = sand.u32 51, %s594
    %s596 = sshrl.u32 %s595, 2
    %s597 = sor.u32 %s595, %s596
    %s598 = sand.u32 15, %s597
    %v599 = vld [vmem:[%s589] sm:%s598]
    %v600 = vunpack.c.l.bf16 %v599
    %v601 = vunpack.c.h.bf16 %v599
    %s602 = scalar_lea.vmem [#allocation1], 192
    %603 = vst [vmem:[%s602] sm:%s3] %v600
    %s604 = scalar_lea.vmem %s0, 23
    %s605 = sshrl.u32 %s3, 1
    %s606 = sor.u32 %s3, %s605
    %s607 = sand.u32 %s606, 85
    %s608 = sshrl.u32 %s607, 1
    %s609 = sor.u32 %s607, %s608
    %s610 = sand.u32 51, %s609
    %s611 = sshrl.u32 %s610, 2
    %s612 = sor.u32 %s610, %s611
    %s613 = sand.u32 15, %s612
    %v614 = vld [vmem:[%s604] sm:%s613]
    %v615 = vunpack.c.l.bf16 %v614
    %v616 = vunpack.c.h.bf16 %v614
    %s617 = scalar_lea.vmem [#allocation1], 184
    %618 = vst [vmem:[%s617] sm:%s3] %v615
    %s619 = scalar_lea.vmem %s0, 22
    %s620 = sshrl.u32 %s3, 1
    %s621 = sor.u32 %s3, %s620
    %s622 = sand.u32 %s621, 85
    %s623 = sshrl.u32 %s622, 1
    %s624 = sor.u32 %s622, %s623
    %s625 = sand.u32 51, %s624
    %s626 = sshrl.u32 %s625, 2
    %s627 = sor.u32 %s625, %s626
    %s628 = sand.u32 15, %s627
    %v629 = vld [vmem:[%s619] sm:%s628]
    %v630 = vunpack.c.l.bf16 %v629
    %v631 = vunpack.c.h.bf16 %v629
    %s632 = scalar_lea.vmem [#allocation1], 176
    %633 = vst [vmem:[%s632] sm:%s3] %v630
    %s634 = scalar_lea.vmem %s0, 21
    %s635 = sshrl.u32 %s3, 1
    %s636 = sor.u32 %s3, %s635
    %s637 = sand.u32 %s636, 85
    %s638 = sshrl.u32 %s637, 1
    %s639 = sor.u32 %s637, %s638
    %s640 = sand.u32 51, %s639
    %s641 = sshrl.u32 %s640, 2
    %s642 = sor.u32 %s640, %s641
    %s643 = sand.u32 15, %s642
    %v644 = vld [vmem:[%s634] sm:%s643]
    %v645 = vunpack.c.l.bf16 %v644
    %v646 = vunpack.c.h.bf16 %v644
    %s647 = scalar_lea.vmem [#allocation1], 168
    %648 = vst [vmem:[%s647] sm:%s3] %v645
    %s649 = scalar_lea.vmem %s0, 20
    %s650 = sshrl.u32 %s3, 1
    %s651 = sor.u32 %s3, %s650
    %s652 = sand.u32 %s651, 85
    %s653 = sshrl.u32 %s652, 1
    %s654 = sor.u32 %s652, %s653
    %s655 = sand.u32 51, %s654
    %s656 = sshrl.u32 %s655, 2
    %s657 = sor.u32 %s655, %s656
    %s658 = sand.u32 15, %s657
    %v659 = vld [vmem:[%s649] sm:%s658]
    %v660 = vunpack.c.l.bf16 %v659
    %v661 = vunpack.c.h.bf16 %v659
    %s662 = scalar_lea.vmem [#allocation1], 160
    %663 = vst [vmem:[%s662] sm:%s3] %v660
    %s664 = scalar_lea.vmem %s0, 19
    %s665 = sshrl.u32 %s3, 1
    %s666 = sor.u32 %s3, %s665
    %s667 = sand.u32 %s666, 85
    %s668 = sshrl.u32 %s667, 1
    %s669 = sor.u32 %s667, %s668
    %s670 = sand.u32 51, %s669
    %s671 = sshrl.u32 %s670, 2
    %s672 = sor.u32 %s670, %s671
    %s673 = sand.u32 15, %s672
    %v674 = vld [vmem:[%s664] sm:%s673]
    %v675 = vunpack.c.l.bf16 %v674
    %v676 = vunpack.c.h.bf16 %v674
    %s677 = scalar_lea.vmem [#allocation1], 152
    %678 = vst [vmem:[%s677] sm:%s3] %v675
    %s679 = scalar_lea.vmem %s0, 18
    %s680 = sshrl.u32 %s3, 1
    %s681 = sor.u32 %s3, %s680
    %s682 = sand.u32 %s681, 85
    %s683 = sshrl.u32 %s682, 1
    %s684 = sor.u32 %s682, %s683
    %s685 = sand.u32 51, %s684
    %s686 = sshrl.u32 %s685, 2
    %s687 = sor.u32 %s685, %s686
    %s688 = sand.u32 15, %s687
    %v689 = vld [vmem:[%s679] sm:%s688]
    %v690 = vunpack.c.l.bf16 %v689
    %v691 = vunpack.c.h.bf16 %v689
    %s692 = scalar_lea.vmem [#allocation1], 144
    %693 = vst [vmem:[%s692] sm:%s3] %v690
    %s694 = scalar_lea.vmem %s0, 17
    %s695 = sshrl.u32 %s3, 1
    %s696 = sor.u32 %s3, %s695
    %s697 = sand.u32 %s696, 85
    %s698 = sshrl.u32 %s697, 1
    %s699 = sor.u32 %s697, %s698
    %s700 = sand.u32 51, %s699
    %s701 = sshrl.u32 %s700, 2
    %s702 = sor.u32 %s700, %s701
    %s703 = sand.u32 15, %s702
    %v704 = vld [vmem:[%s694] sm:%s703]
    %v705 = vunpack.c.l.bf16 %v704
    %v706 = vunpack.c.h.bf16 %v704
    %s707 = scalar_lea.vmem [#allocation1], 136
    %708 = vst [vmem:[%s707] sm:%s3] %v705
    %s709 = scalar_lea.vmem %s0, 16
    %s710 = sshrl.u32 %s3, 1
    %s711 = sor.u32 %s3, %s710
    %s712 = sand.u32 %s711, 85
    %s713 = sshrl.u32 %s712, 1
    %s714 = sor.u32 %s712, %s713
    %s715 = sand.u32 51, %s714
    %s716 = sshrl.u32 %s715, 2
    %s717 = sor.u32 %s715, %s716
    %s718 = sand.u32 15, %s717
    %v719 = vld [vmem:[%s709] sm:%s718]
    %v720 = vunpack.c.l.bf16 %v719
    %v721 = vunpack.c.h.bf16 %v719
    %s722 = scalar_lea.vmem [#allocation1], 128
    %723 = vst [vmem:[%s722] sm:%s3] %v720
    %s724 = scalar_lea.vmem %s0, 15
    %s725 = sshrl.u32 %s3, 1
    %s726 = sor.u32 %s3, %s725
    %s727 = sand.u32 %s726, 85
    %s728 = sshrl.u32 %s727, 1
    %s729 = sor.u32 %s727, %s728
    %s730 = sand.u32 51, %s729
    %s731 = sshrl.u32 %s730, 2
    %s732 = sor.u32 %s730, %s731
    %s733 = sand.u32 15, %s732
    %v734 = vld [vmem:[%s724] sm:%s733]
    %v735 = vunpack.c.l.bf16 %v734
    %v736 = vunpack.c.h.bf16 %v734
    %s737 = scalar_lea.vmem [#allocation1], 120
    %738 = vst [vmem:[%s737] sm:%s3] %v735
    %s739 = scalar_lea.vmem %s0, 14
    %s740 = sshrl.u32 %s3, 1
    %s741 = sor.u32 %s3, %s740
    %s742 = sand.u32 %s741, 85
    %s743 = sshrl.u32 %s742, 1
    %s744 = sor.u32 %s742, %s743
    %s745 = sand.u32 51, %s744
    %s746 = sshrl.u32 %s745, 2
    %s747 = sor.u32 %s745, %s746
    %s748 = sand.u32 15, %s747
    %v749 = vld [vmem:[%s739] sm:%s748]
    %v750 = vunpack.c.l.bf16 %v749
    %v751 = vunpack.c.h.bf16 %v749
    %s752 = scalar_lea.vmem [#allocation1], 112
    %753 = vst [vmem:[%s752] sm:%s3] %v750
    %s754 = scalar_lea.vmem %s0, 13
    %s755 = sshrl.u32 %s3, 1
    %s756 = sor.u32 %s3, %s755
    %s757 = sand.u32 %s756, 85
    %s758 = sshrl.u32 %s757, 1
    %s759 = sor.u32 %s757, %s758
    %s760 = sand.u32 51, %s759
    %s761 = sshrl.u32 %s760, 2
    %s762 = sor.u32 %s760, %s761
    %s763 = sand.u32 15, %s762
    %v764 = vld [vmem:[%s754] sm:%s763]
    %v765 = vunpack.c.l.bf16 %v764
    %v766 = vunpack.c.h.bf16 %v764
    %s767 = scalar_lea.vmem [#allocation1], 104
    %768 = vst [vmem:[%s767] sm:%s3] %v765
    %s769 = scalar_lea.vmem %s0, 12
    %s770 = sshrl.u32 %s3, 1
    %s771 = sor.u32 %s3, %s770
    %s772 = sand.u32 %s771, 85
    %s773 = sshrl.u32 %s772, 1
    %s774 = sor.u32 %s772, %s773
    %s775 = sand.u32 51, %s774
    %s776 = sshrl.u32 %s775, 2
    %s777 = sor.u32 %s775, %s776
    %s778 = sand.u32 15, %s777
    %v779 = vld [vmem:[%s769] sm:%s778]
    %v780 = vunpack.c.l.bf16 %v779
    %v781 = vunpack.c.h.bf16 %v779
    %s782 = scalar_lea.vmem [#allocation1], 96
    %783 = vst [vmem:[%s782] sm:%s3] %v780
    %s784 = scalar_lea.vmem %s0, 11
    %s785 = sshrl.u32 %s3, 1
    %s786 = sor.u32 %s3, %s785
    %s787 = sand.u32 %s786, 85
    %s788 = sshrl.u32 %s787, 1
    %s789 = sor.u32 %s787, %s788
    %s790 = sand.u32 51, %s789
    %s791 = sshrl.u32 %s790, 2
    %s792 = sor.u32 %s790, %s791
    %s793 = sand.u32 15, %s792
    %v794 = vld [vmem:[%s784] sm:%s793]
    %v795 = vunpack.c.l.bf16 %v794
    %v796 = vunpack.c.h.bf16 %v794
    %s797 = scalar_lea.vmem [#allocation1], 88
    %798 = vst [vmem:[%s797] sm:%s3] %v795
    %s799 = scalar_lea.vmem %s0, 10
    %s800 = sshrl.u32 %s3, 1
    %s801 = sor.u32 %s3, %s800
    %s802 = sand.u32 %s801, 85
    %s803 = sshrl.u32 %s802, 1
    %s804 = sor.u32 %s802, %s803
    %s805 = sand.u32 51, %s804
    %s806 = sshrl.u32 %s805, 2
    %s807 = sor.u32 %s805, %s806
    %s808 = sand.u32 15, %s807
    %v809 = vld [vmem:[%s799] sm:%s808]
    %v810 = vunpack.c.l.bf16 %v809
    %v811 = vunpack.c.h.bf16 %v809
    %s812 = scalar_lea.vmem [#allocation1], 80
    %813 = vst [vmem:[%s812] sm:%s3] %v810
    %s814 = scalar_lea.vmem %s0, 9
    %s815 = sshrl.u32 %s3, 1
    %s816 = sor.u32 %s3, %s815
    %s817 = sand.u32 %s816, 85
    %s818 = sshrl.u32 %s817, 1
    %s819 = sor.u32 %s817, %s818
    %s820 = sand.u32 51, %s819
    %s821 = sshrl.u32 %s820, 2
    %s822 = sor.u32 %s820, %s821
    %s823 = sand.u32 15, %s822
    %v824 = vld [vmem:[%s814] sm:%s823]
    %v825 = vunpack.c.l.bf16 %v824
    %v826 = vunpack.c.h.bf16 %v824
    %s827 = scalar_lea.vmem [#allocation1], 72
    %828 = vst [vmem:[%s827] sm:%s3] %v825
    %s829 = scalar_lea.vmem %s0, 8
    %s830 = sshrl.u32 %s3, 1
    %s831 = sor.u32 %s3, %s830
    %s832 = sand.u32 %s831, 85
    %s833 = sshrl.u32 %s832, 1
    %s834 = sor.u32 %s832, %s833
    %s835 = sand.u32 51, %s834
    %s836 = sshrl.u32 %s835, 2
    %s837 = sor.u32 %s835, %s836
    %s838 = sand.u32 15, %s837
    %v839 = vld [vmem:[%s829] sm:%s838]
    %v840 = vunpack.c.l.bf16 %v839
    %v841 = vunpack.c.h.bf16 %v839
    %s842 = scalar_lea.vmem [#allocation1], 64
    %843 = vst [vmem:[%s842] sm:%s3] %v840
    %s844 = scalar_lea.vmem %s0, 7
    %s845 = sshrl.u32 %s3, 1
    %s846 = sor.u32 %s3, %s845
    %s847 = sand.u32 %s846, 85
    %s848 = sshrl.u32 %s847, 1
    %s849 = sor.u32 %s847, %s848
    %s850 = sand.u32 51, %s849
    %s851 = sshrl.u32 %s850, 2
    %s852 = sor.u32 %s850, %s851
    %s853 = sand.u32 15, %s852
    %v854 = vld [vmem:[%s844] sm:%s853]
    %v855 = vunpack.c.l.bf16 %v854
    %v856 = vunpack.c.h.bf16 %v854
    %s857 = scalar_lea.vmem [#allocation1], 56
    %858 = vst [vmem:[%s857] sm:%s3] %v855
    %s859 = scalar_lea.vmem %s0, 6
    %s860 = sshrl.u32 %s3, 1
    %s861 = sor.u32 %s3, %s860
    %s862 = sand.u32 %s861, 85
    %s863 = sshrl.u32 %s862, 1
    %s864 = sor.u32 %s862, %s863
    %s865 = sand.u32 51, %s864
    %s866 = sshrl.u32 %s865, 2
    %s867 = sor.u32 %s865, %s866
    %s868 = sand.u32 15, %s867
    %v869 = vld [vmem:[%s859] sm:%s868]
    %v870 = vunpack.c.l.bf16 %v869
    %v871 = vunpack.c.h.bf16 %v869
    %s872 = scalar_lea.vmem [#allocation1], 48
    %873 = vst [vmem:[%s872] sm:%s3] %v870
    %s874 = scalar_lea.vmem %s0, 5
    %s875 = sshrl.u32 %s3, 1
    %s876 = sor.u32 %s3, %s875
    %s877 = sand.u32 %s876, 85
    %s878 = sshrl.u32 %s877, 1
    %s879 = sor.u32 %s877, %s878
    %s880 = sand.u32 51, %s879
    %s881 = sshrl.u32 %s880, 2
    %s882 = sor.u32 %s880, %s881
    %s883 = sand.u32 15, %s882
    %v884 = vld [vmem:[%s874] sm:%s883]
    %v885 = vunpack.c.l.bf16 %v884
    %v886 = vunpack.c.h.bf16 %v884
    %s887 = scalar_lea.vmem [#allocation1], 40
    %888 = vst [vmem:[%s887] sm:%s3] %v885
    %s889 = scalar_lea.vmem %s0, 4
    %s890 = sshrl.u32 %s3, 1
    %s891 = sor.u32 %s3, %s890
    %s892 = sand.u32 %s891, 85
    %s893 = sshrl.u32 %s892, 1
    %s894 = sor.u32 %s892, %s893
    %s895 = sand.u32 51, %s894
    %s896 = sshrl.u32 %s895, 2
    %s897 = sor.u32 %s895, %s896
    %s898 = sand.u32 15, %s897
    %v899 = vld [vmem:[%s889] sm:%s898]
    %v900 = vunpack.c.l.bf16 %v899
    %v901 = vunpack.c.h.bf16 %v899
    %s902 = scalar_lea.vmem [#allocation1], 32
    %903 = vst [vmem:[%s902] sm:%s3] %v900
    %s904 = scalar_lea.vmem %s0, 3
    %s905 = sshrl.u32 %s3, 1
    %s906 = sor.u32 %s3, %s905
    %s907 = sand.u32 %s906, 85
    %s908 = sshrl.u32 %s907, 1
    %s909 = sor.u32 %s907, %s908
    %s910 = sand.u32 51, %s909
    %s911 = sshrl.u32 %s910, 2
    %s912 = sor.u32 %s910, %s911
    %s913 = sand.u32 15, %s912
    %v914 = vld [vmem:[%s904] sm:%s913]
    %v915 = vunpack.c.l.bf16 %v914
    %v916 = vunpack.c.h.bf16 %v914
    %s917 = scalar_lea.vmem [#allocation1], 24
    %918 = vst [vmem:[%s917] sm:%s3] %v915
    %s919 = scalar_lea.vmem %s0, 2
    %s920 = sshrl.u32 %s3, 1
    %s921 = sor.u32 %s3, %s920
    %s922 = sand.u32 %s921, 85
    %s923 = sshrl.u32 %s922, 1
    %s924 = sor.u32 %s922, %s923
    %s925 = sand.u32 51, %s924
    %s926 = sshrl.u32 %s925, 2
    %s927 = sor.u32 %s925, %s926
    %s928 = sand.u32 15, %s927
    %v929 = vld [vmem:[%s919] sm:%s928]
    %v930 = vunpack.c.l.bf16 %v929
    %v931 = vunpack.c.h.bf16 %v929
    %s932 = scalar_lea.vmem [#allocation1], 16
    %933 = vst [vmem:[%s932] sm:%s3] %v930
    %s934 = scalar_lea.vmem %s0, 1
    %s935 = sshrl.u32 %s3, 1
    %s936 = sor.u32 %s3, %s935
    %s937 = sand.u32 %s936, 85
    %s938 = sshrl.u32 %s937, 1
    %s939 = sor.u32 %s937, %s938
    %s940 = sand.u32 51, %s939
    %s941 = sshrl.u32 %s940, 2
    %s942 = sor.u32 %s940, %s941
    %s943 = sand.u32 15, %s942
    %v944 = vld [vmem:[%s934] sm:%s943]
    %v945 = vunpack.c.l.bf16 %v944
    %v946 = vunpack.c.h.bf16 %v944
    %s947 = scalar_lea.vmem [#allocation1], 8
    %948 = vst [vmem:[%s947] sm:%s3] %v945
    %s949 = sshrl.u32 %s3, 1
    %s950 = sor.u32 %s3, %s949
    %s951 = sand.u32 %s950, 85
    %s952 = sshrl.u32 %s951, 1
    %s953 = sor.u32 %s951, %s952
    %s954 = sand.u32 51, %s953
    %s955 = sshrl.u32 %s954, 2
    %s956 = sor.u32 %s954, %s955
    %s957 = sand.u32 15, %s956
    %v958 = vld [vmem:[%s0] sm:%s957]
    %v959 = vunpack.c.l.bf16 %v958
    %v960 = vunpack.c.h.bf16 %v958
    %961 = vst [vmem:[#allocation1] sm:%s3] %v959
    %v962 = vld [vmem:[#allocation1] sm:$0x3]
    %963 = vst [vmem:[#allocation0] sm:$0x1] %v962
    %s964 = scalar_lea.vmem [#allocation0], 127
    %965 = vst [vmem:[%s964] sm:$0x2] %v962
    %s966 = scalar_lea.vmem [#allocation1], 8
    %v967 = vld [vmem:[%s966] sm:$0x3]
    %s968 = scalar_lea.vmem [#allocation0], 8
    %969 = vst [vmem:[%s968] sm:$0x1] %v967
    %s970 = scalar_lea.vmem [#allocation0], 135
    %971 = vst [vmem:[%s970] sm:$0x2] %v967
    %s972 = scalar_lea.vmem [#allocation1], 16
    %v973 = vld [vmem:[%s972] sm:$0x3]
    %s974 = scalar_lea.vmem [#allocation0], 16
    %975 = vst [vmem:[%s974] sm:$0x1] %v973
    %s976 = scalar_lea.vmem [#allocation0], 143
    %977 = vst [vmem:[%s976] sm:$0x2] %v973
    %s978 = scalar_lea.vmem [#allocation1], 24
    %v979 = vld [vmem:[%s978] sm:$0x3]
    %s980 = scalar_lea.vmem [#allocation0], 24
    %981 = vst [vmem:[%s980] sm:$0x1] %v979
    %s982 = scalar_lea.vmem [#allocation0], 151
    %983 = vst [vmem:[%s982] sm:$0x2] %v979
    %s984 = scalar_lea.vmem [#allocation1], 32
    %v985 = vld [vmem:[%s984] sm:$0x3]
    %s986 = scalar_lea.vmem [#allocation0], 1
    %987 = vst [vmem:[%s986] sm:$0x1] %v985
    %s988 = scalar_lea.vmem [#allocation0], 128
    %989 = vst [vmem:[%s988] sm:$0x2] %v985
    %s990 = scalar_lea.vmem [#allocation1], 40
    %v991 = vld [vmem:[%s990] sm:$0x3]
    %s992 = scalar_lea.vmem [#allocation0], 9
    %993 = vst [vmem:[%s992] sm:$0x1] %v991
    %s994 = scalar_lea.vmem [#allocation0], 136
    %995 = vst [vmem:[%s994] sm:$0x2] %v991
    %s996 = scalar_lea.vmem [#allocation1], 48
    %v997 = vld [vmem:[%s996] sm:$0x3]
    %s998 = scalar_lea.vmem [#allocation0], 17
    %999 = vst [vmem:[%s998] sm:$0x1] %v997
    %s1000 = scalar_lea.vmem [#allocation0], 144
    %1001 = vst [vmem:[%s1000] sm:$0x2] %v997
    %s1002 = scalar_lea.vmem [#allocation1], 56
    %v1003 = vld [vmem:[%s1002] sm:$0x3]
    %s1004 = scalar_lea.vmem [#allocation0], 25
    %1005 = vst [vmem:[%s1004] sm:$0x1] %v1003
    %s1006 = scalar_lea.vmem [#allocation0], 152
    %1007 = vst [vmem:[%s1006] sm:$0x2] %v1003
    %s1008 = scalar_lea.vmem [#allocation1], 64
    %v1009 = vld [vmem:[%s1008] sm:$0x3]
    %s1010 = scalar_lea.vmem [#allocation0], 2
    %1011 = vst [vmem:[%s1010] sm:$0x1] %v1009
    %s1012 = scalar_lea.vmem [#allocation0], 129
    %1013 = vst [vmem:[%s1012] sm:$0x2] %v1009
    %s1014 = scalar_lea.vmem [#allocation1], 72
    %v1015 = vld [vmem:[%s1014] sm:$0x3]
    %s1016 = scalar_lea.vmem [#allocation0], 10
    %1017 = vst [vmem:[%s1016] sm:$0x1] %v1015
    %s1018 = scalar_lea.vmem [#allocation0], 137
    %1019 = vst [vmem:[%s1018] sm:$0x2] %v1015
    %s1020 = scalar_lea.vmem [#allocation1], 80
    %v1021 = vld [vmem:[%s1020] sm:$0x3]
    %s1022 = scalar_lea.vmem [#allocation0], 18
    %1023 = vst [vmem:[%s1022] sm:$0x1] %v1021
    %s1024 = scalar_lea.vmem [#allocation0], 145
    %1025 = vst [vmem:[%s1024] sm:$0x2] %v1021
    %s1026 = scalar_lea.vmem [#allocation1], 88
    %v1027 = vld [vmem:[%s1026] sm:$0x3]
    %s1028 = scalar_lea.vmem [#allocation0], 26
    %1029 = vst [vmem:[%s1028] sm:$0x1] %v1027
    %s1030 = scalar_lea.vmem [#allocation0], 153
    %1031 = vst [vmem:[%s1030] sm:$0x2] %v1027
    %s1032 = scalar_lea.vmem [#allocation1], 96
    %v1033 = vld [vmem:[%s1032] sm:$0x3]
    %s1034 = scalar_lea.vmem [#allocation0], 3
    %1035 = vst [vmem:[%s1034] sm:$0x1] %v1033
    %s1036 = scalar_lea.vmem [#allocation0], 130
    %1037 = vst [vmem:[%s1036] sm:$0x2] %v1033
    %s1038 = scalar_lea.vmem [#allocation1], 104
    %v1039 = vld [vmem:[%s1038] sm:$0x3]
    %s1040 = scalar_lea.vmem [#allocation0], 11
    %1041 = vst [vmem:[%s1040] sm:$0x1] %v1039
    %s1042 = scalar_lea.vmem [#allocation0], 138
    %1043 = vst [vmem:[%s1042] sm:$0x2] %v1039
    %s1044 = scalar_lea.vmem [#allocation1], 112
    %v1045 = vld [vmem:[%s1044] sm:$0x3]
    %s1046 = scalar_lea.vmem [#allocation0], 19
    %1047 = vst [vmem:[%s1046] sm:$0x1] %v1045
    %s1048 = scalar_lea.vmem [#allocation0], 146
    %1049 = vst [vmem:[%s1048] sm:$0x2] %v1045
    %s1050 = scalar_lea.vmem [#allocation1], 120
    %v1051 = vld [vmem:[%s1050] sm:$0x3]
    %s1052 = scalar_lea.vmem [#allocation0], 27
    %1053 = vst [vmem:[%s1052] sm:$0x1] %v1051
    %s1054 = scalar_lea.vmem [#allocation0], 154
    %1055 = vst [vmem:[%s1054] sm:$0x2] %v1051
    %s1056 = scalar_lea.vmem [#allocation1], 128
    %v1057 = vld [vmem:[%s1056] sm:$0x3]
    %s1058 = scalar_lea.vmem [#allocation0], 32
    %1059 = vst [vmem:[%s1058] sm:$0x1] %v1057
    %s1060 = scalar_lea.vmem [#allocation0], 159
    %1061 = vst [vmem:[%s1060] sm:$0x2] %v1057
    %s1062 = scalar_lea.vmem [#allocation1], 136
    %v1063 = vld [vmem:[%s1062] sm:$0x3]
    %s1064 = scalar_lea.vmem [#allocation0], 40
    %1065 = vst [vmem:[%s1064] sm:$0x1] %v1063
    %s1066 = scalar_lea.vmem [#allocation0], 167
    %1067 = vst [vmem:[%s1066] sm:$0x2] %v1063
    %s1068 = scalar_lea.vmem [#allocation1], 144
    %v1069 = vld [vmem:[%s1068] sm:$0x3]
    %s1070 = scalar_lea.vmem [#allocation0], 48
    %1071 = vst [vmem:[%s1070] sm:$0x1] %v1069
    %s1072 = scalar_lea.vmem [#allocation0], 175
    %1073 = vst [vmem:[%s1072] sm:$0x2] %v1069
    %s1074 = scalar_lea.vmem [#allocation1], 152
    %v1075 = vld [vmem:[%s1074] sm:$0x3]
    %s1076 = scalar_lea.vmem [#allocation0], 56
    %1077 = vst [vmem:[%s1076] sm:$0x1] %v1075
    %s1078 = scalar_lea.vmem [#allocation0], 183
    %1079 = vst [vmem:[%s1078] sm:$0x2] %v1075
    %s1080 = scalar_lea.vmem [#allocation1], 160
    %v1081 = vld [vmem:[%s1080] sm:$0x3]
    %s1082 = scalar_lea.vmem [#allocation0], 33
    %1083 = vst [vmem:[%s1082] sm:$0x1] %v1081
    %s1084 = scalar_lea.vmem [#allocation0], 160
    %1085 = vst [vmem:[%s1084] sm:$0x2] %v1081
    %s1086 = scalar_lea.vmem [#allocation1], 168
    %v1087 = vld [vmem:[%s1086] sm:$0x3]
    %s1088 = scalar_lea.vmem [#allocation0], 41
    %1089 = vst [vmem:[%s1088] sm:$0x1] %v1087
    %s1090 = scalar_lea.vmem [#allocation0], 168
    %1091 = vst [vmem:[%s1090] sm:$0x2] %v1087
    %s1092 = scalar_lea.vmem [#allocation1], 176
    %v1093 = vld [vmem:[%s1092] sm:$0x3]
    %s1094 = scalar_lea.vmem [#allocation0], 49
    %1095 = vst [vmem:[%s1094] sm:$0x1] %v1093
    %s1096 = scalar_lea.vmem [#allocation0], 176
    %1097 = vst [vmem:[%s1096] sm:$0x2] %v1093
    %s1098 = scalar_lea.vmem [#allocation1], 184
    %v1099 = vld [vmem:[%s1098] sm:$0x3]
    %s1100 = scalar_lea.vmem [#allocation0], 57
    %1101 = vst [vmem:[%s1100] sm:$0x1] %v1099
    %s1102 = scalar_lea.vmem [#allocation0], 184
    %1103 = vst [vmem:[%s1102] sm:$0x2] %v1099
    %s1104 = scalar_lea.vmem [#allocation1], 192
    %v1105 = vld [vmem:[%s1104] sm:$0x3]
    %s1106 = scalar_lea.vmem [#allocation0], 34
    %1107 = vst [vmem:[%s1106] sm:$0x1] %v1105
    %s1108 = scalar_lea.vmem [#allocation0], 161
    %1109 = vst [vmem:[%s1108] sm:$0x2] %v1105
    %s1110 = scalar_lea.vmem [#allocation1], 200
    %v1111 = vld [vmem:[%s1110] sm:$0x3]
    %s1112 = scalar_lea.vmem [#allocation0], 42
    %1113 = vst [vmem:[%s1112] sm:$0x1] %v1111
    %s1114 = scalar_lea.vmem [#allocation0], 169
    %1115 = vst [vmem:[%s1114] sm:$0x2] %v1111
    %s1116 = scalar_lea.vmem [#allocation1], 208
    %v1117 = vld [vmem:[%s1116] sm:$0x3]
    %s1118 = scalar_lea.vmem [#allocation0], 50
    %1119 = vst [vmem:[%s1118] sm:$0x1] %v1117
    %s1120 = scalar_lea.vmem [#allocation0], 177
    %1121 = vst [vmem:[%s1120] sm:$0x2] %v1117
    %s1122 = scalar_lea.vmem [#allocation1], 216
    %v1123 = vld [vmem:[%s1122] sm:$0x3]
    %s1124 = scalar_lea.vmem [#allocation0], 58
    %1125 = vst [vmem:[%s1124] sm:$0x1] %v1123
    %s1126 = scalar_lea.vmem [#allocation0], 185
    %1127 = vst [vmem:[%s1126] sm:$0x2] %v1123
    %s1128 = scalar_lea.vmem [#allocation1], 224
    %v1129 = vld [vmem:[%s1128] sm:$0x3]
    %s1130 = scalar_lea.vmem [#allocation0], 35
    %1131 = vst [vmem:[%s1130] sm:$0x1] %v1129
    %s1132 = scalar_lea.vmem [#allocation0], 162
    %1133 = vst [vmem:[%s1132] sm:$0x2] %v1129
    %s1134 = scalar_lea.vmem [#allocation1], 232
    %v1135 = vld [vmem:[%s1134] sm:$0x3]
    %s1136 = scalar_lea.vmem [#allocation0], 43
    %1137 = vst [vmem:[%s1136] sm:$0x1] %v1135
    %s1138 = scalar_lea.vmem [#allocation0], 170
    %1139 = vst [vmem:[%s1138] sm:$0x2] %v1135
    %s1140 = scalar_lea.vmem [#allocation1], 240
    %v1141 = vld [vmem:[%s1140] sm:$0x3]
    %s1142 = scalar_lea.vmem [#allocation0], 51
    %1143 = vst [vmem:[%s1142] sm:$0x1] %v1141
    %s1144 = scalar_lea.vmem [#allocation0], 178
    %1145 = vst [vmem:[%s1144] sm:$0x2] %v1141
    %s1146 = scalar_lea.vmem [#allocation1], 248
    %v1147 = vld [vmem:[%s1146] sm:$0x3]
    %s1148 = scalar_lea.vmem [#allocation0], 59
    %1149 = vst [vmem:[%s1148] sm:$0x1] %v1147
    %s1150 = scalar_lea.vmem [#allocation0], 186
    %1151 = vst [vmem:[%s1150] sm:$0x2] %v1147
    %s1152 = scalar_lea.vmem [#allocation1], 256
    %v1153 = vld [vmem:[%s1152] sm:$0x3]
    %s1154 = scalar_lea.vmem [#allocation0], 64
    %1155 = vst [vmem:[%s1154] sm:$0x1] %v1153
    %s1156 = scalar_lea.vmem [#allocation0], 191
    %1157 = vst [vmem:[%s1156] sm:$0x2] %v1153
    %s1158 = scalar_lea.vmem [#allocation1], 264
    %v1159 = vld [vmem:[%s1158] sm:$0x3]
    %s1160 = scalar_lea.vmem [#allocation0], 72
    %1161 = vst [vmem:[%s1160] sm:$0x1] %v1159
    %s1162 = scalar_lea.vmem [#allocation0], 199
    %1163 = vst [vmem:[%s1162] sm:$0x2] %v1159
    %s1164 = scalar_lea.vmem [#allocation1], 272
    %v1165 = vld [vmem:[%s1164] sm:$0x3]
    %s1166 = scalar_lea.vmem [#allocation0], 80
    %1167 = vst [vmem:[%s1166] sm:$0x1] %v1165
    %s1168 = scalar_lea.vmem [#allocation0], 207
    %1169 = vst [vmem:[%s1168] sm:$0x2] %v1165
    %s1170 = scalar_lea.vmem [#allocation1], 280
    %v1171 = vld [vmem:[%s1170] sm:$0x3]
    %s1172 = scalar_lea.vmem [#allocation0], 88
    %1173 = vst [vmem:[%s1172] sm:$0x1] %v1171
    %s1174 = scalar_lea.vmem [#allocation0], 215
    %1175 = vst [vmem:[%s1174] sm:$0x2] %v1171
    %s1176 = scalar_lea.vmem [#allocation1], 288
    %v1177 = vld [vmem:[%s1176] sm:$0x3]
    %s1178 = scalar_lea.vmem [#allocation0], 65
    %1179 = vst [vmem:[%s1178] sm:$0x1] %v1177
    %s1180 = scalar_lea.vmem [#allocation0], 192
    %1181 = vst [vmem:[%s1180] sm:$0x2] %v1177
    %s1182 = scalar_lea.vmem [#allocation1], 296
    %v1183 = vld [vmem:[%s1182] sm:$0x3]
    %s1184 = scalar_lea.vmem [#allocation0], 73
    %1185 = vst [vmem:[%s1184] sm:$0x1] %v1183
    %s1186 = scalar_lea.vmem [#allocation0], 200
    %1187 = vst [vmem:[%s1186] sm:$0x2] %v1183
    %s1188 = scalar_lea.vmem [#allocation1], 304
    %v1189 = vld [vmem:[%s1188] sm:$0x3]
    %s1190 = scalar_lea.vmem [#allocation0], 81
    %1191 = vst [vmem:[%s1190] sm:$0x1] %v1189
    %s1192 = scalar_lea.vmem [#allocation0], 208
    %1193 = vst [vmem:[%s1192] sm:$0x2] %v1189
    %s1194 = scalar_lea.vmem [#allocation1], 312
    %v1195 = vld [vmem:[%s1194] sm:$0x3]
    %s1196 = scalar_lea.vmem [#allocation0], 89
    %1197 = vst [vmem:[%s1196] sm:$0x1] %v1195
    %s1198 = scalar_lea.vmem [#allocation0], 216
    %1199 = vst [vmem:[%s1198] sm:$0x2] %v1195
    %s1200 = scalar_lea.vmem [#allocation1], 320
    %v1201 = vld [vmem:[%s1200] sm:$0x3]
    %s1202 = scalar_lea.vmem [#allocation0], 66
    %1203 = vst [vmem:[%s1202] sm:$0x1] %v1201
    %s1204 = scalar_lea.vmem [#allocation0], 193
    %1205 = vst [vmem:[%s1204] sm:$0x2] %v1201
    %s1206 = scalar_lea.vmem [#allocation1], 328
    %v1207 = vld [vmem:[%s1206] sm:$0x3]
    %s1208 = scalar_lea.vmem [#allocation0], 74
    %1209 = vst [vmem:[%s1208] sm:$0x1] %v1207
    %s1210 = scalar_lea.vmem [#allocation0], 201
    %1211 = vst [vmem:[%s1210] sm:$0x2] %v1207
    %s1212 = scalar_lea.vmem [#allocation1], 336
    %v1213 = vld [vmem:[%s1212] sm:$0x3]
    %s1214 = scalar_lea.vmem [#allocation0], 82
    %1215 = vst [vmem:[%s1214] sm:$0x1] %v1213
    %s1216 = scalar_lea.vmem [#allocation0], 209
    %1217 = vst [vmem:[%s1216] sm:$0x2] %v1213
    %s1218 = scalar_lea.vmem [#allocation1], 344
    %v1219 = vld [vmem:[%s1218] sm:$0x3]
    %s1220 = scalar_lea.vmem [#allocation0], 90
    %1221 = vst [vmem:[%s1220] sm:$0x1] %v1219
    %s1222 = scalar_lea.vmem [#allocation0], 217
    %1223 = vst [vmem:[%s1222] sm:$0x2] %v1219
    %s1224 = scalar_lea.vmem [#allocation1], 352
    %v1225 = vld [vmem:[%s1224] sm:$0x3]
    %s1226 = scalar_lea.vmem [#allocation0], 67
    %1227 = vst [vmem:[%s1226] sm:$0x1] %v1225
    %s1228 = scalar_lea.vmem [#allocation0], 194
    %1229 = vst [vmem:[%s1228] sm:$0x2] %v1225
    %s1230 = scalar_lea.vmem [#allocation1], 360
    %v1231 = vld [vmem:[%s1230] sm:$0x3]
    %s1232 = scalar_lea.vmem [#allocation0], 75
    %1233 = vst [vmem:[%s1232] sm:$0x1] %v1231
    %s1234 = scalar_lea.vmem [#allocation0], 202
    %1235 = vst [vmem:[%s1234] sm:$0x2] %v1231
    %s1236 = scalar_lea.vmem [#allocation1], 368
    %v1237 = vld [vmem:[%s1236] sm:$0x3]
    %s1238 = scalar_lea.vmem [#allocation0], 83
    %1239 = vst [vmem:[%s1238] sm:$0x1] %v1237
    %s1240 = scalar_lea.vmem [#allocation0], 210
    %1241 = vst [vmem:[%s1240] sm:$0x2] %v1237
    %s1242 = scalar_lea.vmem [#allocation1], 376
    %v1243 = vld [vmem:[%s1242] sm:$0x3]
    %s1244 = scalar_lea.vmem [#allocation0], 91
    %1245 = vst [vmem:[%s1244] sm:$0x1] %v1243
    %s1246 = scalar_lea.vmem [#allocation0], 218
    %1247 = vst [vmem:[%s1246] sm:$0x2] %v1243
    %s1248 = scalar_lea.vmem [#allocation1], 384
    %v1249 = vld [vmem:[%s1248] sm:$0x3]
    %s1250 = scalar_lea.vmem [#allocation0], 96
    %1251 = vst [vmem:[%s1250] sm:$0x1] %v1249
    %s1252 = scalar_lea.vmem [#allocation0], 223
    %1253 = vst [vmem:[%s1252] sm:$0x2] %v1249
    %s1254 = scalar_lea.vmem [#allocation1], 392
    %v1255 = vld [vmem:[%s1254] sm:$0x3]
    %s1256 = scalar_lea.vmem [#allocation0], 104
    %1257 = vst [vmem:[%s1256] sm:$0x1] %v1255
    %s1258 = scalar_lea.vmem [#allocation0], 231
    %1259 = vst [vmem:[%s1258] sm:$0x2] %v1255
    %s1260 = scalar_lea.vmem [#allocation1], 400
    %v1261 = vld [vmem:[%s1260] sm:$0x3]
    %s1262 = scalar_lea.vmem [#allocation0], 112
    %1263 = vst [vmem:[%s1262] sm:$0x1] %v1261
    %s1264 = scalar_lea.vmem [#allocation0], 239
    %1265 = vst [vmem:[%s1264] sm:$0x2] %v1261
    %s1266 = scalar_lea.vmem [#allocation1], 408
    %v1267 = vld [vmem:[%s1266] sm:$0x3]
    %s1268 = scalar_lea.vmem [#allocation0], 120
    %1269 = vst [vmem:[%s1268] sm:$0x1] %v1267
    %s1270 = scalar_lea.vmem [#allocation0], 247
    %1271 = vst [vmem:[%s1270] sm:$0x2] %v1267
    %s1272 = scalar_lea.vmem [#allocation1], 416
    %v1273 = vld [vmem:[%s1272] sm:$0x3]
    %s1274 = scalar_lea.vmem [#allocation0], 97
    %1275 = vst [vmem:[%s1274] sm:$0x1] %v1273
    %s1276 = scalar_lea.vmem [#allocation0], 224
    %1277 = vst [vmem:[%s1276] sm:$0x2] %v1273
    %s1278 = scalar_lea.vmem [#allocation1], 424
    %v1279 = vld [vmem:[%s1278] sm:$0x3]
    %s1280 = scalar_lea.vmem [#allocation0], 105
    %1281 = vst [vmem:[%s1280] sm:$0x1] %v1279
    %s1282 = scalar_lea.vmem [#allocation0], 232
    %1283 = vst [vmem:[%s1282] sm:$0x2] %v1279
    %s1284 = scalar_lea.vmem [#allocation1], 432
    %v1285 = vld [vmem:[%s1284] sm:$0x3]
    %s1286 = scalar_lea.vmem [#allocation0], 113
    %1287 = vst [vmem:[%s1286] sm:$0x1] %v1285
    %s1288 = scalar_lea.vmem [#allocation0], 240
    %1289 = vst [vmem:[%s1288] sm:$0x2] %v1285
    %s1290 = scalar_lea.vmem [#allocation1], 440
    %v1291 = vld [vmem:[%s1290] sm:$0x3]
    %s1292 = scalar_lea.vmem [#allocation0], 121
    %1293 = vst [vmem:[%s1292] sm:$0x1] %v1291
    %s1294 = scalar_lea.vmem [#allocation0], 248
    %1295 = vst [vmem:[%s1294] sm:$0x2] %v1291
    %s1296 = scalar_lea.vmem [#allocation1], 448
    %v1297 = vld [vmem:[%s1296] sm:$0x3]
    %s1298 = scalar_lea.vmem [#allocation0], 98
    %1299 = vst [vmem:[%s1298] sm:$0x1] %v1297
    %s1300 = scalar_lea.vmem [#allocation0], 225
    %1301 = vst [vmem:[%s1300] sm:$0x2] %v1297
    %s1302 = scalar_lea.vmem [#allocation1], 456
    %v1303 = vld [vmem:[%s1302] sm:$0x3]
    %s1304 = scalar_lea.vmem [#allocation0], 106
    %1305 = vst [vmem:[%s1304] sm:$0x1] %v1303
    %s1306 = scalar_lea.vmem [#allocation0], 233
    %1307 = vst [vmem:[%s1306] sm:$0x2] %v1303
    %s1308 = scalar_lea.vmem [#allocation1], 464
    %v1309 = vld [vmem:[%s1308] sm:$0x3]
    %s1310 = scalar_lea.vmem [#allocation0], 114
    %1311 = vst [vmem:[%s1310] sm:$0x1] %v1309
    %s1312 = scalar_lea.vmem [#allocation0], 241
    %1313 = vst [vmem:[%s1312] sm:$0x2] %v1309
    %s1314 = scalar_lea.vmem [#allocation1], 472
    %v1315 = vld [vmem:[%s1314] sm:$0x3]
    %s1316 = scalar_lea.vmem [#allocation0], 122
    %1317 = vst [vmem:[%s1316] sm:$0x1] %v1315
    %s1318 = scalar_lea.vmem [#allocation0], 249
    %1319 = vst [vmem:[%s1318] sm:$0x2] %v1315
    %s1320 = scalar_lea.vmem [#allocation1], 480
    %v1321 = vld [vmem:[%s1320] sm:$0x3]
    %s1322 = scalar_lea.vmem [#allocation0], 99
    %1323 = vst [vmem:[%s1322] sm:$0x1] %v1321
    %s1324 = scalar_lea.vmem [#allocation0], 226
    %1325 = vst [vmem:[%s1324] sm:$0x2] %v1321
    %s1326 = scalar_lea.vmem [#allocation1], 488
    %v1327 = vld [vmem:[%s1326] sm:$0x3]
    %s1328 = scalar_lea.vmem [#allocation0], 107
    %1329 = vst [vmem:[%s1328] sm:$0x1] %v1327
    %s1330 = scalar_lea.vmem [#allocation0], 234
    %1331 = vst [vmem:[%s1330] sm:$0x2] %v1327
    %s1332 = scalar_lea.vmem [#allocation1], 496
    %v1333 = vld [vmem:[%s1332] sm:$0x3]
    %s1334 = scalar_lea.vmem [#allocation0], 115
    %1335 = vst [vmem:[%s1334] sm:$0x1] %v1333
    %s1336 = scalar_lea.vmem [#allocation0], 242
    %1337 = vst [vmem:[%s1336] sm:$0x2] %v1333
    %s1338 = scalar_lea.vmem [#allocation1], 504
    %v1339 = vld [vmem:[%s1338] sm:$0x3]
    %s1340 = scalar_lea.vmem [#allocation0], 123
    %1341 = vst [vmem:[%s1340] sm:$0x1] %v1339
    %s1342 = scalar_lea.vmem [#allocation0], 250
    %1343 = vst [vmem:[%s1342] sm:$0x2] %v1339
    %s1345 = ssub.s32 16, 1
    %v1346 = vld [vmem:[#allocation0] sm:%s1345]
    %v1347 = vpack.c.bf16 0.0, %v1346
    %s1349 = ssub.s32 4, 1
    %1350 = vst [vmem:[%s1] sm:%s1349] %v1347
    %s1351 = scalar_lea.vmem [#allocation0], 8
    %v1352 = vld [vmem:[%s1351] sm:%s1345]
    %v1353 = vpack.c.bf16 0.0, %v1352
    %s1355 = ssub.s32 4, 1
    %s1356 = scalar_lea.vmem %s1, 2
    %1357 = vst [vmem:[%s1356] sm:%s1355] %v1353
    %s1358 = scalar_lea.vmem [#allocation0], 16
    %v1359 = vld [vmem:[%s1358] sm:%s1345]
    %v1360 = vpack.c.bf16 0.0, %v1359
    %s1362 = ssub.s32 4, 1
    %s1363 = scalar_lea.vmem %s1, 4
    %1364 = vst [vmem:[%s1363] sm:%s1362] %v1360
    %s1365 = scalar_lea.vmem [#allocation0], 24
    %v1366 = vld [vmem:[%s1365] sm:%s1345]
    %v1367 = vpack.c.bf16 0.0, %v1366
    %s1369 = ssub.s32 4, 1
    %s1370 = scalar_lea.vmem %s1, 6
    %1371 = vst [vmem:[%s1370] sm:%s1369] %v1367
    %s1372 = scalar_lea.vmem [#allocation0], 32
    %v1373 = vld [vmem:[%s1372] sm:%s1345]
    %v1374 = vpack.c.bf16 0.0, %v1373
    %s1376 = ssub.s32 4, 1
    %s1377 = scalar_lea.vmem %s1, 8
    %1378 = vst [vmem:[%s1377] sm:%s1376] %v1374
    %s1379 = scalar_lea.vmem [#allocation0], 40
    %v1380 = vld [vmem:[%s1379] sm:%s1345]
    %v1381 = vpack.c.bf16 0.0, %v1380
    %s1383 = ssub.s32 4, 1
    %s1384 = scalar_lea.vmem %s1, 10
    %1385 = vst [vmem:[%s1384] sm:%s1383] %v1381
    %s1386 = scalar_lea.vmem [#allocation0], 48
    %v1387 = vld [vmem:[%s1386] sm:%s1345]
    %v1388 = vpack.c.bf16 0.0, %v1387
    %s1390 = ssub.s32 4, 1
    %s1391 = scalar_lea.vmem %s1, 12
    %1392 = vst [vmem:[%s1391] sm:%s1390] %v1388
    %s1393 = scalar_lea.vmem [#allocation0], 56
    %v1394 = vld [vmem:[%s1393] sm:%s1345]
    %v1395 = vpack.c.bf16 0.0, %v1394
    %s1397 = ssub.s32 4, 1
    %s1398 = scalar_lea.vmem %s1, 14
    %1399 = vst [vmem:[%s1398] sm:%s1397] %v1395
    %s1400 = scalar_lea.vmem [#allocation0], 64
    %v1401 = vld [vmem:[%s1400] sm:%s1345]
    %v1402 = vpack.c.bf16 0.0, %v1401
    %s1404 = ssub.s32 4, 1
    %s1405 = scalar_lea.vmem %s1, 16
    %1406 = vst [vmem:[%s1405] sm:%s1404] %v1402
    %s1407 = scalar_lea.vmem [#allocation0], 72
    %v1408 = vld [vmem:[%s1407] sm:%s1345]
    %v1409 = vpack.c.bf16 0.0, %v1408
    %s1411 = ssub.s32 4, 1
    %s1412 = scalar_lea.vmem %s1, 18
    %1413 = vst [vmem:[%s1412] sm:%s1411] %v1409
    %s1414 = scalar_lea.vmem [#allocation0], 80
    %v1415 = vld [vmem:[%s1414] sm:%s1345]
    %v1416 = vpack.c.bf16 0.0, %v1415
    %s1418 = ssub.s32 4, 1
    %s1419 = scalar_lea.vmem %s1, 20
    %1420 = vst [vmem:[%s1419] sm:%s1418] %v1416
    %s1421 = scalar_lea.vmem [#allocation0], 88
    %v1422 = vld [vmem:[%s1421] sm:%s1345]
    %v1423 = vpack.c.bf16 0.0, %v1422
    %s1425 = ssub.s32 4, 1
    %s1426 = scalar_lea.vmem %s1, 22
    %1427 = vst [vmem:[%s1426] sm:%s1425] %v1423
    %s1428 = scalar_lea.vmem [#allocation0], 96
    %v1429 = vld [vmem:[%s1428] sm:%s1345]
    %v1430 = vpack.c.bf16 0.0, %v1429
    %s1432 = ssub.s32 4, 1
    %s1433 = scalar_lea.vmem %s1, 24
    %1434 = vst [vmem:[%s1433] sm:%s1432] %v1430
    %s1435 = scalar_lea.vmem [#allocation0], 104
    %v1436 = vld [vmem:[%s1435] sm:%s1345]
    %v1437 = vpack.c.bf16 0.0, %v1436
    %s1439 = ssub.s32 4, 1
    %s1440 = scalar_lea.vmem %s1, 26
    %1441 = vst [vmem:[%s1440] sm:%s1439] %v1437
    %s1442 = scalar_lea.vmem [#allocation0], 112
    %v1443 = vld [vmem:[%s1442] sm:%s1345]
    %v1444 = vpack.c.bf16 0.0, %v1443
    %s1446 = ssub.s32 4, 1
    %s1447 = scalar_lea.vmem %s1, 28
    %1448 = vst [vmem:[%s1447] sm:%s1446] %v1444
    %s1449 = scalar_lea.vmem [#allocation0], 120
    %v1450 = vld [vmem:[%s1449] sm:%s1345]
    %v1451 = vpack.c.bf16 0.0, %v1450
    %s1453 = ssub.s32 4, 1
    %s1454 = scalar_lea.vmem %s1, 30
    %1455 = vst [vmem:[%s1454] sm:%s1453] %v1451
    %s1456 = scalar_lea.vmem [#allocation0], 128
    %v1457 = vld [vmem:[%s1456] sm:%s1345]
    %v1458 = vpack.c.bf16 0.0, %v1457
    %s1460 = ssub.s32 4, 1
    %s1461 = scalar_lea.vmem %s1, 32
    %1462 = vst [vmem:[%s1461] sm:%s1460] %v1458
    %s1463 = scalar_lea.vmem [#allocation0], 136
    %v1464 = vld [vmem:[%s1463] sm:%s1345]
    %v1465 = vpack.c.bf16 0.0, %v1464
    %s1467 = ssub.s32 4, 1
    %s1468 = scalar_lea.vmem %s1, 34
    %1469 = vst [vmem:[%s1468] sm:%s1467] %v1465
    %s1470 = scalar_lea.vmem [#allocation0], 144
    %v1471 = vld [vmem:[%s1470] sm:%s1345]
    %v1472 = vpack.c.bf16 0.0, %v1471
    %s1474 = ssub.s32 4, 1
    %s1475 = scalar_lea.vmem %s1, 36
    %1476 = vst [vmem:[%s1475] sm:%s1474] %v1472
    %s1477 = scalar_lea.vmem [#allocation0], 152
    %v1478 = vld [vmem:[%s1477] sm:%s1345]
    %v1479 = vpack.c.bf16 0.0, %v1478
    %s1481 = ssub.s32 4, 1
    %s1482 = scalar_lea.vmem %s1, 38
    %1483 = vst [vmem:[%s1482] sm:%s1481] %v1479
    %s1484 = scalar_lea.vmem [#allocation0], 160
    %v1485 = vld [vmem:[%s1484] sm:%s1345]
    %v1486 = vpack.c.bf16 0.0, %v1485
    %s1488 = ssub.s32 4, 1
    %s1489 = scalar_lea.vmem %s1, 40
    %1490 = vst [vmem:[%s1489] sm:%s1488] %v1486
    %s1491 = scalar_lea.vmem [#allocation0], 168
    %v1492 = vld [vmem:[%s1491] sm:%s1345]
    %v1493 = vpack.c.bf16 0.0, %v1492
    %s1495 = ssub.s32 4, 1
    %s1496 = scalar_lea.vmem %s1, 42
    %1497 = vst [vmem:[%s1496] sm:%s1495] %v1493
    %s1498 = scalar_lea.vmem [#allocation0], 176
    %v1499 = vld [vmem:[%s1498] sm:%s1345]
    %v1500 = vpack.c.bf16 0.0, %v1499
    %s1502 = ssub.s32 4, 1
    %s1503 = scalar_lea.vmem %s1, 44
    %1504 = vst [vmem:[%s1503] sm:%s1502] %v1500
    %s1505 = scalar_lea.vmem [#allocation0], 184
    %v1506 = vld [vmem:[%s1505] sm:%s1345]
    %v1507 = vpack.c.bf16 0.0, %v1506
    %s1509 = ssub.s32 4, 1
    %s1510 = scalar_lea.vmem %s1, 46
    %1511 = vst [vmem:[%s1510] sm:%s1509] %v1507
    %s1512 = scalar_lea.vmem [#allocation0], 192
    %v1513 = vld [vmem:[%s1512] sm:%s1345]
    %v1514 = vpack.c.bf16 0.0, %v1513
    %s1516 = ssub.s32 4, 1
    %s1517 = scalar_lea.vmem %s1, 48
    %1518 = vst [vmem:[%s1517] sm:%s1516] %v1514
    %s1519 = scalar_lea.vmem [#allocation0], 200
    %v1520 = vld [vmem:[%s1519] sm:%s1345]
    %v1521 = vpack.c.bf16 0.0, %v1520
    %s1523 = ssub.s32 4, 1
    %s1524 = scalar_lea.vmem %s1, 50
    %1525 = vst [vmem:[%s1524] sm:%s1523] %v1521
    %s1526 = scalar_lea.vmem [#allocation0], 208
    %v1527 = vld [vmem:[%s1526] sm:%s1345]
    %v1528 = vpack.c.bf16 0.0, %v1527
    %s1530 = ssub.s32 4, 1
    %s1531 = scalar_lea.vmem %s1, 52
    %1532 = vst [vmem:[%s1531] sm:%s1530] %v1528
    %s1533 = scalar_lea.vmem [#allocation0], 216
    %v1534 = vld [vmem:[%s1533] sm:%s1345]
    %v1535 = vpack.c.bf16 0.0, %v1534
    %s1537 = ssub.s32 4, 1
    %s1538 = scalar_lea.vmem %s1, 54
    %1539 = vst [vmem:[%s1538] sm:%s1537] %v1535
    %s1540 = scalar_lea.vmem [#allocation0], 224
    %v1541 = vld [vmem:[%s1540] sm:%s1345]
    %v1542 = vpack.c.bf16 0.0, %v1541
    %s1544 = ssub.s32 4, 1
    %s1545 = scalar_lea.vmem %s1, 56
    %1546 = vst [vmem:[%s1545] sm:%s1544] %v1542
    %s1547 = scalar_lea.vmem [#allocation0], 232
    %v1548 = vld [vmem:[%s1547] sm:%s1345]
    %v1549 = vpack.c.bf16 0.0, %v1548
    %s1551 = ssub.s32 4, 1
    %s1552 = scalar_lea.vmem %s1, 58
    %1553 = vst [vmem:[%s1552] sm:%s1551] %v1549
    %s1554 = scalar_lea.vmem [#allocation0], 240
    %v1555 = vld [vmem:[%s1554] sm:%s1345]
    %v1556 = vpack.c.bf16 0.0, %v1555
    %s1558 = ssub.s32 4, 1
    %s1559 = scalar_lea.vmem %s1, 60
    %1560 = vst [vmem:[%s1559] sm:%s1558] %v1556
    %s1561 = scalar_lea.vmem [#allocation0], 248
    %v1562 = vld [vmem:[%s1561] sm:%s1345]
    %v1563 = vpack.c.bf16 0.0, %v1562
    %s1565 = ssub.s32 4, 1
    %s1566 = scalar_lea.vmem %s1, 62
    %1567 = vst [vmem:[%s1566] sm:%s1565] %v1563

// kernel: generator_forward.5
$region0: #{generator_forward.5}
  #allocation0 [shape = 'u32[]', space=smem, size = 0x4, offset = 0x4, fixed_abs, tag = 'smem constant byte address 0x4 - core index']
  #allocation1 [shape = 'u32[72,128]{1,0:T(1,128)}', space=vmem, size = 0x9000, scoped, tag = 'internal scratch']
  %s0 = inlined_call_operand.vmem [shape: bf16[1,8,128], index: 0, kind: input, shape index: {}]
  %s1 = inlined_call_operand.vmem [shape: bf16[1,128,8192], index: 1, kind: input, shape index: {}]
  %s2 = inlined_call_operand.vmem [shape: f32[1,8192], index: 2, kind: input, shape index: {}]
  %s3 = inlined_call_operand.vmem [shape: f32[1,8192], index: 3, kind: input, shape index: {}]
  %s4 = inlined_call_operand.vmem [shape: bf16[1,8,8192], index: 4, kind: output, shape index: {}]
  %s5 = sld [smem:[#allocation0]]
  $region72: #{generator_forward.5} parent=0
    _
  %s7 = ssub.s32 1, %s5
  %s8 = scalar_select 0, %s7, %s5
  $region1: #{generator_forward.5} parent=0
    #allocation2 [shape = 'u8[1048576]{0}', space=vmem, size = 0x100000, scoped, tag = 'input window, operand 1']
    loop: start=0, step=1, limit=6
    $region2: #{generator_forward.5} parent=1 // loop_pre_header
      _
    $region3: #{generator_forward.5} parent=1 // loop_header
      %s10 = sphi 0, %s14
      %p11 = scmp.ge.s32.totalorder %s10, 6
      %s17 = sphi 0, %s36
      %s18 = sphi 0, %s32
      %s19 = sphi 0, %s28
      %s20 = sphi 0, %s17
      %s21 = sphi 0, %s18
      %s22 = sphi 0, %s19
      %s23 = sphi 0, %s20
      %s24 = sphi 0, %s21
      %s25 = sphi 0, %s22
      %s41 = sphi 0, %s43
      %s44 = sphi 0, %s41
      %s45 = sphi 0, %s44
      %s61 = sphi 0, %s45
      %s69 = sphi 0, %s71
      %s72 = sphi 0, %s69
      %s73 = sphi 0, %s72
      %s89 = sphi 0, %s73
      %s95 = sphi 0, %s97
      %s98 = sphi 0, %s95
      %s99 = sphi 0, %s98
      %s115 = sphi 0, %s99
      %s121 = sphi 0, %s123
      %s124 = sphi 0, %s121
      %s125 = sphi 0, %s124
      %s141 = sphi 0, %s125
      %s151 = sphi 0, %s153
      %s154 = sphi 0, %s151
      %s155 = sphi 0, %s154
      %s171 = sphi 0, %s155
    $region4: #{generator_forward.5} parent=1 // loop_header_branch
      %13 = sbr.rel (%p11) target = $region8
    $region5: #{generator_forward.5} parent=1 // loop_body
      %s15 = ssub.s32 %s10, 1
      %s16 = ssub.s32 %s10, 2
      %s26 = sadd.s32 1, %s19
      %p27 = scmp.ge.s32.totalorder %s26, 4
      %s28 = scalar_select %p27, 0, %s26
      %s29 = sadd.s32 1, %s18
      %s30 = scalar_select %p27, %s29, %s18
      %p31 = scmp.ge.s32.totalorder %s30, 1
      %s32 = scalar_select %p31, 0, %s30
      %s33 = sadd.s32 1, %s17
      %s34 = scalar_select %p31, %s33, %s17
      %p35 = scmp.ge.s32.totalorder %s34, 1
      %s36 = scalar_select %p35, 0, %s34
      %s37 = ssub.s32 %s17, %s36
      %s38 = ssub.s32 %s18, %s32
      %s39 = sor.u32 %s37, %s38
      %p40 = scmp.eq.s32.totalorder %s39, 0
      %s42 = sadd.s32 %s41, 1
      %s43 = scalar_select %p40, %s41, %s42
      %p46 = pneg %p40
      %p47 = scmp.eq.s32.totalorder %s10, 3
      %p48 = por %p46, %p47
      %p49 = scmp.ne.s32.totalorder %s41, %s44
      %p50 = scmp.eq.s32.totalorder %s10, 0
      %p51 = por %p49, %p50
      %p52 = scmp.ne.s32.totalorder %s41, %s44
      %p53 = scmp.eq.s32.totalorder %s15, 3
      %p54 = por %p52, %p53
      %p55 = scmp.ne.s32.totalorder %s44, %s45
      %p56 = scmp.eq.s32.totalorder %s15, 0
      %p57 = por %p55, %p56
      %p58 = scmp.ne.s32.totalorder %s44, %s45
      %p59 = scmp.eq.s32.totalorder %s16, 3
      %p60 = por %p58, %p59
      %p62 = scmp.ne.s32.totalorder %s45, %s61
      %p63 = scmp.eq.s32.totalorder %s16, 0
      %p64 = por %p62, %p63
      %s65 = ssub.s32 %s17, %s36
      %s66 = ssub.s32 %s19, %s28
      %s67 = sor.u32 %s65, %s66
      %p68 = scmp.eq.s32.totalorder %s67, 0
      %s70 = sadd.s32 %s69, 1
      %s71 = scalar_select %p68, %s69, %s70
      %p74 = pneg %p68
      %p75 = scmp.eq.s32.totalorder %s10, 3
      %p76 = por %p74, %p75
      %p77 = scmp.ne.s32.totalorder %s69, %s72
      %p78 = scmp.eq.s32.totalorder %s10, 0
      %p79 = por %p77, %p78
      %p80 = scmp.ne.s32.totalorder %s69, %s72
      %p81 = scmp.eq.s32.totalorder %s15, 3
      %p82 = por %p80, %p81
      %p83 = scmp.ne.s32.totalorder %s72, %s73
      %p84 = scmp.eq.s32.totalorder %s15, 0
      %p85 = por %p83, %p84
      %p86 = scmp.ne.s32.totalorder %s72, %s73
      %p87 = scmp.eq.s32.totalorder %s16, 3
      %p88 = por %p86, %p87
      %p90 = scmp.ne.s32.totalorder %s73, %s89
      %p91 = scmp.eq.s32.totalorder %s16, 0
      %p92 = por %p90, %p91
      %s93 = ssub.s32 %s19, %s28
      %p94 = scmp.eq.s32.totalorder %s93, 0
      %s96 = sadd.s32 %s95, 1
      %s97 = scalar_select %p94, %s95, %s96
      %p100 = pneg %p94
      %p101 = scmp.eq.s32.totalorder %s10, 3
      %p102 = por %p100, %p101
      %p103 = scmp.ne.s32.totalorder %s95, %s98
      %p104 = scmp.eq.s32.totalorder %s10, 0
      %p105 = por %p103, %p104
      %p106 = scmp.ne.s32.totalorder %s95, %s98
      %p107 = scmp.eq.s32.totalorder %s15, 3
      %p108 = por %p106, %p107
      %p109 = scmp.ne.s32.totalorder %s98, %s99
      %p110 = scmp.eq.s32.totalorder %s15, 0
      %p111 = por %p109, %p110
      %p112 = scmp.ne.s32.totalorder %s98, %s99
      %p113 = scmp.eq.s32.totalorder %s16, 3
      %p114 = por %p112, %p113
      %p116 = scmp.ne.s32.totalorder %s99, %s115
      %p117 = scmp.eq.s32.totalorder %s16, 0
      %p118 = por %p116, %p117
      %s119 = ssub.s32 %s19, %s28
      %p120 = scmp.eq.s32.totalorder %s119, 0
      %s122 = sadd.s32 %s121, 1
      %s123 = scalar_select %p120, %s121, %s122
      %p126 = pneg %p120
      %p127 = scmp.eq.s32.totalorder %s10, 3
      %p128 = por %p126, %p127
      %p129 = scmp.ne.s32.totalorder %s121, %s124
      %p130 = scmp.eq.s32.totalorder %s10, 0
      %p131 = por %p129, %p130
      %p132 = scmp.ne.s32.totalorder %s121, %s124
      %p133 = scmp.eq.s32.totalorder %s15, 3
      %p134 = por %p132, %p133
      %p135 = scmp.ne.s32.totalorder %s124, %s125
      %p136 = scmp.eq.s32.totalorder %s15, 0
      %p137 = por %p135, %p136
      %p138 = scmp.ne.s32.totalorder %s124, %s125
      %p139 = scmp.eq.s32.totalorder %s16, 3
      %p140 = por %p138, %p139
      %p142 = scmp.ne.s32.totalorder %s125, %s141
      %p143 = scmp.eq.s32.totalorder %s16, 0
      %p144 = por %p142, %p143
      %s145 = ssub.s32 %s17, %s36
      %s146 = ssub.s32 %s18, %s32
      %s147 = sor.u32 %s145, %s146
      %s148 = ssub.s32 %s19, %s28
      %s149 = sor.u32 %s147, %s148
      %p150 = scmp.eq.s32.totalorder %s149, 0
      %s152 = sadd.s32 %s151, 1
      %s153 = scalar_select %p150, %s151, %s152
      %p156 = pneg %p150
      %p157 = scmp.eq.s32.totalorder %s10, 3
      %p158 = por %p156, %p157
      %p159 = scmp.ne.s32.totalorder %s151, %s154
      %p160 = scmp.eq.s32.totalorder %s10, 0
      %p161 = por %p159, %p160
      %p162 = scmp.ne.s32.totalorder %s151, %s154
      %p163 = scmp.eq.s32.totalorder %s15, 3
      %p164 = por %p162, %p163
      %p165 = scmp.ne.s32.totalorder %s154, %s155
      %p166 = scmp.eq.s32.totalorder %s15, 0
      %p167 = por %p165, %p166
      %p168 = scmp.ne.s32.totalorder %s154, %s155
      %p169 = scmp.eq.s32.totalorder %s16, 3
      %p170 = por %p168, %p169
      %p172 = scmp.ne.s32.totalorder %s155, %s171
      %p173 = scmp.eq.s32.totalorder %s16, 0
      %p174 = por %p172, %p173
      %p175 = scmp.le.s32.totalorder 1, %s10
      %p176 = scmp.lt.s32.totalorder %s10, 5
      %p177 = pnand %p175, %p176
      %p178 = pneg %p177
      // Predicated region
      $region9: #{generator_forward.5} parent=5 // pred_check
        _
      $region10: #{generator_forward.5} parent=5 // pred_check_branch
        %180 = sbr.rel (%p177) target = $region12
      $region11: #{generator_forward.5} parent=5 // pred_region
        %s181 = ssub.s32 %s10, 1
        // Predicated region
        $region13: #{generator_forward.5} parent=11 // pred_check
          %p182 = pneg %p57
        $region14: #{generator_forward.5} parent=11 // pred_check_branch
          %184 = sbr.rel (%p182) target = $region16
        $region15: #{generator_forward.5} parent=11 // pred_region
          %p185 = scmp.lt.s32.totalorder %s20, 0
          %s186 = scalar_select %p185, %s20, 0
          %p187 = scmp.lt.s32.totalorder %s21, 0
          %s188 = scalar_select %p187, %s21, 0
          %s189 = sadd.s32 %s188, %s186
          %s190 = smul.addr %s189, 4
          %s191 = scalar_lea.vmem %s0, %s190
        $region16: #{generator_forward.5} parent=11 // pred_fallthru
          _
      $region12: #{generator_forward.5} parent=5 // pred_fallthru
        _
      %p192 = scmp.lt.s32.totalorder %s10, 4
      // Predicated region
      $region17: #{generator_forward.5} parent=5 // pred_check
        %p193 = pneg %p192
      $region18: #{generator_forward.5} parent=5 // pred_check_branch
        %195 = sbr.rel (%p193) target = $region20
      $region19: #{generator_forward.5} parent=5 // pred_region
        // Predicated region
        $region21: #{generator_forward.5} parent=19 // pred_check
          %p196 = pneg %p79
        $region22: #{generator_forward.5} parent=19 // pred_check_branch
          %198 = sbr.rel (%p196) target = $region24
        $region23: #{generator_forward.5} parent=19 // pred_region
          %s199 = sand.u32 %s69, 1
          %s200 = sand.u32 %s69, 1
          %s201 = smul.addr %s200, 1024
          %s202 = scalar_lea.vmem [#allocation2], %s201
          %s203 = smul.u32 16, %s19
          %s204 = smul.addr %s17, 1024
          %s205 = sadd.s32 %s203, %s204
          %s206 = smul.addr %s205, 4
          %s207 = scalar_lea.vmem %s1, %s206
          // Predicated region
          $region25: #{generator_forward.5} parent=23 // pred_check
            _
          $region26: #{generator_forward.5} parent=23 // pred_check_branch
            %209 = sbr.rel (0) target = $region28
          $region27: #{generator_forward.5} parent=23 // pred_region
            // Predicated region
            $region29: #{generator_forward.5} parent=27 // pred_check
              _
            $region30: #{generator_forward.5} parent=27 // pred_check_branch
              %211 = sbr.rel (0) target = $region32
            $region31: #{generator_forward.5} parent=27 // pred_region
              loop: start=0, step=1, limit=1
              $region33: #{generator_forward.5} parent=31 // loop_pre_header
                _
              $region34: #{generator_forward.5} parent=31 // loop_header
                %s213 = sphi 0, %s217
                %p214 = scmp.ge.s32.totalorder %s213, 1
                %s218 = sphi %s207, %s207
                %s219 = sphi %s202, %s202
              $region35: #{generator_forward.5} parent=31 // loop_header_branch
                %216 = sbr.rel (%p214) target = $region39
              $region36: #{generator_forward.5} parent=31 // loop_body
                %v220 = vld [vmem:[%s218] sm:$0xff]
                %221 = vst [vmem:[%s219] sm:$0xff] %v220
                %v222 = vld [vmem:[%s218 + $0x8] sm:$0xff]
                %223 = vst [vmem:[%s219 + $0x8] sm:$0xff] %v222
                %v224 = vld [vmem:[%s218 + $0x10] sm:$0xff]
                %225 = vst [vmem:[%s219 + $0x10] sm:$0xff] %v224
                %v226 = vld [vmem:[%s218 + $0x18] sm:$0xff]
                %227 = vst [vmem:[%s219 + $0x18] sm:$0xff] %v226
                %v228 = vld [vmem:[%s218 + $0x20] sm:$0xff]
                %229 = vst [vmem:[%s219 + $0x20] sm:$0xff] %v228
                %v230 = vld [vmem:[%s218 + $0x28] sm:$0xff]
                %231 = vst [vmem:[%s219 + $0x28] sm:$0xff] %v230
                %v232 = vld [vmem:[%s218 + $0x30] sm:$0xff]
                %233 = vst [vmem:[%s219 + $0x30] sm:$0xff] %v232
                %v234 = vld [vmem:[%s218 + $0x38] sm:$0xff]
                %235 = vst [vmem:[%s219 + $0x38] sm:$0xff] %v234
                %v236 = vld [vmem:[%s218 + $0x100] sm:$0xff]
                %237 = vst [vmem:[%s219 + $0x40] sm:$0xff] %v236
                %v238 = vld [vmem:[%s218 + $0x108] sm:$0xff]
                %239 = vst [vmem:[%s219 + $0x48] sm:$0xff] %v238
                %v240 = vld [vmem:[%s218 + $0x110] sm:$0xff]
                %241 = vst [vmem:[%s219 + $0x50] sm:$0xff] %v240
                %v242 = vld [vmem:[%s218 + $0x118] sm:$0xff]
                %243 = vst [vmem:[%s219 + $0x58] sm:$0xff] %v242
                %v244 = vld [vmem:[%s218 + $0x120] sm:$0xff]
                %245 = vst [vmem:[%s219 + $0x60] sm:$0xff] %v244
                %v246 = vld [vmem:[%s218 + $0x128] sm:$0xff]
                %247 = vst [vmem:[%s219 + $0x68] sm:$0xff] %v246
                %v248 = vld [vmem:[%s218 + $0x130] sm:$0xff]
                %249 = vst [vmem:[%s219 + $0x70] sm:$0xff] %v248
                %v250 = vld [vmem:[%s218 + $0x138] sm:$0xff]
                %251 = vst [vmem:[%s219 + $0x78] sm:$0xff] %v250
                %v252 = vld [vmem:[%s218 + $0x200] sm:$0xff]
                %253 = vst [vmem:[%s219 + $0x80] sm:$0xff] %v252
                %v254 = vld [vmem:[%s218 + $0x208] sm:$0xff]
                %255 = vst [vmem:[%s219 + $0x88] sm:$0xff] %v254
                %v256 = vld [vmem:[%s218 + $0x210] sm:$0xff]
                %257 = vst [vmem:[%s219 + $0x90] sm:$0xff] %v256
                %v258 = vld [vmem:[%s218 + $0x218] sm:$0xff]
                %259 = vst [vmem:[%s219 + $0x98] sm:$0xff] %v258
                %v260 = vld [vmem:[%s218 + $0x220] sm:$0xff]
                %261 = vst [vmem:[%s219 + $0xa0] sm:$0xff] %v260
                %v262 = vld [vmem:[%s218 + $0x228] sm:$0xff]
                %263 = vst [vmem:[%s219 + $0xa8] sm:$0xff] %v262
                %v264 = vld [vmem:[%s218 + $0x230] sm:$0xff]
                %265 = vst [vmem:[%s219 + $0xb0] sm:$0xff] %v264
                %v266 = vld [vmem:[%s218 + $0x238] sm:$0xff]
                %267 = vst [vmem:[%s219 + $0xb8] sm:$0xff] %v266
                %v268 = vld [vmem:[%s218 + $0x300] sm:$0xff]
                %269 = vst [vmem:[%s219 + $0xc0] sm:$0xff] %v268
                %v270 = vld [vmem:[%s218 + $0x308] sm:$0xff]
                %271 = vst [vmem:[%s219 + $0xc8] sm:$0xff] %v270
                %v272 = vld [vmem:[%s218 + $0x310] sm:$0xff]
                %273 = vst [vmem:[%s219 + $0xd0] sm:$0xff] %v272
                %v274 = vld [vmem:[%s218 + $0x318] sm:$0xff]
                %275 = vst [vmem:[%s219 + $0xd8] sm:$0xff] %v274
                %v276 = vld [vmem:[%s218 + $0x320] sm:$0xff]
                %277 = vst [vmem:[%s219 + $0xe0] sm:$0xff] %v276
                %v278 = vld [vmem:[%s218 + $0x328] sm:$0xff]
                %279 = vst [vmem:[%s219 + $0xe8] sm:$0xff] %v278
                %v280 = vld [vmem:[%s218 + $0x330] sm:$0xff]
                %281 = vst [vmem:[%s219 + $0xf0] sm:$0xff] %v280
                %v282 = vld [vmem:[%s218 + $0x338] sm:$0xff]
                %283 = vst [vmem:[%s219 + $0xf8] sm:$0xff] %v282
                %v284 = vld [vmem:[%s218 + $0x400] sm:$0xff]
                %285 = vst [vmem:[%s219 + $0x100] sm:$0xff] %v284
                %v286 = vld [vmem:[%s218 + $0x408] sm:$0xff]
                %287 = vst [vmem:[%s219 + $0x108] sm:$0xff] %v286
                %v288 = vld [vmem:[%s218 + $0x410] sm:$0xff]
                %289 = vst [vmem:[%s219 + $0x110] sm:$0xff] %v288
                %v290 = vld [vmem:[%s218 + $0x418] sm:$0xff]
                %291 = vst [vmem:[%s219 + $0x118] sm:$0xff] %v290
                %v292 = vld [vmem:[%s218 + $0x420] sm:$0xff]
                %293 = vst [vmem:[%s219 + $0x120] sm:$0xff] %v292
                %v294 = vld [vmem:[%s218 + $0x428] sm:$0xff]
                %295 = vst [vmem:[%s219 + $0x128] sm:$0xff] %v294
                %v296 = vld [vmem:[%s218 + $0x430] sm:$0xff]
                %297 = vst [vmem:[%s219 + $0x130] sm:$0xff] %v296
                %v298 = vld [vmem:[%s218 + $0x438] sm:$0xff]
                %299 = vst [vmem:[%s219 + $0x138] sm:$0xff] %v298
                %v300 = vld [vmem:[%s218 + $0x500] sm:$0xff]
                %301 = vst [vmem:[%s219 + $0x140] sm:$0xff] %v300
                %v302 = vld [vmem:[%s218 + $0x508] sm:$0xff]
                %303 = vst [vmem:[%s219 + $0x148] sm:$0xff] %v302
                %v304 = vld [vmem:[%s218 + $0x510] sm:$0xff]
                %305 = vst [vmem:[%s219 + $0x150] sm:$0xff] %v304
                %v306 = vld [vmem:[%s218 + $0x518] sm:$0xff]
                %307 = vst [vmem:[%s219 + $0x158] sm:$0xff] %v306
                %v308 = vld [vmem:[%s218 + $0x520] sm:$0xff]
                %309 = vst [vmem:[%s219 + $0x160] sm:$0xff] %v308
                %v310 = vld [vmem:[%s218 + $0x528] sm:$0xff]
                %311 = vst [vmem:[%s219 + $0x168] sm:$0xff] %v310
                %v312 = vld [vmem:[%s218 + $0x530] sm:$0xff]
                %313 = vst [vmem:[%s219 + $0x170] sm:$0xff] %v312
                %v314 = vld [vmem:[%s218 + $0x538] sm:$0xff]
                %315 = vst [vmem:[%s219 + $0x178] sm:$0xff] %v314
                %v316 = vld [vmem:[%s218 + $0x600] sm:$0xff]
                %317 = vst [vmem:[%s219 + $0x180] sm:$0xff] %v316
                %v318 = vld [vmem:[%s218 + $0x608] sm:$0xff]
                %319 = vst [vmem:[%s219 + $0x188] sm:$0xff] %v318
                %v320 = vld [vmem:[%s218 + $0x610] sm:$0xff]
                %321 = vst [vmem:[%s219 + $0x190] sm:$0xff] %v320
                %v322 = vld [vmem:[%s218 + $0x618] sm:$0xff]
                %323 = vst [vmem:[%s219 + $0x198] sm:$0xff] %v322
                %v324 = vld [vmem:[%s218 + $0x620] sm:$0xff]
                %325 = vst [vmem:[%s219 + $0x1a0] sm:$0xff] %v324
                %v326 = vld [vmem:[%s218 + $0x628] sm:$0xff]
                %327 = vst [vmem:[%s219 + $0x1a8] sm:$0xff] %v326
                %v328 = vld [vmem:[%s218 + $0x630] sm:$0xff]
                %329 = vst [vmem:[%s219 + $0x1b0] sm:$0xff] %v328
                %v330 = vld [vmem:[%s218 + $0x638] sm:$0xff]
                %331 = vst [vmem:[%s219 + $0x1b8] sm:$0xff] %v330
                %v332 = vld [vmem:[%s218 + $0x700] sm:$0xff]
                %333 = vst [vmem:[%s219 + $0x1c0] sm:$0xff] %v332
                %v334 = vld [vmem:[%s218 + $0x708] sm:$0xff]
                %335 = vst [vmem:[%s219 + $0x1c8] sm:$0xff] %v334
                %v336 = vld [vmem:[%s218 + $0x710] sm:$0xff]
                %337 = vst [vmem:[%s219 + $0x1d0] sm:$0xff] %v336
                %v338 = vld [vmem:[%s218 + $0x718] sm:$0xff]
                %339 = vst [vmem:[%s219 + $0x1d8] sm:$0xff] %v338
                %v340 = vld [vmem:[%s218 + $0x720] sm:$0xff]
                %341 = vst [vmem:[%s219 + $0x1e0] sm:$0xff] %v340
                %v342 = vld [vmem:[%s218 + $0x728] sm:$0xff]
                %343 = vst [vmem:[%s219 + $0x1e8] sm:$0xff] %v342
                %v344 = vld [vmem:[%s218 + $0x730] sm:$0xff]
                %345 = vst [vmem:[%s219 + $0x1f0] sm:$0xff] %v344
                %v346 = vld [vmem:[%s218 + $0x738] sm:$0xff]
                %347 = vst [vmem:[%s219 + $0x1f8] sm:$0xff] %v346
                %v348 = vld [vmem:[%s218 + $0x800] sm:$0xff]
                %349 = vst [vmem:[%s219 + $0x200] sm:$0xff] %v348
                %v350 = vld [vmem:[%s218 + $0x808] sm:$0xff]
                %351 = vst [vmem:[%s219 + $0x208] sm:$0xff] %v350
                %v352 = vld [vmem:[%s218 + $0x810] sm:$0xff]
                %353 = vst [vmem:[%s219 + $0x210] sm:$0xff] %v352
                %v354 = vld [vmem:[%s218 + $0x818] sm:$0xff]
                %355 = vst [vmem:[%s219 + $0x218] sm:$0xff] %v354
                %v356 = vld [vmem:[%s218 + $0x820] sm:$0xff]
                %357 = vst [vmem:[%s219 + $0x220] sm:$0xff] %v356
                %v358 = vld [vmem:[%s218 + $0x828] sm:$0xff]
                %359 = vst [vmem:[%s219 + $0x228] sm:$0xff] %v358
                %v360 = vld [vmem:[%s218 + $0x830] sm:$0xff]
                %361 = vst [vmem:[%s219 + $0x230] sm:$0xff] %v360
                %v362 = vld [vmem:[%s218 + $0x838] sm:$0xff]
                %363 = vst [vmem:[%s219 + $0x238] sm:$0xff] %v362
                %v364 = vld [vmem:[%s218 + $0x900] sm:$0xff]
                %365 = vst [vmem:[%s219 + $0x240] sm:$0xff] %v364
                %v366 = vld [vmem:[%s218 + $0x908] sm:$0xff]
                %367 = vst [vmem:[%s219 + $0x248] sm:$0xff] %v366
                %v368 = vld [vmem:[%s218 + $0x910] sm:$0xff]
                %369 = vst [vmem:[%s219 + $0x250] sm:$0xff] %v368
                %v370 = vld [vmem:[%s218 + $0x918] sm:$0xff]
                %371 = vst [vmem:[%s219 + $0x258] sm:$0xff] %v370
                %v372 = vld [vmem:[%s218 + $0x920] sm:$0xff]
                %373 = vst [vmem:[%s219 + $0x260] sm:$0xff] %v372
                %v374 = vld [vmem:[%s218 + $0x928] sm:$0xff]
                %375 = vst [vmem:[%s219 + $0x268] sm:$0xff] %v374
                %v376 = vld [vmem:[%s218 + $0x930] sm:$0xff]
                %377 = vst [vmem:[%s219 + $0x270] sm:$0xff] %v376
                %v378 = vld [vmem:[%s218 + $0x938] sm:$0xff]
                %379 = vst [vmem:[%s219 + $0x278] sm:$0xff] %v378
                %v380 = vld [vmem:[%s218 + $0xa00] sm:$0xff]
                %381 = vst [vmem:[%s219 + $0x280] sm:$0xff] %v380
                %v382 = vld [vmem:[%s218 + $0xa08] sm:$0xff]
                %383 = vst [vmem:[%s219 + $0x288] sm:$0xff] %v382
                %v384 = vld [vmem:[%s218 + $0xa10] sm:$0xff]
                %385 = vst [vmem:[%s219 + $0x290] sm:$0xff] %v384
                %v386 = vld [vmem:[%s218 + $0xa18] sm:$0xff]
                %387 = vst [vmem:[%s219 + $0x298] sm:$0xff] %v386
                %v388 = vld [vmem:[%s218 + $0xa20] sm:$0xff]
                %389 = vst [vmem:[%s219 + $0x2a0] sm:$0xff] %v388
                %v390 = vld [vmem:[%s218 + $0xa28] sm:$0xff]
                %391 = vst [vmem:[%s219 + $0x2a8] sm:$0xff] %v390
                %v392 = vld [vmem:[%s218 + $0xa30] sm:$0xff]
                %393 = vst [vmem:[%s219 + $0x2b0] sm:$0xff] %v392
                %v394 = vld [vmem:[%s218 + $0xa38] sm:$0xff]
                %395 = vst [vmem:[%s219 + $0x2b8] sm:$0xff] %v394
                %v396 = vld [vmem:[%s218 + $0xb00] sm:$0xff]
                %397 = vst [vmem:[%s219 + $0x2c0] sm:$0xff] %v396
                %v398 = vld [vmem:[%s218 + $0xb08] sm:$0xff]
                %399 = vst [vmem:[%s219 + $0x2c8] sm:$0xff] %v398
                %v400 = vld [vmem:[%s218 + $0xb10] sm:$0xff]
                %401 = vst [vmem:[%s219 + $0x2d0] sm:$0xff] %v400
                %v402 = vld [vmem:[%s218 + $0xb18] sm:$0xff]
                %403 = vst [vmem:[%s219 + $0x2d8] sm:$0xff] %v402
                %v404 = vld [vmem:[%s218 + $0xb20] sm:$0xff]
                %405 = vst [vmem:[%s219 + $0x2e0] sm:$0xff] %v404
                %v406 = vld [vmem:[%s218 + $0xb28] sm:$0xff]
                %407 = vst [vmem:[%s219 + $0x2e8] sm:$0xff] %v406
                %v408 = vld [vmem:[%s218 + $0xb30] sm:$0xff]
                %409 = vst [vmem:[%s219 + $0x2f0] sm:$0xff] %v408
                %v410 = vld [vmem:[%s218 + $0xb38] sm:$0xff]
                %411 = vst [vmem:[%s219 + $0x2f8] sm:$0xff] %v410
                %v412 = vld [vmem:[%s218 + $0xc00] sm:$0xff]
                %413 = vst [vmem:[%s219 + $0x300] sm:$0xff] %v412
                %v414 = vld [vmem:[%s218 + $0xc08] sm:$0xff]
                %415 = vst [vmem:[%s219 + $0x308] sm:$0xff] %v414
                %v416 = vld [vmem:[%s218 + $0xc10] sm:$0xff]
                %417 = vst [vmem:[%s219 + $0x310] sm:$0xff] %v416
                %v418 = vld [vmem:[%s218 + $0xc18] sm:$0xff]
                %419 = vst [vmem:[%s219 + $0x318] sm:$0xff] %v418
                %v420 = vld [vmem:[%s218 + $0xc20] sm:$0xff]
                %421 = vst [vmem:[%s219 + $0x320] sm:$0xff] %v420
                %v422 = vld [vmem:[%s218 + $0xc28] sm:$0xff]
                %423 = vst [vmem:[%s219 + $0x328] sm:$0xff] %v422
                %v424 = vld [vmem:[%s218 + $0xc30] sm:$0xff]
                %425 = vst [vmem:[%s219 + $0x330] sm:$0xff] %v424
                %v426 = vld [vmem:[%s218 + $0xc38] sm:$0xff]
                %427 = vst [vmem:[%s219 + $0x338] sm:$0xff] %v426
                %v428 = vld [vmem:[%s218 + $0xd00] sm:$0xff]
                %429 = vst [vmem:[%s219 + $0x340] sm:$0xff] %v428
                %v430 = vld [vmem:[%s218 + $0xd08] sm:$0xff]
                %431 = vst [vmem:[%s219 + $0x348] sm:$0xff] %v430
                %v432 = vld [vmem:[%s218 + $0xd10] sm:$0xff]
                %433 = vst [vmem:[%s219 + $0x350] sm:$0xff] %v432
                %v434 = vld [vmem:[%s218 + $0xd18] sm:$0xff]
                %435 = vst [vmem:[%s219 + $0x358] sm:$0xff] %v434
                %v436 = vld [vmem:[%s218 + $0xd20] sm:$0xff]
                %437 = vst [vmem:[%s219 + $0x360] sm:$0xff] %v436
                %v438 = vld [vmem:[%s218 + $0xd28] sm:$0xff]
                %439 = vst [vmem:[%s219 + $0x368] sm:$0xff] %v438
                %v440 = vld [vmem:[%s218 + $0xd30] sm:$0xff]
                %441 = vst [vmem:[%s219 + $0x370] sm:$0xff] %v440
                %v442 = vld [vmem:[%s218 + $0xd38] sm:$0xff]
                %443 = vst [vmem:[%s219 + $0x378] sm:$0xff] %v442
                %v444 = vld [vmem:[%s218 + $0xe00] sm:$0xff]
                %445 = vst [vmem:[%s219 + $0x380] sm:$0xff] %v444
                %v446 = vld [vmem:[%s218 + $0xe08] sm:$0xff]
                %447 = vst [vmem:[%s219 + $0x388] sm:$0xff] %v446
                %v448 = vld [vmem:[%s218 + $0xe10] sm:$0xff]
                %449 = vst [vmem:[%s219 + $0x390] sm:$0xff] %v448
                %v450 = vld [vmem:[%s218 + $0xe18] sm:$0xff]
                %451 = vst [vmem:[%s219 + $0x398] sm:$0xff] %v450
                %v452 = vld [vmem:[%s218 + $0xe20] sm:$0xff]
                %453 = vst [vmem:[%s219 + $0x3a0] sm:$0xff] %v452
                %v454 = vld [vmem:[%s218 + $0xe28] sm:$0xff]
                %455 = vst [vmem:[%s219 + $0x3a8] sm:$0xff] %v454
                %v456 = vld [vmem:[%s218 + $0xe30] sm:$0xff]
                %457 = vst [vmem:[%s219 + $0x3b0] sm:$0xff] %v456
                %v458 = vld [vmem:[%s218 + $0xe38] sm:$0xff]
                %459 = vst [vmem:[%s219 + $0x3b8] sm:$0xff] %v458
                %v460 = vld [vmem:[%s218 + $0xf00] sm:$0xff]
                %461 = vst [vmem:[%s219 + $0x3c0] sm:$0xff] %v460
                %v462 = vld [vmem:[%s218 + $0xf08] sm:$0xff]
                %463 = vst [vmem:[%s219 + $0x3c8] sm:$0xff] %v462
                %v464 = vld [vmem:[%s218 + $0xf10] sm:$0xff]
                %465 = vst [vmem:[%s219 + $0x3d0] sm:$0xff] %v464
                %v466 = vld [vmem:[%s218 + $0xf18] sm:$0xff]
                %467 = vst [vmem:[%s219 + $0x3d8] sm:$0xff] %v466
                %v468 = vld [vmem:[%s218 + $0xf20] sm:$0xff]
                %469 = vst [vmem:[%s219 + $0x3e0] sm:$0xff] %v468
                %v470 = vld [vmem:[%s218 + $0xf28] sm:$0xff]
                %471 = vst [vmem:[%s219 + $0x3e8] sm:$0xff] %v470
                %v472 = vld [vmem:[%s218 + $0xf30] sm:$0xff]
                %473 = vst [vmem:[%s219 + $0x3f0] sm:$0xff] %v472
                %v474 = vld [vmem:[%s218 + $0xf38] sm:$0xff]
                %475 = vst [vmem:[%s219 + $0x3f8] sm:$0xff] %v474
              $region37: #{generator_forward.5} parent=31 // loop_footer
                %s217 = sadd.s32 1, %s213
              $region38: #{generator_forward.5} parent=31 // loop_footer_branch
                %212 = sbr.rel target = $region34
              $region39: #{generator_forward.5} parent=31 // loop_exit
                _
            $region32: #{generator_forward.5} parent=27 // pred_fallthru
              _
            // Predicated region
            $region40: #{generator_forward.5} parent=27 // pred_check
              _
            $region41: #{generator_forward.5} parent=27 // pred_check_branch
              %477 = sbr.rel target = $region43
            $region42: #{generator_forward.5} parent=27 // pred_region
              _
            $region43: #{generator_forward.5} parent=27 // pred_fallthru
              _
          $region28: #{generator_forward.5} parent=23 // pred_fallthru
            _
          %478 = vnop
        $region24: #{generator_forward.5} parent=19 // pred_fallthru
          _
        // Predicated region
        $region44: #{generator_forward.5} parent=19 // pred_check
          %p479 = pneg %p105
        $region45: #{generator_forward.5} parent=19 // pred_check_branch
          %481 = sbr.rel (%p479) target = $region47
        $region46: #{generator_forward.5} parent=19 // pred_region
          %s482 = smul.u32 16, %s19
          %p483 = scmp.lt.s32.totalorder %s482, 63
          %s484 = scalar_select %p483, %s482, 63
          %s485 = scalar_lea.vmem %s2, %s484
          %s486 = smul.u32 16, %s19
        $region47: #{generator_forward.5} parent=19 // pred_fallthru
          _
        // Predicated region
        $region48: #{generator_forward.5} parent=19 // pred_check
          %p487 = pneg %p131
        $region49: #{generator_forward.5} parent=19 // pred_check_branch
          %489 = sbr.rel (%p487) target = $region51
        $region50: #{generator_forward.5} parent=19 // pred_region
          %s490 = smul.u32 16, %s19
          %p491 = scmp.lt.s32.totalorder %s490, 63
          %s492 = scalar_select %p491, %s490, 63
          %s493 = scalar_lea.vmem %s3, %s492
          %s494 = smul.u32 16, %s19
        $region51: #{generator_forward.5} parent=19 // pred_fallthru
          _
      $region20: #{generator_forward.5} parent=5 // pred_fallthru
        _
      %p495 = scmp.le.s32.totalorder 1, %s10
      %p496 = scmp.lt.s32.totalorder %s10, 5
      %p497 = pnand %p495, %p496
      %p498 = pneg %p497
      // Predicated region
      $region52: #{generator_forward.5} parent=5 // pred_check
        _
      $region53: #{generator_forward.5} parent=5 // pred_check_branch
        %500 = sbr.rel (%p497) target = $region55
      $region54: #{generator_forward.5} parent=5 // pred_region
        %s501 = ssub.s32 %s10, 1
        %s502 = sand.u32 %s72, 1
        %s503 = sand.u32 %s72, 1
        %s504 = smul.addr %s503, 1024
        %s505 = scalar_lea.vmem [#allocation2], %s504
        // Predicated region
        $region56: #{generator_forward.5} parent=54 // pred_check
          %p506 = pneg %p85
        $region57: #{generator_forward.5} parent=54 // pred_check_branch
          %508 = sbr.rel (%p506) target = $region59
        $region58: #{generator_forward.5} parent=54 // pred_region
          _
        $region59: #{generator_forward.5} parent=54 // pred_fallthru
          _
        %p509 = scmp.lt.s32.totalorder %s20, 0
        %s510 = scalar_select %p509, %s20, 0
        %p511 = scmp.lt.s32.totalorder %s21, 0
        %s512 = scalar_select %p511, %s21, 0
        %s513 = sadd.s32 %s512, %s510
        %s514 = smul.addr %s513, 4
        %s515 = scalar_lea.vmem %s0, %s514
        %p516 = pneg %p57
        %p517 = pneg %p54
        %s518 = sand.u32 %s72, 1
        %s519 = sand.u32 %s72, 1
        %s520 = smul.addr %s519, 1024
        %s521 = scalar_lea.vmem [#allocation2], %s520
        %p522 = pneg %p85
        %p523 = pneg %p82
        %s524 = smul.u32 16, %s22
        %p525 = scmp.lt.s32.totalorder %s524, 63
        %s526 = scalar_select %p525, %s524, 63
        %s527 = scalar_lea.vmem %s2, %s526
        %p528 = pneg %p111
        %p529 = pneg %p108
        %s530 = smul.u32 16, %s22
        %p531 = scmp.lt.s32.totalorder %s530, 63
        %s532 = scalar_select %p531, %s530, 63
        %s533 = scalar_lea.vmem %s3, %s532
        %p534 = pneg %p137
        %p535 = pneg %p134
        %p536 = pneg %p167
        %p537 = pneg %p164
        %s538 = smul.u32 16, %s22
        %p539 = scmp.lt.s32.totalorder %s20, 0
        %s540 = scalar_select %p539, %s20, 0
        %p541 = scmp.lt.s32.totalorder %s21, 0
        %s542 = scalar_select %p541, %s21, 0
        %p543 = scmp.lt.s32.totalorder %s538, 63
        %s544 = scalar_select %p543, %s538, 63
        %s545 = smul.addr %s542, 64
        %s546 = sadd.s32 %s544, %s545
        %s547 = smul.addr %s540, 64
        %s548 = sadd.s32 %s546, %s547
        %s549 = smul.addr %s548, 4
        %s550 = scalar_lea.vmem %s4, %s549
        %p551 = scmp.lt.s32.totalorder %s20, 0
        %s552 = scalar_select %p551, %s20, 0
        %p553 = scmp.lt.s32.totalorder %s21, 0
        %s554 = scalar_select %p553, %s21, 0
        %s555 = sadd.s32 %s554, %s552
        %s556 = smul.addr %s555, 4
        %s557 = scalar_lea.vmem %s0, %s556
        %s558 = smul.u32 16, %s22
        %s559 = smul.u32 16, %s22
        %p560 = scmp.lt.s32.totalorder %s559, 63
        %s561 = scalar_select %p560, %s559, 63
        %s562 = scalar_lea.vmem %s2, %s561
        %s563 = smul.u32 16, %s22
        %s564 = smul.u32 16, %s22
        %p565 = scmp.lt.s32.totalorder %s564, 63
        %s566 = scalar_select %p565, %s564, 63
        %s567 = scalar_lea.vmem %s3, %s566
        %s568 = smul.u32 16, %s22
        %s569 = smul.u32 16, %s22
        %p570 = scmp.lt.s32.totalorder %s20, 0
        %s571 = scalar_select %p570, %s20, 0
        %p572 = scmp.lt.s32.totalorder %s21, 0
        %s573 = scalar_select %p572, %s21, 0
        %p574 = scmp.lt.s32.totalorder %s569, 63
        %s575 = scalar_select %p574, %s569, 63
        %s576 = smul.addr %s573, 64
        %s577 = sadd.s32 %s575, %s576
        %s578 = smul.addr %s571, 64
        %s579 = sadd.s32 %s577, %s578
        %s580 = smul.addr %s579, 4
        %s581 = scalar_lea.vmem %s4, %s580
        %s582 = smul.u32 16, %s22
        %v583 = vld [vmem:[%s557] sm:$0xf]
        %v584 = vld [vmem:[%s505] sm:$0xff]
        %v585 = vld [vmem:[%s505 + $0x8] sm:$0xff]
        %v586 = vld [vmem:[%s505 + $0x10] sm:$0xff]
        %v587 = vld [vmem:[%s505 + $0x18] sm:$0xff]
        %v588 = vld [vmem:[%s505 + $0x20] sm:$0xff]
        %v589 = vld [vmem:[%s505 + $0x28] sm:$0xff]
        %v590 = vld [vmem:[%s505 + $0x30] sm:$0xff]
        %v591 = vld [vmem:[%s505 + $0x38] sm:$0xff]
        %v592 = vld [vmem:[%s505 + $0x40] sm:$0xff]
        %v593 = vld [vmem:[%s505 + $0x48] sm:$0xff]
        %v594 = vld [vmem:[%s505 + $0x50] sm:$0xff]
        %v595 = vld [vmem:[%s505 + $0x58] sm:$0xff]
        %v596 = vld [vmem:[%s505 + $0x60] sm:$0xff]
        %v597 = vld [vmem:[%s505 + $0x68] sm:$0xff]
        %v598 = vld [vmem:[%s505 + $0x70] sm:$0xff]
        %v599 = vld [vmem:[%s505 + $0x78] sm:$0xff]
        %v600 = vld [vmem:[%s505 + $0x80] sm:$0xff]
        %v601 = vld [vmem:[%s505 + $0x88] sm:$0xff]
        %v602 = vld [vmem:[%s505 + $0x90] sm:$0xff]
        %v603 = vld [vmem:[%s505 + $0x98] sm:$0xff]
        %v604 = vld [vmem:[%s505 + $0xa0] sm:$0xff]
        %v605 = vld [vmem:[%s505 + $0xa8] sm:$0xff]
        %v606 = vld [vmem:[%s505 + $0xb0] sm:$0xff]
        %v607 = vld [vmem:[%s505 + $0xb8] sm:$0xff]
        %v608 = vld [vmem:[%s505 + $0xc0] sm:$0xff]
        %v609 = vld [vmem:[%s505 + $0xc8] sm:$0xff]
        %v610 = vld [vmem:[%s505 + $0xd0] sm:$0xff]
        %v611 = vld [vmem:[%s505 + $0xd8] sm:$0xff]
        %v612 = vld [vmem:[%s505 + $0xe0] sm:$0xff]
        %v613 = vld [vmem:[%s505 + $0xe8] sm:$0xff]
        %v614 = vld [vmem:[%s505 + $0xf0] sm:$0xff]
        %v615 = vld [vmem:[%s505 + $0xf8] sm:$0xff]
        %v616 = vld [vmem:[%s505 + $0x100] sm:$0xff]
        %v617 = vld [vmem:[%s505 + $0x108] sm:$0xff]
        %v618 = vld [vmem:[%s505 + $0x110] sm:$0xff]
        %v619 = vld [vmem:[%s505 + $0x118] sm:$0xff]
        %v620 = vld [vmem:[%s505 + $0x120] sm:$0xff]
        %v621 = vld [vmem:[%s505 + $0x128] sm:$0xff]
        %v622 = vld [vmem:[%s505 + $0x130] sm:$0xff]
        %v623 = vld [vmem:[%s505 + $0x138] sm:$0xff]
        %v624 = vld [vmem:[%s505 + $0x140] sm:$0xff]
        %v625 = vld [vmem:[%s505 + $0x148] sm:$0xff]
        %v626 = vld [vmem:[%s505 + $0x150] sm:$0xff]
        %v627 = vld [vmem:[%s505 + $0x158] sm:$0xff]
        %v628 = vld [vmem:[%s505 + $0x160] sm:$0xff]
        %v629 = vld [vmem:[%s505 + $0x168] sm:$0xff]
        %v630 = vld [vmem:[%s505 + $0x170] sm:$0xff]
        %v631 = vld [vmem:[%s505 + $0x178] sm:$0xff]
        %v632 = vld [vmem:[%s505 + $0x180] sm:$0xff]
        %v633 = vld [vmem:[%s505 + $0x188] sm:$0xff]
        %v634 = vld [vmem:[%s505 + $0x190] sm:$0xff]
        %v635 = vld [vmem:[%s505 + $0x198] sm:$0xff]
        %v636 = vld [vmem:[%s505 + $0x1a0] sm:$0xff]
        %v637 = vld [vmem:[%s505 + $0x1a8] sm:$0xff]
        %v638 = vld [vmem:[%s505 + $0x1b0] sm:$0xff]
        %v639 = vld [vmem:[%s505 + $0x1b8] sm:$0xff]
        %v640 = vld [vmem:[%s505 + $0x1c0] sm:$0xff]
        %v641 = vld [vmem:[%s505 + $0x1c8] sm:$0xff]
        %v642 = vld [vmem:[%s505 + $0x1d0] sm:$0xff]
        %v643 = vld [vmem:[%s505 + $0x1d8] sm:$0xff]
        %v644 = vld [vmem:[%s505 + $0x1e0] sm:$0xff]
        %v645 = vld [vmem:[%s505 + $0x1e8] sm:$0xff]
        %v646 = vld [vmem:[%s505 + $0x1f0] sm:$0xff]
        %v647 = vld [vmem:[%s505 + $0x1f8] sm:$0xff]
        %v648 = vld [vmem:[%s505 + $0x200] sm:$0xff]
        %v649 = vld [vmem:[%s505 + $0x208] sm:$0xff]
        %v650 = vld [vmem:[%s505 + $0x210] sm:$0xff]
        %v651 = vld [vmem:[%s505 + $0x218] sm:$0xff]
        %v652 = vld [vmem:[%s505 + $0x220] sm:$0xff]
        %v653 = vld [vmem:[%s505 + $0x228] sm:$0xff]
        %v654 = vld [vmem:[%s505 + $0x230] sm:$0xff]
        %v655 = vld [vmem:[%s505 + $0x238] sm:$0xff]
        %v656 = vld [vmem:[%s505 + $0x240] sm:$0xff]
        %v657 = vld [vmem:[%s505 + $0x248] sm:$0xff]
        %v658 = vld [vmem:[%s505 + $0x250] sm:$0xff]
        %v659 = vld [vmem:[%s505 + $0x258] sm:$0xff]
        %v660 = vld [vmem:[%s505 + $0x260] sm:$0xff]
        %v661 = vld [vmem:[%s505 + $0x268] sm:$0xff]
        %v662 = vld [vmem:[%s505 + $0x270] sm:$0xff]
        %v663 = vld [vmem:[%s505 + $0x278] sm:$0xff]
        %v664 = vld [vmem:[%s505 + $0x280] sm:$0xff]
        %v665 = vld [vmem:[%s505 + $0x288] sm:$0xff]
        %v666 = vld [vmem:[%s505 + $0x290] sm:$0xff]
        %v667 = vld [vmem:[%s505 + $0x298] sm:$0xff]
        %v668 = vld [vmem:[%s505 + $0x2a0] sm:$0xff]
        %v669 = vld [vmem:[%s505 + $0x2a8] sm:$0xff]
        %v670 = vld [vmem:[%s505 + $0x2b0] sm:$0xff]
        %v671 = vld [vmem:[%s505 + $0x2b8] sm:$0xff]
        %v672 = vld [vmem:[%s505 + $0x2c0] sm:$0xff]
        %v673 = vld [vmem:[%s505 + $0x2c8] sm:$0xff]
        %v674 = vld [vmem:[%s505 + $0x2d0] sm:$0xff]
        %v675 = vld [vmem:[%s505 + $0x2d8] sm:$0xff]
        %v676 = vld [vmem:[%s505 + $0x2e0] sm:$0xff]
        %v677 = vld [vmem:[%s505 + $0x2e8] sm:$0xff]
        %v678 = vld [vmem:[%s505 + $0x2f0] sm:$0xff]
        %v679 = vld [vmem:[%s505 + $0x2f8] sm:$0xff]
        %v680 = vld [vmem:[%s505 + $0x300] sm:$0xff]
        %v681 = vld [vmem:[%s505 + $0x308] sm:$0xff]
        %v682 = vld [vmem:[%s505 + $0x310] sm:$0xff]
        %v683 = vld [vmem:[%s505 + $0x318] sm:$0xff]
        %v684 = vld [vmem:[%s505 + $0x320] sm:$0xff]
        %v685 = vld [vmem:[%s505 + $0x328] sm:$0xff]
        %v686 = vld [vmem:[%s505 + $0x330] sm:$0xff]
        %v687 = vld [vmem:[%s505 + $0x338] sm:$0xff]
        %v688 = vld [vmem:[%s505 + $0x340] sm:$0xff]
        %v689 = vld [vmem:[%s505 + $0x348] sm:$0xff]
        %v690 = vld [vmem:[%s505 + $0x350] sm:$0xff]
        %v691 = vld [vmem:[%s505 + $0x358] sm:$0xff]
        %v692 = vld [vmem:[%s505 + $0x360] sm:$0xff]
        %v693 = vld [vmem:[%s505 + $0x368] sm:$0xff]
        %v694 = vld [vmem:[%s505 + $0x370] sm:$0xff]
        %v695 = vld [vmem:[%s505 + $0x378] sm:$0xff]
        %v696 = vld [vmem:[%s505 + $0x380] sm:$0xff]
        %v697 = vld [vmem:[%s505 + $0x388] sm:$0xff]
        %v698 = vld [vmem:[%s505 + $0x390] sm:$0xff]
        %v699 = vld [vmem:[%s505 + $0x398] sm:$0xff]
        %v700 = vld [vmem:[%s505 + $0x3a0] sm:$0xff]
        %v701 = vld [vmem:[%s505 + $0x3a8] sm:$0xff]
        %v702 = vld [vmem:[%s505 + $0x3b0] sm:$0xff]
        %v703 = vld [vmem:[%s505 + $0x3b8] sm:$0xff]
        %v704 = vld [vmem:[%s505 + $0x3c0] sm:$0xff]
        %v705 = vld [vmem:[%s505 + $0x3c8] sm:$0xff]
        %v706 = vld [vmem:[%s505 + $0x3d0] sm:$0xff]
        %v707 = vld [vmem:[%s505 + $0x3d8] sm:$0xff]
        %v708 = vld [vmem:[%s505 + $0x3e0] sm:$0xff]
        %v709 = vld [vmem:[%s505 + $0x3e8] sm:$0xff]
        %v710 = vld [vmem:[%s505 + $0x3f0] sm:$0xff]
        %v711 = vld [vmem:[%s505 + $0x3f8] sm:$0xff]
        %v840 = vunpack.c.l.b16 %v584
        %v841 = vunpack.c.h.b16 %v584
        %v842 = vunpack.c.l.b16 %v585
        %v843 = vunpack.c.h.b16 %v585
        %v844 = vunpack.c.l.b16 %v586
        %v845 = vunpack.c.h.b16 %v586
        %v846 = vunpack.c.l.b16 %v587
        %v847 = vunpack.c.h.b16 %v587
        %v848 = vunpack.c.l.b16 %v588
        %v849 = vunpack.c.h.b16 %v588
        %v850 = vunpack.c.l.b16 %v589
        %v851 = vunpack.c.h.b16 %v589
        %v852 = vunpack.c.l.b16 %v590
        %v853 = vunpack.c.h.b16 %v590
        %v854 = vunpack.c.l.b16 %v591
        %v855 = vunpack.c.h.b16 %v591
        %v856 = vunpack.c.l.b16 %v592
        %v857 = vunpack.c.h.b16 %v592
        %v858 = vunpack.c.l.b16 %v593
        %v859 = vunpack.c.h.b16 %v593
        %v860 = vunpack.c.l.b16 %v594
        %v861 = vunpack.c.h.b16 %v594
        %v862 = vunpack.c.l.b16 %v595
        %v863 = vunpack.c.h.b16 %v595
        %v864 = vunpack.c.l.b16 %v596
        %v865 = vunpack.c.h.b16 %v596
        %v866 = vunpack.c.l.b16 %v597
        %v867 = vunpack.c.h.b16 %v597
        %v868 = vunpack.c.l.b16 %v598
        %v869 = vunpack.c.h.b16 %v598
        %v870 = vunpack.c.l.b16 %v599
        %v871 = vunpack.c.h.b16 %v599
        %v872 = vunpack.c.l.b16 %v600
        %v873 = vunpack.c.h.b16 %v600
        %v874 = vunpack.c.l.b16 %v601
        %v875 = vunpack.c.h.b16 %v601
        %v876 = vunpack.c.l.b16 %v602
        %v877 = vunpack.c.h.b16 %v602
        %v878 = vunpack.c.l.b16 %v603
        %v879 = vunpack.c.h.b16 %v603
        %v880 = vunpack.c.l.b16 %v604
        %v881 = vunpack.c.h.b16 %v604
        %v882 = vunpack.c.l.b16 %v605
        %v883 = vunpack.c.h.b16 %v605
        %v884 = vunpack.c.l.b16 %v606
        %v885 = vunpack.c.h.b16 %v606
        %v886 = vunpack.c.l.b16 %v607
        %v887 = vunpack.c.h.b16 %v607
        %v888 = vunpack.c.l.b16 %v608
        %v889 = vunpack.c.h.b16 %v608
        %v890 = vunpack.c.l.b16 %v609
        %v891 = vunpack.c.h.b16 %v609
        %v892 = vunpack.c.l.b16 %v610
        %v893 = vunpack.c.h.b16 %v610
        %v894 = vunpack.c.l.b16 %v611
        %v895 = vunpack.c.h.b16 %v611
        %v896 = vunpack.c.l.b16 %v612
        %v897 = vunpack.c.h.b16 %v612
        %v898 = vunpack.c.l.b16 %v613
        %v899 = vunpack.c.h.b16 %v613
        %v900 = vunpack.c.l.b16 %v614
        %v901 = vunpack.c.h.b16 %v614
        %v902 = vunpack.c.l.b16 %v615
        %v903 = vunpack.c.h.b16 %v615
        %v904 = vunpack.c.l.b16 %v616
        %v905 = vunpack.c.h.b16 %v616
        %v906 = vunpack.c.l.b16 %v617
        %v907 = vunpack.c.h.b16 %v617
        %v908 = vunpack.c.l.b16 %v618
        %v909 = vunpack.c.h.b16 %v618
        %v910 = vunpack.c.l.b16 %v619
        %v911 = vunpack.c.h.b16 %v619
        %v912 = vunpack.c.l.b16 %v620
        %v913 = vunpack.c.h.b16 %v620
        %v914 = vunpack.c.l.b16 %v621
        %v915 = vunpack.c.h.b16 %v621
        %v916 = vunpack.c.l.b16 %v622
        %v917 = vunpack.c.h.b16 %v622
        %v918 = vunpack.c.l.b16 %v623
        %v919 = vunpack.c.h.b16 %v623
        %v920 = vunpack.c.l.b16 %v624
        %v921 = vunpack.c.h.b16 %v624
        %v922 = vunpack.c.l.b16 %v625
        %v923 = vunpack.c.h.b16 %v625
        %v924 = vunpack.c.l.b16 %v626
        %v925 = vunpack.c.h.b16 %v626
        %v926 = vunpack.c.l.b16 %v627
        %v927 = vunpack.c.h.b16 %v627
        %v928 = vunpack.c.l.b16 %v628
        %v929 = vunpack.c.h.b16 %v628
        %v930 = vunpack.c.l.b16 %v629
        %v931 = vunpack.c.h.b16 %v629
        %v932 = vunpack.c.l.b16 %v630
        %v933 = vunpack.c.h.b16 %v630
        %v934 = vunpack.c.l.b16 %v631
        %v935 = vunpack.c.h.b16 %v631
        %v936 = vunpack.c.l.b16 %v632
        %v937 = vunpack.c.h.b16 %v632
        %v938 = vunpack.c.l.b16 %v633
        %v939 = vunpack.c.h.b16 %v633
        %v940 = vunpack.c.l.b16 %v634
        %v941 = vunpack.c.h.b16 %v634
        %v942 = vunpack.c.l.b16 %v635
        %v943 = vunpack.c.h.b16 %v635
        %v944 = vunpack.c.l.b16 %v636
        %v945 = vunpack.c.h.b16 %v636
        %v946 = vunpack.c.l.b16 %v637
        %v947 = vunpack.c.h.b16 %v637
        %v948 = vunpack.c.l.b16 %v638
        %v949 = vunpack.c.h.b16 %v638
        %v950 = vunpack.c.l.b16 %v639
        %v951 = vunpack.c.h.b16 %v639
        %v952 = vunpack.c.l.b16 %v640
        %v953 = vunpack.c.h.b16 %v640
        %v954 = vunpack.c.l.b16 %v641
        %v955 = vunpack.c.h.b16 %v641
        %v956 = vunpack.c.l.b16 %v642
        %v957 = vunpack.c.h.b16 %v642
        %v958 = vunpack.c.l.b16 %v643
        %v959 = vunpack.c.h.b16 %v643
        %v960 = vunpack.c.l.b16 %v644
        %v961 = vunpack.c.h.b16 %v644
        %v962 = vunpack.c.l.b16 %v645
        %v963 = vunpack.c.h.b16 %v645
        %v964 = vunpack.c.l.b16 %v646
        %v965 = vunpack.c.h.b16 %v646
        %v966 = vunpack.c.l.b16 %v647
        %v967 = vunpack.c.h.b16 %v647
        %v968 = vunpack.c.l.b16 %v648
        %v969 = vunpack.c.h.b16 %v648
        %v970 = vunpack.c.l.b16 %v649
        %v971 = vunpack.c.h.b16 %v649
        %v972 = vunpack.c.l.b16 %v650
        %v973 = vunpack.c.h.b16 %v650
        %v974 = vunpack.c.l.b16 %v651
        %v975 = vunpack.c.h.b16 %v651
        %v976 = vunpack.c.l.b16 %v652
        %v977 = vunpack.c.h.b16 %v652
        %v978 = vunpack.c.l.b16 %v653
        %v979 = vunpack.c.h.b16 %v653
        %v980 = vunpack.c.l.b16 %v654
        %v981 = vunpack.c.h.b16 %v654
        %v982 = vunpack.c.l.b16 %v655
        %v983 = vunpack.c.h.b16 %v655
        %v984 = vunpack.c.l.b16 %v656
        %v985 = vunpack.c.h.b16 %v656
        %v986 = vunpack.c.l.b16 %v657
        %v987 = vunpack.c.h.b16 %v657
        %v988 = vunpack.c.l.b16 %v658
        %v989 = vunpack.c.h.b16 %v658
        %v990 = vunpack.c.l.b16 %v659
        %v991 = vunpack.c.h.b16 %v659
        %v992 = vunpack.c.l.b16 %v660
        %v993 = vunpack.c.h.b16 %v660
        %v994 = vunpack.c.l.b16 %v661
        %v995 = vunpack.c.h.b16 %v661
        %v996 = vunpack.c.l.b16 %v662
        %v997 = vunpack.c.h.b16 %v662
        %v998 = vunpack.c.l.b16 %v663
        %v999 = vunpack.c.h.b16 %v663
        %v1000 = vunpack.c.l.b16 %v664
        %v1001 = vunpack.c.h.b16 %v664
        %v1002 = vunpack.c.l.b16 %v665
        %v1003 = vunpack.c.h.b16 %v665
        %v1004 = vunpack.c.l.b16 %v666
        %v1005 = vunpack.c.h.b16 %v666
        %v1006 = vunpack.c.l.b16 %v667
        %v1007 = vunpack.c.h.b16 %v667
        %v1008 = vunpack.c.l.b16 %v668
        %v1009 = vunpack.c.h.b16 %v668
        %v1010 = vunpack.c.l.b16 %v669
        %v1011 = vunpack.c.h.b16 %v669
        %v1012 = vunpack.c.l.b16 %v670
        %v1013 = vunpack.c.h.b16 %v670
        %v1014 = vunpack.c.l.b16 %v671
        %v1015 = vunpack.c.h.b16 %v671
        %v1016 = vunpack.c.l.b16 %v672
        %v1017 = vunpack.c.h.b16 %v672
        %v1018 = vunpack.c.l.b16 %v673
        %v1019 = vunpack.c.h.b16 %v673
        %v1020 = vunpack.c.l.b16 %v674
        %v1021 = vunpack.c.h.b16 %v674
        %v1022 = vunpack.c.l.b16 %v675
        %v1023 = vunpack.c.h.b16 %v675
        %v1024 = vunpack.c.l.b16 %v676
        %v1025 = vunpack.c.h.b16 %v676
        %v1026 = vunpack.c.l.b16 %v677
        %v1027 = vunpack.c.h.b16 %v677
        %v1028 = vunpack.c.l.b16 %v678
        %v1029 = vunpack.c.h.b16 %v678
        %v1030 = vunpack.c.l.b16 %v679
        %v1031 = vunpack.c.h.b16 %v679
        %v1032 = vunpack.c.l.b16 %v680
        %v1033 = vunpack.c.h.b16 %v680
        %v1034 = vunpack.c.l.b16 %v681
        %v1035 = vunpack.c.h.b16 %v681
        %v1036 = vunpack.c.l.b16 %v682
        %v1037 = vunpack.c.h.b16 %v682
        %v1038 = vunpack.c.l.b16 %v683
        %v1039 = vunpack.c.h.b16 %v683
        %v1040 = vunpack.c.l.b16 %v684
        %v1041 = vunpack.c.h.b16 %v684
        %v1042 = vunpack.c.l.b16 %v685
        %v1043 = vunpack.c.h.b16 %v685
        %v1044 = vunpack.c.l.b16 %v686
        %v1045 = vunpack.c.h.b16 %v686
        %v1046 = vunpack.c.l.b16 %v687
        %v1047 = vunpack.c.h.b16 %v687
        %v1048 = vunpack.c.l.b16 %v688
        %v1049 = vunpack.c.h.b16 %v688
        %v1050 = vunpack.c.l.b16 %v689
        %v1051 = vunpack.c.h.b16 %v689
        %v1052 = vunpack.c.l.b16 %v690
        %v1053 = vunpack.c.h.b16 %v690
        %v1054 = vunpack.c.l.b16 %v691
        %v1055 = vunpack.c.h.b16 %v691
        %v1056 = vunpack.c.l.b16 %v692
        %v1057 = vunpack.c.h.b16 %v692
        %v1058 = vunpack.c.l.b16 %v693
        %v1059 = vunpack.c.h.b16 %v693
        %v1060 = vunpack.c.l.b16 %v694
        %v1061 = vunpack.c.h.b16 %v694
        %v1062 = vunpack.c.l.b16 %v695
        %v1063 = vunpack.c.h.b16 %v695
        %v1064 = vunpack.c.l.b16 %v696
        %v1065 = vunpack.c.h.b16 %v696
        %v1066 = vunpack.c.l.b16 %v697
        %v1067 = vunpack.c.h.b16 %v697
        %v1068 = vunpack.c.l.b16 %v698
        %v1069 = vunpack.c.h.b16 %v698
        %v1070 = vunpack.c.l.b16 %v699
        %v1071 = vunpack.c.h.b16 %v699
        %v1072 = vunpack.c.l.b16 %v700
        %v1073 = vunpack.c.h.b16 %v700
        %v1074 = vunpack.c.l.b16 %v701
        %v1075 = vunpack.c.h.b16 %v701
        %v1076 = vunpack.c.l.b16 %v702
        %v1077 = vunpack.c.h.b16 %v702
        %v1078 = vunpack.c.l.b16 %v703
        %v1079 = vunpack.c.h.b16 %v703
        %v1080 = vunpack.c.l.b16 %v704
        %v1081 = vunpack.c.h.b16 %v704
        %v1082 = vunpack.c.l.b16 %v705
        %v1083 = vunpack.c.h.b16 %v705
        %v1084 = vunpack.c.l.b16 %v706
        %v1085 = vunpack.c.h.b16 %v706
        %v1086 = vunpack.c.l.b16 %v707
        %v1087 = vunpack.c.h.b16 %v707
        %v1088 = vunpack.c.l.b16 %v708
        %v1089 = vunpack.c.h.b16 %v708
        %v1090 = vunpack.c.l.b16 %v709
        %v1091 = vunpack.c.h.b16 %v709
        %v1092 = vunpack.c.l.b16 %v710
        %v1093 = vunpack.c.h.b16 %v710
        %v1094 = vunpack.c.l.b16 %v711
        %v1095 = vunpack.c.h.b16 %v711
        %v1096 = vpack.c.b16 %v856, %v840
        %v1097 = vpack.c.b16 %v857, %v841
        %v1098 = vpack.c.b16 %v858, %v842
        %v1099 = vpack.c.b16 %v859, %v843
        %v1100 = vpack.c.b16 %v860, %v844
        %v1101 = vpack.c.b16 %v861, %v845
        %v1102 = vpack.c.b16 %v862, %v846
        %v1103 = vpack.c.b16 %v863, %v847
        %v1104 = vpack.c.b16 %v864, %v848
        %v1105 = vpack.c.b16 %v865, %v849
        %v1106 = vpack.c.b16 %v866, %v850
        %v1107 = vpack.c.b16 %v867, %v851
        %v1108 = vpack.c.b16 %v868, %v852
        %v1109 = vpack.c.b16 %v869, %v853
        %v1110 = vpack.c.b16 %v870, %v854
        %v1111 = vpack.c.b16 %v871, %v855
        %v1112 = vpack.c.b16 %v888, %v872
        %v1113 = vpack.c.b16 %v889, %v873
        %v1114 = vpack.c.b16 %v890, %v874
        %v1115 = vpack.c.b16 %v891, %v875
        %v1116 = vpack.c.b16 %v892, %v876
        %v1117 = vpack.c.b16 %v893, %v877
        %v1118 = vpack.c.b16 %v894, %v878
        %v1119 = vpack.c.b16 %v895, %v879
        %v1120 = vpack.c.b16 %v896, %v880
        %v1121 = vpack.c.b16 %v897, %v881
        %v1122 = vpack.c.b16 %v898, %v882
        %v1123 = vpack.c.b16 %v899, %v883
        %v1124 = vpack.c.b16 %v900, %v884
        %v1125 = vpack.c.b16 %v901, %v885
        %v1126 = vpack.c.b16 %v902, %v886
        %v1127 = vpack.c.b16 %v903, %v887
        %v1128 = vpack.c.b16 %v920, %v904
        %v1129 = vpack.c.b16 %v921, %v905
        %v1130 = vpack.c.b16 %v922, %v906
        %v1131 = vpack.c.b16 %v923, %v907
        %v1132 = vpack.c.b16 %v924, %v908
        %v1133 = vpack.c.b16 %v925, %v909
        %v1134 = vpack.c.b16 %v926, %v910
        %v1135 = vpack.c.b16 %v927, %v911
        %v1136 = vpack.c.b16 %v928, %v912
        %v1137 = vpack.c.b16 %v929, %v913
        %v1138 = vpack.c.b16 %v930, %v914
        %v1139 = vpack.c.b16 %v931, %v915
        %v1140 = vpack.c.b16 %v932, %v916
        %v1141 = vpack.c.b16 %v933, %v917
        %v1142 = vpack.c.b16 %v934, %v918
        %v1143 = vpack.c.b16 %v935, %v919
        %v1144 = vpack.c.b16 %v952, %v936
        %v1145 = vpack.c.b16 %v953, %v937
        %v1146 = vpack.c.b16 %v954, %v938
        %v1147 = vpack.c.b16 %v955, %v939
        %v1148 = vpack.c.b16 %v956, %v940
        %v1149 = vpack.c.b16 %v957, %v941
        %v1150 = vpack.c.b16 %v958, %v942
        %v1151 = vpack.c.b16 %v959, %v943
        %v1152 = vpack.c.b16 %v960, %v944
        %v1153 = vpack.c.b16 %v961, %v945
        %v1154 = vpack.c.b16 %v962, %v946
        %v1155 = vpack.c.b16 %v963, %v947
        %v1156 = vpack.c.b16 %v964, %v948
        %v1157 = vpack.c.b16 %v965, %v949
        %v1158 = vpack.c.b16 %v966, %v950
        %v1159 = vpack.c.b16 %v967, %v951
        %v1160 = vpack.c.b16 %v984, %v968
        %v1161 = vpack.c.b16 %v985, %v969
        %v1162 = vpack.c.b16 %v986, %v970
        %v1163 = vpack.c.b16 %v987, %v971
        %v1164 = vpack.c.b16 %v988, %v972
        %v1165 = vpack.c.b16 %v989, %v973
        %v1166 = vpack.c.b16 %v990, %v974
        %v1167 = vpack.c.b16 %v991, %v975
        %v1168 = vpack.c.b16 %v992, %v976
        %v1169 = vpack.c.b16 %v993, %v977
        %v1170 = vpack.c.b16 %v994, %v978
        %v1171 = vpack.c.b16 %v995, %v979
        %v1172 = vpack.c.b16 %v996, %v980
        %v1173 = vpack.c.b16 %v997, %v981
        %v1174 = vpack.c.b16 %v998, %v982
        %v1175 = vpack.c.b16 %v999, %v983
        %v1176 = vpack.c.b16 %v1016, %v1000
        %v1177 = vpack.c.b16 %v1017, %v1001
        %v1178 = vpack.c.b16 %v1018, %v1002
        %v1179 = vpack.c.b16 %v1019, %v1003
        %v1180 = vpack.c.b16 %v1020, %v1004
        %v1181 = vpack.c.b16 %v1021, %v1005
        %v1182 = vpack.c.b16 %v1022, %v1006
        %v1183 = vpack.c.b16 %v1023, %v1007
        %v1184 = vpack.c.b16 %v1024, %v1008
        %v1185 = vpack.c.b16 %v1025, %v1009
        %v1186 = vpack.c.b16 %v1026, %v1010
        %v1187 = vpack.c.b16 %v1027, %v1011
        %v1188 = vpack.c.b16 %v1028, %v1012
        %v1189 = vpack.c.b16 %v1029, %v1013
        %v1190 = vpack.c.b16 %v1030, %v1014
        %v1191 = vpack.c.b16 %v1031, %v1015
        %v1192 = vpack.c.b16 %v1048, %v1032
        %v1193 = vpack.c.b16 %v1049, %v1033
        %v1194 = vpack.c.b16 %v1050, %v1034
        %v1195 = vpack.c.b16 %v1051, %v1035
        %v1196 = vpack.c.b16 %v1052, %v1036
        %v1197 = vpack.c.b16 %v1053, %v1037
        %v1198 = vpack.c.b16 %v1054, %v1038
        %v1199 = vpack.c.b16 %v1055, %v1039
        %v1200 = vpack.c.b16 %v1056, %v1040
        %v1201 = vpack.c.b16 %v1057, %v1041
        %v1202 = vpack.c.b16 %v1058, %v1042
        %v1203 = vpack.c.b16 %v1059, %v1043
        %v1204 = vpack.c.b16 %v1060, %v1044
        %v1205 = vpack.c.b16 %v1061, %v1045
        %v1206 = vpack.c.b16 %v1062, %v1046
        %v1207 = vpack.c.b16 %v1063, %v1047
        %v1208 = vpack.c.b16 %v1080, %v1064
        %v1209 = vpack.c.b16 %v1081, %v1065
        %v1210 = vpack.c.b16 %v1082, %v1066
        %v1211 = vpack.c.b16 %v1083, %v1067
        %v1212 = vpack.c.b16 %v1084, %v1068
        %v1213 = vpack.c.b16 %v1085, %v1069
        %v1214 = vpack.c.b16 %v1086, %v1070
        %v1215 = vpack.c.b16 %v1087, %v1071
        %v1216 = vpack.c.b16 %v1088, %v1072
        %v1217 = vpack.c.b16 %v1089, %v1073
        %v1218 = vpack.c.b16 %v1090, %v1074
        %v1219 = vpack.c.b16 %v1091, %v1075
        %v1220 = vpack.c.b16 %v1092, %v1076
        %v1221 = vpack.c.b16 %v1093, %v1077
        %v1222 = vpack.c.b16 %v1094, %v1078
        %v1223 = vpack.c.b16 %v1095, %v1079
        %1352 = vmatpush.bf16.msra.mxu0 %v1208
        %1353 = vmatpush.bf16.msra.mxu0 %v1192
        %1354 = vmatpush.bf16.msra.mxu0 %v1176
        %1355 = vmatpush.bf16.msra.mxu0 %v1160
        %1356 = vmatpush.bf16.msra.mxu0 %v1144
        %1357 = vmatpush.bf16.msra.mxu0 %v1128
        %1358 = vmatpush.bf16.msra.mxu0 %v1112
        %1359 = vmatpush.bf16.msra.mxu0 %v1096
        %1360 = vmatmul.bf16.gmra.mxu0 %v583
        %v1361 = vpop.f32.mrf.mxu0
        %v1362 = vadd.f32 0.0, %v1361
        %v1363 = vpop.f32.mrf.mxu0
        %1364 = vdwg.mxu0
        %1365 = vmatpush.bf16.msra.mxu0 %v1209
        %1366 = vmatpush.bf16.msra.mxu0 %v1193
        %1367 = vmatpush.bf16.msra.mxu0 %v1177
        %1368 = vmatpush.bf16.msra.mxu0 %v1161
        %1369 = vmatpush.bf16.msra.mxu0 %v1145
        %1370 = vmatpush.bf16.msra.mxu0 %v1129
        %1371 = vmatpush.bf16.msra.mxu0 %v1113
        %1372 = vmatpush.bf16.msra.mxu0 %v1097
        %1373 = vmatmul.bf16.gmra.mxu0 %v583
        %v1374 = vpop.f32.mrf.mxu0
        %v1375 = vadd.f32 0.0, %v1374
        %v1376 = vpop.f32.mrf.mxu0
        %1377 = vdwg.mxu0
        %1378 = vmatpush.bf16.msra.mxu0 %v1210
        %1379 = vmatpush.bf16.msra.mxu0 %v1194
        %1380 = vmatpush.bf16.msra.mxu0 %v1178
        %1381 = vmatpush.bf16.msra.mxu0 %v1162
        %1382 = vmatpush.bf16.msra.mxu0 %v1146
        %1383 = vmatpush.bf16.msra.mxu0 %v1130
        %1384 = vmatpush.bf16.msra.mxu0 %v1114
        %1385 = vmatpush.bf16.msra.mxu0 %v1098
        %1386 = vmatmul.bf16.gmra.mxu0 %v583
        %v1387 = vpop.f32.mrf.mxu0
        %v1388 = vadd.f32 0.0, %v1387
        %v1389 = vpop.f32.mrf.mxu0
        %1390 = vdwg.mxu0
        %1391 = vmatpush.bf16.msra.mxu0 %v1211
        %1392 = vmatpush.bf16.msra.mxu0 %v1195
        %1393 = vmatpush.bf16.msra.mxu0 %v1179
        %1394 = vmatpush.bf16.msra.mxu0 %v1163
        %1395 = vmatpush.bf16.msra.mxu0 %v1147
        %1396 = vmatpush.bf16.msra.mxu0 %v1131
        %1397 = vmatpush.bf16.msra.mxu0 %v1115
        %1398 = vmatpush.bf16.msra.mxu0 %v1099
        %1399 = vmatmul.bf16.gmra.mxu0 %v583
        %v1400 = vpop.f32.mrf.mxu0
        %v1401 = vadd.f32 0.0, %v1400
        %v1402 = vpop.f32.mrf.mxu0
        %1403 = vdwg.mxu0
        %1404 = vmatpush.bf16.msra.mxu0 %v1212
        %1405 = vmatpush.bf16.msra.mxu0 %v1196
        %1406 = vmatpush.bf16.msra.mxu0 %v1180
        %1407 = vmatpush.bf16.msra.mxu0 %v1164
        %1408 = vmatpush.bf16.msra.mxu0 %v1148
        %1409 = vmatpush.bf16.msra.mxu0 %v1132
        %1410 = vmatpush.bf16.msra.mxu0 %v1116
        %1411 = vmatpush.bf16.msra.mxu0 %v1100
        %1412 = vmatmul.bf16.gmra.mxu0 %v583
        %v1413 = vpop.f32.mrf.mxu0
        %v1414 = vadd.f32 0.0, %v1413
        %v1415 = vpop.f32.mrf.mxu0
        %1416 = vdwg.mxu0
        %1417 = vmatpush.bf16.msra.mxu0 %v1213
        %1418 = vmatpush.bf16.msra.mxu0 %v1197
        %1419 = vmatpush.bf16.msra.mxu0 %v1181
        %1420 = vmatpush.bf16.msra.mxu0 %v1165
        %1421 = vmatpush.bf16.msra.mxu0 %v1149
        %1422 = vmatpush.bf16.msra.mxu0 %v1133
        %1423 = vmatpush.bf16.msra.mxu0 %v1117
        %1424 = vmatpush.bf16.msra.mxu0 %v1101
        %1425 = vmatmul.bf16.gmra.mxu0 %v583
        %v1426 = vpop.f32.mrf.mxu0
        %v1427 = vadd.f32 0.0, %v1426
        %v1428 = vpop.f32.mrf.mxu0
        %1429 = vdwg.mxu0
        %1430 = vmatpush.bf16.msra.mxu0 %v1214
        %1431 = vmatpush.bf16.msra.mxu0 %v1198
        %1432 = vmatpush.bf16.msra.mxu0 %v1182
        %1433 = vmatpush.bf16.msra.mxu0 %v1166
        %1434 = vmatpush.bf16.msra.mxu0 %v1150
        %1435 = vmatpush.bf16.msra.mxu0 %v1134
        %1436 = vmatpush.bf16.msra.mxu0 %v1118
        %1437 = vmatpush.bf16.msra.mxu0 %v1102
        %1438 = vmatmul.bf16.gmra.mxu0 %v583
        %v1439 = vpop.f32.mrf.mxu0
        %v1440 = vadd.f32 0.0, %v1439
        %v1441 = vpop.f32.mrf.mxu0
        %1442 = vdwg.mxu0
        %1443 = vmatpush.bf16.msra.mxu0 %v1215
        %1444 = vmatpush.bf16.msra.mxu0 %v1199
        %1445 = vmatpush.bf16.msra.mxu0 %v1183
        %1446 = vmatpush.bf16.msra.mxu0 %v1167
        %1447 = vmatpush.bf16.msra.mxu0 %v1151
        %1448 = vmatpush.bf16.msra.mxu0 %v1135
        %1449 = vmatpush.bf16.msra.mxu0 %v1119
        %1450 = vmatpush.bf16.msra.mxu0 %v1103
        %1451 = vmatmul.bf16.gmra.mxu0 %v583
        %v1452 = vpop.f32.mrf.mxu0
        %v1453 = vadd.f32 0.0, %v1452
        %v1454 = vpop.f32.mrf.mxu0
        %1455 = vdwg.mxu0
        %1456 = vmatpush.bf16.msra.mxu0 %v1216
        %1457 = vmatpush.bf16.msra.mxu0 %v1200
        %1458 = vmatpush.bf16.msra.mxu0 %v1184
        %1459 = vmatpush.bf16.msra.mxu0 %v1168
        %1460 = vmatpush.bf16.msra.mxu0 %v1152
        %1461 = vmatpush.bf16.msra.mxu0 %v1136
        %1462 = vmatpush.bf16.msra.mxu0 %v1120
        %1463 = vmatpush.bf16.msra.mxu0 %v1104
        %1464 = vmatmul.bf16.gmra.mxu0 %v583
        %v1465 = vpop.f32.mrf.mxu0
        %v1466 = vadd.f32 0.0, %v1465
        %v1467 = vpop.f32.mrf.mxu0
        %1468 = vdwg.mxu0
        %1469 = vmatpush.bf16.msra.mxu0 %v1217
        %1470 = vmatpush.bf16.msra.mxu0 %v1201
        %1471 = vmatpush.bf16.msra.mxu0 %v1185
        %1472 = vmatpush.bf16.msra.mxu0 %v1169
        %1473 = vmatpush.bf16.msra.mxu0 %v1153
        %1474 = vmatpush.bf16.msra.mxu0 %v1137
        %1475 = vmatpush.bf16.msra.mxu0 %v1121
        %1476 = vmatpush.bf16.msra.mxu0 %v1105
        %1477 = vmatmul.bf16.gmra.mxu0 %v583
        %v1478 = vpop.f32.mrf.mxu0
        %v1479 = vadd.f32 0.0, %v1478
        %v1480 = vpop.f32.mrf.mxu0
        %1481 = vdwg.mxu0
        %1482 = vmatpush.bf16.msra.mxu0 %v1218
        %1483 = vmatpush.bf16.msra.mxu0 %v1202
        %1484 = vmatpush.bf16.msra.mxu0 %v1186
        %1485 = vmatpush.bf16.msra.mxu0 %v1170
        %1486 = vmatpush.bf16.msra.mxu0 %v1154
        %1487 = vmatpush.bf16.msra.mxu0 %v1138
        %1488 = vmatpush.bf16.msra.mxu0 %v1122
        %1489 = vmatpush.bf16.msra.mxu0 %v1106
        %1490 = vmatmul.bf16.gmra.mxu0 %v583
        %v1491 = vpop.f32.mrf.mxu0
        %v1492 = vadd.f32 0.0, %v1491
        %v1493 = vpop.f32.mrf.mxu0
        %1494 = vdwg.mxu0
        %1495 = vmatpush.bf16.msra.mxu0 %v1219
        %1496 = vmatpush.bf16.msra.mxu0 %v1203
        %1497 = vmatpush.bf16.msra.mxu0 %v1187
        %1498 = vmatpush.bf16.msra.mxu0 %v1171
        %1499 = vmatpush.bf16.msra.mxu0 %v1155
        %1500 = vmatpush.bf16.msra.mxu0 %v1139
        %1501 = vmatpush.bf16.msra.mxu0 %v1123
        %1502 = vmatpush.bf16.msra.mxu0 %v1107
        %1503 = vmatmul.bf16.gmra.mxu0 %v583
        %v1504 = vpop.f32.mrf.mxu0
        %v1505 = vadd.f32 0.0, %v1504
        %v1506 = vpop.f32.mrf.mxu0
        %1507 = vdwg.mxu0
        %1508 = vmatpush.bf16.msra.mxu0 %v1220
        %1509 = vmatpush.bf16.msra.mxu0 %v1204
        %1510 = vmatpush.bf16.msra.mxu0 %v1188
        %1511 = vmatpush.bf16.msra.mxu0 %v1172
        %1512 = vmatpush.bf16.msra.mxu0 %v1156
        %1513 = vmatpush.bf16.msra.mxu0 %v1140
        %1514 = vmatpush.bf16.msra.mxu0 %v1124
        %1515 = vmatpush.bf16.msra.mxu0 %v1108
        %1516 = vmatmul.bf16.gmra.mxu0 %v583
        %v1517 = vpop.f32.mrf.mxu0
        %v1518 = vadd.f32 0.0, %v1517
        %v1519 = vpop.f32.mrf.mxu0
        %1520 = vdwg.mxu0
        %1521 = vmatpush.bf16.msra.mxu0 %v1221
        %1522 = vmatpush.bf16.msra.mxu0 %v1205
        %1523 = vmatpush.bf16.msra.mxu0 %v1189
        %1524 = vmatpush.bf16.msra.mxu0 %v1173
        %1525 = vmatpush.bf16.msra.mxu0 %v1157
        %1526 = vmatpush.bf16.msra.mxu0 %v1141
        %1527 = vmatpush.bf16.msra.mxu0 %v1125
        %1528 = vmatpush.bf16.msra.mxu0 %v1109
        %1529 = vmatmul.bf16.gmra.mxu0 %v583
        %v1530 = vpop.f32.mrf.mxu0
        %v1531 = vadd.f32 0.0, %v1530
        %v1532 = vpop.f32.mrf.mxu0
        %1533 = vdwg.mxu0
        %1534 = vmatpush.bf16.msra.mxu0 %v1222
        %1535 = vmatpush.bf16.msra.mxu0 %v1206
        %1536 = vmatpush.bf16.msra.mxu0 %v1190
        %1537 = vmatpush.bf16.msra.mxu0 %v1174
        %1538 = vmatpush.bf16.msra.mxu0 %v1158
        %1539 = vmatpush.bf16.msra.mxu0 %v1142
        %1540 = vmatpush.bf16.msra.mxu0 %v1126
        %1541 = vmatpush.bf16.msra.mxu0 %v1110
        %1542 = vmatmul.bf16.gmra.mxu0 %v583
        %v1543 = vpop.f32.mrf.mxu0
        %v1544 = vadd.f32 0.0, %v1543
        %v1545 = vpop.f32.mrf.mxu0
        %1546 = vdwg.mxu0
        %1547 = vmatpush.bf16.msra.mxu0 %v1223
        %1548 = vmatpush.bf16.msra.mxu0 %v1207
        %1549 = vmatpush.bf16.msra.mxu0 %v1191
        %1550 = vmatpush.bf16.msra.mxu0 %v1175
        %1551 = vmatpush.bf16.msra.mxu0 %v1159
        %1552 = vmatpush.bf16.msra.mxu0 %v1143
        %1553 = vmatpush.bf16.msra.mxu0 %v1127
        %1554 = vmatpush.bf16.msra.mxu0 %v1111
        %1555 = vmatmul.bf16.gmra.mxu0 %v583
        %v1556 = vpop.f32.mrf.mxu0
        %v1557 = vadd.f32 0.0, %v1556
        %v1558 = vpop.f32.mrf.mxu0
        %1559 = vdwg.mxu0
        %v1560 = vld [vmem:[%s562] sm:$0xff]
        %v1561 = vld [vmem:[%s562 + $0x8] sm:$0xff]
        %v1564 = vperm.slane %v1560, 0
        %v1565 = vperm.slane %v1560, 1
        %v1566 = vperm.slane %v1560, 2
        %v1567 = vperm.slane %v1560, 3
        %v1568 = vperm.slane %v1560, 4
        %v1569 = vperm.slane %v1560, 5
        %v1570 = vperm.slane %v1560, 6
        %v1571 = vperm.slane %v1560, 7
        %v1572 = vperm.slane %v1561, 0
        %v1573 = vperm.slane %v1561, 1
        %v1574 = vperm.slane %v1561, 2
        %v1575 = vperm.slane %v1561, 3
        %v1576 = vperm.slane %v1561, 4
        %v1577 = vperm.slane %v1561, 5
        %v1578 = vperm.slane %v1561, 6
        %v1579 = vperm.slane %v1561, 7
        %v1596 = vmul.f32 %v1362, %v1564
        %v1597 = vmul.f32 %v1375, %v1565
        %v1598 = vmul.f32 %v1388, %v1566
        %v1599 = vmul.f32 %v1401, %v1567
        %v1600 = vmul.f32 %v1414, %v1568
        %v1601 = vmul.f32 %v1427, %v1569
        %v1602 = vmul.f32 %v1440, %v1570
        %v1603 = vmul.f32 %v1453, %v1571
        %v1604 = vmul.f32 %v1466, %v1572
        %v1605 = vmul.f32 %v1479, %v1573
        %v1606 = vmul.f32 %v1492, %v1574
        %v1607 = vmul.f32 %v1505, %v1575
        %v1608 = vmul.f32 %v1518, %v1576
        %v1609 = vmul.f32 %v1531, %v1577
        %v1610 = vmul.f32 %v1544, %v1578
        %v1611 = vmul.f32 %v1557, %v1579
        %v1612 = vld [vmem:[%s567] sm:$0xff]
        %v1613 = vld [vmem:[%s567 + $0x8] sm:$0xff]
        %v1616 = vperm.slane %v1612, 0
        %v1617 = vperm.slane %v1612, 1
        %v1618 = vperm.slane %v1612, 2
        %v1619 = vperm.slane %v1612, 3
        %v1620 = vperm.slane %v1612, 4
        %v1621 = vperm.slane %v1612, 5
        %v1622 = vperm.slane %v1612, 6
        %v1623 = vperm.slane %v1612, 7
        %v1624 = vperm.slane %v1613, 0
        %v1625 = vperm.slane %v1613, 1
        %v1626 = vperm.slane %v1613, 2
        %v1627 = vperm.slane %v1613, 3
        %v1628 = vperm.slane %v1613, 4
        %v1629 = vperm.slane %v1613, 5
        %v1630 = vperm.slane %v1613, 6
        %v1631 = vperm.slane %v1613, 7
        %v1648 = vadd.f32 %v1596, %v1616
        %v1649 = vadd.f32 %v1597, %v1617
        %v1650 = vadd.f32 %v1598, %v1618
        %v1651 = vadd.f32 %v1599, %v1619
        %v1652 = vadd.f32 %v1600, %v1620
        %v1653 = vadd.f32 %v1601, %v1621
        %v1654 = vadd.f32 %v1602, %v1622
        %v1655 = vadd.f32 %v1603, %v1623
        %v1656 = vadd.f32 %v1604, %v1624
        %v1657 = vadd.f32 %v1605, %v1625
        %v1658 = vadd.f32 %v1606, %v1626
        %v1659 = vadd.f32 %v1607, %v1627
        %v1660 = vadd.f32 %v1608, %v1628
        %v1661 = vadd.f32 %v1609, %v1629
        %v1662 = vadd.f32 %v1610, %v1630
        %v1663 = vadd.f32 %v1611, %v1631
        %v1664 = vmax.f32 %v1648, 0.0
        %v1665 = vmax.f32 %v1649, 0.0
        %v1666 = vmax.f32 %v1650, 0.0
        %v1667 = vmax.f32 %v1651, 0.0
        %v1668 = vmax.f32 %v1652, 0.0
        %v1669 = vmax.f32 %v1653, 0.0
        %v1670 = vmax.f32 %v1654, 0.0
        %v1671 = vmax.f32 %v1655, 0.0
        %v1672 = vmax.f32 %v1656, 0.0
        %v1673 = vmax.f32 %v1657, 0.0
        %v1674 = vmax.f32 %v1658, 0.0
        %v1675 = vmax.f32 %v1659, 0.0
        %v1676 = vmax.f32 %v1660, 0.0
        %v1677 = vmax.f32 %v1661, 0.0
        %v1678 = vmax.f32 %v1662, 0.0
        %v1679 = vmax.f32 %v1663, 0.0
        %v1680 = vpack.c.bf16 %v1665, %v1664
        %v1681 = vpack.c.bf16 %v1667, %v1666
        %v1682 = vpack.c.bf16 %v1669, %v1668
        %v1683 = vpack.c.bf16 %v1671, %v1670
        %v1684 = vpack.c.bf16 %v1673, %v1672
        %v1685 = vpack.c.bf16 %v1675, %v1674
        %v1686 = vpack.c.bf16 %v1677, %v1676
        %v1687 = vpack.c.bf16 %v1679, %v1678
        %1688 = vst [vmem:[%s581] sm:$0xff] %v1680
        %1689 = vst [vmem:[%s581 + $0x8] sm:$0xff] %v1681
        %1690 = vst [vmem:[%s581 + $0x10] sm:$0xff] %v1682
        %1691 = vst [vmem:[%s581 + $0x18] sm:$0xff] %v1683
        %1692 = vst [vmem:[%s581 + $0x20] sm:$0xff] %v1684
        %1693 = vst [vmem:[%s581 + $0x28] sm:$0xff] %v1685
        %1694 = vst [vmem:[%s581 + $0x30] sm:$0xff] %v1686
        %1695 = vst [vmem:[%s581 + $0x38] sm:$0xff] %v1687
        %s1696 = smul.u32 16, %s22
        %p1697 = scmp.lt.s32.totalorder %s20, 0
        %s1698 = scalar_select %p1697, %s20, 0
        %p1699 = scmp.lt.s32.totalorder %s21, 0
        %s1700 = scalar_select %p1699, %s21, 0
        %p1701 = scmp.lt.s32.totalorder %s1696, 63
        %s1702 = scalar_select %p1701, %s1696, 63
        %s1703 = smul.addr %s1700, 64
        %s1704 = sadd.s32 %s1702, %s1703
        %s1705 = smul.addr %s1698, 64
        %s1706 = sadd.s32 %s1704, %s1705
        %s1707 = smul.addr %s1706, 4
        %s1708 = scalar_lea.vmem %s4, %s1707
        // Predicated region
        $region60: #{generator_forward.5} parent=54 // pred_check
          %p1709 = pneg %p164
        $region61: #{generator_forward.5} parent=54 // pred_check_branch
          %1711 = sbr.rel (%p1709) target = $region63
        $region62: #{generator_forward.5} parent=54 // pred_region
          %s1712 = smul.u32 16, %s22
        $region63: #{generator_forward.5} parent=54 // pred_fallthru
          _
      $region55: #{generator_forward.5} parent=5 // pred_fallthru
        _
      %p1713 = scmp.le.s32.totalorder 2, %s10
      // Predicated region
      $region64: #{generator_forward.5} parent=5 // pred_check
        %p1714 = pneg %p1713
      $region65: #{generator_forward.5} parent=5 // pred_check_branch
        %1716 = sbr.rel (%p1714) target = $region67
      $region66: #{generator_forward.5} parent=5 // pred_region
        %s1717 = ssub.s32 %s10, 2
        // Predicated region
        $region68: #{generator_forward.5} parent=66 // pred_check
          %p1718 = pneg %p170
        $region69: #{generator_forward.5} parent=66 // pred_check_branch
          %1720 = sbr.rel (%p1718) target = $region71
        $region70: #{generator_forward.5} parent=66 // pred_region
          %s1721 = smul.u32 16, %s25
          %p1722 = scmp.lt.s32.totalorder %s23, 0
          %s1723 = scalar_select %p1722, %s23, 0
          %p1724 = scmp.lt.s32.totalorder %s24, 0
          %s1725 = scalar_select %p1724, %s24, 0
          %p1726 = scmp.lt.s32.totalorder %s1721, 63
          %s1727 = scalar_select %p1726, %s1721, 63
          %s1728 = smul.addr %s1725, 64
          %s1729 = sadd.s32 %s1727, %s1728
          %s1730 = smul.addr %s1723, 64
          %s1731 = sadd.s32 %s1729, %s1730
          %s1732 = smul.addr %s1731, 4
          %s1733 = scalar_lea.vmem %s4, %s1732
        $region71: #{generator_forward.5} parent=66 // pred_fallthru
          _
      $region67: #{generator_forward.5} parent=5 // pred_fallthru
        _
    $region6: #{generator_forward.5} parent=1 // loop_footer
      %s14 = sadd.s32 1, %s10
    $region7: #{generator_forward.5} parent=1 // loop_footer_branch
      %9 = sbr.rel target = $region3
    $region8: #{generator_forward.5} parent=1 // loop_exit
      _

// kernel: generator_forward.6
$region0: #{generator_forward.6}
  #allocation0 [shape = 'u32[]', space=smem, size = 0x4, offset = 0x4, fixed_abs, tag = 'smem constant byte address 0x4 - core index']
  #allocation1 [shape = 'u32[72,128]{1,0:T(1,128)}', space=vmem, size = 0x9000, scoped, tag = 'internal scratch']
  %s0 = inlined_call_operand.vmem [shape: bf16[4,32,2048], index: 0, kind: input, shape index: {}]
  %s1 = inlined_call_operand.vmem [shape: bf16[4,2048,256], index: 1, kind: input, shape index: {}]
  %s2 = inlined_call_operand.vmem [shape: f32[1,256], index: 2, kind: input, shape index: {}]
  %s3 = inlined_call_operand.vmem [shape: f32[1,256], index: 3, kind: input, shape index: {}]
  %s4 = inlined_call_operand.vmem [shape: bf16[4,32,256], index: 4, kind: output, shape index: {}]
  %s5 = sld [smem:[#allocation0]]
  $region49: #{generator_forward.6} parent=0
    _
  %s7 = ssub.s32 1, %s5
  %s8 = scalar_select 0, %s7, %s5
  loop: start=0, step=1, limit=6
  $region2: #{generator_forward.6} parent=0 // loop_pre_header
    _
  $region3: #{generator_forward.6} parent=0 // loop_header
    %s10 = sphi 0, %s14
    %p11 = scmp.ge.s32.totalorder %s10, 6
    %s17 = sphi 0, %s36
    %s18 = sphi 0, %s32
    %s19 = sphi 0, %s28
    %s20 = sphi 0, %s17
    %s21 = sphi 0, %s18
    %s22 = sphi 0, %s19
    %s23 = sphi 0, %s20
    %s24 = sphi 0, %s21
    %s25 = sphi 0, %s22
    %s41 = sphi 0, %s43
    %s44 = sphi 0, %s41
    %s45 = sphi 0, %s44
    %s61 = sphi 0, %s45
    %s69 = sphi 0, %s71
    %s72 = sphi 0, %s69
    %s73 = sphi 0, %s72
    %s89 = sphi 0, %s73
    %s95 = sphi 0, %s97
    %s98 = sphi 0, %s95
    %s99 = sphi 0, %s98
    %s115 = sphi 0, %s99
    %s121 = sphi 0, %s123
    %s124 = sphi 0, %s121
    %s125 = sphi 0, %s124
    %s141 = sphi 0, %s125
    %s151 = sphi 0, %s153
    %s154 = sphi 0, %s151
    %s155 = sphi 0, %s154
    %s171 = sphi 0, %s155
  $region4: #{generator_forward.6} parent=0 // loop_header_branch
    %13 = sbr.rel (%p11) target = $region8
  $region5: #{generator_forward.6} parent=0 // loop_body
    %s15 = ssub.s32 %s10, 1
    %s16 = ssub.s32 %s10, 2
    %s26 = sadd.s32 1, %s19
    %p27 = scmp.ge.s32.totalorder %s26, 1
    %s28 = scalar_select %p27, 0, %s26
    %s29 = sadd.s32 1, %s18
    %s30 = scalar_select %p27, %s29, %s18
    %p31 = scmp.ge.s32.totalorder %s30, 1
    %s32 = scalar_select %p31, 0, %s30
    %s33 = sadd.s32 1, %s17
    %s34 = scalar_select %p31, %s33, %s17
    %p35 = scmp.ge.s32.totalorder %s34, 4
    %s36 = scalar_select %p35, 0, %s34
    %s37 = ssub.s32 %s17, %s36
    %s38 = ssub.s32 %s18, %s32
    %s39 = sor.u32 %s37, %s38
    %p40 = scmp.eq.s32.totalorder %s39, 0
    %s42 = sadd.s32 %s41, 1
    %s43 = scalar_select %p40, %s41, %s42
    %p46 = pneg %p40
    %p47 = scmp.eq.s32.totalorder %s10, 3
    %p48 = por %p46, %p47
    %p49 = scmp.ne.s32.totalorder %s41, %s44
    %p50 = scmp.eq.s32.totalorder %s10, 0
    %p51 = por %p49, %p50
    %p52 = scmp.ne.s32.totalorder %s41, %s44
    %p53 = scmp.eq.s32.totalorder %s15, 3
    %p54 = por %p52, %p53
    %p55 = scmp.ne.s32.totalorder %s44, %s45
    %p56 = scmp.eq.s32.totalorder %s15, 0
    %p57 = por %p55, %p56
    %p58 = scmp.ne.s32.totalorder %s44, %s45
    %p59 = scmp.eq.s32.totalorder %s16, 3
    %p60 = por %p58, %p59
    %p62 = scmp.ne.s32.totalorder %s45, %s61
    %p63 = scmp.eq.s32.totalorder %s16, 0
    %p64 = por %p62, %p63
    %s65 = ssub.s32 %s17, %s36
    %s66 = ssub.s32 %s19, %s28
    %s67 = sor.u32 %s65, %s66
    %p68 = scmp.eq.s32.totalorder %s67, 0
    %s70 = sadd.s32 %s69, 1
    %s71 = scalar_select %p68, %s69, %s70
    %p74 = pneg %p68
    %p75 = scmp.eq.s32.totalorder %s10, 3
    %p76 = por %p74, %p75
    %p77 = scmp.ne.s32.totalorder %s69, %s72
    %p78 = scmp.eq.s32.totalorder %s10, 0
    %p79 = por %p77, %p78
    %p80 = scmp.ne.s32.totalorder %s69, %s72
    %p81 = scmp.eq.s32.totalorder %s15, 3
    %p82 = por %p80, %p81
    %p83 = scmp.ne.s32.totalorder %s72, %s73
    %p84 = scmp.eq.s32.totalorder %s15, 0
    %p85 = por %p83, %p84
    %p86 = scmp.ne.s32.totalorder %s72, %s73
    %p87 = scmp.eq.s32.totalorder %s16, 3
    %p88 = por %p86, %p87
    %p90 = scmp.ne.s32.totalorder %s73, %s89
    %p91 = scmp.eq.s32.totalorder %s16, 0
    %p92 = por %p90, %p91
    %s93 = ssub.s32 %s19, %s28
    %p94 = scmp.eq.s32.totalorder %s93, 0
    %s96 = sadd.s32 %s95, 1
    %s97 = scalar_select %p94, %s95, %s96
    %p100 = pneg %p94
    %p101 = scmp.eq.s32.totalorder %s10, 3
    %p102 = por %p100, %p101
    %p103 = scmp.ne.s32.totalorder %s95, %s98
    %p104 = scmp.eq.s32.totalorder %s10, 0
    %p105 = por %p103, %p104
    %p106 = scmp.ne.s32.totalorder %s95, %s98
    %p107 = scmp.eq.s32.totalorder %s15, 3
    %p108 = por %p106, %p107
    %p109 = scmp.ne.s32.totalorder %s98, %s99
    %p110 = scmp.eq.s32.totalorder %s15, 0
    %p111 = por %p109, %p110
    %p112 = scmp.ne.s32.totalorder %s98, %s99
    %p113 = scmp.eq.s32.totalorder %s16, 3
    %p114 = por %p112, %p113
    %p116 = scmp.ne.s32.totalorder %s99, %s115
    %p117 = scmp.eq.s32.totalorder %s16, 0
    %p118 = por %p116, %p117
    %s119 = ssub.s32 %s19, %s28
    %p120 = scmp.eq.s32.totalorder %s119, 0
    %s122 = sadd.s32 %s121, 1
    %s123 = scalar_select %p120, %s121, %s122
    %p126 = pneg %p120
    %p127 = scmp.eq.s32.totalorder %s10, 3
    %p128 = por %p126, %p127
    %p129 = scmp.ne.s32.totalorder %s121, %s124
    %p130 = scmp.eq.s32.totalorder %s10, 0
    %p131 = por %p129, %p130
    %p132 = scmp.ne.s32.totalorder %s121, %s124
    %p133 = scmp.eq.s32.totalorder %s15, 3
    %p134 = por %p132, %p133
    %p135 = scmp.ne.s32.totalorder %s124, %s125
    %p136 = scmp.eq.s32.totalorder %s15, 0
    %p137 = por %p135, %p136
    %p138 = scmp.ne.s32.totalorder %s124, %s125
    %p139 = scmp.eq.s32.totalorder %s16, 3
    %p140 = por %p138, %p139
    %p142 = scmp.ne.s32.totalorder %s125, %s141
    %p143 = scmp.eq.s32.totalorder %s16, 0
    %p144 = por %p142, %p143
    %s145 = ssub.s32 %s17, %s36
    %s146 = ssub.s32 %s18, %s32
    %s147 = sor.u32 %s145, %s146
    %s148 = ssub.s32 %s19, %s28
    %s149 = sor.u32 %s147, %s148
    %p150 = scmp.eq.s32.totalorder %s149, 0
    %s152 = sadd.s32 %s151, 1
    %s153 = scalar_select %p150, %s151, %s152
    %p156 = pneg %p150
    %p157 = scmp.eq.s32.totalorder %s10, 3
    %p158 = por %p156, %p157
    %p159 = scmp.ne.s32.totalorder %s151, %s154
    %p160 = scmp.eq.s32.totalorder %s10, 0
    %p161 = por %p159, %p160
    %p162 = scmp.ne.s32.totalorder %s151, %s154
    %p163 = scmp.eq.s32.totalorder %s15, 3
    %p164 = por %p162, %p163
    %p165 = scmp.ne.s32.totalorder %s154, %s155
    %p166 = scmp.eq.s32.totalorder %s15, 0
    %p167 = por %p165, %p166
    %p168 = scmp.ne.s32.totalorder %s154, %s155
    %p169 = scmp.eq.s32.totalorder %s16, 3
    %p170 = por %p168, %p169
    %p172 = scmp.ne.s32.totalorder %s155, %s171
    %p173 = scmp.eq.s32.totalorder %s16, 0
    %p174 = por %p172, %p173
    %p175 = scmp.le.s32.totalorder 1, %s10
    %p176 = scmp.lt.s32.totalorder %s10, 5
    %p177 = pnand %p175, %p176
    %p178 = pneg %p177
    // Predicated region
    $region9: #{generator_forward.6} parent=5 // pred_check
      _
    $region10: #{generator_forward.6} parent=5 // pred_check_branch
      %180 = sbr.rel (%p177) target = $region12
    $region11: #{generator_forward.6} parent=5 // pred_region
      %s181 = ssub.s32 %s10, 1
      // Predicated region
      $region13: #{generator_forward.6} parent=11 // pred_check
        %p182 = pneg %p111
      $region14: #{generator_forward.6} parent=11 // pred_check_branch
        %184 = sbr.rel (%p182) target = $region16
      $region15: #{generator_forward.6} parent=11 // pred_region
        %s185 = smul.u32 2, %s22
        %p186 = scmp.lt.s32.totalorder %s185, 1
        %s187 = scalar_select %p186, %s185, 1
        %s188 = scalar_lea.vmem %s2, %s187
        %s189 = smul.u32 2, %s22
      $region16: #{generator_forward.6} parent=11 // pred_fallthru
        _
      // Predicated region
      $region17: #{generator_forward.6} parent=11 // pred_check
        %p190 = pneg %p137
      $region18: #{generator_forward.6} parent=11 // pred_check_branch
        %192 = sbr.rel (%p190) target = $region20
      $region19: #{generator_forward.6} parent=11 // pred_region
        %s193 = smul.u32 2, %s22
        %p194 = scmp.lt.s32.totalorder %s193, 1
        %s195 = scalar_select %p194, %s193, 1
        %s196 = scalar_lea.vmem %s3, %s195
        %s197 = smul.u32 2, %s22
      $region20: #{generator_forward.6} parent=11 // pred_fallthru
        _
    $region12: #{generator_forward.6} parent=5 // pred_fallthru
      _
    %p198 = scmp.lt.s32.totalorder %s10, 4
    // Predicated region
    $region21: #{generator_forward.6} parent=5 // pred_check
      %p199 = pneg %p198
    $region22: #{generator_forward.6} parent=5 // pred_check_branch
      %201 = sbr.rel (%p199) target = $region24
    $region23: #{generator_forward.6} parent=5 // pred_region
      // Predicated region
      $region25: #{generator_forward.6} parent=23 // pred_check
        %p202 = pneg %p51
      $region26: #{generator_forward.6} parent=23 // pred_check_branch
        %204 = sbr.rel (%p202) target = $region28
      $region27: #{generator_forward.6} parent=23 // pred_region
        %s205 = smul.u32 4, %s18
        %p206 = scmp.lt.s32.totalorder %s17, 3
        %s207 = scalar_select %p206, %s17, 3
        %p208 = scmp.lt.s32.totalorder %s205, 3
        %s209 = scalar_select %p208, %s205, 3
        %s210 = smul.addr %s209, 16
        %s211 = smul.addr %s207, 64
        %s212 = sadd.s32 %s210, %s211
        %s213 = smul.addr %s212, 4
        %s214 = scalar_lea.vmem %s0, %s213
        %s215 = smul.u32 4, %s18
      $region28: #{generator_forward.6} parent=23 // pred_fallthru
        _
      // Predicated region
      $region29: #{generator_forward.6} parent=23 // pred_check
        %p216 = pneg %p79
      $region30: #{generator_forward.6} parent=23 // pred_check_branch
        %218 = sbr.rel (%p216) target = $region32
      $region31: #{generator_forward.6} parent=23 // pred_region
        %s219 = smul.u32 2, %s19
        %p220 = scmp.lt.s32.totalorder %s17, 3
        %s221 = scalar_select %p220, %s17, 3
        %p222 = scmp.lt.s32.totalorder %s219, 1
        %s223 = scalar_select %p222, %s219, 1
        %s224 = smul.addr %s221, 512
        %s225 = sadd.s32 %s223, %s224
        %s226 = smul.addr %s225, 4
        %s227 = scalar_lea.vmem %s1, %s226
        %s228 = smul.u32 2, %s19
      $region32: #{generator_forward.6} parent=23 // pred_fallthru
        _
    $region24: #{generator_forward.6} parent=5 // pred_fallthru
      _
    %p229 = scmp.le.s32.totalorder 1, %s10
    %p230 = scmp.lt.s32.totalorder %s10, 5
    %p231 = pnand %p229, %p230
    %p232 = pneg %p231
    // Predicated region
    $region33: #{generator_forward.6} parent=5 // pred_check
      _
    $region34: #{generator_forward.6} parent=5 // pred_check_branch
      %234 = sbr.rel (%p231) target = $region36
    $region35: #{generator_forward.6} parent=5 // pred_region
      %s235 = ssub.s32 %s10, 1
      %s236 = smul.u32 4, %s21
      %p237 = scmp.lt.s32.totalorder %s20, 3
      %s238 = scalar_select %p237, %s20, 3
      %p239 = scmp.lt.s32.totalorder %s236, 3
      %s240 = scalar_select %p239, %s236, 3
      %s241 = smul.addr %s240, 16
      %s242 = smul.addr %s238, 64
      %s243 = sadd.s32 %s241, %s242
      %s244 = smul.addr %s243, 4
      %s245 = scalar_lea.vmem %s0, %s244
      %p246 = pneg %p57
      %p247 = pneg %p54
      %s248 = smul.u32 2, %s22
      %p249 = scmp.lt.s32.totalorder %s20, 3
      %s250 = scalar_select %p249, %s20, 3
      %p251 = scmp.lt.s32.totalorder %s248, 1
      %s252 = scalar_select %p251, %s248, 1
      %s253 = smul.addr %s250, 512
      %s254 = sadd.s32 %s252, %s253
      %s255 = smul.addr %s254, 4
      %s256 = scalar_lea.vmem %s1, %s255
      %p257 = pneg %p85
      %p258 = pneg %p82
      %s259 = smul.u32 2, %s22
      %p260 = scmp.lt.s32.totalorder %s259, 1
      %s261 = scalar_select %p260, %s259, 1
      %s262 = scalar_lea.vmem %s2, %s261
      %p263 = pneg %p111
      %p264 = pneg %p108
      %s265 = smul.u32 2, %s22
      %p266 = scmp.lt.s32.totalorder %s265, 1
      %s267 = scalar_select %p266, %s265, 1
      %s268 = scalar_lea.vmem %s3, %s267
      %p269 = pneg %p137
      %p270 = pneg %p134
      %p271 = pneg %p167
      %p272 = pneg %p164
      %s273 = smul.u32 4, %s21
      %s274 = smul.u32 2, %s22
      %p275 = scmp.lt.s32.totalorder %s20, 3
      %s276 = scalar_select %p275, %s20, 3
      %p277 = scmp.lt.s32.totalorder %s273, 3
      %s278 = scalar_select %p277, %s273, 3
      %p279 = scmp.lt.s32.totalorder %s274, 1
      %s280 = scalar_select %p279, %s274, 1
      %s281 = smul.addr %s278, 2
      %s282 = sadd.s32 %s280, %s281
      %s283 = smul.addr %s276, 8
      %s284 = sadd.s32 %s282, %s283
      %s285 = smul.addr %s284, 4
      %s286 = scalar_lea.vmem %s4, %s285
      %s287 = smul.u32 4, %s21
      %p288 = scmp.lt.s32.totalorder %s20, 3
      %s289 = scalar_select %p288, %s20, 3
      %p290 = scmp.lt.s32.totalorder %s287, 3
      %s291 = scalar_select %p290, %s287, 3
      %s292 = smul.addr %s291, 16
      %s293 = smul.addr %s289, 64
      %s294 = sadd.s32 %s292, %s293
      %s295 = smul.addr %s294, 4
      %s296 = scalar_lea.vmem %s0, %s295
      %s297 = smul.u32 4, %s21
      %s298 = smul.u32 2, %s22
      %p299 = scmp.lt.s32.totalorder %s20, 3
      %s300 = scalar_select %p299, %s20, 3
      %p301 = scmp.lt.s32.totalorder %s298, 1
      %s302 = scalar_select %p301, %s298, 1
      %s303 = smul.addr %s300, 512
      %s304 = sadd.s32 %s302, %s303
      %s305 = smul.addr %s304, 4
      %s306 = scalar_lea.vmem %s1, %s305
      %s307 = smul.u32 2, %s22
      %s308 = smul.u32 2, %s22
      %p309 = scmp.lt.s32.totalorder %s308, 1
      %s310 = scalar_select %p309, %s308, 1
      %s311 = scalar_lea.vmem %s2, %s310
      %s312 = smul.u32 2, %s22
      %s313 = smul.u32 2, %s22
      %p314 = scmp.lt.s32.totalorder %s313, 1
      %s315 = scalar_select %p314, %s313, 1
      %s316 = scalar_lea.vmem %s3, %s315
      %s317 = smul.u32 2, %s22
      %s318 = smul.u32 4, %s21
      %s319 = smul.u32 2, %s22
      %p320 = scmp.lt.s32.totalorder %s20, 3
      %s321 = scalar_select %p320, %s20, 3
      %p322 = scmp.lt.s32.totalorder %s318, 3
      %s323 = scalar_select %p322, %s318, 3
      %p324 = scmp.lt.s32.totalorder %s319, 1
      %s325 = scalar_select %p324, %s319, 1
      %s326 = smul.addr %s323, 2
      %s327 = sadd.s32 %s325, %s326
      %s328 = smul.addr %s321, 8
      %s329 = sadd.s32 %s327, %s328
      %s330 = smul.addr %s329, 4
      %s331 = scalar_lea.vmem %s4, %s330
      %s332 = smul.u32 4, %s21
      %s333 = smul.u32 2, %s22
      %v334 = vld [vmem:[%s296] sm:$0xff]
      %v335 = vld [vmem:[%s296 + $0x8] sm:$0xff]
      %v336 = vld [vmem:[%s296 + $0x10] sm:$0xff]
      %v337 = vld [vmem:[%s296 + $0x18] sm:$0xff]
      %v338 = vld [vmem:[%s296 + $0x20] sm:$0xff]
      %v339 = vld [vmem:[%s296 + $0x28] sm:$0xff]
      %v340 = vld [vmem:[%s296 + $0x30] sm:$0xff]
      %v341 = vld [vmem:[%s296 + $0x38] sm:$0xff]
      %v342 = vld [vmem:[%s296 + $0x40] sm:$0xff]
      %v343 = vld [vmem:[%s296 + $0x48] sm:$0xff]
      %v344 = vld [vmem:[%s296 + $0x50] sm:$0xff]
      %v345 = vld [vmem:[%s296 + $0x58] sm:$0xff]
      %v346 = vld [vmem:[%s296 + $0x60] sm:$0xff]
      %v347 = vld [vmem:[%s296 + $0x68] sm:$0xff]
      %v348 = vld [vmem:[%s296 + $0x70] sm:$0xff]
      %v349 = vld [vmem:[%s296 + $0x78] sm:$0xff]
      %v350 = vld [vmem:[%s296 + $0x80] sm:$0xff]
      %v351 = vld [vmem:[%s296 + $0x88] sm:$0xff]
      %v352 = vld [vmem:[%s296 + $0x90] sm:$0xff]
      %v353 = vld [vmem:[%s296 + $0x98] sm:$0xff]
      %v354 = vld [vmem:[%s296 + $0xa0] sm:$0xff]
      %v355 = vld [vmem:[%s296 + $0xa8] sm:$0xff]
      %v356 = vld [vmem:[%s296 + $0xb0] sm:$0xff]
      %v357 = vld [vmem:[%s296 + $0xb8] sm:$0xff]
      %v358 = vld [vmem:[%s296 + $0xc0] sm:$0xff]
      %v359 = vld [vmem:[%s296 + $0xc8] sm:$0xff]
      %v360 = vld [vmem:[%s296 + $0xd0] sm:$0xff]
      %v361 = vld [vmem:[%s296 + $0xd8] sm:$0xff]
      %v362 = vld [vmem:[%s296 + $0xe0] sm:$0xff]
      %v363 = vld [vmem:[%s296 + $0xe8] sm:$0xff]
      %v364 = vld [vmem:[%s296 + $0xf0] sm:$0xff]
      %v365 = vld [vmem:[%s296 + $0xf8] sm:$0xff]
      %v366 = vld [vmem:[%s306] sm:$0xff]
      %v367 = vld [vmem:[%s306 + $0x8] sm:$0xff]
      %v368 = vld [vmem:[%s306 + $0x10] sm:$0xff]
      %v369 = vld [vmem:[%s306 + $0x18] sm:$0xff]
      %v370 = vld [vmem:[%s306 + $0x20] sm:$0xff]
      %v371 = vld [vmem:[%s306 + $0x28] sm:$0xff]
      %v372 = vld [vmem:[%s306 + $0x30] sm:$0xff]
      %v373 = vld [vmem:[%s306 + $0x38] sm:$0xff]
      %v374 = vld [vmem:[%s306 + $0x40] sm:$0xff]
      %v375 = vld [vmem:[%s306 + $0x48] sm:$0xff]
      %v376 = vld [vmem:[%s306 + $0x50] sm:$0xff]
      %v377 = vld [vmem:[%s306 + $0x58] sm:$0xff]
      %v378 = vld [vmem:[%s306 + $0x60] sm:$0xff]
      %v379 = vld [vmem:[%s306 + $0x68] sm:$0xff]
      %v380 = vld [vmem:[%s306 + $0x70] sm:$0xff]
      %v381 = vld [vmem:[%s306 + $0x78] sm:$0xff]
      %v382 = vld [vmem:[%s306 + $0x80] sm:$0xff]
      %v383 = vld [vmem:[%s306 + $0x88] sm:$0xff]
      %v384 = vld [vmem:[%s306 + $0x90] sm:$0xff]
      %v385 = vld [vmem:[%s306 + $0x98] sm:$0xff]
      %v386 = vld [vmem:[%s306 + $0xa0] sm:$0xff]
      %v387 = vld [vmem:[%s306 + $0xa8] sm:$0xff]
      %v388 = vld [vmem:[%s306 + $0xb0] sm:$0xff]
      %v389 = vld [vmem:[%s306 + $0xb8] sm:$0xff]
      %v390 = vld [vmem:[%s306 + $0xc0] sm:$0xff]
      %v391 = vld [vmem:[%s306 + $0xc8] sm:$0xff]
      %v392 = vld [vmem:[%s306 + $0xd0] sm:$0xff]
      %v393 = vld [vmem:[%s306 + $0xd8] sm:$0xff]
      %v394 = vld [vmem:[%s306 + $0xe0] sm:$0xff]
      %v395 = vld [vmem:[%s306 + $0xe8] sm:$0xff]
      %v396 = vld [vmem:[%s306 + $0xf0] sm:$0xff]
      %v397 = vld [vmem:[%s306 + $0xf8] sm:$0xff]
      %v398 = vld [vmem:[%s306 + $0x100] sm:$0xff]
      %v399 = vld [vmem:[%s306 + $0x108] sm:$0xff]
      %v400 = vld [vmem:[%s306 + $0x110] sm:$0xff]
      %v401 = vld [vmem:[%s306 + $0x118] sm:$0xff]
      %v402 = vld [vmem:[%s306 + $0x120] sm:$0xff]
      %v403 = vld [vmem:[%s306 + $0x128] sm:$0xff]
      %v404 = vld [vmem:[%s306 + $0x130] sm:$0xff]
      %v405 = vld [vmem:[%s306 + $0x138] sm:$0xff]
      %v406 = vld [vmem:[%s306 + $0x140] sm:$0xff]
      %v407 = vld [vmem:[%s306 + $0x148] sm:$0xff]
      %v408 = vld [vmem:[%s306 + $0x150] sm:$0xff]
      %v409 = vld [vmem:[%s306 + $0x158] sm:$0xff]
      %v410 = vld [vmem:[%s306 + $0x160] sm:$0xff]
      %v411 = vld [vmem:[%s306 + $0x168] sm:$0xff]
      %v412 = vld [vmem:[%s306 + $0x170] sm:$0xff]
      %v413 = vld [vmem:[%s306 + $0x178] sm:$0xff]
      %v414 = vld [vmem:[%s306 + $0x180] sm:$0xff]
      %v415 = vld [vmem:[%s306 + $0x188] sm:$0xff]
      %v416 = vld [vmem:[%s306 + $0x190] sm:$0xff]
      %v417 = vld [vmem:[%s306 + $0x198] sm:$0xff]
      %v418 = vld [vmem:[%s306 + $0x1a0] sm:$0xff]
      %v419 = vld [vmem:[%s306 + $0x1a8] sm:$0xff]
      %v420 = vld [vmem:[%s306 + $0x1b0] sm:$0xff]
      %v421 = vld [vmem:[%s306 + $0x1b8] sm:$0xff]
      %v422 = vld [vmem:[%s306 + $0x1c0] sm:$0xff]
      %v423 = vld [vmem:[%s306 + $0x1c8] sm:$0xff]
      %v424 = vld [vmem:[%s306 + $0x1d0] sm:$0xff]
      %v425 = vld [vmem:[%s306 + $0x1d8] sm:$0xff]
      %v426 = vld [vmem:[%s306 + $0x1e0] sm:$0xff]
      %v427 = vld [vmem:[%s306 + $0x1e8] sm:$0xff]
      %v428 = vld [vmem:[%s306 + $0x1f0] sm:$0xff]
      %v429 = vld [vmem:[%s306 + $0x1f8] sm:$0xff]
      %v430 = vld [vmem:[%s306 + $0x200] sm:$0xff]
      %v431 = vld [vmem:[%s306 + $0x208] sm:$0xff]
      %v432 = vld [vmem:[%s306 + $0x210] sm:$0xff]
      %v433 = vld [vmem:[%s306 + $0x218] sm:$0xff]
      %v434 = vld [vmem:[%s306 + $0x220] sm:$0xff]
      %v435 = vld [vmem:[%s306 + $0x228] sm:$0xff]
      %v436 = vld [vmem:[%s306 + $0x230] sm:$0xff]
      %v437 = vld [vmem:[%s306 + $0x238] sm:$0xff]
      %v438 = vld [vmem:[%s306 + $0x240] sm:$0xff]
      %v439 = vld [vmem:[%s306 + $0x248] sm:$0xff]
      %v440 = vld [vmem:[%s306 + $0x250] sm:$0xff]
      %v441 = vld [vmem:[%s306 + $0x258] sm:$0xff]
      %v442 = vld [vmem:[%s306 + $0x260] sm:$0xff]
      %v443 = vld [vmem:[%s306 + $0x268] sm:$0xff]
      %v444 = vld [vmem:[%s306 + $0x270] sm:$0xff]
      %v445 = vld [vmem:[%s306 + $0x278] sm:$0xff]
      %v446 = vld [vmem:[%s306 + $0x280] sm:$0xff]
      %v447 = vld [vmem:[%s306 + $0x288] sm:$0xff]
      %v448 = vld [vmem:[%s306 + $0x290] sm:$0xff]
      %v449 = vld [vmem:[%s306 + $0x298] sm:$0xff]
      %v450 = vld [vmem:[%s306 + $0x2a0] sm:$0xff]
      %v451 = vld [vmem:[%s306 + $0x2a8] sm:$0xff]
      %v452 = vld [vmem:[%s306 + $0x2b0] sm:$0xff]
      %v453 = vld [vmem:[%s306 + $0x2b8] sm:$0xff]
      %v454 = vld [vmem:[%s306 + $0x2c0] sm:$0xff]
      %v455 = vld [vmem:[%s306 + $0x2c8] sm:$0xff]
      %v456 = vld [vmem:[%s306 + $0x2d0] sm:$0xff]
      %v457 = vld [vmem:[%s306 + $0x2d8] sm:$0xff]
      %v458 = vld [vmem:[%s306 + $0x2e0] sm:$0xff]
      %v459 = vld [vmem:[%s306 + $0x2e8] sm:$0xff]
      %v460 = vld [vmem:[%s306 + $0x2f0] sm:$0xff]
      %v461 = vld [vmem:[%s306 + $0x2f8] sm:$0xff]
      %v462 = vld [vmem:[%s306 + $0x300] sm:$0xff]
      %v463 = vld [vmem:[%s306 + $0x308] sm:$0xff]
      %v464 = vld [vmem:[%s306 + $0x310] sm:$0xff]
      %v465 = vld [vmem:[%s306 + $0x318] sm:$0xff]
      %v466 = vld [vmem:[%s306 + $0x320] sm:$0xff]
      %v467 = vld [vmem:[%s306 + $0x328] sm:$0xff]
      %v468 = vld [vmem:[%s306 + $0x330] sm:$0xff]
      %v469 = vld [vmem:[%s306 + $0x338] sm:$0xff]
      %v470 = vld [vmem:[%s306 + $0x340] sm:$0xff]
      %v471 = vld [vmem:[%s306 + $0x348] sm:$0xff]
      %v472 = vld [vmem:[%s306 + $0x350] sm:$0xff]
      %v473 = vld [vmem:[%s306 + $0x358] sm:$0xff]
      %v474 = vld [vmem:[%s306 + $0x360] sm:$0xff]
      %v475 = vld [vmem:[%s306 + $0x368] sm:$0xff]
      %v476 = vld [vmem:[%s306 + $0x370] sm:$0xff]
      %v477 = vld [vmem:[%s306 + $0x378] sm:$0xff]
      %v478 = vld [vmem:[%s306 + $0x380] sm:$0xff]
      %v479 = vld [vmem:[%s306 + $0x388] sm:$0xff]
      %v480 = vld [vmem:[%s306 + $0x390] sm:$0xff]
      %v481 = vld [vmem:[%s306 + $0x398] sm:$0xff]
      %v482 = vld [vmem:[%s306 + $0x3a0] sm:$0xff]
      %v483 = vld [vmem:[%s306 + $0x3a8] sm:$0xff]
      %v484 = vld [vmem:[%s306 + $0x3b0] sm:$0xff]
      %v485 = vld [vmem:[%s306 + $0x3b8] sm:$0xff]
      %v486 = vld [vmem:[%s306 + $0x3c0] sm:$0xff]
      %v487 = vld [vmem:[%s306 + $0x3c8] sm:$0xff]
      %v488 = vld [vmem:[%s306 + $0x3d0] sm:$0xff]
      %v489 = vld [vmem:[%s306 + $0x3d8] sm:$0xff]
      %v490 = vld [vmem:[%s306 + $0x3e0] sm:$0xff]
      %v491 = vld [vmem:[%s306 + $0x3e8] sm:$0xff]
      %v492 = vld [vmem:[%s306 + $0x3f0] sm:$0xff]
      %v493 = vld [vmem:[%s306 + $0x3f8] sm:$0xff]
      %v494 = vld [vmem:[%s306 + $0x400] sm:$0xff]
      %v495 = vld [vmem:[%s306 + $0x408] sm:$0xff]
      %v496 = vld [vmem:[%s306 + $0x410] sm:$0xff]
      %v497 = vld [vmem:[%s306 + $0x418] sm:$0xff]
      %v498 = vld [vmem:[%s306 + $0x420] sm:$0xff]
      %v499 = vld [vmem:[%s306 + $0x428] sm:$0xff]
      %v500 = vld [vmem:[%s306 + $0x430] sm:$0xff]
      %v501 = vld [vmem:[%s306 + $0x438] sm:$0xff]
      %v502 = vld [vmem:[%s306 + $0x440] sm:$0xff]
      %v503 = vld [vmem:[%s306 + $0x448] sm:$0xff]
      %v504 = vld [vmem:[%s306 + $0x450] sm:$0xff]
      %v505 = vld [vmem:[%s306 + $0x458] sm:$0xff]
      %v506 = vld [vmem:[%s306 + $0x460] sm:$0xff]
      %v507 = vld [vmem:[%s306 + $0x468] sm:$0xff]
      %v508 = vld [vmem:[%s306 + $0x470] sm:$0xff]
      %v509 = vld [vmem:[%s306 + $0x478] sm:$0xff]
      %v510 = vld [vmem:[%s306 + $0x480] sm:$0xff]
      %v511 = vld [vmem:[%s306 + $0x488] sm:$0xff]
      %v512 = vld [vmem:[%s306 + $0x490] sm:$0xff]
      %v513 = vld [vmem:[%s306 + $0x498] sm:$0xff]
      %v514 = vld [vmem:[%s306 + $0x4a0] sm:$0xff]
      %v515 = vld [vmem:[%s306 + $0x4a8] sm:$0xff]
      %v516 = vld [vmem:[%s306 + $0x4b0] sm:$0xff]
      %v517 = vld [vmem:[%s306 + $0x4b8] sm:$0xff]
      %v518 = vld [vmem:[%s306 + $0x4c0] sm:$0xff]
      %v519 = vld [vmem:[%s306 + $0x4c8] sm:$0xff]
      %v520 = vld [vmem:[%s306 + $0x4d0] sm:$0xff]
      %v521 = vld [vmem:[%s306 + $0x4d8] sm:$0xff]
      %v522 = vld [vmem:[%s306 + $0x4e0] sm:$0xff]
      %v523 = vld [vmem:[%s306 + $0x4e8] sm:$0xff]
      %v524 = vld [vmem:[%s306 + $0x4f0] sm:$0xff]
      %v525 = vld [vmem:[%s306 + $0x4f8] sm:$0xff]
      %v526 = vld [vmem:[%s306 + $0x500] sm:$0xff]
      %v527 = vld [vmem:[%s306 + $0x508] sm:$0xff]
      %v528 = vld [vmem:[%s306 + $0x510] sm:$0xff]
      %v529 = vld [vmem:[%s306 + $0x518] sm:$0xff]
      %v530 = vld [vmem:[%s306 + $0x520] sm:$0xff]
      %v531 = vld [vmem:[%s306 + $0x528] sm:$0xff]
      %v532 = vld [vmem:[%s306 + $0x530] sm:$0xff]
      %v533 = vld [vmem:[%s306 + $0x538] sm:$0xff]
      %v534 = vld [vmem:[%s306 + $0x540] sm:$0xff]
      %v535 = vld [vmem:[%s306 + $0x548] sm:$0xff]
      %v536 = vld [vmem:[%s306 + $0x550] sm:$0xff]
      %v537 = vld [vmem:[%s306 + $0x558] sm:$0xff]
      %v538 = vld [vmem:[%s306 + $0x560] sm:$0xff]
      %v539 = vld [vmem:[%s306 + $0x568] sm:$0xff]
      %v540 = vld [vmem:[%s306 + $0x570] sm:$0xff]
      %v541 = vld [vmem:[%s306 + $0x578] sm:$0xff]
      %v542 = vld [vmem:[%s306 + $0x580] sm:$0xff]
      %v543 = vld [vmem:[%s306 + $0x588] sm:$0xff]
      %v544 = vld [vmem:[%s306 + $0x590] sm:$0xff]
      %v545 = vld [vmem:[%s306 + $0x598] sm:$0xff]
      %v546 = vld [vmem:[%s306 + $0x5a0] sm:$0xff]
      %v547 = vld [vmem:[%s306 + $0x5a8] sm:$0xff]
      %v548 = vld [vmem:[%s306 + $0x5b0] sm:$0xff]
      %v549 = vld [vmem:[%s306 + $0x5b8] sm:$0xff]
      %v550 = vld [vmem:[%s306 + $0x5c0] sm:$0xff]
      %v551 = vld [vmem:[%s306 + $0x5c8] sm:$0xff]
      %v552 = vld [vmem:[%s306 + $0x5d0] sm:$0xff]
      %v553 = vld [vmem:[%s306 + $0x5d8] sm:$0xff]
      %v554 = vld [vmem:[%s306 + $0x5e0] sm:$0xff]
      %v555 = vld [vmem:[%s306 + $0x5e8] sm:$0xff]
      %v556 = vld [vmem:[%s306 + $0x5f0] sm:$0xff]
      %v557 = vld [vmem:[%s306 + $0x5f8] sm:$0xff]
      %v558 = vld [vmem:[%s306 + $0x600] sm:$0xff]
      %v559 = vld [vmem:[%s306 + $0x608] sm:$0xff]
      %v560 = vld [vmem:[%s306 + $0x610] sm:$0xff]
      %v561 = vld [vmem:[%s306 + $0x618] sm:$0xff]
      %v562 = vld [vmem:[%s306 + $0x620] sm:$0xff]
      %v563 = vld [vmem:[%s306 + $0x628] sm:$0xff]
      %v564 = vld [vmem:[%s306 + $0x630] sm:$0xff]
      %v565 = vld [vmem:[%s306 + $0x638] sm:$0xff]
      %v566 = vld [vmem:[%s306 + $0x640] sm:$0xff]
      %v567 = vld [vmem:[%s306 + $0x648] sm:$0xff]
      %v568 = vld [vmem:[%s306 + $0x650] sm:$0xff]
      %v569 = vld [vmem:[%s306 + $0x658] sm:$0xff]
      %v570 = vld [vmem:[%s306 + $0x660] sm:$0xff]
      %v571 = vld [vmem:[%s306 + $0x668] sm:$0xff]
      %v572 = vld [vmem:[%s306 + $0x670] sm:$0xff]
      %v573 = vld [vmem:[%s306 + $0x678] sm:$0xff]
      %v574 = vld [vmem:[%s306 + $0x680] sm:$0xff]
      %v575 = vld [vmem:[%s306 + $0x688] sm:$0xff]
      %v576 = vld [vmem:[%s306 + $0x690] sm:$0xff]
      %v577 = vld [vmem:[%s306 + $0x698] sm:$0xff]
      %v578 = vld [vmem:[%s306 + $0x6a0] sm:$0xff]
      %v579 = vld [vmem:[%s306 + $0x6a8] sm:$0xff]
      %v580 = vld [vmem:[%s306 + $0x6b0] sm:$0xff]
      %v581 = vld [vmem:[%s306 + $0x6b8] sm:$0xff]
      %v582 = vld [vmem:[%s306 + $0x6c0] sm:$0xff]
      %v583 = vld [vmem:[%s306 + $0x6c8] sm:$0xff]
      %v584 = vld [vmem:[%s306 + $0x6d0] sm:$0xff]
      %v585 = vld [vmem:[%s306 + $0x6d8] sm:$0xff]
      %v586 = vld [vmem:[%s306 + $0x6e0] sm:$0xff]
      %v587 = vld [vmem:[%s306 + $0x6e8] sm:$0xff]
      %v588 = vld [vmem:[%s306 + $0x6f0] sm:$0xff]
      %v589 = vld [vmem:[%s306 + $0x6f8] sm:$0xff]
      %v590 = vld [vmem:[%s306 + $0x700] sm:$0xff]
      %v591 = vld [vmem:[%s306 + $0x708] sm:$0xff]
      %v592 = vld [vmem:[%s306 + $0x710] sm:$0xff]
      %v593 = vld [vmem:[%s306 + $0x718] sm:$0xff]
      %v594 = vld [vmem:[%s306 + $0x720] sm:$0xff]
      %v595 = vld [vmem:[%s306 + $0x728] sm:$0xff]
      %v596 = vld [vmem:[%s306 + $0x730] sm:$0xff]
      %v597 = vld [vmem:[%s306 + $0x738] sm:$0xff]
      %v598 = vld [vmem:[%s306 + $0x740] sm:$0xff]
      %v599 = vld [vmem:[%s306 + $0x748] sm:$0xff]
      %v600 = vld [vmem:[%s306 + $0x750] sm:$0xff]
      %v601 = vld [vmem:[%s306 + $0x758] sm:$0xff]
      %v602 = vld [vmem:[%s306 + $0x760] sm:$0xff]
      %v603 = vld [vmem:[%s306 + $0x768] sm:$0xff]
      %v604 = vld [vmem:[%s306 + $0x770] sm:$0xff]
      %v605 = vld [vmem:[%s306 + $0x778] sm:$0xff]
      %v606 = vld [vmem:[%s306 + $0x780] sm:$0xff]
      %v607 = vld [vmem:[%s306 + $0x788] sm:$0xff]
      %v608 = vld [vmem:[%s306 + $0x790] sm:$0xff]
      %v609 = vld [vmem:[%s306 + $0x798] sm:$0xff]
      %v610 = vld [vmem:[%s306 + $0x7a0] sm:$0xff]
      %v611 = vld [vmem:[%s306 + $0x7a8] sm:$0xff]
      %v612 = vld [vmem:[%s306 + $0x7b0] sm:$0xff]
      %v613 = vld [vmem:[%s306 + $0x7b8] sm:$0xff]
      %v614 = vld [vmem:[%s306 + $0x7c0] sm:$0xff]
      %v615 = vld [vmem:[%s306 + $0x7c8] sm:$0xff]
      %v616 = vld [vmem:[%s306 + $0x7d0] sm:$0xff]
      %v617 = vld [vmem:[%s306 + $0x7d8] sm:$0xff]
      %v618 = vld [vmem:[%s306 + $0x7e0] sm:$0xff]
      %v619 = vld [vmem:[%s306 + $0x7e8] sm:$0xff]
      %v620 = vld [vmem:[%s306 + $0x7f0] sm:$0xff]
      %v621 = vld [vmem:[%s306 + $0x7f8] sm:$0xff]
      %v654 = vunpack.c.l.b16 %v334
      %v655 = vunpack.c.h.b16 %v334
      %v656 = vunpack.c.l.b16 %v335
      %v657 = vunpack.c.h.b16 %v335
      %v658 = vunpack.c.l.b16 %v336
      %v659 = vunpack.c.h.b16 %v336
      %v660 = vunpack.c.l.b16 %v337
      %v661 = vunpack.c.h.b16 %v337
      %v662 = vunpack.c.l.b16 %v338
      %v663 = vunpack.c.h.b16 %v338
      %v664 = vunpack.c.l.b16 %v339
      %v665 = vunpack.c.h.b16 %v339
      %v666 = vunpack.c.l.b16 %v340
      %v667 = vunpack.c.h.b16 %v340
      %v668 = vunpack.c.l.b16 %v341
      %v669 = vunpack.c.h.b16 %v341
      %v670 = vunpack.c.l.b16 %v342
      %v671 = vunpack.c.h.b16 %v342
      %v672 = vunpack.c.l.b16 %v343
      %v673 = vunpack.c.h.b16 %v343
      %v674 = vunpack.c.l.b16 %v344
      %v675 = vunpack.c.h.b16 %v344
      %v676 = vunpack.c.l.b16 %v345
      %v677 = vunpack.c.h.b16 %v345
      %v678 = vunpack.c.l.b16 %v346
      %v679 = vunpack.c.h.b16 %v346
      %v680 = vunpack.c.l.b16 %v347
      %v681 = vunpack.c.h.b16 %v347
      %v682 = vunpack.c.l.b16 %v348
      %v683 = vunpack.c.h.b16 %v348
      %v684 = vunpack.c.l.b16 %v349
      %v685 = vunpack.c.h.b16 %v349
      %v686 = vunpack.c.l.b16 %v350
      %v687 = vunpack.c.h.b16 %v350
      %v688 = vunpack.c.l.b16 %v351
      %v689 = vunpack.c.h.b16 %v351
      %v690 = vunpack.c.l.b16 %v352
      %v691 = vunpack.c.h.b16 %v352
      %v692 = vunpack.c.l.b16 %v353
      %v693 = vunpack.c.h.b16 %v353
      %v694 = vunpack.c.l.b16 %v354
      %v695 = vunpack.c.h.b16 %v354
      %v696 = vunpack.c.l.b16 %v355
      %v697 = vunpack.c.h.b16 %v355
      %v698 = vunpack.c.l.b16 %v356
      %v699 = vunpack.c.h.b16 %v356
      %v700 = vunpack.c.l.b16 %v357
      %v701 = vunpack.c.h.b16 %v357
      %v702 = vunpack.c.l.b16 %v358
      %v703 = vunpack.c.h.b16 %v358
      %v704 = vunpack.c.l.b16 %v359
      %v705 = vunpack.c.h.b16 %v359
      %v706 = vunpack.c.l.b16 %v360
      %v707 = vunpack.c.h.b16 %v360
      %v708 = vunpack.c.l.b16 %v361
      %v709 = vunpack.c.h.b16 %v361
      %v710 = vunpack.c.l.b16 %v362
      %v711 = vunpack.c.h.b16 %v362
      %v712 = vunpack.c.l.b16 %v363
      %v713 = vunpack.c.h.b16 %v363
      %v714 = vunpack.c.l.b16 %v364
      %v715 = vunpack.c.h.b16 %v364
      %v716 = vunpack.c.l.b16 %v365
      %v717 = vunpack.c.h.b16 %v365
      %v718 = vpack.c.b16 %v670, %v654
      %v719 = vpack.c.b16 %v671, %v655
      %v720 = vpack.c.b16 %v672, %v656
      %v721 = vpack.c.b16 %v673, %v657
      %v722 = vpack.c.b16 %v674, %v658
      %v723 = vpack.c.b16 %v675, %v659
      %v724 = vpack.c.b16 %v676, %v660
      %v725 = vpack.c.b16 %v677, %v661
      %v726 = vpack.c.b16 %v678, %v662
      %v727 = vpack.c.b16 %v679, %v663
      %v728 = vpack.c.b16 %v680, %v664
      %v729 = vpack.c.b16 %v681, %v665
      %v730 = vpack.c.b16 %v682, %v666
      %v731 = vpack.c.b16 %v683, %v667
      %v732 = vpack.c.b16 %v684, %v668
      %v733 = vpack.c.b16 %v685, %v669
      %v734 = vpack.c.b16 %v702, %v686
      %v735 = vpack.c.b16 %v703, %v687
      %v736 = vpack.c.b16 %v704, %v688
      %v737 = vpack.c.b16 %v705, %v689
      %v738 = vpack.c.b16 %v706, %v690
      %v739 = vpack.c.b16 %v707, %v691
      %v740 = vpack.c.b16 %v708, %v692
      %v741 = vpack.c.b16 %v709, %v693
      %v742 = vpack.c.b16 %v710, %v694
      %v743 = vpack.c.b16 %v711, %v695
      %v744 = vpack.c.b16 %v712, %v696
      %v745 = vpack.c.b16 %v713, %v697
      %v746 = vpack.c.b16 %v714, %v698
      %v747 = vpack.c.b16 %v715, %v699
      %v748 = vpack.c.b16 %v716, %v700
      %v749 = vpack.c.b16 %v717, %v701
      %v1038 = vunpack.c.l.b16 %v366
      %v1039 = vunpack.c.h.b16 %v366
      %v1040 = vunpack.c.l.b16 %v367
      %v1041 = vunpack.c.h.b16 %v367
      %v1042 = vunpack.c.l.b16 %v368
      %v1043 = vunpack.c.h.b16 %v368
      %v1044 = vunpack.c.l.b16 %v369
      %v1045 = vunpack.c.h.b16 %v369
      %v1046 = vunpack.c.l.b16 %v370
      %v1047 = vunpack.c.h.b16 %v370
      %v1048 = vunpack.c.l.b16 %v371
      %v1049 = vunpack.c.h.b16 %v371
      %v1050 = vunpack.c.l.b16 %v372
      %v1051 = vunpack.c.h.b16 %v372
      %v1052 = vunpack.c.l.b16 %v373
      %v1053 = vunpack.c.h.b16 %v373
      %v1054 = vunpack.c.l.b16 %v374
      %v1055 = vunpack.c.h.b16 %v374
      %v1056 = vunpack.c.l.b16 %v375
      %v1057 = vunpack.c.h.b16 %v375
      %v1058 = vunpack.c.l.b16 %v376
      %v1059 = vunpack.c.h.b16 %v376
      %v1060 = vunpack.c.l.b16 %v377
      %v1061 = vunpack.c.h.b16 %v377
      %v1062 = vunpack.c.l.b16 %v378
      %v1063 = vunpack.c.h.b16 %v378
      %v1064 = vunpack.c.l.b16 %v379
      %v1065 = vunpack.c.h.b16 %v379
      %v1066 = vunpack.c.l.b16 %v380
      %v1067 = vunpack.c.h.b16 %v380
      %v1068 = vunpack.c.l.b16 %v381
      %v1069 = vunpack.c.h.b16 %v381
      %v1070 = vunpack.c.l.b16 %v382
      %v1071 = vunpack.c.h.b16 %v382
      %v1072 = vunpack.c.l.b16 %v383
      %v1073 = vunpack.c.h.b16 %v383
      %v1074 = vunpack.c.l.b16 %v384
      %v1075 = vunpack.c.h.b16 %v384
      %v1076 = vunpack.c.l.b16 %v385
      %v1077 = vunpack.c.h.b16 %v385
      %v1078 = vunpack.c.l.b16 %v386
      %v1079 = vunpack.c.h.b16 %v386
      %v1080 = vunpack.c.l.b16 %v387
      %v1081 = vunpack.c.h.b16 %v387
      %v1082 = vunpack.c.l.b16 %v388
      %v1083 = vunpack.c.h.b16 %v388
      %v1084 = vunpack.c.l.b16 %v389
      %v1085 = vunpack.c.h.b16 %v389
      %v1086 = vunpack.c.l.b16 %v390
      %v1087 = vunpack.c.h.b16 %v390
      %v1088 = vunpack.c.l.b16 %v391
      %v1089 = vunpack.c.h.b16 %v391
      %v1090 = vunpack.c.l.b16 %v392
      %v1091 = vunpack.c.h.b16 %v392
      %v1092 = vunpack.c.l.b16 %v393
      %v1093 = vunpack.c.h.b16 %v393
      %v1094 = vunpack.c.l.b16 %v394
      %v1095 = vunpack.c.h.b16 %v394
      %v1096 = vunpack.c.l.b16 %v395
      %v1097 = vunpack.c.h.b16 %v395
      %v1098 = vunpack.c.l.b16 %v396
      %v1099 = vunpack.c.h.b16 %v396
      %v1100 = vunpack.c.l.b16 %v397
      %v1101 = vunpack.c.h.b16 %v397
      %v1102 = vunpack.c.l.b16 %v398
      %v1103 = vunpack.c.h.b16 %v398
      %v1104 = vunpack.c.l.b16 %v399
      %v1105 = vunpack.c.h.b16 %v399
      %v1106 = vunpack.c.l.b16 %v400
      %v1107 = vunpack.c.h.b16 %v400
      %v1108 = vunpack.c.l.b16 %v401
      %v1109 = vunpack.c.h.b16 %v401
      %v1110 = vunpack.c.l.b16 %v402
      %v1111 = vunpack.c.h.b16 %v402
      %v1112 = vunpack.c.l.b16 %v403
      %v1113 = vunpack.c.h.b16 %v403
      %v1114 = vunpack.c.l.b16 %v404
      %v1115 = vunpack.c.h.b16 %v404
      %v1116 = vunpack.c.l.b16 %v405
      %v1117 = vunpack.c.h.b16 %v405
      %v1118 = vunpack.c.l.b16 %v406
      %v1119 = vunpack.c.h.b16 %v406
      %v1120 = vunpack.c.l.b16 %v407
      %v1121 = vunpack.c.h.b16 %v407
      %v1122 = vunpack.c.l.b16 %v408
      %v1123 = vunpack.c.h.b16 %v408
      %v1124 = vunpack.c.l.b16 %v409
      %v1125 = vunpack.c.h.b16 %v409
      %v1126 = vunpack.c.l.b16 %v410
      %v1127 = vunpack.c.h.b16 %v410
      %v1128 = vunpack.c.l.b16 %v411
      %v1129 = vunpack.c.h.b16 %v411
      %v1130 = vunpack.c.l.b16 %v412
      %v1131 = vunpack.c.h.b16 %v412
      %v1132 = vunpack.c.l.b16 %v413
      %v1133 = vunpack.c.h.b16 %v413
      %v1134 = vunpack.c.l.b16 %v414
      %v1135 = vunpack.c.h.b16 %v414
      %v1136 = vunpack.c.l.b16 %v415
      %v1137 = vunpack.c.h.b16 %v415
      %v1138 = vunpack.c.l.b16 %v416
      %v1139 = vunpack.c.h.b16 %v416
      %v1140 = vunpack.c.l.b16 %v417
      %v1141 = vunpack.c.h.b16 %v417
      %v1142 = vunpack.c.l.b16 %v418
      %v1143 = vunpack.c.h.b16 %v418
      %v1144 = vunpack.c.l.b16 %v419
      %v1145 = vunpack.c.h.b16 %v419
      %v1146 = vunpack.c.l.b16 %v420
      %v1147 = vunpack.c.h.b16 %v420
      %v1148 = vunpack.c.l.b16 %v421
      %v1149 = vunpack.c.h.b16 %v421
      %v1150 = vunpack.c.l.b16 %v422
      %v1151 = vunpack.c.h.b16 %v422
      %v1152 = vunpack.c.l.b16 %v423
      %v1153 = vunpack.c.h.b16 %v423
      %v1154 = vunpack.c.l.b16 %v424
      %v1155 = vunpack.c.h.b16 %v424
      %v1156 = vunpack.c.l.b16 %v425
      %v1157 = vunpack.c.h.b16 %v425
      %v1158 = vunpack.c.l.b16 %v426
      %v1159 = vunpack.c.h.b16 %v426
      %v1160 = vunpack.c.l.b16 %v427
      %v1161 = vunpack.c.h.b16 %v427
      %v1162 = vunpack.c.l.b16 %v428
      %v1163 = vunpack.c.h.b16 %v428
      %v1164 = vunpack.c.l.b16 %v429
      %v1165 = vunpack.c.h.b16 %v429
      %v1166 = vunpack.c.l.b16 %v430
      %v1167 = vunpack.c.h.b16 %v430
      %v1168 = vunpack.c.l.b16 %v431
      %v1169 = vunpack.c.h.b16 %v431
      %v1170 = vunpack.c.l.b16 %v432
      %v1171 = vunpack.c.h.b16 %v432
      %v1172 = vunpack.c.l.b16 %v433
      %v1173 = vunpack.c.h.b16 %v433
      %v1174 = vunpack.c.l.b16 %v434
      %v1175 = vunpack.c.h.b16 %v434
      %v1176 = vunpack.c.l.b16 %v435
      %v1177 = vunpack.c.h.b16 %v435
      %v1178 = vunpack.c.l.b16 %v436
      %v1179 = vunpack.c.h.b16 %v436
      %v1180 = vunpack.c.l.b16 %v437
      %v1181 = vunpack.c.h.b16 %v437
      %v1182 = vunpack.c.l.b16 %v438
      %v1183 = vunpack.c.h.b16 %v438
      %v1184 = vunpack.c.l.b16 %v439
      %v1185 = vunpack.c.h.b16 %v439
      %v1186 = vunpack.c.l.b16 %v440
      %v1187 = vunpack.c.h.b16 %v440
      %v1188 = vunpack.c.l.b16 %v441
      %v1189 = vunpack.c.h.b16 %v441
      %v1190 = vunpack.c.l.b16 %v442
      %v1191 = vunpack.c.h.b16 %v442
      %v1192 = vunpack.c.l.b16 %v443
      %v1193 = vunpack.c.h.b16 %v443
      %v1194 = vunpack.c.l.b16 %v444
      %v1195 = vunpack.c.h.b16 %v444
      %v1196 = vunpack.c.l.b16 %v445
      %v1197 = vunpack.c.h.b16 %v445
      %v1198 = vunpack.c.l.b16 %v446
      %v1199 = vunpack.c.h.b16 %v446
      %v1200 = vunpack.c.l.b16 %v447
      %v1201 = vunpack.c.h.b16 %v447
      %v1202 = vunpack.c.l.b16 %v448
      %v1203 = vunpack.c.h.b16 %v448
      %v1204 = vunpack.c.l.b16 %v449
      %v1205 = vunpack.c.h.b16 %v449
      %v1206 = vunpack.c.l.b16 %v450
      %v1207 = vunpack.c.h.b16 %v450
      %v1208 = vunpack.c.l.b16 %v451
      %v1209 = vunpack.c.h.b16 %v451
      %v1210 = vunpack.c.l.b16 %v452
      %v1211 = vunpack.c.h.b16 %v452
      %v1212 = vunpack.c.l.b16 %v453
      %v1213 = vunpack.c.h.b16 %v453
      %v1214 = vunpack.c.l.b16 %v454
      %v1215 = vunpack.c.h.b16 %v454
      %v1216 = vunpack.c.l.b16 %v455
      %v1217 = vunpack.c.h.b16 %v455
      %v1218 = vunpack.c.l.b16 %v456
      %v1219 = vunpack.c.h.b16 %v456
      %v1220 = vunpack.c.l.b16 %v457
      %v1221 = vunpack.c.h.b16 %v457
      %v1222 = vunpack.c.l.b16 %v458
      %v1223 = vunpack.c.h.b16 %v458
      %v1224 = vunpack.c.l.b16 %v459
      %v1225 = vunpack.c.h.b16 %v459
      %v1226 = vunpack.c.l.b16 %v460
      %v1227 = vunpack.c.h.b16 %v460
      %v1228 = vunpack.c.l.b16 %v461
      %v1229 = vunpack.c.h.b16 %v461
      %v1230 = vunpack.c.l.b16 %v462
      %v1231 = vunpack.c.h.b16 %v462
      %v1232 = vunpack.c.l.b16 %v463
      %v1233 = vunpack.c.h.b16 %v463
      %v1234 = vunpack.c.l.b16 %v464
      %v1235 = vunpack.c.h.b16 %v464
      %v1236 = vunpack.c.l.b16 %v465
      %v1237 = vunpack.c.h.b16 %v465
      %v1238 = vunpack.c.l.b16 %v466
      %v1239 = vunpack.c.h.b16 %v466
      %v1240 = vunpack.c.l.b16 %v467
      %v1241 = vunpack.c.h.b16 %v467
      %v1242 = vunpack.c.l.b16 %v468
      %v1243 = vunpack.c.h.b16 %v468
      %v1244 = vunpack.c.l.b16 %v469
      %v1245 = vunpack.c.h.b16 %v469
      %v1246 = vunpack.c.l.b16 %v470
      %v1247 = vunpack.c.h.b16 %v470
      %v1248 = vunpack.c.l.b16 %v471
      %v1249 = vunpack.c.h.b16 %v471
      %v1250 = vunpack.c.l.b16 %v472
      %v1251 = vunpack.c.h.b16 %v472
      %v1252 = vunpack.c.l.b16 %v473
      %v1253 = vunpack.c.h.b16 %v473
      %v1254 = vunpack.c.l.b16 %v474
      %v1255 = vunpack.c.h.b16 %v474
      %v1256 = vunpack.c.l.b16 %v475
      %v1257 = vunpack.c.h.b16 %v475
      %v1258 = vunpack.c.l.b16 %v476
      %v1259 = vunpack.c.h.b16 %v476
      %v1260 = vunpack.c.l.b16 %v477
      %v1261 = vunpack.c.h.b16 %v477
      %v1262 = vunpack.c.l.b16 %v478
      %v1263 = vunpack.c.h.b16 %v478
      %v1264 = vunpack.c.l.b16 %v479
      %v1265 = vunpack.c.h.b16 %v479
      %v1266 = vunpack.c.l.b16 %v480
      %v1267 = vunpack.c.h.b16 %v480
      %v1268 = vunpack.c.l.b16 %v481
      %v1269 = vunpack.c.h.b16 %v481
      %v1270 = vunpack.c.l.b16 %v482
      %v1271 = vunpack.c.h.b16 %v482
      %v1272 = vunpack.c.l.b16 %v483
      %v1273 = vunpack.c.h.b16 %v483
      %v1274 = vunpack.c.l.b16 %v484
      %v1275 = vunpack.c.h.b16 %v484
      %v1276 = vunpack.c.l.b16 %v485
      %v1277 = vunpack.c.h.b16 %v485
      %v1278 = vunpack.c.l.b16 %v486
      %v1279 = vunpack.c.h.b16 %v486
      %v1280 = vunpack.c.l.b16 %v487
      %v1281 = vunpack.c.h.b16 %v487
      %v1282 = vunpack.c.l.b16 %v488
      %v1283 = vunpack.c.h.b16 %v488
      %v1284 = vunpack.c.l.b16 %v489
      %v1285 = vunpack.c.h.b16 %v489
      %v1286 = vunpack.c.l.b16 %v490
      %v1287 = vunpack.c.h.b16 %v490
      %v1288 = vunpack.c.l.b16 %v491
      %v1289 = vunpack.c.h.b16 %v491
      %v1290 = vunpack.c.l.b16 %v492
      %v1291 = vunpack.c.h.b16 %v492
      %v1292 = vunpack.c.l.b16 %v493
      %v1293 = vunpack.c.h.b16 %v493
      %v1294 = vunpack.c.l.b16 %v494
      %v1295 = vunpack.c.h.b16 %v494
      %v1296 = vunpack.c.l.b16 %v495
      %v1297 = vunpack.c.h.b16 %v495
      %v1298 = vunpack.c.l.b16 %v496
      %v1299 = vunpack.c.h.b16 %v496
      %v1300 = vunpack.c.l.b16 %v497
      %v1301 = vunpack.c.h.b16 %v497
      %v1302 = vunpack.c.l.b16 %v498
      %v1303 = vunpack.c.h.b16 %v498
      %v1304 = vunpack.c.l.b16 %v499
      %v1305 = vunpack.c.h.b16 %v499
      %v1306 = vunpack.c.l.b16 %v500
      %v1307 = vunpack.c.h.b16 %v500
      %v1308 = vunpack.c.l.b16 %v501
      %v1309 = vunpack.c.h.b16 %v501
      %v1310 = vunpack.c.l.b16 %v502
      %v1311 = vunpack.c.h.b16 %v502
      %v1312 = vunpack.c.l.b16 %v503
      %v1313 = vunpack.c.h.b16 %v503
      %v1314 = vunpack.c.l.b16 %v504
      %v1315 = vunpack.c.h.b16 %v504
      %v1316 = vunpack.c.l.b16 %v505
      %v1317 = vunpack.c.h.b16 %v505
      %v1318 = vunpack.c.l.b16 %v506
      %v1319 = vunpack.c.h.b16 %v506
      %v1320 = vunpack.c.l.b16 %v507
      %v1321 = vunpack.c.h.b16 %v507
      %v1322 = vunpack.c.l.b16 %v508
      %v1323 = vunpack.c.h.b16 %v508
      %v1324 = vunpack.c.l.b16 %v509
      %v1325 = vunpack.c.h.b16 %v509
      %v1326 = vunpack.c.l.b16 %v510
      %v1327 = vunpack.c.h.b16 %v510
      %v1328 = vunpack.c.l.b16 %v511
      %v1329 = vunpack.c.h.b16 %v511
      %v1330 = vunpack.c.l.b16 %v512
      %v1331 = vunpack.c.h.b16 %v512
      %v1332 = vunpack.c.l.b16 %v513
      %v1333 = vunpack.c.h.b16 %v513
      %v1334 = vunpack.c.l.b16 %v514
      %v1335 = vunpack.c.h.b16 %v514
      %v1336 = vunpack.c.l.b16 %v515
      %v1337 = vunpack.c.h.b16 %v515
      %v1338 = vunpack.c.l.b16 %v516
      %v1339 = vunpack.c.h.b16 %v516
      %v1340 = vunpack.c.l.b16 %v517
      %v1341 = vunpack.c.h.b16 %v517
      %v1342 = vunpack.c.l.b16 %v518
      %v1343 = vunpack.c.h.b16 %v518
      %v1344 = vunpack.c.l.b16 %v519
      %v1345 = vunpack.c.h.b16 %v519
      %v1346 = vunpack.c.l.b16 %v520
      %v1347 = vunpack.c.h.b16 %v520
      %v1348 = vunpack.c.l.b16 %v521
      %v1349 = vunpack.c.h.b16 %v521
      %v1350 = vunpack.c.l.b16 %v522
      %v1351 = vunpack.c.h.b16 %v522
      %v1352 = vunpack.c.l.b16 %v523
      %v1353 = vunpack.c.h.b16 %v523
      %v1354 = vunpack.c.l.b16 %v524
      %v1355 = vunpack.c.h.b16 %v524
      %v1356 = vunpack.c.l.b16 %v525
      %v1357 = vunpack.c.h.b16 %v525
      %v1358 = vunpack.c.l.b16 %v526
      %v1359 = vunpack.c.h.b16 %v526
      %v1360 = vunpack.c.l.b16 %v527
      %v1361 = vunpack.c.h.b16 %v527
      %v1362 = vunpack.c.l.b16 %v528
      %v1363 = vunpack.c.h.b16 %v528
      %v1364 = vunpack.c.l.b16 %v529
      %v1365 = vunpack.c.h.b16 %v529
      %v1366 = vunpack.c.l.b16 %v530
      %v1367 = vunpack.c.h.b16 %v530
      %v1368 = vunpack.c.l.b16 %v531
      %v1369 = vunpack.c.h.b16 %v531
      %v1370 = vunpack.c.l.b16 %v532
      %v1371 = vunpack.c.h.b16 %v532
      %v1372 = vunpack.c.l.b16 %v533
      %v1373 = vunpack.c.h.b16 %v533
      %v1374 = vunpack.c.l.b16 %v534
      %v1375 = vunpack.c.h.b16 %v534
      %v1376 = vunpack.c.l.b16 %v535
      %v1377 = vunpack.c.h.b16 %v535
      %v1378 = vunpack.c.l.b16 %v536
      %v1379 = vunpack.c.h.b16 %v536
      %v1380 = vunpack.c.l.b16 %v537
      %v1381 = vunpack.c.h.b16 %v537
      %v1382 = vunpack.c.l.b16 %v538
      %v1383 = vunpack.c.h.b16 %v538
      %v1384 = vunpack.c.l.b16 %v539
      %v1385 = vunpack.c.h.b16 %v539
      %v1386 = vunpack.c.l.b16 %v540
      %v1387 = vunpack.c.h.b16 %v540
      %v1388 = vunpack.c.l.b16 %v541
      %v1389 = vunpack.c.h.b16 %v541
      %v1390 = vunpack.c.l.b16 %v542
      %v1391 = vunpack.c.h.b16 %v542
      %v1392 = vunpack.c.l.b16 %v543
      %v1393 = vunpack.c.h.b16 %v543
      %v1394 = vunpack.c.l.b16 %v544
      %v1395 = vunpack.c.h.b16 %v544
      %v1396 = vunpack.c.l.b16 %v545
      %v1397 = vunpack.c.h.b16 %v545
      %v1398 = vunpack.c.l.b16 %v546
      %v1399 = vunpack.c.h.b16 %v546
      %v1400 = vunpack.c.l.b16 %v547
      %v1401 = vunpack.c.h.b16 %v547
      %v1402 = vunpack.c.l.b16 %v548
      %v1403 = vunpack.c.h.b16 %v548
      %v1404 = vunpack.c.l.b16 %v549
      %v1405 = vunpack.c.h.b16 %v549
      %v1406 = vunpack.c.l.b16 %v550
      %v1407 = vunpack.c.h.b16 %v550
      %v1408 = vunpack.c.l.b16 %v551
      %v1409 = vunpack.c.h.b16 %v551
      %v1410 = vunpack.c.l.b16 %v552
      %v1411 = vunpack.c.h.b16 %v552
      %v1412 = vunpack.c.l.b16 %v553
      %v1413 = vunpack.c.h.b16 %v553
      %v1414 = vunpack.c.l.b16 %v554
      %v1415 = vunpack.c.h.b16 %v554
      %v1416 = vunpack.c.l.b16 %v555
      %v1417 = vunpack.c.h.b16 %v555
      %v1418 = vunpack.c.l.b16 %v556
      %v1419 = vunpack.c.h.b16 %v556
      %v1420 = vunpack.c.l.b16 %v557
      %v1421 = vunpack.c.h.b16 %v557
      %v1422 = vunpack.c.l.b16 %v558
      %v1423 = vunpack.c.h.b16 %v558
      %v1424 = vunpack.c.l.b16 %v559
      %v1425 = vunpack.c.h.b16 %v559
      %v1426 = vunpack.c.l.b16 %v560
      %v1427 = vunpack.c.h.b16 %v560
      %v1428 = vunpack.c.l.b16 %v561
      %v1429 = vunpack.c.h.b16 %v561
      %v1430 = vunpack.c.l.b16 %v562
      %v1431 = vunpack.c.h.b16 %v562
      %v1432 = vunpack.c.l.b16 %v563
      %v1433 = vunpack.c.h.b16 %v563
      %v1434 = vunpack.c.l.b16 %v564
      %v1435 = vunpack.c.h.b16 %v564
      %v1436 = vunpack.c.l.b16 %v565
      %v1437 = vunpack.c.h.b16 %v565
      %v1438 = vunpack.c.l.b16 %v566
      %v1439 = vunpack.c.h.b16 %v566
      %v1440 = vunpack.c.l.b16 %v567
      %v1441 = vunpack.c.h.b16 %v567
      %v1442 = vunpack.c.l.b16 %v568
      %v1443 = vunpack.c.h.b16 %v568
      %v1444 = vunpack.c.l.b16 %v569
      %v1445 = vunpack.c.h.b16 %v569
      %v1446 = vunpack.c.l.b16 %v570
      %v1447 = vunpack.c.h.b16 %v570
      %v1448 = vunpack.c.l.b16 %v571
      %v1449 = vunpack.c.h.b16 %v571
      %v1450 = vunpack.c.l.b16 %v572
      %v1451 = vunpack.c.h.b16 %v572
      %v1452 = vunpack.c.l.b16 %v573
      %v1453 = vunpack.c.h.b16 %v573
      %v1454 = vunpack.c.l.b16 %v574
      %v1455 = vunpack.c.h.b16 %v574
      %v1456 = vunpack.c.l.b16 %v575
      %v1457 = vunpack.c.h.b16 %v575
      %v1458 = vunpack.c.l.b16 %v576
      %v1459 = vunpack.c.h.b16 %v576
      %v1460 = vunpack.c.l.b16 %v577
      %v1461 = vunpack.c.h.b16 %v577
      %v1462 = vunpack.c.l.b16 %v578
      %v1463 = vunpack.c.h.b16 %v578
      %v1464 = vunpack.c.l.b16 %v579
      %v1465 = vunpack.c.h.b16 %v579
      %v1466 = vunpack.c.l.b16 %v580
      %v1467 = vunpack.c.h.b16 %v580
      %v1468 = vunpack.c.l.b16 %v581
      %v1469 = vunpack.c.h.b16 %v581
      %v1470 = vunpack.c.l.b16 %v582
      %v1471 = vunpack.c.h.b16 %v582
      %v1472 = vunpack.c.l.b16 %v583
      %v1473 = vunpack.c.h.b16 %v583
      %v1474 = vunpack.c.l.b16 %v584
      %v1475 = vunpack.c.h.b16 %v584
      %v1476 = vunpack.c.l.b16 %v585
      %v1477 = vunpack.c.h.b16 %v585
      %v1478 = vunpack.c.l.b16 %v586
      %v1479 = vunpack.c.h.b16 %v586
      %v1480 = vunpack.c.l.b16 %v587
      %v1481 = vunpack.c.h.b16 %v587
      %v1482 = vunpack.c.l.b16 %v588
      %v1483 = vunpack.c.h.b16 %v588
      %v1484 = vunpack.c.l.b16 %v589
      %v1485 = vunpack.c.h.b16 %v589
      %v1486 = vunpack.c.l.b16 %v590
      %v1487 = vunpack.c.h.b16 %v590
      %v1488 = vunpack.c.l.b16 %v591
      %v1489 = vunpack.c.h.b16 %v591
      %v1490 = vunpack.c.l.b16 %v592
      %v1491 = vunpack.c.h.b16 %v592
      %v1492 = vunpack.c.l.b16 %v593
      %v1493 = vunpack.c.h.b16 %v593
      %v1494 = vunpack.c.l.b16 %v594
      %v1495 = vunpack.c.h.b16 %v594
      %v1496 = vunpack.c.l.b16 %v595
      %v1497 = vunpack.c.h.b16 %v595
      %v1498 = vunpack.c.l.b16 %v596
      %v1499 = vunpack.c.h.b16 %v596
      %v1500 = vunpack.c.l.b16 %v597
      %v1501 = vunpack.c.h.b16 %v597
      %v1502 = vunpack.c.l.b16 %v598
      %v1503 = vunpack.c.h.b16 %v598
      %v1504 = vunpack.c.l.b16 %v599
      %v1505 = vunpack.c.h.b16 %v599
      %v1506 = vunpack.c.l.b16 %v600
      %v1507 = vunpack.c.h.b16 %v600
      %v1508 = vunpack.c.l.b16 %v601
      %v1509 = vunpack.c.h.b16 %v601
      %v1510 = vunpack.c.l.b16 %v602
      %v1511 = vunpack.c.h.b16 %v602
      %v1512 = vunpack.c.l.b16 %v603
      %v1513 = vunpack.c.h.b16 %v603
      %v1514 = vunpack.c.l.b16 %v604
      %v1515 = vunpack.c.h.b16 %v604
      %v1516 = vunpack.c.l.b16 %v605
      %v1517 = vunpack.c.h.b16 %v605
      %v1518 = vunpack.c.l.b16 %v606
      %v1519 = vunpack.c.h.b16 %v606
      %v1520 = vunpack.c.l.b16 %v607
      %v1521 = vunpack.c.h.b16 %v607
      %v1522 = vunpack.c.l.b16 %v608
      %v1523 = vunpack.c.h.b16 %v608
      %v1524 = vunpack.c.l.b16 %v609
      %v1525 = vunpack.c.h.b16 %v609
      %v1526 = vunpack.c.l.b16 %v610
      %v1527 = vunpack.c.h.b16 %v610
      %v1528 = vunpack.c.l.b16 %v611
      %v1529 = vunpack.c.h.b16 %v611
      %v1530 = vunpack.c.l.b16 %v612
      %v1531 = vunpack.c.h.b16 %v612
      %v1532 = vunpack.c.l.b16 %v613
      %v1533 = vunpack.c.h.b16 %v613
      %v1534 = vunpack.c.l.b16 %v614
      %v1535 = vunpack.c.h.b16 %v614
      %v1536 = vunpack.c.l.b16 %v615
      %v1537 = vunpack.c.h.b16 %v615
      %v1538 = vunpack.c.l.b16 %v616
      %v1539 = vunpack.c.h.b16 %v616
      %v1540 = vunpack.c.l.b16 %v617
      %v1541 = vunpack.c.h.b16 %v617
      %v1542 = vunpack.c.l.b16 %v618
      %v1543 = vunpack.c.h.b16 %v618
      %v1544 = vunpack.c.l.b16 %v619
      %v1545 = vunpack.c.h.b16 %v619
      %v1546 = vunpack.c.l.b16 %v620
      %v1547 = vunpack.c.h.b16 %v620
      %v1548 = vunpack.c.l.b16 %v621
      %v1549 = vunpack.c.h.b16 %v621
      %v1550 = vpack.c.b16 %v1040, %v1038
      %v1551 = vpack.c.b16 %v1041, %v1039
      %v1552 = vpack.c.b16 %v1044, %v1042
      %v1553 = vpack.c.b16 %v1045, %v1043
      %v1554 = vpack.c.b16 %v1048, %v1046
      %v1555 = vpack.c.b16 %v1049, %v1047
      %v1556 = vpack.c.b16 %v1052, %v1050
      %v1557 = vpack.c.b16 %v1053, %v1051
      %v1558 = vpack.c.b16 %v1056, %v1054
      %v1559 = vpack.c.b16 %v1057, %v1055
      %v1560 = vpack.c.b16 %v1060, %v1058
      %v1561 = vpack.c.b16 %v1061, %v1059
      %v1562 = vpack.c.b16 %v1064, %v1062
      %v1563 = vpack.c.b16 %v1065, %v1063
      %v1564 = vpack.c.b16 %v1068, %v1066
      %v1565 = vpack.c.b16 %v1069, %v1067
      %v1566 = vpack.c.b16 %v1072, %v1070
      %v1567 = vpack.c.b16 %v1073, %v1071
      %v1568 = vpack.c.b16 %v1076, %v1074
      %v1569 = vpack.c.b16 %v1077, %v1075
      %v1570 = vpack.c.b16 %v1080, %v1078
      %v1571 = vpack.c.b16 %v1081, %v1079
      %v1572 = vpack.c.b16 %v1084, %v1082
      %v1573 = vpack.c.b16 %v1085, %v1083
      %v1574 = vpack.c.b16 %v1088, %v1086
      %v1575 = vpack.c.b16 %v1089, %v1087
      %v1576 = vpack.c.b16 %v1092, %v1090
      %v1577 = vpack.c.b16 %v1093, %v1091
      %v1578 = vpack.c.b16 %v1096, %v1094
      %v1579 = vpack.c.b16 %v1097, %v1095
      %v1580 = vpack.c.b16 %v1100, %v1098
      %v1581 = vpack.c.b16 %v1101, %v1099
      %v1582 = vpack.c.b16 %v1104, %v1102
      %v1583 = vpack.c.b16 %v1105, %v1103
      %v1584 = vpack.c.b16 %v1108, %v1106
      %v1585 = vpack.c.b16 %v1109, %v1107
      %v1586 = vpack.c.b16 %v1112, %v1110
      %v1587 = vpack.c.b16 %v1113, %v1111
      %v1588 = vpack.c.b16 %v1116, %v1114
      %v1589 = vpack.c.b16 %v1117, %v1115
      %v1590 = vpack.c.b16 %v1120, %v1118
      %v1591 = vpack.c.b16 %v1121, %v1119
      %v1592 = vpack.c.b16 %v1124, %v1122
      %v1593 = vpack.c.b16 %v1125, %v1123
      %v1594 = vpack.c.b16 %v1128, %v1126
      %v1595 = vpack.c.b16 %v1129, %v1127
      %v1596 = vpack.c.b16 %v1132, %v1130
      %v1597 = vpack.c.b16 %v1133, %v1131
      %v1598 = vpack.c.b16 %v1136, %v1134
      %v1599 = vpack.c.b16 %v1137, %v1135
      %v1600 = vpack.c.b16 %v1140, %v1138
      %v1601 = vpack.c.b16 %v1141, %v1139
      %v1602 = vpack.c.b16 %v1144, %v1142
      %v1603 = vpack.c.b16 %v1145, %v1143
      %v1604 = vpack.c.b16 %v1148, %v1146
      %v1605 = vpack.c.b16 %v1149, %v1147
      %v1606 = vpack.c.b16 %v1152, %v1150
      %v1607 = vpack.c.b16 %v1153, %v1151
      %v1608 = vpack.c.b16 %v1156, %v1154
      %v1609 = vpack.c.b16 %v1157, %v1155
      %v1610 = vpack.c.b16 %v1160, %v1158
      %v1611 = vpack.c.b16 %v1161, %v1159
      %v1612 = vpack.c.b16 %v1164, %v1162
      %v1613 = vpack.c.b16 %v1165, %v1163
      %v1614 = vpack.c.b16 %v1168, %v1166
      %v1615 = vpack.c.b16 %v1169, %v1167
      %v1616 = vpack.c.b16 %v1172, %v1170
      %v1617 = vpack.c.b16 %v1173, %v1171
      %v1618 = vpack.c.b16 %v1176, %v1174
      %v1619 = vpack.c.b16 %v1177, %v1175
      %v1620 = vpack.c.b16 %v1180, %v1178
      %v1621 = vpack.c.b16 %v1181, %v1179
      %v1622 = vpack.c.b16 %v1184, %v1182
      %v1623 = vpack.c.b16 %v1185, %v1183
      %v1624 = vpack.c.b16 %v1188, %v1186
      %v1625 = vpack.c.b16 %v1189, %v1187
      %v1626 = vpack.c.b16 %v1192, %v1190
      %v1627 = vpack.c.b16 %v1193, %v1191
      %v1628 = vpack.c.b16 %v1196, %v1194
      %v1629 = vpack.c.b16 %v1197, %v1195
      %v1630 = vpack.c.b16 %v1200, %v1198
      %v1631 = vpack.c.b16 %v1201, %v1199
      %v1632 = vpack.c.b16 %v1204, %v1202
      %v1633 = vpack.c.b16 %v1205, %v1203
      %v1634 = vpack.c.b16 %v1208, %v1206
      %v1635 = vpack.c.b16 %v1209, %v1207
      %v1636 = vpack.c.b16 %v1212, %v1210
      %v1637 = vpack.c.b16 %v1213, %v1211
      %v1638 = vpack.c.b16 %v1216, %v1214
      %v1639 = vpack.c.b16 %v1217, %v1215
      %v1640 = vpack.c.b16 %v1220, %v1218
      %v1641 = vpack.c.b16 %v1221, %v1219
      %v1642 = vpack.c.b16 %v1224, %v1222
      %v1643 = vpack.c.b16 %v1225, %v1223
      %v1644 = vpack.c.b16 %v1228, %v1226
      %v1645 = vpack.c.b16 %v1229, %v1227
      %v1646 = vpack.c.b16 %v1232, %v1230
      %v1647 = vpack.c.b16 %v1233, %v1231
      %v1648 = vpack.c.b16 %v1236, %v1234
      %v1649 = vpack.c.b16 %v1237, %v1235
      %v1650 = vpack.c.b16 %v1240, %v1238
      %v1651 = vpack.c.b16 %v1241, %v1239
      %v1652 = vpack.c.b16 %v1244, %v1242
      %v1653 = vpack.c.b16 %v1245, %v1243
      %v1654 = vpack.c.b16 %v1248, %v1246
      %v1655 = vpack.c.b16 %v1249, %v1247
      %v1656 = vpack.c.b16 %v1252, %v1250
      %v1657 = vpack.c.b16 %v1253, %v1251
      %v1658 = vpack.c.b16 %v1256, %v1254
      %v1659 = vpack.c.b16 %v1257, %v1255
      %v1660 = vpack.c.b16 %v1260, %v1258
      %v1661 = vpack.c.b16 %v1261, %v1259
      %v1662 = vpack.c.b16 %v1264, %v1262
      %v1663 = vpack.c.b16 %v1265, %v1263
      %v1664 = vpack.c.b16 %v1268, %v1266
      %v1665 = vpack.c.b16 %v1269, %v1267
      %v1666 = vpack.c.b16 %v1272, %v1270
      %v1667 = vpack.c.b16 %v1273, %v1271
      %v1668 = vpack.c.b16 %v1276, %v1274
      %v1669 = vpack.c.b16 %v1277, %v1275
      %v1670 = vpack.c.b16 %v1280, %v1278
      %v1671 = vpack.c.b16 %v1281, %v1279
      %v1672 = vpack.c.b16 %v1284, %v1282
      %v1673 = vpack.c.b16 %v1285, %v1283
      %v1674 = vpack.c.b16 %v1288, %v1286
      %v1675 = vpack.c.b16 %v1289, %v1287
      %v1676 = vpack.c.b16 %v1292, %v1290
      %v1677 = vpack.c.b16 %v1293, %v1291
      %v1678 = vpack.c.b16 %v1296, %v1294
      %v1679 = vpack.c.b16 %v1297, %v1295
      %v1680 = vpack.c.b16 %v1300, %v1298
      %v1681 = vpack.c.b16 %v1301, %v1299
      %v1682 = vpack.c.b16 %v1304, %v1302
      %v1683 = vpack.c.b16 %v1305, %v1303
      %v1684 = vpack.c.b16 %v1308, %v1306
      %v1685 = vpack.c.b16 %v1309, %v1307
      %v1686 = vpack.c.b16 %v1312, %v1310
      %v1687 = vpack.c.b16 %v1313, %v1311
      %v1688 = vpack.c.b16 %v1316, %v1314
      %v1689 = vpack.c.b16 %v1317, %v1315
      %v1690 = vpack.c.b16 %v1320, %v1318
      %v1691 = vpack.c.b16 %v1321, %v1319
      %v1692 = vpack.c.b16 %v1324, %v1322
      %v1693 = vpack.c.b16 %v1325, %v1323
      %v1694 = vpack.c.b16 %v1328, %v1326
      %v1695 = vpack.c.b16 %v1329, %v1327
      %v1696 = vpack.c.b16 %v1332, %v1330
      %v1697 = vpack.c.b16 %v1333, %v1331
      %v1698 = vpack.c.b16 %v1336, %v1334
      %v1699 = vpack.c.b16 %v1337, %v1335
      %v1700 = vpack.c.b16 %v1340, %v1338
      %v1701 = vpack.c.b16 %v1341, %v1339
      %v1702 = vpack.c.b16 %v1344, %v1342
      %v1703 = vpack.c.b16 %v1345, %v1343
      %v1704 = vpack.c.b16 %v1348, %v1346
      %v1705 = vpack.c.b16 %v1349, %v1347
      %v1706 = vpack.c.b16 %v1352, %v1350
      %v1707 = vpack.c.b16 %v1353, %v1351
      %v1708 = vpack.c.b16 %v1356, %v1354
      %v1709 = vpack.c.b16 %v1357, %v1355
      %v1710 = vpack.c.b16 %v1360, %v1358
      %v1711 = vpack.c.b16 %v1361, %v1359
      %v1712 = vpack.c.b16 %v1364, %v1362
      %v1713 = vpack.c.b16 %v1365, %v1363
      %v1714 = vpack.c.b16 %v1368, %v1366
      %v1715 = vpack.c.b16 %v1369, %v1367
      %v1716 = vpack.c.b16 %v1372, %v1370
      %v1717 = vpack.c.b16 %v1373, %v1371
      %v1718 = vpack.c.b16 %v1376, %v1374
      %v1719 = vpack.c.b16 %v1377, %v1375
      %v1720 = vpack.c.b16 %v1380, %v1378
      %v1721 = vpack.c.b16 %v1381, %v1379
      %v1722 = vpack.c.b16 %v1384, %v1382
      %v1723 = vpack.c.b16 %v1385, %v1383
      %v1724 = vpack.c.b16 %v1388, %v1386
      %v1725 = vpack.c.b16 %v1389, %v1387
      %v1726 = vpack.c.b16 %v1392, %v1390
      %v1727 = vpack.c.b16 %v1393, %v1391
      %v1728 = vpack.c.b16 %v1396, %v1394
      %v1729 = vpack.c.b16 %v1397, %v1395
      %v1730 = vpack.c.b16 %v1400, %v1398
      %v1731 = vpack.c.b16 %v1401, %v1399
      %v1732 = vpack.c.b16 %v1404, %v1402
      %v1733 = vpack.c.b16 %v1405, %v1403
      %v1734 = vpack.c.b16 %v1408, %v1406
      %v1735 = vpack.c.b16 %v1409, %v1407
      %v1736 = vpack.c.b16 %v1412, %v1410
      %v1737 = vpack.c.b16 %v1413, %v1411
      %v1738 = vpack.c.b16 %v1416, %v1414
      %v1739 = vpack.c.b16 %v1417, %v1415
      %v1740 = vpack.c.b16 %v1420, %v1418
      %v1741 = vpack.c.b16 %v1421, %v1419
      %v1742 = vpack.c.b16 %v1424, %v1422
      %v1743 = vpack.c.b16 %v1425, %v1423
      %v1744 = vpack.c.b16 %v1428, %v1426
      %v1745 = vpack.c.b16 %v1429, %v1427
      %v1746 = vpack.c.b16 %v1432, %v1430
      %v1747 = vpack.c.b16 %v1433, %v1431
      %v1748 = vpack.c.b16 %v1436, %v1434
      %v1749 = vpack.c.b16 %v1437, %v1435
      %v1750 = vpack.c.b16 %v1440, %v1438
      %v1751 = vpack.c.b16 %v1441, %v1439
      %v1752 = vpack.c.b16 %v1444, %v1442
      %v1753 = vpack.c.b16 %v1445, %v1443
      %v1754 = vpack.c.b16 %v1448, %v1446
      %v1755 = vpack.c.b16 %v1449, %v1447
      %v1756 = vpack.c.b16 %v1452, %v1450
      %v1757 = vpack.c.b16 %v1453, %v1451
      %v1758 = vpack.c.b16 %v1456, %v1454
      %v1759 = vpack.c.b16 %v1457, %v1455
      %v1760 = vpack.c.b16 %v1460, %v1458
      %v1761 = vpack.c.b16 %v1461, %v1459
      %v1762 = vpack.c.b16 %v1464, %v1462
      %v1763 = vpack.c.b16 %v1465, %v1463
      %v1764 = vpack.c.b16 %v1468, %v1466
      %v1765 = vpack.c.b16 %v1469, %v1467
      %v1766 = vpack.c.b16 %v1472, %v1470
      %v1767 = vpack.c.b16 %v1473, %v1471
      %v1768 = vpack.c.b16 %v1476, %v1474
      %v1769 = vpack.c.b16 %v1477, %v1475
      %v1770 = vpack.c.b16 %v1480, %v1478
      %v1771 = vpack.c.b16 %v1481, %v1479
      %v1772 = vpack.c.b16 %v1484, %v1482
      %v1773 = vpack.c.b16 %v1485, %v1483
      %v1774 = vpack.c.b16 %v1488, %v1486
      %v1775 = vpack.c.b16 %v1489, %v1487
      %v1776 = vpack.c.b16 %v1492, %v1490
      %v1777 = vpack.c.b16 %v1493, %v1491
      %v1778 = vpack.c.b16 %v1496, %v1494
      %v1779 = vpack.c.b16 %v1497, %v1495
      %v1780 = vpack.c.b16 %v1500, %v1498
      %v1781 = vpack.c.b16 %v1501, %v1499
      %v1782 = vpack.c.b16 %v1504, %v1502
      %v1783 = vpack.c.b16 %v1505, %v1503
      %v1784 = vpack.c.b16 %v1508, %v1506
      %v1785 = vpack.c.b16 %v1509, %v1507
      %v1786 = vpack.c.b16 %v1512, %v1510
      %v1787 = vpack.c.b16 %v1513, %v1511
      %v1788 = vpack.c.b16 %v1516, %v1514
      %v1789 = vpack.c.b16 %v1517, %v1515
      %v1790 = vpack.c.b16 %v1520, %v1518
      %v1791 = vpack.c.b16 %v1521, %v1519
      %v1792 = vpack.c.b16 %v1524, %v1522
      %v1793 = vpack.c.b16 %v1525, %v1523
      %v1794 = vpack.c.b16 %v1528, %v1526
      %v1795 = vpack.c.b16 %v1529, %v1527
      %v1796 = vpack.c.b16 %v1532, %v1530
      %v1797 = vpack.c.b16 %v1533, %v1531
      %v1798 = vpack.c.b16 %v1536, %v1534
      %v1799 = vpack.c.b16 %v1537, %v1535
      %v1800 = vpack.c.b16 %v1540, %v1538
      %v1801 = vpack.c.b16 %v1541, %v1539
      %v1802 = vpack.c.b16 %v1544, %v1542
      %v1803 = vpack.c.b16 %v1545, %v1543
      %v1804 = vpack.c.b16 %v1548, %v1546
      %v1805 = vpack.c.b16 %v1549, %v1547
      %2062 = vmatpush.bf16.msra.mxu0 %v1564
      %2063 = vmatpush.bf16.msra.mxu0 %v1562
      %2064 = vmatpush.bf16.msra.mxu0 %v1560
      %2065 = vmatpush.bf16.msra.mxu0 %v1558
      %2066 = vmatpush.bf16.msra.mxu0 %v1556
      %2067 = vmatpush.bf16.msra.mxu0 %v1554
      %2068 = vmatpush.bf16.msra.mxu0 %v1552
      %2069 = vmatpush.bf16.msra.mxu0 %v1550
      %2070 = vmatmul.bf16.gmra.mxu0 %v718
      %v2071 = vpop.f32.mrf.mxu0
      %v2072 = vadd.f32 0.0, %v2071
      %v2073 = vpop.f32.mrf.mxu0
      %v2074 = vadd.f32 0.0, %v2073
      %2075 = vmatmul.bf16.gmra.mxu0 %v734
      %v2076 = vpop.f32.mrf.mxu0
      %v2077 = vadd.f32 0.0, %v2076
      %v2078 = vpop.f32.mrf.mxu0
      %v2079 = vadd.f32 0.0, %v2078
      %2080 = vdwg.mxu0
      %2081 = vmatpush.bf16.msra.mxu0 %v1580
      %2082 = vmatpush.bf16.msra.mxu0 %v1578
      %2083 = vmatpush.bf16.msra.mxu0 %v1576
      %2084 = vmatpush.bf16.msra.mxu0 %v1574
      %2085 = vmatpush.bf16.msra.mxu0 %v1572
      %2086 = vmatpush.bf16.msra.mxu0 %v1570
      %2087 = vmatpush.bf16.msra.mxu0 %v1568
      %2088 = vmatpush.bf16.msra.mxu0 %v1566
      %2089 = vmatmul.bf16.gmra.mxu0 %v719
      %v2090 = vpop.f32.mrf.mxu0
      %v2091 = vadd.f32 %v2072, %v2090
      %v2092 = vpop.f32.mrf.mxu0
      %v2093 = vadd.f32 %v2074, %v2092
      %2094 = vmatmul.bf16.gmra.mxu0 %v735
      %v2095 = vpop.f32.mrf.mxu0
      %v2096 = vadd.f32 %v2077, %v2095
      %v2097 = vpop.f32.mrf.mxu0
      %v2098 = vadd.f32 %v2079, %v2097
      %2099 = vdwg.mxu0
      %2100 = vmatpush.bf16.msra.mxu0 %v1596
      %2101 = vmatpush.bf16.msra.mxu0 %v1594
      %2102 = vmatpush.bf16.msra.mxu0 %v1592
      %2103 = vmatpush.bf16.msra.mxu0 %v1590
      %2104 = vmatpush.bf16.msra.mxu0 %v1588
      %2105 = vmatpush.bf16.msra.mxu0 %v1586
      %2106 = vmatpush.bf16.msra.mxu0 %v1584
      %2107 = vmatpush.bf16.msra.mxu0 %v1582
      %2108 = vmatmul.bf16.gmra.mxu0 %v720
      %v2109 = vpop.f32.mrf.mxu0
      %v2110 = vadd.f32 %v2091, %v2109
      %v2111 = vpop.f32.mrf.mxu0
      %v2112 = vadd.f32 %v2093, %v2111
      %2113 = vmatmul.bf16.gmra.mxu0 %v736
      %v2114 = vpop.f32.mrf.mxu0
      %v2115 = vadd.f32 %v2096, %v2114
      %v2116 = vpop.f32.mrf.mxu0
      %v2117 = vadd.f32 %v2098, %v2116
      %2118 = vdwg.mxu0
      %2119 = vmatpush.bf16.msra.mxu0 %v1612
      %2120 = vmatpush.bf16.msra.mxu0 %v1610
      %2121 = vmatpush.bf16.msra.mxu0 %v1608
      %2122 = vmatpush.bf16.msra.mxu0 %v1606
      %2123 = vmatpush.bf16.msra.mxu0 %v1604
      %2124 = vmatpush.bf16.msra.mxu0 %v1602
      %2125 = vmatpush.bf16.msra.mxu0 %v1600
      %2126 = vmatpush.bf16.msra.mxu0 %v1598
      %2127 = vmatmul.bf16.gmra.mxu0 %v721
      %v2128 = vpop.f32.mrf.mxu0
      %v2129 = vadd.f32 %v2110, %v2128
      %v2130 = vpop.f32.mrf.mxu0
      %v2131 = vadd.f32 %v2112, %v2130
      %2132 = vmatmul.bf16.gmra.mxu0 %v737
      %v2133 = vpop.f32.mrf.mxu0
      %v2134 = vadd.f32 %v2115, %v2133
      %v2135 = vpop.f32.mrf.mxu0
      %v2136 = vadd.f32 %v2117, %v2135
      %2137 = vdwg.mxu0
      %2138 = vmatpush.bf16.msra.mxu0 %v1628
      %2139 = vmatpush.bf16.msra.mxu0 %v1626
      %2140 = vmatpush.bf16.msra.mxu0 %v1624
      %2141 = vmatpush.bf16.msra.mxu0 %v1622
      %2142 = vmatpush.bf16.msra.mxu0 %v1620
      %2143 = vmatpush.bf16.msra.mxu0 %v1618
      %2144 = vmatpush.bf16.msra.mxu0 %v1616
      %2145 = vmatpush.bf16.msra.mxu0 %v1614
      %2146 = vmatmul.bf16.gmra.mxu0 %v722
      %v2147 = vpop.f32.mrf.mxu0
      %v2148 = vadd.f32 %v2129, %v2147
      %v2149 = vpop.f32.mrf.mxu0
      %v2150 = vadd.f32 %v2131, %v2149
      %2151 = vmatmul.bf16.gmra.mxu0 %v738
      %v2152 = vpop.f32.mrf.mxu0
      %v2153 = vadd.f32 %v2134, %v2152
      %v2154 = vpop.f32.mrf.mxu0
      %v2155 = vadd.f32 %v2136, %v2154
      %2156 = vdwg.mxu0
      %2157 = vmatpush.bf16.msra.mxu0 %v1644
      %2158 = vmatpush.bf16.msra.mxu0 %v1642
      %2159 = vmatpush.bf16.msra.mxu0 %v1640
      %2160 = vmatpush.bf16.msra.mxu0 %v1638
      %2161 = vmatpush.bf16.msra.mxu0 %v1636
      %2162 = vmatpush.bf16.msra.mxu0 %v1634
      %2163 = vmatpush.bf16.msra.mxu0 %v1632
      %2164 = vmatpush.bf16.msra.mxu0 %v1630
      %2165 = vmatmul.bf16.gmra.mxu0 %v723
      %v2166 = vpop.f32.mrf.mxu0
      %v2167 = vadd.f32 %v2148, %v2166
      %v2168 = vpop.f32.mrf.mxu0
      %v2169 = vadd.f32 %v2150, %v2168
      %2170 = vmatmul.bf16.gmra.mxu0 %v739
      %v2171 = vpop.f32.mrf.mxu0
      %v2172 = vadd.f32 %v2153, %v2171
      %v2173 = vpop.f32.mrf.mxu0
      %v2174 = vadd.f32 %v2155, %v2173
      %2175 = vdwg.mxu0
      %2176 = vmatpush.bf16.msra.mxu0 %v1660
      %2177 = vmatpush.bf16.msra.mxu0 %v1658
      %2178 = vmatpush.bf16.msra.mxu0 %v1656
      %2179 = vmatpush.bf16.msra.mxu0 %v1654
      %2180 = vmatpush.bf16.msra.mxu0 %v1652
      %2181 = vmatpush.bf16.msra.mxu0 %v1650
      %2182 = vmatpush.bf16.msra.mxu0 %v1648
      %2183 = vmatpush.bf16.msra.mxu0 %v1646
      %2184 = vmatmul.bf16.gmra.mxu0 %v724
      %v2185 = vpop.f32.mrf.mxu0
      %v2186 = vadd.f32 %v2167, %v2185
      %v2187 = vpop.f32.mrf.mxu0
      %v2188 = vadd.f32 %v2169, %v2187
      %2189 = vmatmul.bf16.gmra.mxu0 %v740
      %v2190 = vpop.f32.mrf.mxu0
      %v2191 = vadd.f32 %v2172, %v2190
      %v2192 = vpop.f32.mrf.mxu0
      %v2193 = vadd.f32 %v2174, %v2192
      %2194 = vdwg.mxu0
      %2195 = vmatpush.bf16.msra.mxu0 %v1676
      %2196 = vmatpush.bf16.msra.mxu0 %v1674
      %2197 = vmatpush.bf16.msra.mxu0 %v1672
      %2198 = vmatpush.bf16.msra.mxu0 %v1670
      %2199 = vmatpush.bf16.msra.mxu0 %v1668
      %2200 = vmatpush.bf16.msra.mxu0 %v1666
      %2201 = vmatpush.bf16.msra.mxu0 %v1664
      %2202 = vmatpush.bf16.msra.mxu0 %v1662
      %2203 = vmatmul.bf16.gmra.mxu0 %v725
      %v2204 = vpop.f32.mrf.mxu0
      %v2205 = vadd.f32 %v2186, %v2204
      %v2206 = vpop.f32.mrf.mxu0
      %v2207 = vadd.f32 %v2188, %v2206
      %2208 = vmatmul.bf16.gmra.mxu0 %v741
      %v2209 = vpop.f32.mrf.mxu0
      %v2210 = vadd.f32 %v2191, %v2209
      %v2211 = vpop.f32.mrf.mxu0
      %v2212 = vadd.f32 %v2193, %v2211
      %2213 = vdwg.mxu0
      %2214 = vmatpush.bf16.msra.mxu0 %v1692
      %2215 = vmatpush.bf16.msra.mxu0 %v1690
      %2216 = vmatpush.bf16.msra.mxu0 %v1688
      %2217 = vmatpush.bf16.msra.mxu0 %v1686
      %2218 = vmatpush.bf16.msra.mxu0 %v1684
      %2219 = vmatpush.bf16.msra.mxu0 %v1682
      %2220 = vmatpush.bf16.msra.mxu0 %v1680
      %2221 = vmatpush.bf16.msra.mxu0 %v1678
      %2222 = vmatmul.bf16.gmra.mxu0 %v726
      %v2223 = vpop.f32.mrf.mxu0
      %v2224 = vadd.f32 %v2205, %v2223
      %v2225 = vpop.f32.mrf.mxu0
      %v2226 = vadd.f32 %v2207, %v2225
      %2227 = vmatmul.bf16.gmra.mxu0 %v742
      %v2228 = vpop.f32.mrf.mxu0
      %v2229 = vadd.f32 %v2210, %v2228
      %v2230 = vpop.f32.mrf.mxu0
      %v2231 = vadd.f32 %v2212, %v2230
      %2232 = vdwg.mxu0
      %2233 = vmatpush.bf16.msra.mxu0 %v1708
      %2234 = vmatpush.bf16.msra.mxu0 %v1706
      %2235 = vmatpush.bf16.msra.mxu0 %v1704
      %2236 = vmatpush.bf16.msra.mxu0 %v1702
      %2237 = vmatpush.bf16.msra.mxu0 %v1700
      %2238 = vmatpush.bf16.msra.mxu0 %v1698
      %2239 = vmatpush.bf16.msra.mxu0 %v1696
      %2240 = vmatpush.bf16.msra.mxu0 %v1694
      %2241 = vmatmul.bf16.gmra.mxu0 %v727
      %v2242 = vpop.f32.mrf.mxu0
      %v2243 = vadd.f32 %v2224, %v2242
      %v2244 = vpop.f32.mrf.mxu0
      %v2245 = vadd.f32 %v2226, %v2244
      %2246 = vmatmul.bf16.gmra.mxu0 %v743
      %v2247 = vpop.f32.mrf.mxu0
      %v2248 = vadd.f32 %v2229, %v2247
      %v2249 = vpop.f32.mrf.mxu0
      %v2250 = vadd.f32 %v2231, %v2249
      %2251 = vdwg.mxu0
      %2252 = vmatpush.bf16.msra.mxu0 %v1724
      %2253 = vmatpush.bf16.msra.mxu0 %v1722
      %2254 = vmatpush.bf16.msra.mxu0 %v1720
      %2255 = vmatpush.bf16.msra.mxu0 %v1718
      %2256 = vmatpush.bf16.msra.mxu0 %v1716
      %2257 = vmatpush.bf16.msra.mxu0 %v1714
      %2258 = vmatpush.bf16.msra.mxu0 %v1712
      %2259 = vmatpush.bf16.msra.mxu0 %v1710
      %2260 = vmatmul.bf16.gmra.mxu0 %v728
      %v2261 = vpop.f32.mrf.mxu0
      %v2262 = vadd.f32 %v2243, %v2261
      %v2263 = vpop.f32.mrf.mxu0
      %v2264 = vadd.f32 %v2245, %v2263
      %2265 = vmatmul.bf16.gmra.mxu0 %v744
      %v2266 = vpop.f32.mrf.mxu0
      %v2267 = vadd.f32 %v2248, %v2266
      %v2268 = vpop.f32.mrf.mxu0
      %v2269 = vadd.f32 %v2250, %v2268
      %2270 = vdwg.mxu0
      %2271 = vmatpush.bf16.msra.mxu0 %v1740
      %2272 = vmatpush.bf16.msra.mxu0 %v1738
      %2273 = vmatpush.bf16.msra.mxu0 %v1736
      %2274 = vmatpush.bf16.msra.mxu0 %v1734
      %2275 = vmatpush.bf16.msra.mxu0 %v1732
      %2276 = vmatpush.bf16.msra.mxu0 %v1730
      %2277 = vmatpush.bf16.msra.mxu0 %v1728
      %2278 = vmatpush.bf16.msra.mxu0 %v1726
      %2279 = vmatmul.bf16.gmra.mxu0 %v729
      %v2280 = vpop.f32.mrf.mxu0
      %v2281 = vadd.f32 %v2262, %v2280
      %v2282 = vpop.f32.mrf.mxu0
      %v2283 = vadd.f32 %v2264, %v2282
      %2284 = vmatmul.bf16.gmra.mxu0 %v745
      %v2285 = vpop.f32.mrf.mxu0
      %v2286 = vadd.f32 %v2267, %v2285
      %v2287 = vpop.f32.mrf.mxu0
      %v2288 = vadd.f32 %v2269, %v2287
      %2289 = vdwg.mxu0
      %2290 = vmatpush.bf16.msra.mxu0 %v1756
      %2291 = vmatpush.bf16.msra.mxu0 %v1754
      %2292 = vmatpush.bf16.msra.mxu0 %v1752
      %2293 = vmatpush.bf16.msra.mxu0 %v1750
      %2294 = vmatpush.bf16.msra.mxu0 %v1748
      %2295 = vmatpush.bf16.msra.mxu0 %v1746
      %2296 = vmatpush.bf16.msra.mxu0 %v1744
      %2297 = vmatpush.bf16.msra.mxu0 %v1742
      %2298 = vmatmul.bf16.gmra.mxu0 %v730
      %v2299 = vpop.f32.mrf.mxu0
      %v2300 = vadd.f32 %v2281, %v2299
      %v2301 = vpop.f32.mrf.mxu0
      %v2302 = vadd.f32 %v2283, %v2301
      %2303 = vmatmul.bf16.gmra.mxu0 %v746
      %v2304 = vpop.f32.mrf.mxu0
      %v2305 = vadd.f32 %v2286, %v2304
      %v2306 = vpop.f32.mrf.mxu0
      %v2307 = vadd.f32 %v2288, %v2306
      %2308 = vdwg.mxu0
      %2309 = vmatpush.bf16.msra.mxu0 %v1772
      %2310 = vmatpush.bf16.msra.mxu0 %v1770
      %2311 = vmatpush.bf16.msra.mxu0 %v1768
      %2312 = vmatpush.bf16.msra.mxu0 %v1766
      %2313 = vmatpush.bf16.msra.mxu0 %v1764
      %2314 = vmatpush.bf16.msra.mxu0 %v1762
      %2315 = vmatpush.bf16.msra.mxu0 %v1760
      %2316 = vmatpush.bf16.msra.mxu0 %v1758
      %2317 = vmatmul.bf16.gmra.mxu0 %v731
      %v2318 = vpop.f32.mrf.mxu0
      %v2319 = vadd.f32 %v2300, %v2318
      %v2320 = vpop.f32.mrf.mxu0
      %v2321 = vadd.f32 %v2302, %v2320
      %2322 = vmatmul.bf16.gmra.mxu0 %v747
      %v2323 = vpop.f32.mrf.mxu0
      %v2324 = vadd.f32 %v2305, %v2323
      %v2325 = vpop.f32.mrf.mxu0
      %v2326 = vadd.f32 %v2307, %v2325
      %2327 = vdwg.mxu0
      %2328 = vmatpush.bf16.msra.mxu0 %v1788
      %2329 = vmatpush.bf16.msra.mxu0 %v1786
      %2330 = vmatpush.bf16.msra.mxu0 %v1784
      %2331 = vmatpush.bf16.msra.mxu0 %v1782
      %2332 = vmatpush.bf16.msra.mxu0 %v1780
      %2333 = vmatpush.bf16.msra.mxu0 %v1778
      %2334 = vmatpush.bf16.msra.mxu0 %v1776
      %2335 = vmatpush.bf16.msra.mxu0 %v1774
      %2336 = vmatmul.bf16.gmra.mxu0 %v732
      %v2337 = vpop.f32.mrf.mxu0
      %v2338 = vadd.f32 %v2319, %v2337
      %v2339 = vpop.f32.mrf.mxu0
      %v2340 = vadd.f32 %v2321, %v2339
      %2341 = vmatmul.bf16.gmra.mxu0 %v748
      %v2342 = vpop.f32.mrf.mxu0
      %v2343 = vadd.f32 %v2324, %v2342
      %v2344 = vpop.f32.mrf.mxu0
      %v2345 = vadd.f32 %v2326, %v2344
      %2346 = vdwg.mxu0
      %2347 = vmatpush.bf16.msra.mxu0 %v1804
      %2348 = vmatpush.bf16.msra.mxu0 %v1802
      %2349 = vmatpush.bf16.msra.mxu0 %v1800
      %2350 = vmatpush.bf16.msra.mxu0 %v1798
      %2351 = vmatpush.bf16.msra.mxu0 %v1796
      %2352 = vmatpush.bf16.msra.mxu0 %v1794
      %2353 = vmatpush.bf16.msra.mxu0 %v1792
      %2354 = vmatpush.bf16.msra.mxu0 %v1790
      %2355 = vmatmul.bf16.gmra.mxu0 %v733
      %v2356 = vpop.f32.mrf.mxu0
      %v2357 = vadd.f32 %v2338, %v2356
      %v2358 = vpop.f32.mrf.mxu0
      %v2359 = vadd.f32 %v2340, %v2358
      %2360 = vmatmul.bf16.gmra.mxu0 %v749
      %v2361 = vpop.f32.mrf.mxu0
      %v2362 = vadd.f32 %v2343, %v2361
      %v2363 = vpop.f32.mrf.mxu0
      %v2364 = vadd.f32 %v2345, %v2363
      %2365 = vdwg.mxu0
      %2366 = vmatpush.bf16.msra.mxu0 %v1565
      %2367 = vmatpush.bf16.msra.mxu0 %v1563
      %2368 = vmatpush.bf16.msra.mxu0 %v1561
      %2369 = vmatpush.bf16.msra.mxu0 %v1559
      %2370 = vmatpush.bf16.msra.mxu0 %v1557
      %2371 = vmatpush.bf16.msra.mxu0 %v1555
      %2372 = vmatpush.bf16.msra.mxu0 %v1553
      %2373 = vmatpush.bf16.msra.mxu0 %v1551
      %2374 = vmatmul.bf16.gmra.mxu0 %v718
      %v2375 = vpop.f32.mrf.mxu0
      %v2376 = vadd.f32 0.0, %v2375
      %v2377 = vpop.f32.mrf.mxu0
      %v2378 = vadd.f32 0.0, %v2377
      %2379 = vmatmul.bf16.gmra.mxu0 %v734
      %v2380 = vpop.f32.mrf.mxu0
      %v2381 = vadd.f32 0.0, %v2380
      %v2382 = vpop.f32.mrf.mxu0
      %v2383 = vadd.f32 0.0, %v2382
      %2384 = vdwg.mxu0
      %2385 = vmatpush.bf16.msra.mxu0 %v1581
      %2386 = vmatpush.bf16.msra.mxu0 %v1579
      %2387 = vmatpush.bf16.msra.mxu0 %v1577
      %2388 = vmatpush.bf16.msra.mxu0 %v1575
      %2389 = vmatpush.bf16.msra.mxu0 %v1573
      %2390 = vmatpush.bf16.msra.mxu0 %v1571
      %2391 = vmatpush.bf16.msra.mxu0 %v1569
      %2392 = vmatpush.bf16.msra.mxu0 %v1567
      %2393 = vmatmul.bf16.gmra.mxu0 %v719
      %v2394 = vpop.f32.mrf.mxu0
      %v2395 = vadd.f32 %v2376, %v2394
      %v2396 = vpop.f32.mrf.mxu0
      %v2397 = vadd.f32 %v2378, %v2396
      %2398 = vmatmul.bf16.gmra.mxu0 %v735
      %v2399 = vpop.f32.mrf.mxu0
      %v2400 = vadd.f32 %v2381, %v2399
      %v2401 = vpop.f32.mrf.mxu0
      %v2402 = vadd.f32 %v2383, %v2401
      %2403 = vdwg.mxu0
      %2404 = vmatpush.bf16.msra.mxu0 %v1597
      %2405 = vmatpush.bf16.msra.mxu0 %v1595
      %2406 = vmatpush.bf16.msra.mxu0 %v1593
      %2407 = vmatpush.bf16.msra.mxu0 %v1591
      %2408 = vmatpush.bf16.msra.mxu0 %v1589
      %2409 = vmatpush.bf16.msra.mxu0 %v1587
      %2410 = vmatpush.bf16.msra.mxu0 %v1585
      %2411 = vmatpush.bf16.msra.mxu0 %v1583
      %2412 = vmatmul.bf16.gmra.mxu0 %v720
      %v2413 = vpop.f32.mrf.mxu0
      %v2414 = vadd.f32 %v2395, %v2413
      %v2415 = vpop.f32.mrf.mxu0
      %v2416 = vadd.f32 %v2397, %v2415
      %2417 = vmatmul.bf16.gmra.mxu0 %v736
      %v2418 = vpop.f32.mrf.mxu0
      %v2419 = vadd.f32 %v2400, %v2418
      %v2420 = vpop.f32.mrf.mxu0
      %v2421 = vadd.f32 %v2402, %v2420
      %2422 = vdwg.mxu0
      %2423 = vmatpush.bf16.msra.mxu0 %v1613
      %2424 = vmatpush.bf16.msra.mxu0 %v1611
      %2425 = vmatpush.bf16.msra.mxu0 %v1609
      %2426 = vmatpush.bf16.msra.mxu0 %v1607
      %2427 = vmatpush.bf16.msra.mxu0 %v1605
      %2428 = vmatpush.bf16.msra.mxu0 %v1603
      %2429 = vmatpush.bf16.msra.mxu0 %v1601
      %2430 = vmatpush.bf16.msra.mxu0 %v1599
      %2431 = vmatmul.bf16.gmra.mxu0 %v721
      %v2432 = vpop.f32.mrf.mxu0
      %v2433 = vadd.f32 %v2414, %v2432
      %v2434 = vpop.f32.mrf.mxu0
      %v2435 = vadd.f32 %v2416, %v2434
      %2436 = vmatmul.bf16.gmra.mxu0 %v737
      %v2437 = vpop.f32.mrf.mxu0
      %v2438 = vadd.f32 %v2419, %v2437
      %v2439 = vpop.f32.mrf.mxu0
      %v2440 = vadd.f32 %v2421, %v2439
      %2441 = vdwg.mxu0
      %2442 = vmatpush.bf16.msra.mxu0 %v1629
      %2443 = vmatpush.bf16.msra.mxu0 %v1627
      %2444 = vmatpush.bf16.msra.mxu0 %v1625
      %2445 = vmatpush.bf16.msra.mxu0 %v1623
      %2446 = vmatpush.bf16.msra.mxu0 %v1621
      %2447 = vmatpush.bf16.msra.mxu0 %v1619
      %2448 = vmatpush.bf16.msra.mxu0 %v1617
      %2449 = vmatpush.bf16.msra.mxu0 %v1615
      %2450 = vmatmul.bf16.gmra.mxu0 %v722
      %v2451 = vpop.f32.mrf.mxu0
      %v2452 = vadd.f32 %v2433, %v2451
      %v2453 = vpop.f32.mrf.mxu0
      %v2454 = vadd.f32 %v2435, %v2453
      %2455 = vmatmul.bf16.gmra.mxu0 %v738
      %v2456 = vpop.f32.mrf.mxu0
      %v2457 = vadd.f32 %v2438, %v2456
      %v2458 = vpop.f32.mrf.mxu0
      %v2459 = vadd.f32 %v2440, %v2458
      %2460 = vdwg.mxu0
      %2461 = vmatpush.bf16.msra.mxu0 %v1645
      %2462 = vmatpush.bf16.msra.mxu0 %v1643
      %2463 = vmatpush.bf16.msra.mxu0 %v1641
      %2464 = vmatpush.bf16.msra.mxu0 %v1639
      %2465 = vmatpush.bf16.msra.mxu0 %v1637
      %2466 = vmatpush.bf16.msra.mxu0 %v1635
      %2467 = vmatpush.bf16.msra.mxu0 %v1633
      %2468 = vmatpush.bf16.msra.mxu0 %v1631
      %2469 = vmatmul.bf16.gmra.mxu0 %v723
      %v2470 = vpop.f32.mrf.mxu0
      %v2471 = vadd.f32 %v2452, %v2470
      %v2472 = vpop.f32.mrf.mxu0
      %v2473 = vadd.f32 %v2454, %v2472
      %2474 = vmatmul.bf16.gmra.mxu0 %v739
      %v2475 = vpop.f32.mrf.mxu0
      %v2476 = vadd.f32 %v2457, %v2475
      %v2477 = vpop.f32.mrf.mxu0
      %v2478 = vadd.f32 %v2459, %v2477
      %2479 = vdwg.mxu0
      %2480 = vmatpush.bf16.msra.mxu0 %v1661
      %2481 = vmatpush.bf16.msra.mxu0 %v1659
      %2482 = vmatpush.bf16.msra.mxu0 %v1657
      %2483 = vmatpush.bf16.msra.mxu0 %v1655
      %2484 = vmatpush.bf16.msra.mxu0 %v1653
      %2485 = vmatpush.bf16.msra.mxu0 %v1651
      %2486 = vmatpush.bf16.msra.mxu0 %v1649
      %2487 = vmatpush.bf16.msra.mxu0 %v1647
      %2488 = vmatmul.bf16.gmra.mxu0 %v724
      %v2489 = vpop.f32.mrf.mxu0
      %v2490 = vadd.f32 %v2471, %v2489
      %v2491 = vpop.f32.mrf.mxu0
      %v2492 = vadd.f32 %v2473, %v2491
      %2493 = vmatmul.bf16.gmra.mxu0 %v740
      %v2494 = vpop.f32.mrf.mxu0
      %v2495 = vadd.f32 %v2476, %v2494
      %v2496 = vpop.f32.mrf.mxu0
      %v2497 = vadd.f32 %v2478, %v2496
      %2498 = vdwg.mxu0
      %2499 = vmatpush.bf16.msra.mxu0 %v1677
      %2500 = vmatpush.bf16.msra.mxu0 %v1675
      %2501 = vmatpush.bf16.msra.mxu0 %v1673
      %2502 = vmatpush.bf16.msra.mxu0 %v1671
      %2503 = vmatpush.bf16.msra.mxu0 %v1669
      %2504 = vmatpush.bf16.msra.mxu0 %v1667
      %2505 = vmatpush.bf16.msra.mxu0 %v1665
      %2506 = vmatpush.bf16.msra.mxu0 %v1663
      %2507 = vmatmul.bf16.gmra.mxu0 %v725
      %v2508 = vpop.f32.mrf.mxu0
      %v2509 = vadd.f32 %v2490, %v2508
      %v2510 = vpop.f32.mrf.mxu0
      %v2511 = vadd.f32 %v2492, %v2510
      %2512 = vmatmul.bf16.gmra.mxu0 %v741
      %v2513 = vpop.f32.mrf.mxu0
      %v2514 = vadd.f32 %v2495, %v2513
      %v2515 = vpop.f32.mrf.mxu0
      %v2516 = vadd.f32 %v2497, %v2515
      %2517 = vdwg.mxu0
      %2518 = vmatpush.bf16.msra.mxu0 %v1693
      %2519 = vmatpush.bf16.msra.mxu0 %v1691
      %2520 = vmatpush.bf16.msra.mxu0 %v1689
      %2521 = vmatpush.bf16.msra.mxu0 %v1687
      %2522 = vmatpush.bf16.msra.mxu0 %v1685
      %2523 = vmatpush.bf16.msra.mxu0 %v1683
      %2524 = vmatpush.bf16.msra.mxu0 %v1681
      %2525 = vmatpush.bf16.msra.mxu0 %v1679
      %2526 = vmatmul.bf16.gmra.mxu0 %v726
      %v2527 = vpop.f32.mrf.mxu0
      %v2528 = vadd.f32 %v2509, %v2527
      %v2529 = vpop.f32.mrf.mxu0
      %v2530 = vadd.f32 %v2511, %v2529
      %2531 = vmatmul.bf16.gmra.mxu0 %v742
      %v2532 = vpop.f32.mrf.mxu0
      %v2533 = vadd.f32 %v2514, %v2532
      %v2534 = vpop.f32.mrf.mxu0
      %v2535 = vadd.f32 %v2516, %v2534
      %2536 = vdwg.mxu0
      %2537 = vmatpush.bf16.msra.mxu0 %v1709
      %2538 = vmatpush.bf16.msra.mxu0 %v1707
      %2539 = vmatpush.bf16.msra.mxu0 %v1705
      %2540 = vmatpush.bf16.msra.mxu0 %v1703
      %2541 = vmatpush.bf16.msra.mxu0 %v1701
      %2542 = vmatpush.bf16.msra.mxu0 %v1699
      %2543 = vmatpush.bf16.msra.mxu0 %v1697
      %2544 = vmatpush.bf16.msra.mxu0 %v1695
      %2545 = vmatmul.bf16.gmra.mxu0 %v727
      %v2546 = vpop.f32.mrf.mxu0
      %v2547 = vadd.f32 %v2528, %v2546
      %v2548 = vpop.f32.mrf.mxu0
      %v2549 = vadd.f32 %v2530, %v2548
      %2550 = vmatmul.bf16.gmra.mxu0 %v743
      %v2551 = vpop.f32.mrf.mxu0
      %v2552 = vadd.f32 %v2533, %v2551
      %v2553 = vpop.f32.mrf.mxu0
      %v2554 = vadd.f32 %v2535, %v2553
      %2555 = vdwg.mxu0
      %2556 = vmatpush.bf16.msra.mxu0 %v1725
      %2557 = vmatpush.bf16.msra.mxu0 %v1723
      %2558 = vmatpush.bf16.msra.mxu0 %v1721
      %2559 = vmatpush.bf16.msra.mxu0 %v1719
      %2560 = vmatpush.bf16.msra.mxu0 %v1717
      %2561 = vmatpush.bf16.msra.mxu0 %v1715
      %2562 = vmatpush.bf16.msra.mxu0 %v1713
      %2563 = vmatpush.bf16.msra.mxu0 %v1711
      %2564 = vmatmul.bf16.gmra.mxu0 %v728
      %v2565 = vpop.f32.mrf.mxu0
      %v2566 = vadd.f32 %v2547, %v2565
      %v2567 = vpop.f32.mrf.mxu0
      %v2568 = vadd.f32 %v2549, %v2567
      %2569 = vmatmul.bf16.gmra.mxu0 %v744
      %v2570 = vpop.f32.mrf.mxu0
      %v2571 = vadd.f32 %v2552, %v2570
      %v2572 = vpop.f32.mrf.mxu0
      %v2573 = vadd.f32 %v2554, %v2572
      %2574 = vdwg.mxu0
      %2575 = vmatpush.bf16.msra.mxu0 %v1741
      %2576 = vmatpush.bf16.msra.mxu0 %v1739
      %2577 = vmatpush.bf16.msra.mxu0 %v1737
      %2578 = vmatpush.bf16.msra.mxu0 %v1735
      %2579 = vmatpush.bf16.msra.mxu0 %v1733
      %2580 = vmatpush.bf16.msra.mxu0 %v1731
      %2581 = vmatpush.bf16.msra.mxu0 %v1729
      %2582 = vmatpush.bf16.msra.mxu0 %v1727
      %2583 = vmatmul.bf16.gmra.mxu0 %v729
      %v2584 = vpop.f32.mrf.mxu0
      %v2585 = vadd.f32 %v2566, %v2584
      %v2586 = vpop.f32.mrf.mxu0
      %v2587 = vadd.f32 %v2568, %v2586
      %2588 = vmatmul.bf16.gmra.mxu0 %v745
      %v2589 = vpop.f32.mrf.mxu0
      %v2590 = vadd.f32 %v2571, %v2589
      %v2591 = vpop.f32.mrf.mxu0
      %v2592 = vadd.f32 %v2573, %v2591
      %2593 = vdwg.mxu0
      %2594 = vmatpush.bf16.msra.mxu0 %v1757
      %2595 = vmatpush.bf16.msra.mxu0 %v1755
      %2596 = vmatpush.bf16.msra.mxu0 %v1753
      %2597 = vmatpush.bf16.msra.mxu0 %v1751
      %2598 = vmatpush.bf16.msra.mxu0 %v1749
      %2599 = vmatpush.bf16.msra.mxu0 %v1747
      %2600 = vmatpush.bf16.msra.mxu0 %v1745
      %2601 = vmatpush.bf16.msra.mxu0 %v1743
      %2602 = vmatmul.bf16.gmra.mxu0 %v730
      %v2603 = vpop.f32.mrf.mxu0
      %v2604 = vadd.f32 %v2585, %v2603
      %v2605 = vpop.f32.mrf.mxu0
      %v2606 = vadd.f32 %v2587, %v2605
      %2607 = vmatmul.bf16.gmra.mxu0 %v746
      %v2608 = vpop.f32.mrf.mxu0
      %v2609 = vadd.f32 %v2590, %v2608
      %v2610 = vpop.f32.mrf.mxu0
      %v2611 = vadd.f32 %v2592, %v2610
      %2612 = vdwg.mxu0
      %2613 = vmatpush.bf16.msra.mxu0 %v1773
      %2614 = vmatpush.bf16.msra.mxu0 %v1771
      %2615 = vmatpush.bf16.msra.mxu0 %v1769
      %2616 = vmatpush.bf16.msra.mxu0 %v1767
      %2617 = vmatpush.bf16.msra.mxu0 %v1765
      %2618 = vmatpush.bf16.msra.mxu0 %v1763
      %2619 = vmatpush.bf16.msra.mxu0 %v1761
      %2620 = vmatpush.bf16.msra.mxu0 %v1759
      %2621 = vmatmul.bf16.gmra.mxu0 %v731
      %v2622 = vpop.f32.mrf.mxu0
      %v2623 = vadd.f32 %v2604, %v2622
      %v2624 = vpop.f32.mrf.mxu0
      %v2625 = vadd.f32 %v2606, %v2624
      %2626 = vmatmul.bf16.gmra.mxu0 %v747
      %v2627 = vpop.f32.mrf.mxu0
      %v2628 = vadd.f32 %v2609, %v2627
      %v2629 = vpop.f32.mrf.mxu0
      %v2630 = vadd.f32 %v2611, %v2629
      %2631 = vdwg.mxu0
      %2632 = vmatpush.bf16.msra.mxu0 %v1789
      %2633 = vmatpush.bf16.msra.mxu0 %v1787
      %2634 = vmatpush.bf16.msra.mxu0 %v1785
      %2635 = vmatpush.bf16.msra.mxu0 %v1783
      %2636 = vmatpush.bf16.msra.mxu0 %v1781
      %2637 = vmatpush.bf16.msra.mxu0 %v1779
      %2638 = vmatpush.bf16.msra.mxu0 %v1777
      %2639 = vmatpush.bf16.msra.mxu0 %v1775
      %2640 = vmatmul.bf16.gmra.mxu0 %v732
      %v2641 = vpop.f32.mrf.mxu0
      %v2642 = vadd.f32 %v2623, %v2641
      %v2643 = vpop.f32.mrf.mxu0
      %v2644 = vadd.f32 %v2625, %v2643
      %2645 = vmatmul.bf16.gmra.mxu0 %v748
      %v2646 = vpop.f32.mrf.mxu0
      %v2647 = vadd.f32 %v2628, %v2646
      %v2648 = vpop.f32.mrf.mxu0
      %v2649 = vadd.f32 %v2630, %v2648
      %2650 = vdwg.mxu0
      %2651 = vmatpush.bf16.msra.mxu0 %v1805
      %2652 = vmatpush.bf16.msra.mxu0 %v1803
      %2653 = vmatpush.bf16.msra.mxu0 %v1801
      %2654 = vmatpush.bf16.msra.mxu0 %v1799
      %2655 = vmatpush.bf16.msra.mxu0 %v1797
      %2656 = vmatpush.bf16.msra.mxu0 %v1795
      %2657 = vmatpush.bf16.msra.mxu0 %v1793
      %2658 = vmatpush.bf16.msra.mxu0 %v1791
      %2659 = vmatmul.bf16.gmra.mxu0 %v733
      %v2660 = vpop.f32.mrf.mxu0
      %v2661 = vadd.f32 %v2642, %v2660
      %v2662 = vpop.f32.mrf.mxu0
      %v2663 = vadd.f32 %v2644, %v2662
      %2664 = vmatmul.bf16.gmra.mxu0 %v749
      %v2665 = vpop.f32.mrf.mxu0
      %v2666 = vadd.f32 %v2647, %v2665
      %v2667 = vpop.f32.mrf.mxu0
      %v2668 = vadd.f32 %v2649, %v2667
      %2669 = vdwg.mxu0
      %v2670 = vld [vmem:[%s311] sm:$0x3]
      %v2672 = vperm.slane %v2670, 0
      %v2673 = vperm.slane %v2670, 1
      %v2676 = vmul.f32 %v2357, %v2672
      %v2677 = vmul.f32 %v2661, %v2673
      %v2678 = vmul.f32 %v2359, %v2672
      %v2679 = vmul.f32 %v2663, %v2673
      %v2680 = vmul.f32 %v2362, %v2672
      %v2681 = vmul.f32 %v2666, %v2673
      %v2682 = vmul.f32 %v2364, %v2672
      %v2683 = vmul.f32 %v2668, %v2673
      %v2684 = vld [vmem:[%s316] sm:$0x3]
      %v2686 = vperm.slane %v2684, 0
      %v2687 = vperm.slane %v2684, 1
      %v2690 = vadd.f32 %v2676, %v2686
      %v2691 = vadd.f32 %v2677, %v2687
      %v2692 = vadd.f32 %v2678, %v2686
      %v2693 = vadd.f32 %v2679, %v2687
      %v2694 = vadd.f32 %v2680, %v2686
      %v2695 = vadd.f32 %v2681, %v2687
      %v2696 = vadd.f32 %v2682, %v2686
      %v2697 = vadd.f32 %v2683, %v2687
      %v2698 = vmax.f32 %v2690, 0.0
      %v2699 = vmax.f32 %v2691, 0.0
      %v2700 = vmax.f32 %v2692, 0.0
      %v2701 = vmax.f32 %v2693, 0.0
      %v2702 = vmax.f32 %v2694, 0.0
      %v2703 = vmax.f32 %v2695, 0.0
      %v2704 = vmax.f32 %v2696, 0.0
      %v2705 = vmax.f32 %v2697, 0.0
      %v2706 = vpack.c.bf16 %v2699, %v2698
      %v2707 = vpack.c.bf16 %v2701, %v2700
      %v2708 = vpack.c.bf16 %v2703, %v2702
      %v2709 = vpack.c.bf16 %v2705, %v2704
      %2710 = vst [vmem:[%s331] sm:$0xff] %v2706
      %2711 = vst [vmem:[%s331 + $0x8] sm:$0xff] %v2707
      %2712 = vst [vmem:[%s331 + $0x10] sm:$0xff] %v2708
      %2713 = vst [vmem:[%s331 + $0x18] sm:$0xff] %v2709
      %s2714 = smul.u32 4, %s21
      %s2715 = smul.u32 2, %s22
      %p2716 = scmp.lt.s32.totalorder %s20, 3
      %s2717 = scalar_select %p2716, %s20, 3
      %p2718 = scmp.lt.s32.totalorder %s2714, 3
      %s2719 = scalar_select %p2718, %s2714, 3
      %p2720 = scmp.lt.s32.totalorder %s2715, 1
      %s2721 = scalar_select %p2720, %s2715, 1
      %s2722 = smul.addr %s2719, 2
      %s2723 = sadd.s32 %s2721, %s2722
      %s2724 = smul.addr %s2717, 8
      %s2725 = sadd.s32 %s2723, %s2724
      %s2726 = smul.addr %s2725, 4
      %s2727 = scalar_lea.vmem %s4, %s2726
      // Predicated region
      $region37: #{generator_forward.6} parent=35 // pred_check
        %p2728 = pneg %p164
      $region38: #{generator_forward.6} parent=35 // pred_check_branch
        %2730 = sbr.rel (%p2728) target = $region40
      $region39: #{generator_forward.6} parent=35 // pred_region
        %s2731 = smul.u32 4, %s21
        %s2732 = smul.u32 2, %s22
      $region40: #{generator_forward.6} parent=35 // pred_fallthru
        _
    $region36: #{generator_forward.6} parent=5 // pred_fallthru
      _
    %p2733 = scmp.le.s32.totalorder 2, %s10
    // Predicated region
    $region41: #{generator_forward.6} parent=5 // pred_check
      %p2734 = pneg %p2733
    $region42: #{generator_forward.6} parent=5 // pred_check_branch
      %2736 = sbr.rel (%p2734) target = $region44
    $region43: #{generator_forward.6} parent=5 // pred_region
      %s2737 = ssub.s32 %s10, 2
      // Predicated region
      $region45: #{generator_forward.6} parent=43 // pred_check
        %p2738 = pneg %p170
      $region46: #{generator_forward.6} parent=43 // pred_check_branch
        %2740 = sbr.rel (%p2738) target = $region48
      $region47: #{generator_forward.6} parent=43 // pred_region
        %s2741 = smul.u32 4, %s24
        %s2742 = smul.u32 2, %s25
        %p2743 = scmp.lt.s32.totalorder %s23, 3
        %s2744 = scalar_select %p2743, %s23, 3
        %p2745 = scmp.lt.s32.totalorder %s2741, 3
        %s2746 = scalar_select %p2745, %s2741, 3
        %p2747 = scmp.lt.s32.totalorder %s2742, 1
        %s2748 = scalar_select %p2747, %s2742, 1
        %s2749 = smul.addr %s2746, 2
        %s2750 = sadd.s32 %s2748, %s2749
        %s2751 = smul.addr %s2744, 8
        %s2752 = sadd.s32 %s2750, %s2751
        %s2753 = smul.addr %s2752, 4
        %s2754 = scalar_lea.vmem %s4, %s2753
      $region48: #{generator_forward.6} parent=43 // pred_fallthru
        _
    $region44: #{generator_forward.6} parent=5 // pred_fallthru
      _
  $region6: #{generator_forward.6} parent=0 // loop_footer
    %s14 = sadd.s32 1, %s10
  $region7: #{generator_forward.6} parent=0 // loop_footer_branch
    %9 = sbr.rel target = $region3
  $region8: #{generator_forward.6} parent=0 // loop_exit
    _

// kernel: generator_forward.7
$region0: #{generator_forward.7}
  #allocation0 [shape = 'u32[]', space=smem, size = 0x4, offset = 0x4, fixed_abs, tag = 'smem constant byte address 0x4 - core index']
  #allocation1 [shape = 'u32[72,128]{1,0:T(1,128)}', space=vmem, size = 0x9000, scoped, tag = 'internal scratch']
  %s0 = inlined_call_operand.vmem [shape: bf16[4,128,1024], index: 0, kind: input, shape index: {}]
  %s1 = inlined_call_operand.vmem [shape: bf16[4,1024,128], index: 1, kind: input, shape index: {}]
  %s2 = inlined_call_operand.vmem [shape: f32[1,128], index: 2, kind: input, shape index: {}]
  %s3 = inlined_call_operand.vmem [shape: f32[1,128], index: 3, kind: input, shape index: {}]
  %s4 = inlined_call_operand.vmem [shape: bf16[4,128,128], index: 4, kind: output, shape index: {}]
  %s5 = sld [smem:[#allocation0]]
  $region49: #{generator_forward.7} parent=0
    _
  %s7 = ssub.s32 1, %s5
  %s8 = scalar_select 0, %s7, %s5
  loop: start=0, step=1, limit=6
  $region2: #{generator_forward.7} parent=0 // loop_pre_header
    _
  $region3: #{generator_forward.7} parent=0 // loop_header
    %s10 = sphi 0, %s14
    %p11 = scmp.ge.s32.totalorder %s10, 6
    %s17 = sphi 0, %s36
    %s18 = sphi 0, %s32
    %s19 = sphi 0, %s28
    %s20 = sphi 0, %s17
    %s21 = sphi 0, %s18
    %s22 = sphi 0, %s19
    %s23 = sphi 0, %s20
    %s24 = sphi 0, %s21
    %s25 = sphi 0, %s22
    %s41 = sphi 0, %s43
    %s44 = sphi 0, %s41
    %s45 = sphi 0, %s44
    %s61 = sphi 0, %s45
    %s69 = sphi 0, %s71
    %s72 = sphi 0, %s69
    %s73 = sphi 0, %s72
    %s89 = sphi 0, %s73
    %s95 = sphi 0, %s97
    %s98 = sphi 0, %s95
    %s99 = sphi 0, %s98
    %s115 = sphi 0, %s99
    %s121 = sphi 0, %s123
    %s124 = sphi 0, %s121
    %s125 = sphi 0, %s124
    %s141 = sphi 0, %s125
    %s151 = sphi 0, %s153
    %s154 = sphi 0, %s151
    %s155 = sphi 0, %s154
    %s171 = sphi 0, %s155
  $region4: #{generator_forward.7} parent=0 // loop_header_branch
    %13 = sbr.rel (%p11) target = $region8
  $region5: #{generator_forward.7} parent=0 // loop_body
    %s15 = ssub.s32 %s10, 1
    %s16 = ssub.s32 %s10, 2
    %s26 = sadd.s32 1, %s19
    %p27 = scmp.ge.s32.totalorder %s26, 1
    %s28 = scalar_select %p27, 0, %s26
    %s29 = sadd.s32 1, %s18
    %s30 = scalar_select %p27, %s29, %s18
    %p31 = scmp.ge.s32.totalorder %s30, 1
    %s32 = scalar_select %p31, 0, %s30
    %s33 = sadd.s32 1, %s17
    %s34 = scalar_select %p31, %s33, %s17
    %p35 = scmp.ge.s32.totalorder %s34, 4
    %s36 = scalar_select %p35, 0, %s34
    %s37 = ssub.s32 %s17, %s36
    %s38 = ssub.s32 %s18, %s32
    %s39 = sor.u32 %s37, %s38
    %p40 = scmp.eq.s32.totalorder %s39, 0
    %s42 = sadd.s32 %s41, 1
    %s43 = scalar_select %p40, %s41, %s42
    %p46 = pneg %p40
    %p47 = scmp.eq.s32.totalorder %s10, 3
    %p48 = por %p46, %p47
    %p49 = scmp.ne.s32.totalorder %s41, %s44
    %p50 = scmp.eq.s32.totalorder %s10, 0
    %p51 = por %p49, %p50
    %p52 = scmp.ne.s32.totalorder %s41, %s44
    %p53 = scmp.eq.s32.totalorder %s15, 3
    %p54 = por %p52, %p53
    %p55 = scmp.ne.s32.totalorder %s44, %s45
    %p56 = scmp.eq.s32.totalorder %s15, 0
    %p57 = por %p55, %p56
    %p58 = scmp.ne.s32.totalorder %s44, %s45
    %p59 = scmp.eq.s32.totalorder %s16, 3
    %p60 = por %p58, %p59
    %p62 = scmp.ne.s32.totalorder %s45, %s61
    %p63 = scmp.eq.s32.totalorder %s16, 0
    %p64 = por %p62, %p63
    %s65 = ssub.s32 %s17, %s36
    %s66 = ssub.s32 %s19, %s28
    %s67 = sor.u32 %s65, %s66
    %p68 = scmp.eq.s32.totalorder %s67, 0
    %s70 = sadd.s32 %s69, 1
    %s71 = scalar_select %p68, %s69, %s70
    %p74 = pneg %p68
    %p75 = scmp.eq.s32.totalorder %s10, 3
    %p76 = por %p74, %p75
    %p77 = scmp.ne.s32.totalorder %s69, %s72
    %p78 = scmp.eq.s32.totalorder %s10, 0
    %p79 = por %p77, %p78
    %p80 = scmp.ne.s32.totalorder %s69, %s72
    %p81 = scmp.eq.s32.totalorder %s15, 3
    %p82 = por %p80, %p81
    %p83 = scmp.ne.s32.totalorder %s72, %s73
    %p84 = scmp.eq.s32.totalorder %s15, 0
    %p85 = por %p83, %p84
    %p86 = scmp.ne.s32.totalorder %s72, %s73
    %p87 = scmp.eq.s32.totalorder %s16, 3
    %p88 = por %p86, %p87
    %p90 = scmp.ne.s32.totalorder %s73, %s89
    %p91 = scmp.eq.s32.totalorder %s16, 0
    %p92 = por %p90, %p91
    %s93 = ssub.s32 %s19, %s28
    %p94 = scmp.eq.s32.totalorder %s93, 0
    %s96 = sadd.s32 %s95, 1
    %s97 = scalar_select %p94, %s95, %s96
    %p100 = pneg %p94
    %p101 = scmp.eq.s32.totalorder %s10, 3
    %p102 = por %p100, %p101
    %p103 = scmp.ne.s32.totalorder %s95, %s98
    %p104 = scmp.eq.s32.totalorder %s10, 0
    %p105 = por %p103, %p104
    %p106 = scmp.ne.s32.totalorder %s95, %s98
    %p107 = scmp.eq.s32.totalorder %s15, 3
    %p108 = por %p106, %p107
    %p109 = scmp.ne.s32.totalorder %s98, %s99
    %p110 = scmp.eq.s32.totalorder %s15, 0
    %p111 = por %p109, %p110
    %p112 = scmp.ne.s32.totalorder %s98, %s99
    %p113 = scmp.eq.s32.totalorder %s16, 3
    %p114 = por %p112, %p113
    %p116 = scmp.ne.s32.totalorder %s99, %s115
    %p117 = scmp.eq.s32.totalorder %s16, 0
    %p118 = por %p116, %p117
    %s119 = ssub.s32 %s19, %s28
    %p120 = scmp.eq.s32.totalorder %s119, 0
    %s122 = sadd.s32 %s121, 1
    %s123 = scalar_select %p120, %s121, %s122
    %p126 = pneg %p120
    %p127 = scmp.eq.s32.totalorder %s10, 3
    %p128 = por %p126, %p127
    %p129 = scmp.ne.s32.totalorder %s121, %s124
    %p130 = scmp.eq.s32.totalorder %s10, 0
    %p131 = por %p129, %p130
    %p132 = scmp.ne.s32.totalorder %s121, %s124
    %p133 = scmp.eq.s32.totalorder %s15, 3
    %p134 = por %p132, %p133
    %p135 = scmp.ne.s32.totalorder %s124, %s125
    %p136 = scmp.eq.s32.totalorder %s15, 0
    %p137 = por %p135, %p136
    %p138 = scmp.ne.s32.totalorder %s124, %s125
    %p139 = scmp.eq.s32.totalorder %s16, 3
    %p140 = por %p138, %p139
    %p142 = scmp.ne.s32.totalorder %s125, %s141
    %p143 = scmp.eq.s32.totalorder %s16, 0
    %p144 = por %p142, %p143
    %s145 = ssub.s32 %s17, %s36
    %s146 = ssub.s32 %s18, %s32
    %s147 = sor.u32 %s145, %s146
    %s148 = ssub.s32 %s19, %s28
    %s149 = sor.u32 %s147, %s148
    %p150 = scmp.eq.s32.totalorder %s149, 0
    %s152 = sadd.s32 %s151, 1
    %s153 = scalar_select %p150, %s151, %s152
    %p156 = pneg %p150
    %p157 = scmp.eq.s32.totalorder %s10, 3
    %p158 = por %p156, %p157
    %p159 = scmp.ne.s32.totalorder %s151, %s154
    %p160 = scmp.eq.s32.totalorder %s10, 0
    %p161 = por %p159, %p160
    %p162 = scmp.ne.s32.totalorder %s151, %s154
    %p163 = scmp.eq.s32.totalorder %s15, 3
    %p164 = por %p162, %p163
    %p165 = scmp.ne.s32.totalorder %s154, %s155
    %p166 = scmp.eq.s32.totalorder %s15, 0
    %p167 = por %p165, %p166
    %p168 = scmp.ne.s32.totalorder %s154, %s155
    %p169 = scmp.eq.s32.totalorder %s16, 3
    %p170 = por %p168, %p169
    %p172 = scmp.ne.s32.totalorder %s155, %s171
    %p173 = scmp.eq.s32.totalorder %s16, 0
    %p174 = por %p172, %p173
    %p175 = scmp.le.s32.totalorder 1, %s10
    %p176 = scmp.lt.s32.totalorder %s10, 5
    %p177 = pnand %p175, %p176
    %p178 = pneg %p177
    // Predicated region
    $region9: #{generator_forward.7} parent=5 // pred_check
      _
    $region10: #{generator_forward.7} parent=5 // pred_check_branch
      %180 = sbr.rel (%p177) target = $region12
    $region11: #{generator_forward.7} parent=5 // pred_region
      %s181 = ssub.s32 %s10, 1
      // Predicated region
      $region13: #{generator_forward.7} parent=11 // pred_check
        %p182 = pneg %p111
      $region14: #{generator_forward.7} parent=11 // pred_check_branch
        %184 = sbr.rel (%p182) target = $region16
      $region15: #{generator_forward.7} parent=11 // pred_region
        %p185 = scmp.lt.s32.totalorder %s22, 0
        %s186 = scalar_select %p185, %s22, 0
        %s187 = scalar_lea.vmem %s2, %s186
      $region16: #{generator_forward.7} parent=11 // pred_fallthru
        _
      // Predicated region
      $region17: #{generator_forward.7} parent=11 // pred_check
        %p188 = pneg %p137
      $region18: #{generator_forward.7} parent=11 // pred_check_branch
        %190 = sbr.rel (%p188) target = $region20
      $region19: #{generator_forward.7} parent=11 // pred_region
        %p191 = scmp.lt.s32.totalorder %s22, 0
        %s192 = scalar_select %p191, %s22, 0
        %s193 = scalar_lea.vmem %s3, %s192
      $region20: #{generator_forward.7} parent=11 // pred_fallthru
        _
    $region12: #{generator_forward.7} parent=5 // pred_fallthru
      _
    %p194 = scmp.lt.s32.totalorder %s10, 4
    // Predicated region
    $region21: #{generator_forward.7} parent=5 // pred_check
      %p195 = pneg %p194
    $region22: #{generator_forward.7} parent=5 // pred_check_branch
      %197 = sbr.rel (%p195) target = $region24
    $region23: #{generator_forward.7} parent=5 // pred_region
      // Predicated region
      $region25: #{generator_forward.7} parent=23 // pred_check
        %p198 = pneg %p51
      $region26: #{generator_forward.7} parent=23 // pred_check_branch
        %200 = sbr.rel (%p198) target = $region28
      $region27: #{generator_forward.7} parent=23 // pred_region
        %s201 = smul.u32 16, %s18
        %p202 = scmp.lt.s32.totalorder %s17, 3
        %s203 = scalar_select %p202, %s17, 3
        %p204 = scmp.lt.s32.totalorder %s201, 15
        %s205 = scalar_select %p204, %s201, 15
        %s206 = smul.addr %s205, 8
        %s207 = smul.addr %s203, 128
        %s208 = sadd.s32 %s206, %s207
        %s209 = smul.addr %s208, 4
        %s210 = scalar_lea.vmem %s0, %s209
        %s211 = smul.u32 16, %s18
      $region28: #{generator_forward.7} parent=23 // pred_fallthru
        _
      // Predicated region
      $region29: #{generator_forward.7} parent=23 // pred_check
        %p212 = pneg %p79
      $region30: #{generator_forward.7} parent=23 // pred_check_branch
        %214 = sbr.rel (%p212) target = $region32
      $region31: #{generator_forward.7} parent=23 // pred_region
        %p215 = scmp.lt.s32.totalorder %s17, 3
        %s216 = scalar_select %p215, %s17, 3
        %p217 = scmp.lt.s32.totalorder %s19, 0
        %s218 = scalar_select %p217, %s19, 0
        %s219 = smul.addr %s216, 128
        %s220 = sadd.s32 %s218, %s219
        %s221 = smul.addr %s220, 4
        %s222 = scalar_lea.vmem %s1, %s221
      $region32: #{generator_forward.7} parent=23 // pred_fallthru
        _
    $region24: #{generator_forward.7} parent=5 // pred_fallthru
      _
    %p223 = scmp.le.s32.totalorder 1, %s10
    %p224 = scmp.lt.s32.totalorder %s10, 5
    %p225 = pnand %p223, %p224
    %p226 = pneg %p225
    // Predicated region
    $region33: #{generator_forward.7} parent=5 // pred_check
      _
    $region34: #{generator_forward.7} parent=5 // pred_check_branch
      %228 = sbr.rel (%p225) target = $region36
    $region35: #{generator_forward.7} parent=5 // pred_region
      %s229 = ssub.s32 %s10, 1
      %s230 = smul.u32 16, %s21
      %p231 = scmp.lt.s32.totalorder %s20, 3
      %s232 = scalar_select %p231, %s20, 3
      %p233 = scmp.lt.s32.totalorder %s230, 15
      %s234 = scalar_select %p233, %s230, 15
      %s235 = smul.addr %s234, 8
      %s236 = smul.addr %s232, 128
      %s237 = sadd.s32 %s235, %s236
      %s238 = smul.addr %s237, 4
      %s239 = scalar_lea.vmem %s0, %s238
      %p240 = pneg %p57
      %p241 = pneg %p54
      %p242 = scmp.lt.s32.totalorder %s20, 3
      %s243 = scalar_select %p242, %s20, 3
      %p244 = scmp.lt.s32.totalorder %s22, 0
      %s245 = scalar_select %p244, %s22, 0
      %s246 = smul.addr %s243, 128
      %s247 = sadd.s32 %s245, %s246
      %s248 = smul.addr %s247, 4
      %s249 = scalar_lea.vmem %s1, %s248
      %p250 = pneg %p85
      %p251 = pneg %p82
      %p252 = scmp.lt.s32.totalorder %s22, 0
      %s253 = scalar_select %p252, %s22, 0
      %s254 = scalar_lea.vmem %s2, %s253
      %p255 = pneg %p111
      %p256 = pneg %p108
      %p257 = scmp.lt.s32.totalorder %s22, 0
      %s258 = scalar_select %p257, %s22, 0
      %s259 = scalar_lea.vmem %s3, %s258
      %p260 = pneg %p137
      %p261 = pneg %p134
      %p262 = pneg %p167
      %p263 = pneg %p164
      %s264 = smul.u32 16, %s21
      %p265 = scmp.lt.s32.totalorder %s20, 3
      %s266 = scalar_select %p265, %s20, 3
      %p267 = scmp.lt.s32.totalorder %s264, 15
      %s268 = scalar_select %p267, %s264, 15
      %p269 = scmp.lt.s32.totalorder %s22, 0
      %s270 = scalar_select %p269, %s22, 0
      %s271 = sadd.s32 %s270, %s268
      %s272 = smul.addr %s266, 16
      %s273 = sadd.s32 %s271, %s272
      %s274 = smul.addr %s273, 4
      %s275 = scalar_lea.vmem %s4, %s274
      %s276 = smul.u32 16, %s21
      %p277 = scmp.lt.s32.totalorder %s20, 3
      %s278 = scalar_select %p277, %s20, 3
      %p279 = scmp.lt.s32.totalorder %s276, 15
      %s280 = scalar_select %p279, %s276, 15
      %s281 = smul.addr %s280, 8
      %s282 = smul.addr %s278, 128
      %s283 = sadd.s32 %s281, %s282
      %s284 = smul.addr %s283, 4
      %s285 = scalar_lea.vmem %s0, %s284
      %s286 = smul.u32 16, %s21
      %p287 = scmp.lt.s32.totalorder %s20, 3
      %s288 = scalar_select %p287, %s20, 3
      %p289 = scmp.lt.s32.totalorder %s22, 0
      %s290 = scalar_select %p289, %s22, 0
      %s291 = smul.addr %s288, 128
      %s292 = sadd.s32 %s290, %s291
      %s293 = smul.addr %s292, 4
      %s294 = scalar_lea.vmem %s1, %s293
      %p295 = scmp.lt.s32.totalorder %s22, 0
      %s296 = scalar_select %p295, %s22, 0
      %s297 = scalar_lea.vmem %s2, %s296
      %p298 = scmp.lt.s32.totalorder %s22, 0
      %s299 = scalar_select %p298, %s22, 0
      %s300 = scalar_lea.vmem %s3, %s299
      %s301 = smul.u32 16, %s21
      %p302 = scmp.lt.s32.totalorder %s20, 3
      %s303 = scalar_select %p302, %s20, 3
      %p304 = scmp.lt.s32.totalorder %s301, 15
      %s305 = scalar_select %p304, %s301, 15
      %p306 = scmp.lt.s32.totalorder %s22, 0
      %s307 = scalar_select %p306, %s22, 0
      %s308 = sadd.s32 %s307, %s305
      %s309 = smul.addr %s303, 16
      %s310 = sadd.s32 %s308, %s309
      %s311 = smul.addr %s310, 4
      %s312 = scalar_lea.vmem %s4, %s311
      %s313 = smul.u32 16, %s21
      %v314 = vld [vmem:[%s285] sm:$0xff]
      %v315 = vld [vmem:[%s285 + $0x8] sm:$0xff]
      %v316 = vld [vmem:[%s285 + $0x10] sm:$0xff]
      %v317 = vld [vmem:[%s285 + $0x18] sm:$0xff]
      %v318 = vld [vmem:[%s285 + $0x20] sm:$0xff]
      %v319 = vld [vmem:[%s285 + $0x28] sm:$0xff]
      %v320 = vld [vmem:[%s285 + $0x30] sm:$0xff]
      %v321 = vld [vmem:[%s285 + $0x38] sm:$0xff]
      %v322 = vld [vmem:[%s285 + $0x40] sm:$0xff]
      %v323 = vld [vmem:[%s285 + $0x48] sm:$0xff]
      %v324 = vld [vmem:[%s285 + $0x50] sm:$0xff]
      %v325 = vld [vmem:[%s285 + $0x58] sm:$0xff]
      %v326 = vld [vmem:[%s285 + $0x60] sm:$0xff]
      %v327 = vld [vmem:[%s285 + $0x68] sm:$0xff]
      %v328 = vld [vmem:[%s285 + $0x70] sm:$0xff]
      %v329 = vld [vmem:[%s285 + $0x78] sm:$0xff]
      %v330 = vld [vmem:[%s285 + $0x80] sm:$0xff]
      %v331 = vld [vmem:[%s285 + $0x88] sm:$0xff]
      %v332 = vld [vmem:[%s285 + $0x90] sm:$0xff]
      %v333 = vld [vmem:[%s285 + $0x98] sm:$0xff]
      %v334 = vld [vmem:[%s285 + $0xa0] sm:$0xff]
      %v335 = vld [vmem:[%s285 + $0xa8] sm:$0xff]
      %v336 = vld [vmem:[%s285 + $0xb0] sm:$0xff]
      %v337 = vld [vmem:[%s285 + $0xb8] sm:$0xff]
      %v338 = vld [vmem:[%s285 + $0xc0] sm:$0xff]
      %v339 = vld [vmem:[%s285 + $0xc8] sm:$0xff]
      %v340 = vld [vmem:[%s285 + $0xd0] sm:$0xff]
      %v341 = vld [vmem:[%s285 + $0xd8] sm:$0xff]
      %v342 = vld [vmem:[%s285 + $0xe0] sm:$0xff]
      %v343 = vld [vmem:[%s285 + $0xe8] sm:$0xff]
      %v344 = vld [vmem:[%s285 + $0xf0] sm:$0xff]
      %v345 = vld [vmem:[%s285 + $0xf8] sm:$0xff]
      %v346 = vld [vmem:[%s285 + $0x100] sm:$0xff]
      %v347 = vld [vmem:[%s285 + $0x108] sm:$0xff]
      %v348 = vld [vmem:[%s285 + $0x110] sm:$0xff]
      %v349 = vld [vmem:[%s285 + $0x118] sm:$0xff]
      %v350 = vld [vmem:[%s285 + $0x120] sm:$0xff]
      %v351 = vld [vmem:[%s285 + $0x128] sm:$0xff]
      %v352 = vld [vmem:[%s285 + $0x130] sm:$0xff]
      %v353 = vld [vmem:[%s285 + $0x138] sm:$0xff]
      %v354 = vld [vmem:[%s285 + $0x140] sm:$0xff]
      %v355 = vld [vmem:[%s285 + $0x148] sm:$0xff]
      %v356 = vld [vmem:[%s285 + $0x150] sm:$0xff]
      %v357 = vld [vmem:[%s285 + $0x158] sm:$0xff]
      %v358 = vld [vmem:[%s285 + $0x160] sm:$0xff]
      %v359 = vld [vmem:[%s285 + $0x168] sm:$0xff]
      %v360 = vld [vmem:[%s285 + $0x170] sm:$0xff]
      %v361 = vld [vmem:[%s285 + $0x178] sm:$0xff]
      %v362 = vld [vmem:[%s285 + $0x180] sm:$0xff]
      %v363 = vld [vmem:[%s285 + $0x188] sm:$0xff]
      %v364 = vld [vmem:[%s285 + $0x190] sm:$0xff]
      %v365 = vld [vmem:[%s285 + $0x198] sm:$0xff]
      %v366 = vld [vmem:[%s285 + $0x1a0] sm:$0xff]
      %v367 = vld [vmem:[%s285 + $0x1a8] sm:$0xff]
      %v368 = vld [vmem:[%s285 + $0x1b0] sm:$0xff]
      %v369 = vld [vmem:[%s285 + $0x1b8] sm:$0xff]
      %v370 = vld [vmem:[%s285 + $0x1c0] sm:$0xff]
      %v371 = vld [vmem:[%s285 + $0x1c8] sm:$0xff]
      %v372 = vld [vmem:[%s285 + $0x1d0] sm:$0xff]
      %v373 = vld [vmem:[%s285 + $0x1d8] sm:$0xff]
      %v374 = vld [vmem:[%s285 + $0x1e0] sm:$0xff]
      %v375 = vld [vmem:[%s285 + $0x1e8] sm:$0xff]
      %v376 = vld [vmem:[%s285 + $0x1f0] sm:$0xff]
      %v377 = vld [vmem:[%s285 + $0x1f8] sm:$0xff]
      %v378 = vld [vmem:[%s294] sm:$0xf]
      %v379 = vld [vmem:[%s294 + $0x4] sm:$0xf]
      %v380 = vld [vmem:[%s294 + $0x8] sm:$0xf]
      %v381 = vld [vmem:[%s294 + $0xc] sm:$0xf]
      %v382 = vld [vmem:[%s294 + $0x10] sm:$0xf]
      %v383 = vld [vmem:[%s294 + $0x14] sm:$0xf]
      %v384 = vld [vmem:[%s294 + $0x18] sm:$0xf]
      %v385 = vld [vmem:[%s294 + $0x1c] sm:$0xf]
      %v386 = vld [vmem:[%s294 + $0x20] sm:$0xf]
      %v387 = vld [vmem:[%s294 + $0x24] sm:$0xf]
      %v388 = vld [vmem:[%s294 + $0x28] sm:$0xf]
      %v389 = vld [vmem:[%s294 + $0x2c] sm:$0xf]
      %v390 = vld [vmem:[%s294 + $0x30] sm:$0xf]
      %v391 = vld [vmem:[%s294 + $0x34] sm:$0xf]
      %v392 = vld [vmem:[%s294 + $0x38] sm:$0xf]
      %v393 = vld [vmem:[%s294 + $0x3c] sm:$0xf]
      %v394 = vld [vmem:[%s294 + $0x40] sm:$0xf]
      %v395 = vld [vmem:[%s294 + $0x44] sm:$0xf]
      %v396 = vld [vmem:[%s294 + $0x48] sm:$0xf]
      %v397 = vld [vmem:[%s294 + $0x4c] sm:$0xf]
      %v398 = vld [vmem:[%s294 + $0x50] sm:$0xf]
      %v399 = vld [vmem:[%s294 + $0x54] sm:$0xf]
      %v400 = vld [vmem:[%s294 + $0x58] sm:$0xf]
      %v401 = vld [vmem:[%s294 + $0x5c] sm:$0xf]
      %v402 = vld [vmem:[%s294 + $0x60] sm:$0xf]
      %v403 = vld [vmem:[%s294 + $0x64] sm:$0xf]
      %v404 = vld [vmem:[%s294 + $0x68] sm:$0xf]
      %v405 = vld [vmem:[%s294 + $0x6c] sm:$0xf]
      %v406 = vld [vmem:[%s294 + $0x70] sm:$0xf]
      %v407 = vld [vmem:[%s294 + $0x74] sm:$0xf]
      %v408 = vld [vmem:[%s294 + $0x78] sm:$0xf]
      %v409 = vld [vmem:[%s294 + $0x7c] sm:$0xf]
      %v410 = vld [vmem:[%s294 + $0x80] sm:$0xf]
      %v411 = vld [vmem:[%s294 + $0x84] sm:$0xf]
      %v412 = vld [vmem:[%s294 + $0x88] sm:$0xf]
      %v413 = vld [vmem:[%s294 + $0x8c] sm:$0xf]
      %v414 = vld [vmem:[%s294 + $0x90] sm:$0xf]
      %v415 = vld [vmem:[%s294 + $0x94] sm:$0xf]
      %v416 = vld [vmem:[%s294 + $0x98] sm:$0xf]
      %v417 = vld [vmem:[%s294 + $0x9c] sm:$0xf]
      %v418 = vld [vmem:[%s294 + $0xa0] sm:$0xf]
      %v419 = vld [vmem:[%s294 + $0xa4] sm:$0xf]
      %v420 = vld [vmem:[%s294 + $0xa8] sm:$0xf]
      %v421 = vld [vmem:[%s294 + $0xac] sm:$0xf]
      %v422 = vld [vmem:[%s294 + $0xb0] sm:$0xf]
      %v423 = vld [vmem:[%s294 + $0xb4] sm:$0xf]
      %v424 = vld [vmem:[%s294 + $0xb8] sm:$0xf]
      %v425 = vld [vmem:[%s294 + $0xbc] sm:$0xf]
      %v426 = vld [vmem:[%s294 + $0xc0] sm:$0xf]
      %v427 = vld [vmem:[%s294 + $0xc4] sm:$0xf]
      %v428 = vld [vmem:[%s294 + $0xc8] sm:$0xf]
      %v429 = vld [vmem:[%s294 + $0xcc] sm:$0xf]
      %v430 = vld [vmem:[%s294 + $0xd0] sm:$0xf]
      %v431 = vld [vmem:[%s294 + $0xd4] sm:$0xf]
      %v432 = vld [vmem:[%s294 + $0xd8] sm:$0xf]
      %v433 = vld [vmem:[%s294 + $0xdc] sm:$0xf]
      %v434 = vld [vmem:[%s294 + $0xe0] sm:$0xf]
      %v435 = vld [vmem:[%s294 + $0xe4] sm:$0xf]
      %v436 = vld [vmem:[%s294 + $0xe8] sm:$0xf]
      %v437 = vld [vmem:[%s294 + $0xec] sm:$0xf]
      %v438 = vld [vmem:[%s294 + $0xf0] sm:$0xf]
      %v439 = vld [vmem:[%s294 + $0xf4] sm:$0xf]
      %v440 = vld [vmem:[%s294 + $0xf8] sm:$0xf]
      %v441 = vld [vmem:[%s294 + $0xfc] sm:$0xf]
      %v442 = vld [vmem:[%s294 + $0x100] sm:$0xf]
      %v443 = vld [vmem:[%s294 + $0x104] sm:$0xf]
      %v444 = vld [vmem:[%s294 + $0x108] sm:$0xf]
      %v445 = vld [vmem:[%s294 + $0x10c] sm:$0xf]
      %v446 = vld [vmem:[%s294 + $0x110] sm:$0xf]
      %v447 = vld [vmem:[%s294 + $0x114] sm:$0xf]
      %v448 = vld [vmem:[%s294 + $0x118] sm:$0xf]
      %v449 = vld [vmem:[%s294 + $0x11c] sm:$0xf]
      %v450 = vld [vmem:[%s294 + $0x120] sm:$0xf]
      %v451 = vld [vmem:[%s294 + $0x124] sm:$0xf]
      %v452 = vld [vmem:[%s294 + $0x128] sm:$0xf]
      %v453 = vld [vmem:[%s294 + $0x12c] sm:$0xf]
      %v454 = vld [vmem:[%s294 + $0x130] sm:$0xf]
      %v455 = vld [vmem:[%s294 + $0x134] sm:$0xf]
      %v456 = vld [vmem:[%s294 + $0x138] sm:$0xf]
      %v457 = vld [vmem:[%s294 + $0x13c] sm:$0xf]
      %v458 = vld [vmem:[%s294 + $0x140] sm:$0xf]
      %v459 = vld [vmem:[%s294 + $0x144] sm:$0xf]
      %v460 = vld [vmem:[%s294 + $0x148] sm:$0xf]
      %v461 = vld [vmem:[%s294 + $0x14c] sm:$0xf]
      %v462 = vld [vmem:[%s294 + $0x150] sm:$0xf]
      %v463 = vld [vmem:[%s294 + $0x154] sm:$0xf]
      %v464 = vld [vmem:[%s294 + $0x158] sm:$0xf]
      %v465 = vld [vmem:[%s294 + $0x15c] sm:$0xf]
      %v466 = vld [vmem:[%s294 + $0x160] sm:$0xf]
      %v467 = vld [vmem:[%s294 + $0x164] sm:$0xf]
      %v468 = vld [vmem:[%s294 + $0x168] sm:$0xf]
      %v469 = vld [vmem:[%s294 + $0x16c] sm:$0xf]
      %v470 = vld [vmem:[%s294 + $0x170] sm:$0xf]
      %v471 = vld [vmem:[%s294 + $0x174] sm:$0xf]
      %v472 = vld [vmem:[%s294 + $0x178] sm:$0xf]
      %v473 = vld [vmem:[%s294 + $0x17c] sm:$0xf]
      %v474 = vld [vmem:[%s294 + $0x180] sm:$0xf]
      %v475 = vld [vmem:[%s294 + $0x184] sm:$0xf]
      %v476 = vld [vmem:[%s294 + $0x188] sm:$0xf]
      %v477 = vld [vmem:[%s294 + $0x18c] sm:$0xf]
      %v478 = vld [vmem:[%s294 + $0x190] sm:$0xf]
      %v479 = vld [vmem:[%s294 + $0x194] sm:$0xf]
      %v480 = vld [vmem:[%s294 + $0x198] sm:$0xf]
      %v481 = vld [vmem:[%s294 + $0x19c] sm:$0xf]
      %v482 = vld [vmem:[%s294 + $0x1a0] sm:$0xf]
      %v483 = vld [vmem:[%s294 + $0x1a4] sm:$0xf]
      %v484 = vld [vmem:[%s294 + $0x1a8] sm:$0xf]
      %v485 = vld [vmem:[%s294 + $0x1ac] sm:$0xf]
      %v486 = vld [vmem:[%s294 + $0x1b0] sm:$0xf]
      %v487 = vld [vmem:[%s294 + $0x1b4] sm:$0xf]
      %v488 = vld [vmem:[%s294 + $0x1b8] sm:$0xf]
      %v489 = vld [vmem:[%s294 + $0x1bc] sm:$0xf]
      %v490 = vld [vmem:[%s294 + $0x1c0] sm:$0xf]
      %v491 = vld [vmem:[%s294 + $0x1c4] sm:$0xf]
      %v492 = vld [vmem:[%s294 + $0x1c8] sm:$0xf]
      %v493 = vld [vmem:[%s294 + $0x1cc] sm:$0xf]
      %v494 = vld [vmem:[%s294 + $0x1d0] sm:$0xf]
      %v495 = vld [vmem:[%s294 + $0x1d4] sm:$0xf]
      %v496 = vld [vmem:[%s294 + $0x1d8] sm:$0xf]
      %v497 = vld [vmem:[%s294 + $0x1dc] sm:$0xf]
      %v498 = vld [vmem:[%s294 + $0x1e0] sm:$0xf]
      %v499 = vld [vmem:[%s294 + $0x1e4] sm:$0xf]
      %v500 = vld [vmem:[%s294 + $0x1e8] sm:$0xf]
      %v501 = vld [vmem:[%s294 + $0x1ec] sm:$0xf]
      %v502 = vld [vmem:[%s294 + $0x1f0] sm:$0xf]
      %v503 = vld [vmem:[%s294 + $0x1f4] sm:$0xf]
      %v504 = vld [vmem:[%s294 + $0x1f8] sm:$0xf]
      %v505 = vld [vmem:[%s294 + $0x1fc] sm:$0xf]
      %v570 = vunpack.c.l.b16 %v314
      %v571 = vunpack.c.h.b16 %v314
      %v572 = vunpack.c.l.b16 %v315
      %v573 = vunpack.c.h.b16 %v315
      %v574 = vunpack.c.l.b16 %v316
      %v575 = vunpack.c.h.b16 %v316
      %v576 = vunpack.c.l.b16 %v317
      %v577 = vunpack.c.h.b16 %v317
      %v578 = vunpack.c.l.b16 %v318
      %v579 = vunpack.c.h.b16 %v318
      %v580 = vunpack.c.l.b16 %v319
      %v581 = vunpack.c.h.b16 %v319
      %v582 = vunpack.c.l.b16 %v320
      %v583 = vunpack.c.h.b16 %v320
      %v584 = vunpack.c.l.b16 %v321
      %v585 = vunpack.c.h.b16 %v321
      %v586 = vunpack.c.l.b16 %v322
      %v587 = vunpack.c.h.b16 %v322
      %v588 = vunpack.c.l.b16 %v323
      %v589 = vunpack.c.h.b16 %v323
      %v590 = vunpack.c.l.b16 %v324
      %v591 = vunpack.c.h.b16 %v324
      %v592 = vunpack.c.l.b16 %v325
      %v593 = vunpack.c.h.b16 %v325
      %v594 = vunpack.c.l.b16 %v326
      %v595 = vunpack.c.h.b16 %v326
      %v596 = vunpack.c.l.b16 %v327
      %v597 = vunpack.c.h.b16 %v327
      %v598 = vunpack.c.l.b16 %v328
      %v599 = vunpack.c.h.b16 %v328
      %v600 = vunpack.c.l.b16 %v329
      %v601 = vunpack.c.h.b16 %v329
      %v602 = vunpack.c.l.b16 %v330
      %v603 = vunpack.c.h.b16 %v330
      %v604 = vunpack.c.l.b16 %v331
      %v605 = vunpack.c.h.b16 %v331
      %v606 = vunpack.c.l.b16 %v332
      %v607 = vunpack.c.h.b16 %v332
      %v608 = vunpack.c.l.b16 %v333
      %v609 = vunpack.c.h.b16 %v333
      %v610 = vunpack.c.l.b16 %v334
      %v611 = vunpack.c.h.b16 %v334
      %v612 = vunpack.c.l.b16 %v335
      %v613 = vunpack.c.h.b16 %v335
      %v614 = vunpack.c.l.b16 %v336
      %v615 = vunpack.c.h.b16 %v336
      %v616 = vunpack.c.l.b16 %v337
      %v617 = vunpack.c.h.b16 %v337
      %v618 = vunpack.c.l.b16 %v338
      %v619 = vunpack.c.h.b16 %v338
      %v620 = vunpack.c.l.b16 %v339
      %v621 = vunpack.c.h.b16 %v339
      %v622 = vunpack.c.l.b16 %v340
      %v623 = vunpack.c.h.b16 %v340
      %v624 = vunpack.c.l.b16 %v341
      %v625 = vunpack.c.h.b16 %v341
      %v626 = vunpack.c.l.b16 %v342
      %v627 = vunpack.c.h.b16 %v342
      %v628 = vunpack.c.l.b16 %v343
      %v629 = vunpack.c.h.b16 %v343
      %v630 = vunpack.c.l.b16 %v344
      %v631 = vunpack.c.h.b16 %v344
      %v632 = vunpack.c.l.b16 %v345
      %v633 = vunpack.c.h.b16 %v345
      %v634 = vunpack.c.l.b16 %v346
      %v635 = vunpack.c.h.b16 %v346
      %v636 = vunpack.c.l.b16 %v347
      %v637 = vunpack.c.h.b16 %v347
      %v638 = vunpack.c.l.b16 %v348
      %v639 = vunpack.c.h.b16 %v348
      %v640 = vunpack.c.l.b16 %v349
      %v641 = vunpack.c.h.b16 %v349
      %v642 = vunpack.c.l.b16 %v350
      %v643 = vunpack.c.h.b16 %v350
      %v644 = vunpack.c.l.b16 %v351
      %v645 = vunpack.c.h.b16 %v351
      %v646 = vunpack.c.l.b16 %v352
      %v647 = vunpack.c.h.b16 %v352
      %v648 = vunpack.c.l.b16 %v353
      %v649 = vunpack.c.h.b16 %v353
      %v650 = vunpack.c.l.b16 %v354
      %v651 = vunpack.c.h.b16 %v354
      %v652 = vunpack.c.l.b16 %v355
      %v653 = vunpack.c.h.b16 %v355
      %v654 = vunpack.c.l.b16 %v356
      %v655 = vunpack.c.h.b16 %v356
      %v656 = vunpack.c.l.b16 %v357
      %v657 = vunpack.c.h.b16 %v357
      %v658 = vunpack.c.l.b16 %v358
      %v659 = vunpack.c.h.b16 %v358
      %v660 = vunpack.c.l.b16 %v359
      %v661 = vunpack.c.h.b16 %v359
      %v662 = vunpack.c.l.b16 %v360
      %v663 = vunpack.c.h.b16 %v360
      %v664 = vunpack.c.l.b16 %v361
      %v665 = vunpack.c.h.b16 %v361
      %v666 = vunpack.c.l.b16 %v362
      %v667 = vunpack.c.h.b16 %v362
      %v668 = vunpack.c.l.b16 %v363
      %v669 = vunpack.c.h.b16 %v363
      %v670 = vunpack.c.l.b16 %v364
      %v671 = vunpack.c.h.b16 %v364
      %v672 = vunpack.c.l.b16 %v365
      %v673 = vunpack.c.h.b16 %v365
      %v674 = vunpack.c.l.b16 %v366
      %v675 = vunpack.c.h.b16 %v366
      %v676 = vunpack.c.l.b16 %v367
      %v677 = vunpack.c.h.b16 %v367
      %v678 = vunpack.c.l.b16 %v368
      %v679 = vunpack.c.h.b16 %v368
      %v680 = vunpack.c.l.b16 %v369
      %v681 = vunpack.c.h.b16 %v369
      %v682 = vunpack.c.l.b16 %v370
      %v683 = vunpack.c.h.b16 %v370
      %v684 = vunpack.c.l.b16 %v371
      %v685 = vunpack.c.h.b16 %v371
      %v686 = vunpack.c.l.b16 %v372
      %v687 = vunpack.c.h.b16 %v372
      %v688 = vunpack.c.l.b16 %v373
      %v689 = vunpack.c.h.b16 %v373
      %v690 = vunpack.c.l.b16 %v374
      %v691 = vunpack.c.h.b16 %v374
      %v692 = vunpack.c.l.b16 %v375
      %v693 = vunpack.c.h.b16 %v375
      %v694 = vunpack.c.l.b16 %v376
      %v695 = vunpack.c.h.b16 %v376
      %v696 = vunpack.c.l.b16 %v377
      %v697 = vunpack.c.h.b16 %v377
      %v698 = vpack.c.b16 %v578, %v570
      %v699 = vpack.c.b16 %v579, %v571
      %v700 = vpack.c.b16 %v580, %v572
      %v701 = vpack.c.b16 %v581, %v573
      %v702 = vpack.c.b16 %v582, %v574
      %v703 = vpack.c.b16 %v583, %v575
      %v704 = vpack.c.b16 %v584, %v576
      %v705 = vpack.c.b16 %v585, %v577
      %v706 = vpack.c.b16 %v594, %v586
      %v707 = vpack.c.b16 %v595, %v587
      %v708 = vpack.c.b16 %v596, %v588
      %v709 = vpack.c.b16 %v597, %v589
      %v710 = vpack.c.b16 %v598, %v590
      %v711 = vpack.c.b16 %v599, %v591
      %v712 = vpack.c.b16 %v600, %v592
      %v713 = vpack.c.b16 %v601, %v593
      %v714 = vpack.c.b16 %v610, %v602
      %v715 = vpack.c.b16 %v611, %v603
      %v716 = vpack.c.b16 %v612, %v604
      %v717 = vpack.c.b16 %v613, %v605
      %v718 = vpack.c.b16 %v614, %v606
      %v719 = vpack.c.b16 %v615, %v607
      %v720 = vpack.c.b16 %v616, %v608
      %v721 = vpack.c.b16 %v617, %v609
      %v722 = vpack.c.b16 %v626, %v618
      %v723 = vpack.c.b16 %v627, %v619
      %v724 = vpack.c.b16 %v628, %v620
      %v725 = vpack.c.b16 %v629, %v621
      %v726 = vpack.c.b16 %v630, %v622
      %v727 = vpack.c.b16 %v631, %v623
      %v728 = vpack.c.b16 %v632, %v624
      %v729 = vpack.c.b16 %v633, %v625
      %v730 = vpack.c.b16 %v642, %v634
      %v731 = vpack.c.b16 %v643, %v635
      %v732 = vpack.c.b16 %v644, %v636
      %v733 = vpack.c.b16 %v645, %v637
      %v734 = vpack.c.b16 %v646, %v638
      %v735 = vpack.c.b16 %v647, %v639
      %v736 = vpack.c.b16 %v648, %v640
      %v737 = vpack.c.b16 %v649, %v641
      %v738 = vpack.c.b16 %v658, %v650
      %v739 = vpack.c.b16 %v659, %v651
      %v740 = vpack.c.b16 %v660, %v652
      %v741 = vpack.c.b16 %v661, %v653
      %v742 = vpack.c.b16 %v662, %v654
      %v743 = vpack.c.b16 %v663, %v655
      %v744 = vpack.c.b16 %v664, %v656
      %v745 = vpack.c.b16 %v665, %v657
      %v746 = vpack.c.b16 %v674, %v666
      %v747 = vpack.c.b16 %v675, %v667
      %v748 = vpack.c.b16 %v676, %v668
      %v749 = vpack.c.b16 %v677, %v669
      %v750 = vpack.c.b16 %v678, %v670
      %v751 = vpack.c.b16 %v679, %v671
      %v752 = vpack.c.b16 %v680, %v672
      %v753 = vpack.c.b16 %v681, %v673
      %v754 = vpack.c.b16 %v690, %v682
      %v755 = vpack.c.b16 %v691, %v683
      %v756 = vpack.c.b16 %v692, %v684
      %v757 = vpack.c.b16 %v693, %v685
      %v758 = vpack.c.b16 %v694, %v686
      %v759 = vpack.c.b16 %v695, %v687
      %v760 = vpack.c.b16 %v696, %v688
      %v761 = vpack.c.b16 %v697, %v689
      %v954 = vunpack.c.l.b16 %v378
      %v955 = vunpack.c.l.b16 %v379
      %v956 = vunpack.c.l.b16 %v380
      %v957 = vunpack.c.l.b16 %v381
      %v958 = vunpack.c.l.b16 %v382
      %v959 = vunpack.c.l.b16 %v383
      %v960 = vunpack.c.l.b16 %v384
      %v961 = vunpack.c.l.b16 %v385
      %v962 = vunpack.c.l.b16 %v386
      %v963 = vunpack.c.l.b16 %v387
      %v964 = vunpack.c.l.b16 %v388
      %v965 = vunpack.c.l.b16 %v389
      %v966 = vunpack.c.l.b16 %v390
      %v967 = vunpack.c.l.b16 %v391
      %v968 = vunpack.c.l.b16 %v392
      %v969 = vunpack.c.l.b16 %v393
      %v970 = vunpack.c.l.b16 %v394
      %v971 = vunpack.c.l.b16 %v395
      %v972 = vunpack.c.l.b16 %v396
      %v973 = vunpack.c.l.b16 %v397
      %v974 = vunpack.c.l.b16 %v398
      %v975 = vunpack.c.l.b16 %v399
      %v976 = vunpack.c.l.b16 %v400
      %v977 = vunpack.c.l.b16 %v401
      %v978 = vunpack.c.l.b16 %v402
      %v979 = vunpack.c.l.b16 %v403
      %v980 = vunpack.c.l.b16 %v404
      %v981 = vunpack.c.l.b16 %v405
      %v982 = vunpack.c.l.b16 %v406
      %v983 = vunpack.c.l.b16 %v407
      %v984 = vunpack.c.l.b16 %v408
      %v985 = vunpack.c.l.b16 %v409
      %v986 = vunpack.c.l.b16 %v410
      %v987 = vunpack.c.l.b16 %v411
      %v988 = vunpack.c.l.b16 %v412
      %v989 = vunpack.c.l.b16 %v413
      %v990 = vunpack.c.l.b16 %v414
      %v991 = vunpack.c.l.b16 %v415
      %v992 = vunpack.c.l.b16 %v416
      %v993 = vunpack.c.l.b16 %v417
      %v994 = vunpack.c.l.b16 %v418
      %v995 = vunpack.c.l.b16 %v419
      %v996 = vunpack.c.l.b16 %v420
      %v997 = vunpack.c.l.b16 %v421
      %v998 = vunpack.c.l.b16 %v422
      %v999 = vunpack.c.l.b16 %v423
      %v1000 = vunpack.c.l.b16 %v424
      %v1001 = vunpack.c.l.b16 %v425
      %v1002 = vunpack.c.l.b16 %v426
      %v1003 = vunpack.c.l.b16 %v427
      %v1004 = vunpack.c.l.b16 %v428
      %v1005 = vunpack.c.l.b16 %v429
      %v1006 = vunpack.c.l.b16 %v430
      %v1007 = vunpack.c.l.b16 %v431
      %v1008 = vunpack.c.l.b16 %v432
      %v1009 = vunpack.c.l.b16 %v433
      %v1010 = vunpack.c.l.b16 %v434
      %v1011 = vunpack.c.l.b16 %v435
      %v1012 = vunpack.c.l.b16 %v436
      %v1013 = vunpack.c.l.b16 %v437
      %v1014 = vunpack.c.l.b16 %v438
      %v1015 = vunpack.c.l.b16 %v439
      %v1016 = vunpack.c.l.b16 %v440
      %v1017 = vunpack.c.l.b16 %v441
      %v1018 = vunpack.c.l.b16 %v442
      %v1019 = vunpack.c.l.b16 %v443
      %v1020 = vunpack.c.l.b16 %v444
      %v1021 = vunpack.c.l.b16 %v445
      %v1022 = vunpack.c.l.b16 %v446
      %v1023 = vunpack.c.l.b16 %v447
      %v1024 = vunpack.c.l.b16 %v448
      %v1025 = vunpack.c.l.b16 %v449
      %v1026 = vunpack.c.l.b16 %v450
      %v1027 = vunpack.c.l.b16 %v451
      %v1028 = vunpack.c.l.b16 %v452
      %v1029 = vunpack.c.l.b16 %v453
      %v1030 = vunpack.c.l.b16 %v454
      %v1031 = vunpack.c.l.b16 %v455
      %v1032 = vunpack.c.l.b16 %v456
      %v1033 = vunpack.c.l.b16 %v457
      %v1034 = vunpack.c.l.b16 %v458
      %v1035 = vunpack.c.l.b16 %v459
      %v1036 = vunpack.c.l.b16 %v460
      %v1037 = vunpack.c.l.b16 %v461
      %v1038 = vunpack.c.l.b16 %v462
      %v1039 = vunpack.c.l.b16 %v463
      %v1040 = vunpack.c.l.b16 %v464
      %v1041 = vunpack.c.l.b16 %v465
      %v1042 = vunpack.c.l.b16 %v466
      %v1043 = vunpack.c.l.b16 %v467
      %v1044 = vunpack.c.l.b16 %v468
      %v1045 = vunpack.c.l.b16 %v469
      %v1046 = vunpack.c.l.b16 %v470
      %v1047 = vunpack.c.l.b16 %v471
      %v1048 = vunpack.c.l.b16 %v472
      %v1049 = vunpack.c.l.b16 %v473
      %v1050 = vunpack.c.l.b16 %v474
      %v1051 = vunpack.c.l.b16 %v475
      %v1052 = vunpack.c.l.b16 %v476
      %v1053 = vunpack.c.l.b16 %v477
      %v1054 = vunpack.c.l.b16 %v478
      %v1055 = vunpack.c.l.b16 %v479
      %v1056 = vunpack.c.l.b16 %v480
      %v1057 = vunpack.c.l.b16 %v481
      %v1058 = vunpack.c.l.b16 %v482
      %v1059 = vunpack.c.l.b16 %v483
      %v1060 = vunpack.c.l.b16 %v484
      %v1061 = vunpack.c.l.b16 %v485
      %v1062 = vunpack.c.l.b16 %v486
      %v1063 = vunpack.c.l.b16 %v487
      %v1064 = vunpack.c.l.b16 %v488
      %v1065 = vunpack.c.l.b16 %v489
      %v1066 = vunpack.c.l.b16 %v490
      %v1067 = vunpack.c.l.b16 %v491
      %v1068 = vunpack.c.l.b16 %v492
      %v1069 = vunpack.c.l.b16 %v493
      %v1070 = vunpack.c.l.b16 %v494
      %v1071 = vunpack.c.l.b16 %v495
      %v1072 = vunpack.c.l.b16 %v496
      %v1073 = vunpack.c.l.b16 %v497
      %v1074 = vunpack.c.l.b16 %v498
      %v1075 = vunpack.c.l.b16 %v499
      %v1076 = vunpack.c.l.b16 %v500
      %v1077 = vunpack.c.l.b16 %v501
      %v1078 = vunpack.c.l.b16 %v502
      %v1079 = vunpack.c.l.b16 %v503
      %v1080 = vunpack.c.l.b16 %v504
      %v1081 = vunpack.c.l.b16 %v505
      %v1082 = vpack.c.b16 %v955, %v954
      %v1083 = vpack.c.b16 %v957, %v956
      %v1084 = vpack.c.b16 %v959, %v958
      %v1085 = vpack.c.b16 %v961, %v960
      %v1086 = vpack.c.b16 %v963, %v962
      %v1087 = vpack.c.b16 %v965, %v964
      %v1088 = vpack.c.b16 %v967, %v966
      %v1089 = vpack.c.b16 %v969, %v968
      %v1090 = vpack.c.b16 %v971, %v970
      %v1091 = vpack.c.b16 %v973, %v972
      %v1092 = vpack.c.b16 %v975, %v974
      %v1093 = vpack.c.b16 %v977, %v976
      %v1094 = vpack.c.b16 %v979, %v978
      %v1095 = vpack.c.b16 %v981, %v980
      %v1096 = vpack.c.b16 %v983, %v982
      %v1097 = vpack.c.b16 %v985, %v984
      %v1098 = vpack.c.b16 %v987, %v986
      %v1099 = vpack.c.b16 %v989, %v988
      %v1100 = vpack.c.b16 %v991, %v990
      %v1101 = vpack.c.b16 %v993, %v992
      %v1102 = vpack.c.b16 %v995, %v994
      %v1103 = vpack.c.b16 %v997, %v996
      %v1104 = vpack.c.b16 %v999, %v998
      %v1105 = vpack.c.b16 %v1001, %v1000
      %v1106 = vpack.c.b16 %v1003, %v1002
      %v1107 = vpack.c.b16 %v1005, %v1004
      %v1108 = vpack.c.b16 %v1007, %v1006
      %v1109 = vpack.c.b16 %v1009, %v1008
      %v1110 = vpack.c.b16 %v1011, %v1010
      %v1111 = vpack.c.b16 %v1013, %v1012
      %v1112 = vpack.c.b16 %v1015, %v1014
      %v1113 = vpack.c.b16 %v1017, %v1016
      %v1114 = vpack.c.b16 %v1019, %v1018
      %v1115 = vpack.c.b16 %v1021, %v1020
      %v1116 = vpack.c.b16 %v1023, %v1022
      %v1117 = vpack.c.b16 %v1025, %v1024
      %v1118 = vpack.c.b16 %v1027, %v1026
      %v1119 = vpack.c.b16 %v1029, %v1028
      %v1120 = vpack.c.b16 %v1031, %v1030
      %v1121 = vpack.c.b16 %v1033, %v1032
      %v1122 = vpack.c.b16 %v1035, %v1034
      %v1123 = vpack.c.b16 %v1037, %v1036
      %v1124 = vpack.c.b16 %v1039, %v1038
      %v1125 = vpack.c.b16 %v1041, %v1040
      %v1126 = vpack.c.b16 %v1043, %v1042
      %v1127 = vpack.c.b16 %v1045, %v1044
      %v1128 = vpack.c.b16 %v1047, %v1046
      %v1129 = vpack.c.b16 %v1049, %v1048
      %v1130 = vpack.c.b16 %v1051, %v1050
      %v1131 = vpack.c.b16 %v1053, %v1052
      %v1132 = vpack.c.b16 %v1055, %v1054
      %v1133 = vpack.c.b16 %v1057, %v1056
      %v1134 = vpack.c.b16 %v1059, %v1058
      %v1135 = vpack.c.b16 %v1061, %v1060
      %v1136 = vpack.c.b16 %v1063, %v1062
      %v1137 = vpack.c.b16 %v1065, %v1064
      %v1138 = vpack.c.b16 %v1067, %v1066
      %v1139 = vpack.c.b16 %v1069, %v1068
      %v1140 = vpack.c.b16 %v1071, %v1070
      %v1141 = vpack.c.b16 %v1073, %v1072
      %v1142 = vpack.c.b16 %v1075, %v1074
      %v1143 = vpack.c.b16 %v1077, %v1076
      %v1144 = vpack.c.b16 %v1079, %v1078
      %v1145 = vpack.c.b16 %v1081, %v1080
      %1210 = vmatpush.bf16.msra.mxu0 %v1089
      %1211 = vmatpush.bf16.msra.mxu0 %v1088
      %1212 = vmatpush.bf16.msra.mxu0 %v1087
      %1213 = vmatpush.bf16.msra.mxu0 %v1086
      %1214 = vmatpush.bf16.msra.mxu0 %v1085
      %1215 = vmatpush.bf16.msra.mxu0 %v1084
      %1216 = vmatpush.bf16.msra.mxu0 %v1083
      %1217 = vmatpush.bf16.msra.mxu0 %v1082
      %1218 = vmatmul.bf16.gmra.mxu0 %v698
      %v1219 = vpop.f32.mrf.mxu0
      %v1220 = vadd.f32 0.0, %v1219
      %v1221 = vpop.f32.mrf.mxu0
      %v1222 = vadd.f32 0.0, %v1221
      %1223 = vmatmul.bf16.gmra.mxu0 %v706
      %v1224 = vpop.f32.mrf.mxu0
      %v1225 = vadd.f32 0.0, %v1224
      %v1226 = vpop.f32.mrf.mxu0
      %v1227 = vadd.f32 0.0, %v1226
      %1228 = vmatmul.bf16.gmra.mxu0 %v714
      %v1229 = vpop.f32.mrf.mxu0
      %v1230 = vadd.f32 0.0, %v1229
      %v1231 = vpop.f32.mrf.mxu0
      %v1232 = vadd.f32 0.0, %v1231
      %1233 = vmatmul.bf16.gmra.mxu0 %v722
      %v1234 = vpop.f32.mrf.mxu0
      %v1235 = vadd.f32 0.0, %v1234
      %v1236 = vpop.f32.mrf.mxu0
      %v1237 = vadd.f32 0.0, %v1236
      %1238 = vmatmul.bf16.gmra.mxu0 %v730
      %v1239 = vpop.f32.mrf.mxu0
      %v1240 = vadd.f32 0.0, %v1239
      %v1241 = vpop.f32.mrf.mxu0
      %v1242 = vadd.f32 0.0, %v1241
      %1243 = vmatmul.bf16.gmra.mxu0 %v738
      %v1244 = vpop.f32.mrf.mxu0
      %v1245 = vadd.f32 0.0, %v1244
      %v1246 = vpop.f32.mrf.mxu0
      %v1247 = vadd.f32 0.0, %v1246
      %1248 = vmatmul.bf16.gmra.mxu0 %v746
      %v1249 = vpop.f32.mrf.mxu0
      %v1250 = vadd.f32 0.0, %v1249
      %v1251 = vpop.f32.mrf.mxu0
      %v1252 = vadd.f32 0.0, %v1251
      %1253 = vmatmul.bf16.gmra.mxu0 %v754
      %v1254 = vpop.f32.mrf.mxu0
      %v1255 = vadd.f32 0.0, %v1254
      %v1256 = vpop.f32.mrf.mxu0
      %v1257 = vadd.f32 0.0, %v1256
      %1258 = vdwg.mxu0
      %1259 = vmatpush.bf16.msra.mxu0 %v1097
      %1260 = vmatpush.bf16.msra.mxu0 %v1096
      %1261 = vmatpush.bf16.msra.mxu0 %v1095
      %1262 = vmatpush.bf16.msra.mxu0 %v1094
      %1263 = vmatpush.bf16.msra.mxu0 %v1093
      %1264 = vmatpush.bf16.msra.mxu0 %v1092
      %1265 = vmatpush.bf16.msra.mxu0 %v1091
      %1266 = vmatpush.bf16.msra.mxu0 %v1090
      %1267 = vmatmul.bf16.gmra.mxu0 %v699
      %v1268 = vpop.f32.mrf.mxu0
      %v1269 = vadd.f32 %v1220, %v1268
      %v1270 = vpop.f32.mrf.mxu0
      %v1271 = vadd.f32 %v1222, %v1270
      %1272 = vmatmul.bf16.gmra.mxu0 %v707
      %v1273 = vpop.f32.mrf.mxu0
      %v1274 = vadd.f32 %v1225, %v1273
      %v1275 = vpop.f32.mrf.mxu0
      %v1276 = vadd.f32 %v1227, %v1275
      %1277 = vmatmul.bf16.gmra.mxu0 %v715
      %v1278 = vpop.f32.mrf.mxu0
      %v1279 = vadd.f32 %v1230, %v1278
      %v1280 = vpop.f32.mrf.mxu0
      %v1281 = vadd.f32 %v1232, %v1280
      %1282 = vmatmul.bf16.gmra.mxu0 %v723
      %v1283 = vpop.f32.mrf.mxu0
      %v1284 = vadd.f32 %v1235, %v1283
      %v1285 = vpop.f32.mrf.mxu0
      %v1286 = vadd.f32 %v1237, %v1285
      %1287 = vmatmul.bf16.gmra.mxu0 %v731
      %v1288 = vpop.f32.mrf.mxu0
      %v1289 = vadd.f32 %v1240, %v1288
      %v1290 = vpop.f32.mrf.mxu0
      %v1291 = vadd.f32 %v1242, %v1290
      %1292 = vmatmul.bf16.gmra.mxu0 %v739
      %v1293 = vpop.f32.mrf.mxu0
      %v1294 = vadd.f32 %v1245, %v1293
      %v1295 = vpop.f32.mrf.mxu0
      %v1296 = vadd.f32 %v1247, %v1295
      %1297 = vmatmul.bf16.gmra.mxu0 %v747
      %v1298 = vpop.f32.mrf.mxu0
      %v1299 = vadd.f32 %v1250, %v1298
      %v1300 = vpop.f32.mrf.mxu0
      %v1301 = vadd.f32 %v1252, %v1300
      %1302 = vmatmul.bf16.gmra.mxu0 %v755
      %v1303 = vpop.f32.mrf.mxu0
      %v1304 = vadd.f32 %v1255, %v1303
      %v1305 = vpop.f32.mrf.mxu0
      %v1306 = vadd.f32 %v1257, %v1305
      %1307 = vdwg.mxu0
      %1308 = vmatpush.bf16.msra.mxu0 %v1105
      %1309 = vmatpush.bf16.msra.mxu0 %v1104
      %1310 = vmatpush.bf16.msra.mxu0 %v1103
      %1311 = vmatpush.bf16.msra.mxu0 %v1102
      %1312 = vmatpush.bf16.msra.mxu0 %v1101
      %1313 = vmatpush.bf16.msra.mxu0 %v1100
      %1314 = vmatpush.bf16.msra.mxu0 %v1099
      %1315 = vmatpush.bf16.msra.mxu0 %v1098
      %1316 = vmatmul.bf16.gmra.mxu0 %v700
      %v1317 = vpop.f32.mrf.mxu0
      %v1318 = vadd.f32 %v1269, %v1317
      %v1319 = vpop.f32.mrf.mxu0
      %v1320 = vadd.f32 %v1271, %v1319
      %1321 = vmatmul.bf16.gmra.mxu0 %v708
      %v1322 = vpop.f32.mrf.mxu0
      %v1323 = vadd.f32 %v1274, %v1322
      %v1324 = vpop.f32.mrf.mxu0
      %v1325 = vadd.f32 %v1276, %v1324
      %1326 = vmatmul.bf16.gmra.mxu0 %v716
      %v1327 = vpop.f32.mrf.mxu0
      %v1328 = vadd.f32 %v1279, %v1327
      %v1329 = vpop.f32.mrf.mxu0
      %v1330 = vadd.f32 %v1281, %v1329
      %1331 = vmatmul.bf16.gmra.mxu0 %v724
      %v1332 = vpop.f32.mrf.mxu0
      %v1333 = vadd.f32 %v1284, %v1332
      %v1334 = vpop.f32.mrf.mxu0
      %v1335 = vadd.f32 %v1286, %v1334
      %1336 = vmatmul.bf16.gmra.mxu0 %v732
      %v1337 = vpop.f32.mrf.mxu0
      %v1338 = vadd.f32 %v1289, %v1337
      %v1339 = vpop.f32.mrf.mxu0
      %v1340 = vadd.f32 %v1291, %v1339
      %1341 = vmatmul.bf16.gmra.mxu0 %v740
      %v1342 = vpop.f32.mrf.mxu0
      %v1343 = vadd.f32 %v1294, %v1342
      %v1344 = vpop.f32.mrf.mxu0
      %v1345 = vadd.f32 %v1296, %v1344
      %1346 = vmatmul.bf16.gmra.mxu0 %v748
      %v1347 = vpop.f32.mrf.mxu0
      %v1348 = vadd.f32 %v1299, %v1347
      %v1349 = vpop.f32.mrf.mxu0
      %v1350 = vadd.f32 %v1301, %v1349
      %1351 = vmatmul.bf16.gmra.mxu0 %v756
      %v1352 = vpop.f32.mrf.mxu0
      %v1353 = vadd.f32 %v1304, %v1352
      %v1354 = vpop.f32.mrf.mxu0
      %v1355 = vadd.f32 %v1306, %v1354
      %1356 = vdwg.mxu0
      %1357 = vmatpush.bf16.msra.mxu0 %v1113
      %1358 = vmatpush.bf16.msra.mxu0 %v1112
      %1359 = vmatpush.bf16.msra.mxu0 %v1111
      %1360 = vmatpush.bf16.msra.mxu0 %v1110
      %1361 = vmatpush.bf16.msra.mxu0 %v1109
      %1362 = vmatpush.bf16.msra.mxu0 %v1108
      %1363 = vmatpush.bf16.msra.mxu0 %v1107
      %1364 = vmatpush.bf16.msra.mxu0 %v1106
      %1365 = vmatmul.bf16.gmra.mxu0 %v701
      %v1366 = vpop.f32.mrf.mxu0
      %v1367 = vadd.f32 %v1318, %v1366
      %v1368 = vpop.f32.mrf.mxu0
      %v1369 = vadd.f32 %v1320, %v1368
      %1370 = vmatmul.bf16.gmra.mxu0 %v709
      %v1371 = vpop.f32.mrf.mxu0
      %v1372 = vadd.f32 %v1323, %v1371
      %v1373 = vpop.f32.mrf.mxu0
      %v1374 = vadd.f32 %v1325, %v1373
      %1375 = vmatmul.bf16.gmra.mxu0 %v717
      %v1376 = vpop.f32.mrf.mxu0
      %v1377 = vadd.f32 %v1328, %v1376
      %v1378 = vpop.f32.mrf.mxu0
      %v1379 = vadd.f32 %v1330, %v1378
      %1380 = vmatmul.bf16.gmra.mxu0 %v725
      %v1381 = vpop.f32.mrf.mxu0
      %v1382 = vadd.f32 %v1333, %v1381
      %v1383 = vpop.f32.mrf.mxu0
      %v1384 = vadd.f32 %v1335, %v1383
      %1385 = vmatmul.bf16.gmra.mxu0 %v733
      %v1386 = vpop.f32.mrf.mxu0
      %v1387 = vadd.f32 %v1338, %v1386
      %v1388 = vpop.f32.mrf.mxu0
      %v1389 = vadd.f32 %v1340, %v1388
      %1390 = vmatmul.bf16.gmra.mxu0 %v741
      %v1391 = vpop.f32.mrf.mxu0
      %v1392 = vadd.f32 %v1343, %v1391
      %v1393 = vpop.f32.mrf.mxu0
      %v1394 = vadd.f32 %v1345, %v1393
      %1395 = vmatmul.bf16.gmra.mxu0 %v749
      %v1396 = vpop.f32.mrf.mxu0
      %v1397 = vadd.f32 %v1348, %v1396
      %v1398 = vpop.f32.mrf.mxu0
      %v1399 = vadd.f32 %v1350, %v1398
      %1400 = vmatmul.bf16.gmra.mxu0 %v757
      %v1401 = vpop.f32.mrf.mxu0
      %v1402 = vadd.f32 %v1353, %v1401
      %v1403 = vpop.f32.mrf.mxu0
      %v1404 = vadd.f32 %v1355, %v1403
      %1405 = vdwg.mxu0
      %1406 = vmatpush.bf16.msra.mxu0 %v1121
      %1407 = vmatpush.bf16.msra.mxu0 %v1120
      %1408 = vmatpush.bf16.msra.mxu0 %v1119
      %1409 = vmatpush.bf16.msra.mxu0 %v1118
      %1410 = vmatpush.bf16.msra.mxu0 %v1117
      %1411 = vmatpush.bf16.msra.mxu0 %v1116
      %1412 = vmatpush.bf16.msra.mxu0 %v1115
      %1413 = vmatpush.bf16.msra.mxu0 %v1114
      %1414 = vmatmul.bf16.gmra.mxu0 %v702
      %v1415 = vpop.f32.mrf.mxu0
      %v1416 = vadd.f32 %v1367, %v1415
      %v1417 = vpop.f32.mrf.mxu0
      %v1418 = vadd.f32 %v1369, %v1417
      %1419 = vmatmul.bf16.gmra.mxu0 %v710
      %v1420 = vpop.f32.mrf.mxu0
      %v1421 = vadd.f32 %v1372, %v1420
      %v1422 = vpop.f32.mrf.mxu0
      %v1423 = vadd.f32 %v1374, %v1422
      %1424 = vmatmul.bf16.gmra.mxu0 %v718
      %v1425 = vpop.f32.mrf.mxu0
      %v1426 = vadd.f32 %v1377, %v1425
      %v1427 = vpop.f32.mrf.mxu0
      %v1428 = vadd.f32 %v1379, %v1427
      %1429 = vmatmul.bf16.gmra.mxu0 %v726
      %v1430 = vpop.f32.mrf.mxu0
      %v1431 = vadd.f32 %v1382, %v1430
      %v1432 = vpop.f32.mrf.mxu0
      %v1433 = vadd.f32 %v1384, %v1432
      %1434 = vmatmul.bf16.gmra.mxu0 %v734
      %v1435 = vpop.f32.mrf.mxu0
      %v1436 = vadd.f32 %v1387, %v1435
      %v1437 = vpop.f32.mrf.mxu0
      %v1438 = vadd.f32 %v1389, %v1437
      %1439 = vmatmul.bf16.gmra.mxu0 %v742
      %v1440 = vpop.f32.mrf.mxu0
      %v1441 = vadd.f32 %v1392, %v1440
      %v1442 = vpop.f32.mrf.mxu0
      %v1443 = vadd.f32 %v1394, %v1442
      %1444 = vmatmul.bf16.gmra.mxu0 %v750
      %v1445 = vpop.f32.mrf.mxu0
      %v1446 = vadd.f32 %v1397, %v1445
      %v1447 = vpop.f32.mrf.mxu0
      %v1448 = vadd.f32 %v1399, %v1447
      %1449 = vmatmul.bf16.gmra.mxu0 %v758
      %v1450 = vpop.f32.mrf.mxu0
      %v1451 = vadd.f32 %v1402, %v1450
      %v1452 = vpop.f32.mrf.mxu0
      %v1453 = vadd.f32 %v1404, %v1452
      %1454 = vdwg.mxu0
      %1455 = vmatpush.bf16.msra.mxu0 %v1129
      %1456 = vmatpush.bf16.msra.mxu0 %v1128
      %1457 = vmatpush.bf16.msra.mxu0 %v1127
      %1458 = vmatpush.bf16.msra.mxu0 %v1126
      %1459 = vmatpush.bf16.msra.mxu0 %v1125
      %1460 = vmatpush.bf16.msra.mxu0 %v1124
      %1461 = vmatpush.bf16.msra.mxu0 %v1123
      %1462 = vmatpush.bf16.msra.mxu0 %v1122
      %1463 = vmatmul.bf16.gmra.mxu0 %v703
      %v1464 = vpop.f32.mrf.mxu0
      %v1465 = vadd.f32 %v1416, %v1464
      %v1466 = vpop.f32.mrf.mxu0
      %v1467 = vadd.f32 %v1418, %v1466
      %1468 = vmatmul.bf16.gmra.mxu0 %v711
      %v1469 = vpop.f32.mrf.mxu0
      %v1470 = vadd.f32 %v1421, %v1469
      %v1471 = vpop.f32.mrf.mxu0
      %v1472 = vadd.f32 %v1423, %v1471
      %1473 = vmatmul.bf16.gmra.mxu0 %v719
      %v1474 = vpop.f32.mrf.mxu0
      %v1475 = vadd.f32 %v1426, %v1474
      %v1476 = vpop.f32.mrf.mxu0
      %v1477 = vadd.f32 %v1428, %v1476
      %1478 = vmatmul.bf16.gmra.mxu0 %v727
      %v1479 = vpop.f32.mrf.mxu0
      %v1480 = vadd.f32 %v1431, %v1479
      %v1481 = vpop.f32.mrf.mxu0
      %v1482 = vadd.f32 %v1433, %v1481
      %1483 = vmatmul.bf16.gmra.mxu0 %v735
      %v1484 = vpop.f32.mrf.mxu0
      %v1485 = vadd.f32 %v1436, %v1484
      %v1486 = vpop.f32.mrf.mxu0
      %v1487 = vadd.f32 %v1438, %v1486
      %1488 = vmatmul.bf16.gmra.mxu0 %v743
      %v1489 = vpop.f32.mrf.mxu0
      %v1490 = vadd.f32 %v1441, %v1489
      %v1491 = vpop.f32.mrf.mxu0
      %v1492 = vadd.f32 %v1443, %v1491
      %1493 = vmatmul.bf16.gmra.mxu0 %v751
      %v1494 = vpop.f32.mrf.mxu0
      %v1495 = vadd.f32 %v1446, %v1494
      %v1496 = vpop.f32.mrf.mxu0
      %v1497 = vadd.f32 %v1448, %v1496
      %1498 = vmatmul.bf16.gmra.mxu0 %v759
      %v1499 = vpop.f32.mrf.mxu0
      %v1500 = vadd.f32 %v1451, %v1499
      %v1501 = vpop.f32.mrf.mxu0
      %v1502 = vadd.f32 %v1453, %v1501
      %1503 = vdwg.mxu0
      %1504 = vmatpush.bf16.msra.mxu0 %v1137
      %1505 = vmatpush.bf16.msra.mxu0 %v1136
      %1506 = vmatpush.bf16.msra.mxu0 %v1135
      %1507 = vmatpush.bf16.msra.mxu0 %v1134
      %1508 = vmatpush.bf16.msra.mxu0 %v1133
      %1509 = vmatpush.bf16.msra.mxu0 %v1132
      %1510 = vmatpush.bf16.msra.mxu0 %v1131
      %1511 = vmatpush.bf16.msra.mxu0 %v1130
      %1512 = vmatmul.bf16.gmra.mxu0 %v704
      %v1513 = vpop.f32.mrf.mxu0
      %v1514 = vadd.f32 %v1465, %v1513
      %v1515 = vpop.f32.mrf.mxu0
      %v1516 = vadd.f32 %v1467, %v1515
      %1517 = vmatmul.bf16.gmra.mxu0 %v712
      %v1518 = vpop.f32.mrf.mxu0
      %v1519 = vadd.f32 %v1470, %v1518
      %v1520 = vpop.f32.mrf.mxu0
      %v1521 = vadd.f32 %v1472, %v1520
      %1522 = vmatmul.bf16.gmra.mxu0 %v720
      %v1523 = vpop.f32.mrf.mxu0
      %v1524 = vadd.f32 %v1475, %v1523
      %v1525 = vpop.f32.mrf.mxu0
      %v1526 = vadd.f32 %v1477, %v1525
      %1527 = vmatmul.bf16.gmra.mxu0 %v728
      %v1528 = vpop.f32.mrf.mxu0
      %v1529 = vadd.f32 %v1480, %v1528
      %v1530 = vpop.f32.mrf.mxu0
      %v1531 = vadd.f32 %v1482, %v1530
      %1532 = vmatmul.bf16.gmra.mxu0 %v736
      %v1533 = vpop.f32.mrf.mxu0
      %v1534 = vadd.f32 %v1485, %v1533
      %v1535 = vpop.f32.mrf.mxu0
      %v1536 = vadd.f32 %v1487, %v1535
      %1537 = vmatmul.bf16.gmra.mxu0 %v744
      %v1538 = vpop.f32.mrf.mxu0
      %v1539 = vadd.f32 %v1490, %v1538
      %v1540 = vpop.f32.mrf.mxu0
      %v1541 = vadd.f32 %v1492, %v1540
      %1542 = vmatmul.bf16.gmra.mxu0 %v752
      %v1543 = vpop.f32.mrf.mxu0
      %v1544 = vadd.f32 %v1495, %v1543
      %v1545 = vpop.f32.mrf.mxu0
      %v1546 = vadd.f32 %v1497, %v1545
      %1547 = vmatmul.bf16.gmra.mxu0 %v760
      %v1548 = vpop.f32.mrf.mxu0
      %v1549 = vadd.f32 %v1500, %v1548
      %v1550 = vpop.f32.mrf.mxu0
      %v1551 = vadd.f32 %v1502, %v1550
      %1552 = vdwg.mxu0
      %1553 = vmatpush.bf16.msra.mxu0 %v1145
      %1554 = vmatpush.bf16.msra.mxu0 %v1144
      %1555 = vmatpush.bf16.msra.mxu0 %v1143
      %1556 = vmatpush.bf16.msra.mxu0 %v1142
      %1557 = vmatpush.bf16.msra.mxu0 %v1141
      %1558 = vmatpush.bf16.msra.mxu0 %v1140
      %1559 = vmatpush.bf16.msra.mxu0 %v1139
      %1560 = vmatpush.bf16.msra.mxu0 %v1138
      %1561 = vmatmul.bf16.gmra.mxu0 %v705
      %v1562 = vpop.f32.mrf.mxu0
      %v1563 = vadd.f32 %v1514, %v1562
      %v1564 = vpop.f32.mrf.mxu0
      %v1565 = vadd.f32 %v1516, %v1564
      %1566 = vmatmul.bf16.gmra.mxu0 %v713
      %v1567 = vpop.f32.mrf.mxu0
      %v1568 = vadd.f32 %v1519, %v1567
      %v1569 = vpop.f32.mrf.mxu0
      %v1570 = vadd.f32 %v1521, %v1569
      %1571 = vmatmul.bf16.gmra.mxu0 %v721
      %v1572 = vpop.f32.mrf.mxu0
      %v1573 = vadd.f32 %v1524, %v1572
      %v1574 = vpop.f32.mrf.mxu0
      %v1575 = vadd.f32 %v1526, %v1574
      %1576 = vmatmul.bf16.gmra.mxu0 %v729
      %v1577 = vpop.f32.mrf.mxu0
      %v1578 = vadd.f32 %v1529, %v1577
      %v1579 = vpop.f32.mrf.mxu0
      %v1580 = vadd.f32 %v1531, %v1579
      %1581 = vmatmul.bf16.gmra.mxu0 %v737
      %v1582 = vpop.f32.mrf.mxu0
      %v1583 = vadd.f32 %v1534, %v1582
      %v1584 = vpop.f32.mrf.mxu0
      %v1585 = vadd.f32 %v1536, %v1584
      %1586 = vmatmul.bf16.gmra.mxu0 %v745
      %v1587 = vpop.f32.mrf.mxu0
      %v1588 = vadd.f32 %v1539, %v1587
      %v1589 = vpop.f32.mrf.mxu0
      %v1590 = vadd.f32 %v1541, %v1589
      %1591 = vmatmul.bf16.gmra.mxu0 %v753
      %v1592 = vpop.f32.mrf.mxu0
      %v1593 = vadd.f32 %v1544, %v1592
      %v1594 = vpop.f32.mrf.mxu0
      %v1595 = vadd.f32 %v1546, %v1594
      %1596 = vmatmul.bf16.gmra.mxu0 %v761
      %v1597 = vpop.f32.mrf.mxu0
      %v1598 = vadd.f32 %v1549, %v1597
      %v1599 = vpop.f32.mrf.mxu0
      %v1600 = vadd.f32 %v1551, %v1599
      %1601 = vdwg.mxu0
      %v1602 = vld [vmem:[%s297] sm:$0x1]
      %v1604 = vperm.slane %v1602, 0
      %v1606 = vmul.f32 %v1563, %v1604
      %v1607 = vmul.f32 %v1565, %v1604
      %v1608 = vmul.f32 %v1568, %v1604
      %v1609 = vmul.f32 %v1570, %v1604
      %v1610 = vmul.f32 %v1573, %v1604
      %v1611 = vmul.f32 %v1575, %v1604
      %v1612 = vmul.f32 %v1578, %v1604
      %v1613 = vmul.f32 %v1580, %v1604
      %v1614 = vmul.f32 %v1583, %v1604
      %v1615 = vmul.f32 %v1585, %v1604
      %v1616 = vmul.f32 %v1588, %v1604
      %v1617 = vmul.f32 %v1590, %v1604
      %v1618 = vmul.f32 %v1593, %v1604
      %v1619 = vmul.f32 %v1595, %v1604
      %v1620 = vmul.f32 %v1598, %v1604
      %v1621 = vmul.f32 %v1600, %v1604
      %v1622 = vld [vmem:[%s300] sm:$0x1]
      %v1624 = vperm.slane %v1622, 0
      %v1626 = vadd.f32 %v1606, %v1624
      %v1627 = vadd.f32 %v1607, %v1624
      %v1628 = vadd.f32 %v1608, %v1624
      %v1629 = vadd.f32 %v1609, %v1624
      %v1630 = vadd.f32 %v1610, %v1624
      %v1631 = vadd.f32 %v1611, %v1624
      %v1632 = vadd.f32 %v1612, %v1624
      %v1633 = vadd.f32 %v1613, %v1624
      %v1634 = vadd.f32 %v1614, %v1624
      %v1635 = vadd.f32 %v1615, %v1624
      %v1636 = vadd.f32 %v1616, %v1624
      %v1637 = vadd.f32 %v1617, %v1624
      %v1638 = vadd.f32 %v1618, %v1624
      %v1639 = vadd.f32 %v1619, %v1624
      %v1640 = vadd.f32 %v1620, %v1624
      %v1641 = vadd.f32 %v1621, %v1624
      %v1642 = vmax.f32 %v1626, 0.0
      %v1643 = vmax.f32 %v1627, 0.0
      %v1644 = vmax.f32 %v1628, 0.0
      %v1645 = vmax.f32 %v1629, 0.0
      %v1646 = vmax.f32 %v1630, 0.0
      %v1647 = vmax.f32 %v1631, 0.0
      %v1648 = vmax.f32 %v1632, 0.0
      %v1649 = vmax.f32 %v1633, 0.0
      %v1650 = vmax.f32 %v1634, 0.0
      %v1651 = vmax.f32 %v1635, 0.0
      %v1652 = vmax.f32 %v1636, 0.0
      %v1653 = vmax.f32 %v1637, 0.0
      %v1654 = vmax.f32 %v1638, 0.0
      %v1655 = vmax.f32 %v1639, 0.0
      %v1656 = vmax.f32 %v1640, 0.0
      %v1657 = vmax.f32 %v1641, 0.0
      %v1658 = vpack.c.bf16 %v1642, %v1642
      %v1659 = vpack.c.bf16 %v1643, %v1643
      %v1660 = vpack.c.bf16 %v1644, %v1644
      %v1661 = vpack.c.bf16 %v1645, %v1645
      %v1662 = vpack.c.bf16 %v1646, %v1646
      %v1663 = vpack.c.bf16 %v1647, %v1647
      %v1664 = vpack.c.bf16 %v1648, %v1648
      %v1665 = vpack.c.bf16 %v1649, %v1649
      %v1666 = vpack.c.bf16 %v1650, %v1650
      %v1667 = vpack.c.bf16 %v1651, %v1651
      %v1668 = vpack.c.bf16 %v1652, %v1652
      %v1669 = vpack.c.bf16 %v1653, %v1653
      %v1670 = vpack.c.bf16 %v1654, %v1654
      %v1671 = vpack.c.bf16 %v1655, %v1655
      %v1672 = vpack.c.bf16 %v1656, %v1656
      %v1673 = vpack.c.bf16 %v1657, %v1657
      %1674 = vst [vmem:[%s312] sm:$0xf] %v1658
      %1675 = vst [vmem:[%s312 + $0x4] sm:$0xf] %v1659
      %1676 = vst [vmem:[%s312 + $0x8] sm:$0xf] %v1660
      %1677 = vst [vmem:[%s312 + $0xc] sm:$0xf] %v1661
      %1678 = vst [vmem:[%s312 + $0x10] sm:$0xf] %v1662
      %1679 = vst [vmem:[%s312 + $0x14] sm:$0xf] %v1663
      %1680 = vst [vmem:[%s312 + $0x18] sm:$0xf] %v1664
      %1681 = vst [vmem:[%s312 + $0x1c] sm:$0xf] %v1665
      %1682 = vst [vmem:[%s312 + $0x20] sm:$0xf] %v1666
      %1683 = vst [vmem:[%s312 + $0x24] sm:$0xf] %v1667
      %1684 = vst [vmem:[%s312 + $0x28] sm:$0xf] %v1668
      %1685 = vst [vmem:[%s312 + $0x2c] sm:$0xf] %v1669
      %1686 = vst [vmem:[%s312 + $0x30] sm:$0xf] %v1670
      %1687 = vst [vmem:[%s312 + $0x34] sm:$0xf] %v1671
      %1688 = vst [vmem:[%s312 + $0x38] sm:$0xf] %v1672
      %1689 = vst [vmem:[%s312 + $0x3c] sm:$0xf] %v1673
      %s1690 = smul.u32 16, %s21
      %p1691 = scmp.lt.s32.totalorder %s20, 3
      %s1692 = scalar_select %p1691, %s20, 3
      %p1693 = scmp.lt.s32.totalorder %s1690, 15
      %s1694 = scalar_select %p1693, %s1690, 15
      %p1695 = scmp.lt.s32.totalorder %s22, 0
      %s1696 = scalar_select %p1695, %s22, 0
      %s1697 = sadd.s32 %s1696, %s1694
      %s1698 = smul.addr %s1692, 16
      %s1699 = sadd.s32 %s1697, %s1698
      %s1700 = smul.addr %s1699, 4
      %s1701 = scalar_lea.vmem %s4, %s1700
      // Predicated region
      $region37: #{generator_forward.7} parent=35 // pred_check
        %p1702 = pneg %p164
      $region38: #{generator_forward.7} parent=35 // pred_check_branch
        %1704 = sbr.rel (%p1702) target = $region40
      $region39: #{generator_forward.7} parent=35 // pred_region
        %s1705 = smul.u32 16, %s21
      $region40: #{generator_forward.7} parent=35 // pred_fallthru
        _
    $region36: #{generator_forward.7} parent=5 // pred_fallthru
      _
    %p1706 = scmp.le.s32.totalorder 2, %s10
    // Predicated region
    $region41: #{generator_forward.7} parent=5 // pred_check
      %p1707 = pneg %p1706
    $region42: #{generator_forward.7} parent=5 // pred_check_branch
      %1709 = sbr.rel (%p1707) target = $region44
    $region43: #{generator_forward.7} parent=5 // pred_region
      %s1710 = ssub.s32 %s10, 2
      // Predicated region
      $region45: #{generator_forward.7} parent=43 // pred_check
        %p1711 = pneg %p170
      $region46: #{generator_forward.7} parent=43 // pred_check_branch
        %1713 = sbr.rel (%p1711) target = $region48
      $region47: #{generator_forward.7} parent=43 // pred_region
        %s1714 = smul.u32 16, %s24
        %p1715 = scmp.lt.s32.totalorder %s23, 3
        %s1716 = scalar_select %p1715, %s23, 3
        %p1717 = scmp.lt.s32.totalorder %s1714, 15
        %s1718 = scalar_select %p1717, %s1714, 15
        %p1719 = scmp.lt.s32.totalorder %s25, 0
        %s1720 = scalar_select %p1719, %s25, 0
        %s1721 = sadd.s32 %s1720, %s1718
        %s1722 = smul.addr %s1716, 16
        %s1723 = sadd.s32 %s1721, %s1722
        %s1724 = smul.addr %s1723, 4
        %s1725 = scalar_lea.vmem %s4, %s1724
      $region48: #{generator_forward.7} parent=43 // pred_fallthru
        _
    $region44: #{generator_forward.7} parent=5 // pred_fallthru
      _
  $region6: #{generator_forward.7} parent=0 // loop_footer
    %s14 = sadd.s32 1, %s10
  $region7: #{generator_forward.7} parent=0 // loop_footer_branch
    %9 = sbr.rel target = $region3
  $region8: #{generator_forward.7} parent=0 // loop_exit
    _

// kernel: generator_forward.8
$region0: #{generator_forward.8}
  #allocation0 [shape = 'u32[]', space=smem, size = 0x4, offset = 0x4, fixed_abs, tag = 'smem constant byte address 0x4 - core index']
  #allocation1 [shape = 'u32[72,128]{1,0:T(1,128)}', space=vmem, size = 0x9000, scoped, tag = 'internal scratch']
  %s0 = inlined_call_operand.vmem [shape: bf16[4,512,512], index: 0, kind: input, shape index: {}]
  %s1 = inlined_call_operand.vmem [shape: bf16[4,512,128], index: 1, kind: input, shape index: {}]
  %s2 = inlined_call_operand.vmem [shape: f32[1,128], index: 2, kind: input, shape index: {}]
  %s3 = inlined_call_operand.vmem [shape: f32[1,128], index: 3, kind: input, shape index: {}]
  %s4 = inlined_call_operand.vmem [shape: bf16[4,512,128], index: 4, kind: output, shape index: {}]
  %s5 = sld [smem:[#allocation0]]
  $region49: #{generator_forward.8} parent=0
    _
  %s7 = ssub.s32 1, %s5
  %s8 = scalar_select 0, %s7, %s5
  loop: start=0, step=1, limit=10
  $region2: #{generator_forward.8} parent=0 // loop_pre_header
    _
  $region3: #{generator_forward.8} parent=0 // loop_header
    %s10 = sphi 0, %s14
    %p11 = scmp.ge.s32.totalorder %s10, 10
    %s17 = sphi 0, %s36
    %s18 = sphi 0, %s32
    %s19 = sphi 0, %s28
    %s20 = sphi 0, %s17
    %s21 = sphi 0, %s18
    %s22 = sphi 0, %s19
    %s23 = sphi 0, %s20
    %s24 = sphi 0, %s21
    %s25 = sphi 0, %s22
    %s41 = sphi 0, %s43
    %s44 = sphi 0, %s41
    %s45 = sphi 0, %s44
    %s61 = sphi 0, %s45
    %s69 = sphi 0, %s71
    %s72 = sphi 0, %s69
    %s73 = sphi 0, %s72
    %s89 = sphi 0, %s73
    %s95 = sphi 0, %s97
    %s98 = sphi 0, %s95
    %s99 = sphi 0, %s98
    %s115 = sphi 0, %s99
    %s121 = sphi 0, %s123
    %s124 = sphi 0, %s121
    %s125 = sphi 0, %s124
    %s141 = sphi 0, %s125
    %s151 = sphi 0, %s153
    %s154 = sphi 0, %s151
    %s155 = sphi 0, %s154
    %s171 = sphi 0, %s155
  $region4: #{generator_forward.8} parent=0 // loop_header_branch
    %13 = sbr.rel (%p11) target = $region8
  $region5: #{generator_forward.8} parent=0 // loop_body
    %s15 = ssub.s32 %s10, 1
    %s16 = ssub.s32 %s10, 2
    %s26 = sadd.s32 1, %s19
    %p27 = scmp.ge.s32.totalorder %s26, 1
    %s28 = scalar_select %p27, 0, %s26
    %s29 = sadd.s32 1, %s18
    %s30 = scalar_select %p27, %s29, %s18
    %p31 = scmp.ge.s32.totalorder %s30, 2
    %s32 = scalar_select %p31, 0, %s30
    %s33 = sadd.s32 1, %s17
    %s34 = scalar_select %p31, %s33, %s17
    %p35 = scmp.ge.s32.totalorder %s34, 4
    %s36 = scalar_select %p35, 0, %s34
    %s37 = ssub.s32 %s17, %s36
    %s38 = ssub.s32 %s18, %s32
    %s39 = sor.u32 %s37, %s38
    %p40 = scmp.eq.s32.totalorder %s39, 0
    %s42 = sadd.s32 %s41, 1
    %s43 = scalar_select %p40, %s41, %s42
    %p46 = pneg %p40
    %p47 = scmp.eq.s32.totalorder %s10, 7
    %p48 = por %p46, %p47
    %p49 = scmp.ne.s32.totalorder %s41, %s44
    %p50 = scmp.eq.s32.totalorder %s10, 0
    %p51 = por %p49, %p50
    %p52 = scmp.ne.s32.totalorder %s41, %s44
    %p53 = scmp.eq.s32.totalorder %s15, 7
    %p54 = por %p52, %p53
    %p55 = scmp.ne.s32.totalorder %s44, %s45
    %p56 = scmp.eq.s32.totalorder %s15, 0
    %p57 = por %p55, %p56
    %p58 = scmp.ne.s32.totalorder %s44, %s45
    %p59 = scmp.eq.s32.totalorder %s16, 7
    %p60 = por %p58, %p59
    %p62 = scmp.ne.s32.totalorder %s45, %s61
    %p63 = scmp.eq.s32.totalorder %s16, 0
    %p64 = por %p62, %p63
    %s65 = ssub.s32 %s17, %s36
    %s66 = ssub.s32 %s19, %s28
    %s67 = sor.u32 %s65, %s66
    %p68 = scmp.eq.s32.totalorder %s67, 0
    %s70 = sadd.s32 %s69, 1
    %s71 = scalar_select %p68, %s69, %s70
    %p74 = pneg %p68
    %p75 = scmp.eq.s32.totalorder %s10, 7
    %p76 = por %p74, %p75
    %p77 = scmp.ne.s32.totalorder %s69, %s72
    %p78 = scmp.eq.s32.totalorder %s10, 0
    %p79 = por %p77, %p78
    %p80 = scmp.ne.s32.totalorder %s69, %s72
    %p81 = scmp.eq.s32.totalorder %s15, 7
    %p82 = por %p80, %p81
    %p83 = scmp.ne.s32.totalorder %s72, %s73
    %p84 = scmp.eq.s32.totalorder %s15, 0
    %p85 = por %p83, %p84
    %p86 = scmp.ne.s32.totalorder %s72, %s73
    %p87 = scmp.eq.s32.totalorder %s16, 7
    %p88 = por %p86, %p87
    %p90 = scmp.ne.s32.totalorder %s73, %s89
    %p91 = scmp.eq.s32.totalorder %s16, 0
    %p92 = por %p90, %p91
    %s93 = ssub.s32 %s19, %s28
    %p94 = scmp.eq.s32.totalorder %s93, 0
    %s96 = sadd.s32 %s95, 1
    %s97 = scalar_select %p94, %s95, %s96
    %p100 = pneg %p94
    %p101 = scmp.eq.s32.totalorder %s10, 7
    %p102 = por %p100, %p101
    %p103 = scmp.ne.s32.totalorder %s95, %s98
    %p104 = scmp.eq.s32.totalorder %s10, 0
    %p105 = por %p103, %p104
    %p106 = scmp.ne.s32.totalorder %s95, %s98
    %p107 = scmp.eq.s32.totalorder %s15, 7
    %p108 = por %p106, %p107
    %p109 = scmp.ne.s32.totalorder %s98, %s99
    %p110 = scmp.eq.s32.totalorder %s15, 0
    %p111 = por %p109, %p110
    %p112 = scmp.ne.s32.totalorder %s98, %s99
    %p113 = scmp.eq.s32.totalorder %s16, 7
    %p114 = por %p112, %p113
    %p116 = scmp.ne.s32.totalorder %s99, %s115
    %p117 = scmp.eq.s32.totalorder %s16, 0
    %p118 = por %p116, %p117
    %s119 = ssub.s32 %s19, %s28
    %p120 = scmp.eq.s32.totalorder %s119, 0
    %s122 = sadd.s32 %s121, 1
    %s123 = scalar_select %p120, %s121, %s122
    %p126 = pneg %p120
    %p127 = scmp.eq.s32.totalorder %s10, 7
    %p128 = por %p126, %p127
    %p129 = scmp.ne.s32.totalorder %s121, %s124
    %p130 = scmp.eq.s32.totalorder %s10, 0
    %p131 = por %p129, %p130
    %p132 = scmp.ne.s32.totalorder %s121, %s124
    %p133 = scmp.eq.s32.totalorder %s15, 7
    %p134 = por %p132, %p133
    %p135 = scmp.ne.s32.totalorder %s124, %s125
    %p136 = scmp.eq.s32.totalorder %s15, 0
    %p137 = por %p135, %p136
    %p138 = scmp.ne.s32.totalorder %s124, %s125
    %p139 = scmp.eq.s32.totalorder %s16, 7
    %p140 = por %p138, %p139
    %p142 = scmp.ne.s32.totalorder %s125, %s141
    %p143 = scmp.eq.s32.totalorder %s16, 0
    %p144 = por %p142, %p143
    %s145 = ssub.s32 %s17, %s36
    %s146 = ssub.s32 %s18, %s32
    %s147 = sor.u32 %s145, %s146
    %s148 = ssub.s32 %s19, %s28
    %s149 = sor.u32 %s147, %s148
    %p150 = scmp.eq.s32.totalorder %s149, 0
    %s152 = sadd.s32 %s151, 1
    %s153 = scalar_select %p150, %s151, %s152
    %p156 = pneg %p150
    %p157 = scmp.eq.s32.totalorder %s10, 7
    %p158 = por %p156, %p157
    %p159 = scmp.ne.s32.totalorder %s151, %s154
    %p160 = scmp.eq.s32.totalorder %s10, 0
    %p161 = por %p159, %p160
    %p162 = scmp.ne.s32.totalorder %s151, %s154
    %p163 = scmp.eq.s32.totalorder %s15, 7
    %p164 = por %p162, %p163
    %p165 = scmp.ne.s32.totalorder %s154, %s155
    %p166 = scmp.eq.s32.totalorder %s15, 0
    %p167 = por %p165, %p166
    %p168 = scmp.ne.s32.totalorder %s154, %s155
    %p169 = scmp.eq.s32.totalorder %s16, 7
    %p170 = por %p168, %p169
    %p172 = scmp.ne.s32.totalorder %s155, %s171
    %p173 = scmp.eq.s32.totalorder %s16, 0
    %p174 = por %p172, %p173
    %p175 = scmp.le.s32.totalorder 1, %s10
    %p176 = scmp.lt.s32.totalorder %s10, 9
    %p177 = pnand %p175, %p176
    %p178 = pneg %p177
    // Predicated region
    $region9: #{generator_forward.8} parent=5 // pred_check
      _
    $region10: #{generator_forward.8} parent=5 // pred_check_branch
      %180 = sbr.rel (%p177) target = $region12
    $region11: #{generator_forward.8} parent=5 // pred_region
      %s181 = ssub.s32 %s10, 1
      // Predicated region
      $region13: #{generator_forward.8} parent=11 // pred_check
        %p182 = pneg %p111
      $region14: #{generator_forward.8} parent=11 // pred_check_branch
        %184 = sbr.rel (%p182) target = $region16
      $region15: #{generator_forward.8} parent=11 // pred_region
        %p185 = scmp.lt.s32.totalorder %s22, 0
        %s186 = scalar_select %p185, %s22, 0
        %s187 = scalar_lea.vmem %s2, %s186
      $region16: #{generator_forward.8} parent=11 // pred_fallthru
        _
      // Predicated region
      $region17: #{generator_forward.8} parent=11 // pred_check
        %p188 = pneg %p137
      $region18: #{generator_forward.8} parent=11 // pred_check_branch
        %190 = sbr.rel (%p188) target = $region20
      $region19: #{generator_forward.8} parent=11 // pred_region
        %p191 = scmp.lt.s32.totalorder %s22, 0
        %s192 = scalar_select %p191, %s22, 0
        %s193 = scalar_lea.vmem %s3, %s192
      $region20: #{generator_forward.8} parent=11 // pred_fallthru
        _
    $region12: #{generator_forward.8} parent=5 // pred_fallthru
      _
    %p194 = scmp.lt.s32.totalorder %s10, 8
    // Predicated region
    $region21: #{generator_forward.8} parent=5 // pred_check
      %p195 = pneg %p194
    $region22: #{generator_forward.8} parent=5 // pred_check_branch
      %197 = sbr.rel (%p195) target = $region24
    $region23: #{generator_forward.8} parent=5 // pred_region
      // Predicated region
      $region25: #{generator_forward.8} parent=23 // pred_check
        %p198 = pneg %p51
      $region26: #{generator_forward.8} parent=23 // pred_check_branch
        %200 = sbr.rel (%p198) target = $region28
      $region27: #{generator_forward.8} parent=23 // pred_region
        %s201 = smul.u32 32, %s18
        %p202 = scmp.lt.s32.totalorder %s17, 3
        %s203 = scalar_select %p202, %s17, 3
        %p204 = scmp.lt.s32.totalorder %s201, 63
        %s205 = scalar_select %p204, %s201, 63
        %s206 = smul.addr %s205, 4
        %s207 = smul.addr %s203, 256
        %s208 = sadd.s32 %s206, %s207
        %s209 = smul.addr %s208, 4
        %s210 = scalar_lea.vmem %s0, %s209
        %s211 = smul.u32 32, %s18
      $region28: #{generator_forward.8} parent=23 // pred_fallthru
        _
      // Predicated region
      $region29: #{generator_forward.8} parent=23 // pred_check
        %p212 = pneg %p79
      $region30: #{generator_forward.8} parent=23 // pred_check_branch
        %214 = sbr.rel (%p212) target = $region32
      $region31: #{generator_forward.8} parent=23 // pred_region
        %p215 = scmp.lt.s32.totalorder %s17, 3
        %s216 = scalar_select %p215, %s17, 3
        %p217 = scmp.lt.s32.totalorder %s19, 0
        %s218 = scalar_select %p217, %s19, 0
        %s219 = smul.addr %s216, 64
        %s220 = sadd.s32 %s218, %s219
        %s221 = smul.addr %s220, 4
        %s222 = scalar_lea.vmem %s1, %s221
      $region32: #{generator_forward.8} parent=23 // pred_fallthru
        _
    $region24: #{generator_forward.8} parent=5 // pred_fallthru
      _
    %p223 = scmp.le.s32.totalorder 1, %s10
    %p224 = scmp.lt.s32.totalorder %s10, 9
    %p225 = pnand %p223, %p224
    %p226 = pneg %p225
    // Predicated region
    $region33: #{generator_forward.8} parent=5 // pred_check
      _
    $region34: #{generator_forward.8} parent=5 // pred_check_branch
      %228 = sbr.rel (%p225) target = $region36
    $region35: #{generator_forward.8} parent=5 // pred_region
      %s229 = ssub.s32 %s10, 1
      %s230 = smul.u32 32, %s21
      %p231 = scmp.lt.s32.totalorder %s20, 3
      %s232 = scalar_select %p231, %s20, 3
      %p233 = scmp.lt.s32.totalorder %s230, 63
      %s234 = scalar_select %p233, %s230, 63
      %s235 = smul.addr %s234, 4
      %s236 = smul.addr %s232, 256
      %s237 = sadd.s32 %s235, %s236
      %s238 = smul.addr %s237, 4
      %s239 = scalar_lea.vmem %s0, %s238
      %p240 = pneg %p57
      %p241 = pneg %p54
      %p242 = scmp.lt.s32.totalorder %s20, 3
      %s243 = scalar_select %p242, %s20, 3
      %p244 = scmp.lt.s32.totalorder %s22, 0
      %s245 = scalar_select %p244, %s22, 0
      %s246 = smul.addr %s243, 64
      %s247 = sadd.s32 %s245, %s246
      %s248 = smul.addr %s247, 4
      %s249 = scalar_lea.vmem %s1, %s248
      %p250 = pneg %p85
      %p251 = pneg %p82
      %p252 = scmp.lt.s32.totalorder %s22, 0
      %s253 = scalar_select %p252, %s22, 0
      %s254 = scalar_lea.vmem %s2, %s253
      %p255 = pneg %p111
      %p256 = pneg %p108
      %p257 = scmp.lt.s32.totalorder %s22, 0
      %s258 = scalar_select %p257, %s22, 0
      %s259 = scalar_lea.vmem %s3, %s258
      %p260 = pneg %p137
      %p261 = pneg %p134
      %p262 = pneg %p167
      %p263 = pneg %p164
      %s264 = smul.u32 32, %s21
      %p265 = scmp.lt.s32.totalorder %s20, 3
      %s266 = scalar_select %p265, %s20, 3
      %p267 = scmp.lt.s32.totalorder %s264, 63
      %s268 = scalar_select %p267, %s264, 63
      %p269 = scmp.lt.s32.totalorder %s22, 0
      %s270 = scalar_select %p269, %s22, 0
      %s271 = sadd.s32 %s270, %s268
      %s272 = smul.addr %s266, 64
      %s273 = sadd.s32 %s271, %s272
      %s274 = smul.addr %s273, 4
      %s275 = scalar_lea.vmem %s4, %s274
      %s276 = smul.u32 32, %s21
      %p277 = scmp.lt.s32.totalorder %s20, 3
      %s278 = scalar_select %p277, %s20, 3
      %p279 = scmp.lt.s32.totalorder %s276, 63
      %s280 = scalar_select %p279, %s276, 63
      %s281 = smul.addr %s280, 4
      %s282 = smul.addr %s278, 256
      %s283 = sadd.s32 %s281, %s282
      %s284 = smul.addr %s283, 4
      %s285 = scalar_lea.vmem %s0, %s284
      %s286 = smul.u32 32, %s21
      %p287 = scmp.lt.s32.totalorder %s20, 3
      %s288 = scalar_select %p287, %s20, 3
      %p289 = scmp.lt.s32.totalorder %s22, 0
      %s290 = scalar_select %p289, %s22, 0
      %s291 = smul.addr %s288, 64
      %s292 = sadd.s32 %s290, %s291
      %s293 = smul.addr %s292, 4
      %s294 = scalar_lea.vmem %s1, %s293
      %p295 = scmp.lt.s32.totalorder %s22, 0
      %s296 = scalar_select %p295, %s22, 0
      %s297 = scalar_lea.vmem %s2, %s296
      %p298 = scmp.lt.s32.totalorder %s22, 0
      %s299 = scalar_select %p298, %s22, 0
      %s300 = scalar_lea.vmem %s3, %s299
      %s301 = smul.u32 32, %s21
      %p302 = scmp.lt.s32.totalorder %s20, 3
      %s303 = scalar_select %p302, %s20, 3
      %p304 = scmp.lt.s32.totalorder %s301, 63
      %s305 = scalar_select %p304, %s301, 63
      %p306 = scmp.lt.s32.totalorder %s22, 0
      %s307 = scalar_select %p306, %s22, 0
      %s308 = sadd.s32 %s307, %s305
      %s309 = smul.addr %s303, 64
      %s310 = sadd.s32 %s308, %s309
      %s311 = smul.addr %s310, 4
      %s312 = scalar_lea.vmem %s4, %s311
      %s313 = smul.u32 32, %s21
      %v314 = vld [vmem:[%s285] sm:$0xff]
      %v315 = vld [vmem:[%s285 + $0x8] sm:$0xff]
      %v316 = vld [vmem:[%s285 + $0x10] sm:$0xff]
      %v317 = vld [vmem:[%s285 + $0x18] sm:$0xff]
      %v318 = vld [vmem:[%s285 + $0x20] sm:$0xff]
      %v319 = vld [vmem:[%s285 + $0x28] sm:$0xff]
      %v320 = vld [vmem:[%s285 + $0x30] sm:$0xff]
      %v321 = vld [vmem:[%s285 + $0x38] sm:$0xff]
      %v322 = vld [vmem:[%s285 + $0x40] sm:$0xff]
      %v323 = vld [vmem:[%s285 + $0x48] sm:$0xff]
      %v324 = vld [vmem:[%s285 + $0x50] sm:$0xff]
      %v325 = vld [vmem:[%s285 + $0x58] sm:$0xff]
      %v326 = vld [vmem:[%s285 + $0x60] sm:$0xff]
      %v327 = vld [vmem:[%s285 + $0x68] sm:$0xff]
      %v328 = vld [vmem:[%s285 + $0x70] sm:$0xff]
      %v329 = vld [vmem:[%s285 + $0x78] sm:$0xff]
      %v330 = vld [vmem:[%s285 + $0x80] sm:$0xff]
      %v331 = vld [vmem:[%s285 + $0x88] sm:$0xff]
      %v332 = vld [vmem:[%s285 + $0x90] sm:$0xff]
      %v333 = vld [vmem:[%s285 + $0x98] sm:$0xff]
      %v334 = vld [vmem:[%s285 + $0xa0] sm:$0xff]
      %v335 = vld [vmem:[%s285 + $0xa8] sm:$0xff]
      %v336 = vld [vmem:[%s285 + $0xb0] sm:$0xff]
      %v337 = vld [vmem:[%s285 + $0xb8] sm:$0xff]
      %v338 = vld [vmem:[%s285 + $0xc0] sm:$0xff]
      %v339 = vld [vmem:[%s285 + $0xc8] sm:$0xff]
      %v340 = vld [vmem:[%s285 + $0xd0] sm:$0xff]
      %v341 = vld [vmem:[%s285 + $0xd8] sm:$0xff]
      %v342 = vld [vmem:[%s285 + $0xe0] sm:$0xff]
      %v343 = vld [vmem:[%s285 + $0xe8] sm:$0xff]
      %v344 = vld [vmem:[%s285 + $0xf0] sm:$0xff]
      %v345 = vld [vmem:[%s285 + $0xf8] sm:$0xff]
      %v346 = vld [vmem:[%s285 + $0x100] sm:$0xff]
      %v347 = vld [vmem:[%s285 + $0x108] sm:$0xff]
      %v348 = vld [vmem:[%s285 + $0x110] sm:$0xff]
      %v349 = vld [vmem:[%s285 + $0x118] sm:$0xff]
      %v350 = vld [vmem:[%s285 + $0x120] sm:$0xff]
      %v351 = vld [vmem:[%s285 + $0x128] sm:$0xff]
      %v352 = vld [vmem:[%s285 + $0x130] sm:$0xff]
      %v353 = vld [vmem:[%s285 + $0x138] sm:$0xff]
      %v354 = vld [vmem:[%s285 + $0x140] sm:$0xff]
      %v355 = vld [vmem:[%s285 + $0x148] sm:$0xff]
      %v356 = vld [vmem:[%s285 + $0x150] sm:$0xff]
      %v357 = vld [vmem:[%s285 + $0x158] sm:$0xff]
      %v358 = vld [vmem:[%s285 + $0x160] sm:$0xff]
      %v359 = vld [vmem:[%s285 + $0x168] sm:$0xff]
      %v360 = vld [vmem:[%s285 + $0x170] sm:$0xff]
      %v361 = vld [vmem:[%s285 + $0x178] sm:$0xff]
      %v362 = vld [vmem:[%s285 + $0x180] sm:$0xff]
      %v363 = vld [vmem:[%s285 + $0x188] sm:$0xff]
      %v364 = vld [vmem:[%s285 + $0x190] sm:$0xff]
      %v365 = vld [vmem:[%s285 + $0x198] sm:$0xff]
      %v366 = vld [vmem:[%s285 + $0x1a0] sm:$0xff]
      %v367 = vld [vmem:[%s285 + $0x1a8] sm:$0xff]
      %v368 = vld [vmem:[%s285 + $0x1b0] sm:$0xff]
      %v369 = vld [vmem:[%s285 + $0x1b8] sm:$0xff]
      %v370 = vld [vmem:[%s285 + $0x1c0] sm:$0xff]
      %v371 = vld [vmem:[%s285 + $0x1c8] sm:$0xff]
      %v372 = vld [vmem:[%s285 + $0x1d0] sm:$0xff]
      %v373 = vld [vmem:[%s285 + $0x1d8] sm:$0xff]
      %v374 = vld [vmem:[%s285 + $0x1e0] sm:$0xff]
      %v375 = vld [vmem:[%s285 + $0x1e8] sm:$0xff]
      %v376 = vld [vmem:[%s285 + $0x1f0] sm:$0xff]
      %v377 = vld [vmem:[%s285 + $0x1f8] sm:$0xff]
      %v378 = vld [vmem:[%s294] sm:$0xf]
      %v379 = vld [vmem:[%s294 + $0x4] sm:$0xf]
      %v380 = vld [vmem:[%s294 + $0x8] sm:$0xf]
      %v381 = vld [vmem:[%s294 + $0xc] sm:$0xf]
      %v382 = vld [vmem:[%s294 + $0x10] sm:$0xf]
      %v383 = vld [vmem:[%s294 + $0x14] sm:$0xf]
      %v384 = vld [vmem:[%s294 + $0x18] sm:$0xf]
      %v385 = vld [vmem:[%s294 + $0x1c] sm:$0xf]
      %v386 = vld [vmem:[%s294 + $0x20] sm:$0xf]
      %v387 = vld [vmem:[%s294 + $0x24] sm:$0xf]
      %v388 = vld [vmem:[%s294 + $0x28] sm:$0xf]
      %v389 = vld [vmem:[%s294 + $0x2c] sm:$0xf]
      %v390 = vld [vmem:[%s294 + $0x30] sm:$0xf]
      %v391 = vld [vmem:[%s294 + $0x34] sm:$0xf]
      %v392 = vld [vmem:[%s294 + $0x38] sm:$0xf]
      %v393 = vld [vmem:[%s294 + $0x3c] sm:$0xf]
      %v394 = vld [vmem:[%s294 + $0x40] sm:$0xf]
      %v395 = vld [vmem:[%s294 + $0x44] sm:$0xf]
      %v396 = vld [vmem:[%s294 + $0x48] sm:$0xf]
      %v397 = vld [vmem:[%s294 + $0x4c] sm:$0xf]
      %v398 = vld [vmem:[%s294 + $0x50] sm:$0xf]
      %v399 = vld [vmem:[%s294 + $0x54] sm:$0xf]
      %v400 = vld [vmem:[%s294 + $0x58] sm:$0xf]
      %v401 = vld [vmem:[%s294 + $0x5c] sm:$0xf]
      %v402 = vld [vmem:[%s294 + $0x60] sm:$0xf]
      %v403 = vld [vmem:[%s294 + $0x64] sm:$0xf]
      %v404 = vld [vmem:[%s294 + $0x68] sm:$0xf]
      %v405 = vld [vmem:[%s294 + $0x6c] sm:$0xf]
      %v406 = vld [vmem:[%s294 + $0x70] sm:$0xf]
      %v407 = vld [vmem:[%s294 + $0x74] sm:$0xf]
      %v408 = vld [vmem:[%s294 + $0x78] sm:$0xf]
      %v409 = vld [vmem:[%s294 + $0x7c] sm:$0xf]
      %v410 = vld [vmem:[%s294 + $0x80] sm:$0xf]
      %v411 = vld [vmem:[%s294 + $0x84] sm:$0xf]
      %v412 = vld [vmem:[%s294 + $0x88] sm:$0xf]
      %v413 = vld [vmem:[%s294 + $0x8c] sm:$0xf]
      %v414 = vld [vmem:[%s294 + $0x90] sm:$0xf]
      %v415 = vld [vmem:[%s294 + $0x94] sm:$0xf]
      %v416 = vld [vmem:[%s294 + $0x98] sm:$0xf]
      %v417 = vld [vmem:[%s294 + $0x9c] sm:$0xf]
      %v418 = vld [vmem:[%s294 + $0xa0] sm:$0xf]
      %v419 = vld [vmem:[%s294 + $0xa4] sm:$0xf]
      %v420 = vld [vmem:[%s294 + $0xa8] sm:$0xf]
      %v421 = vld [vmem:[%s294 + $0xac] sm:$0xf]
      %v422 = vld [vmem:[%s294 + $0xb0] sm:$0xf]
      %v423 = vld [vmem:[%s294 + $0xb4] sm:$0xf]
      %v424 = vld [vmem:[%s294 + $0xb8] sm:$0xf]
      %v425 = vld [vmem:[%s294 + $0xbc] sm:$0xf]
      %v426 = vld [vmem:[%s294 + $0xc0] sm:$0xf]
      %v427 = vld [vmem:[%s294 + $0xc4] sm:$0xf]
      %v428 = vld [vmem:[%s294 + $0xc8] sm:$0xf]
      %v429 = vld [vmem:[%s294 + $0xcc] sm:$0xf]
      %v430 = vld [vmem:[%s294 + $0xd0] sm:$0xf]
      %v431 = vld [vmem:[%s294 + $0xd4] sm:$0xf]
      %v432 = vld [vmem:[%s294 + $0xd8] sm:$0xf]
      %v433 = vld [vmem:[%s294 + $0xdc] sm:$0xf]
      %v434 = vld [vmem:[%s294 + $0xe0] sm:$0xf]
      %v435 = vld [vmem:[%s294 + $0xe4] sm:$0xf]
      %v436 = vld [vmem:[%s294 + $0xe8] sm:$0xf]
      %v437 = vld [vmem:[%s294 + $0xec] sm:$0xf]
      %v438 = vld [vmem:[%s294 + $0xf0] sm:$0xf]
      %v439 = vld [vmem:[%s294 + $0xf4] sm:$0xf]
      %v440 = vld [vmem:[%s294 + $0xf8] sm:$0xf]
      %v441 = vld [vmem:[%s294 + $0xfc] sm:$0xf]
      %v506 = vunpack.c.l.b16 %v314
      %v507 = vunpack.c.h.b16 %v314
      %v508 = vunpack.c.l.b16 %v315
      %v509 = vunpack.c.h.b16 %v315
      %v510 = vunpack.c.l.b16 %v316
      %v511 = vunpack.c.h.b16 %v316
      %v512 = vunpack.c.l.b16 %v317
      %v513 = vunpack.c.h.b16 %v317
      %v514 = vunpack.c.l.b16 %v318
      %v515 = vunpack.c.h.b16 %v318
      %v516 = vunpack.c.l.b16 %v319
      %v517 = vunpack.c.h.b16 %v319
      %v518 = vunpack.c.l.b16 %v320
      %v519 = vunpack.c.h.b16 %v320
      %v520 = vunpack.c.l.b16 %v321
      %v521 = vunpack.c.h.b16 %v321
      %v522 = vunpack.c.l.b16 %v322
      %v523 = vunpack.c.h.b16 %v322
      %v524 = vunpack.c.l.b16 %v323
      %v525 = vunpack.c.h.b16 %v323
      %v526 = vunpack.c.l.b16 %v324
      %v527 = vunpack.c.h.b16 %v324
      %v528 = vunpack.c.l.b16 %v325
      %v529 = vunpack.c.h.b16 %v325
      %v530 = vunpack.c.l.b16 %v326
      %v531 = vunpack.c.h.b16 %v326
      %v532 = vunpack.c.l.b16 %v327
      %v533 = vunpack.c.h.b16 %v327
      %v534 = vunpack.c.l.b16 %v328
      %v535 = vunpack.c.h.b16 %v328
      %v536 = vunpack.c.l.b16 %v329
      %v537 = vunpack.c.h.b16 %v329
      %v538 = vunpack.c.l.b16 %v330
      %v539 = vunpack.c.h.b16 %v330
      %v540 = vunpack.c.l.b16 %v331
      %v541 = vunpack.c.h.b16 %v331
      %v542 = vunpack.c.l.b16 %v332
      %v543 = vunpack.c.h.b16 %v332
      %v544 = vunpack.c.l.b16 %v333
      %v545 = vunpack.c.h.b16 %v333
      %v546 = vunpack.c.l.b16 %v334
      %v547 = vunpack.c.h.b16 %v334
      %v548 = vunpack.c.l.b16 %v335
      %v549 = vunpack.c.h.b16 %v335
      %v550 = vunpack.c.l.b16 %v336
      %v551 = vunpack.c.h.b16 %v336
      %v552 = vunpack.c.l.b16 %v337
      %v553 = vunpack.c.h.b16 %v337
      %v554 = vunpack.c.l.b16 %v338
      %v555 = vunpack.c.h.b16 %v338
      %v556 = vunpack.c.l.b16 %v339
      %v557 = vunpack.c.h.b16 %v339
      %v558 = vunpack.c.l.b16 %v340
      %v559 = vunpack.c.h.b16 %v340
      %v560 = vunpack.c.l.b16 %v341
      %v561 = vunpack.c.h.b16 %v341
      %v562 = vunpack.c.l.b16 %v342
      %v563 = vunpack.c.h.b16 %v342
      %v564 = vunpack.c.l.b16 %v343
      %v565 = vunpack.c.h.b16 %v343
      %v566 = vunpack.c.l.b16 %v344
      %v567 = vunpack.c.h.b16 %v344
      %v568 = vunpack.c.l.b16 %v345
      %v569 = vunpack.c.h.b16 %v345
      %v570 = vunpack.c.l.b16 %v346
      %v571 = vunpack.c.h.b16 %v346
      %v572 = vunpack.c.l.b16 %v347
      %v573 = vunpack.c.h.b16 %v347
      %v574 = vunpack.c.l.b16 %v348
      %v575 = vunpack.c.h.b16 %v348
      %v576 = vunpack.c.l.b16 %v349
      %v577 = vunpack.c.h.b16 %v349
      %v578 = vunpack.c.l.b16 %v350
      %v579 = vunpack.c.h.b16 %v350
      %v580 = vunpack.c.l.b16 %v351
      %v581 = vunpack.c.h.b16 %v351
      %v582 = vunpack.c.l.b16 %v352
      %v583 = vunpack.c.h.b16 %v352
      %v584 = vunpack.c.l.b16 %v353
      %v585 = vunpack.c.h.b16 %v353
      %v586 = vunpack.c.l.b16 %v354
      %v587 = vunpack.c.h.b16 %v354
      %v588 = vunpack.c.l.b16 %v355
      %v589 = vunpack.c.h.b16 %v355
      %v590 = vunpack.c.l.b16 %v356
      %v591 = vunpack.c.h.b16 %v356
      %v592 = vunpack.c.l.b16 %v357
      %v593 = vunpack.c.h.b16 %v357
      %v594 = vunpack.c.l.b16 %v358
      %v595 = vunpack.c.h.b16 %v358
      %v596 = vunpack.c.l.b16 %v359
      %v597 = vunpack.c.h.b16 %v359
      %v598 = vunpack.c.l.b16 %v360
      %v599 = vunpack.c.h.b16 %v360
      %v600 = vunpack.c.l.b16 %v361
      %v601 = vunpack.c.h.b16 %v361
      %v602 = vunpack.c.l.b16 %v362
      %v603 = vunpack.c.h.b16 %v362
      %v604 = vunpack.c.l.b16 %v363
      %v605 = vunpack.c.h.b16 %v363
      %v606 = vunpack.c.l.b16 %v364
      %v607 = vunpack.c.h.b16 %v364
      %v608 = vunpack.c.l.b16 %v365
      %v609 = vunpack.c.h.b16 %v365
      %v610 = vunpack.c.l.b16 %v366
      %v611 = vunpack.c.h.b16 %v366
      %v612 = vunpack.c.l.b16 %v367
      %v613 = vunpack.c.h.b16 %v367
      %v614 = vunpack.c.l.b16 %v368
      %v615 = vunpack.c.h.b16 %v368
      %v616 = vunpack.c.l.b16 %v369
      %v617 = vunpack.c.h.b16 %v369
      %v618 = vunpack.c.l.b16 %v370
      %v619 = vunpack.c.h.b16 %v370
      %v620 = vunpack.c.l.b16 %v371
      %v621 = vunpack.c.h.b16 %v371
      %v622 = vunpack.c.l.b16 %v372
      %v623 = vunpack.c.h.b16 %v372
      %v624 = vunpack.c.l.b16 %v373
      %v625 = vunpack.c.h.b16 %v373
      %v626 = vunpack.c.l.b16 %v374
      %v627 = vunpack.c.h.b16 %v374
      %v628 = vunpack.c.l.b16 %v375
      %v629 = vunpack.c.h.b16 %v375
      %v630 = vunpack.c.l.b16 %v376
      %v631 = vunpack.c.h.b16 %v376
      %v632 = vunpack.c.l.b16 %v377
      %v633 = vunpack.c.h.b16 %v377
      %v634 = vpack.c.b16 %v510, %v506
      %v635 = vpack.c.b16 %v511, %v507
      %v636 = vpack.c.b16 %v512, %v508
      %v637 = vpack.c.b16 %v513, %v509
      %v638 = vpack.c.b16 %v518, %v514
      %v639 = vpack.c.b16 %v519, %v515
      %v640 = vpack.c.b16 %v520, %v516
      %v641 = vpack.c.b16 %v521, %v517
      %v642 = vpack.c.b16 %v526, %v522
      %v643 = vpack.c.b16 %v527, %v523
      %v644 = vpack.c.b16 %v528, %v524
      %v645 = vpack.c.b16 %v529, %v525
      %v646 = vpack.c.b16 %v534, %v530
      %v647 = vpack.c.b16 %v535, %v531
      %v648 = vpack.c.b16 %v536, %v532
      %v649 = vpack.c.b16 %v537, %v533
      %v650 = vpack.c.b16 %v542, %v538
      %v651 = vpack.c.b16 %v543, %v539
      %v652 = vpack.c.b16 %v544, %v540
      %v653 = vpack.c.b16 %v545, %v541
      %v654 = vpack.c.b16 %v550, %v546
      %v655 = vpack.c.b16 %v551, %v547
      %v656 = vpack.c.b16 %v552, %v548
      %v657 = vpack.c.b16 %v553, %v549
      %v658 = vpack.c.b16 %v558, %v554
      %v659 = vpack.c.b16 %v559, %v555
      %v660 = vpack.c.b16 %v560, %v556
      %v661 = vpack.c.b16 %v561, %v557
      %v662 = vpack.c.b16 %v566, %v562
      %v663 = vpack.c.b16 %v567, %v563
      %v664 = vpack.c.b16 %v568, %v564
      %v665 = vpack.c.b16 %v569, %v565
      %v666 = vpack.c.b16 %v574, %v570
      %v667 = vpack.c.b16 %v575, %v571
      %v668 = vpack.c.b16 %v576, %v572
      %v669 = vpack.c.b16 %v577, %v573
      %v670 = vpack.c.b16 %v582, %v578
      %v671 = vpack.c.b16 %v583, %v579
      %v672 = vpack.c.b16 %v584, %v580
      %v673 = vpack.c.b16 %v585, %v581
      %v674 = vpack.c.b16 %v590, %v586
      %v675 = vpack.c.b16 %v591, %v587
      %v676 = vpack.c.b16 %v592, %v588
      %v677 = vpack.c.b16 %v593, %v589
      %v678 = vpack.c.b16 %v598, %v594
      %v679 = vpack.c.b16 %v599, %v595
      %v680 = vpack.c.b16 %v600, %v596
      %v681 = vpack.c.b16 %v601, %v597
      %v682 = vpack.c.b16 %v606, %v602
      %v683 = vpack.c.b16 %v607, %v603
      %v684 = vpack.c.b16 %v608, %v604
      %v685 = vpack.c.b16 %v609, %v605
      %v686 = vpack.c.b16 %v614, %v610
      %v687 = vpack.c.b16 %v615, %v611
      %v688 = vpack.c.b16 %v616, %v612
      %v689 = vpack.c.b16 %v617, %v613
      %v690 = vpack.c.b16 %v622, %v618
      %v691 = vpack.c.b16 %v623, %v619
      %v692 = vpack.c.b16 %v624, %v620
      %v693 = vpack.c.b16 %v625, %v621
      %v694 = vpack.c.b16 %v630, %v626
      %v695 = vpack.c.b16 %v631, %v627
      %v696 = vpack.c.b16 %v632, %v628
      %v697 = vpack.c.b16 %v633, %v629
      %v826 = vunpack.c.l.b16 %v378
      %v827 = vunpack.c.l.b16 %v379
      %v828 = vunpack.c.l.b16 %v380
      %v829 = vunpack.c.l.b16 %v381
      %v830 = vunpack.c.l.b16 %v382
      %v831 = vunpack.c.l.b16 %v383
      %v832 = vunpack.c.l.b16 %v384
      %v833 = vunpack.c.l.b16 %v385
      %v834 = vunpack.c.l.b16 %v386
      %v835 = vunpack.c.l.b16 %v387
      %v836 = vunpack.c.l.b16 %v388
      %v837 = vunpack.c.l.b16 %v389
      %v838 = vunpack.c.l.b16 %v390
      %v839 = vunpack.c.l.b16 %v391
      %v840 = vunpack.c.l.b16 %v392
      %v841 = vunpack.c.l.b16 %v393
      %v842 = vunpack.c.l.b16 %v394
      %v843 = vunpack.c.l.b16 %v395
      %v844 = vunpack.c.l.b16 %v396
      %v845 = vunpack.c.l.b16 %v397
      %v846 = vunpack.c.l.b16 %v398
      %v847 = vunpack.c.l.b16 %v399
      %v848 = vunpack.c.l.b16 %v400
      %v849 = vunpack.c.l.b16 %v401
      %v850 = vunpack.c.l.b16 %v402
      %v851 = vunpack.c.l.b16 %v403
      %v852 = vunpack.c.l.b16 %v404
      %v853 = vunpack.c.l.b16 %v405
      %v854 = vunpack.c.l.b16 %v406
      %v855 = vunpack.c.l.b16 %v407
      %v856 = vunpack.c.l.b16 %v408
      %v857 = vunpack.c.l.b16 %v409
      %v858 = vunpack.c.l.b16 %v410
      %v859 = vunpack.c.l.b16 %v411
      %v860 = vunpack.c.l.b16 %v412
      %v861 = vunpack.c.l.b16 %v413
      %v862 = vunpack.c.l.b16 %v414
      %v863 = vunpack.c.l.b16 %v415
      %v864 = vunpack.c.l.b16 %v416
      %v865 = vunpack.c.l.b16 %v417
      %v866 = vunpack.c.l.b16 %v418
      %v867 = vunpack.c.l.b16 %v419
      %v868 = vunpack.c.l.b16 %v420
      %v869 = vunpack.c.l.b16 %v421
      %v870 = vunpack.c.l.b16 %v422
      %v871 = vunpack.c.l.b16 %v423
      %v872 = vunpack.c.l.b16 %v424
      %v873 = vunpack.c.l.b16 %v425
      %v874 = vunpack.c.l.b16 %v426
      %v875 = vunpack.c.l.b16 %v427
      %v876 = vunpack.c.l.b16 %v428
      %v877 = vunpack.c.l.b16 %v429
      %v878 = vunpack.c.l.b16 %v430
      %v879 = vunpack.c.l.b16 %v431
      %v880 = vunpack.c.l.b16 %v432
      %v881 = vunpack.c.l.b16 %v433
      %v882 = vunpack.c.l.b16 %v434
      %v883 = vunpack.c.l.b16 %v435
      %v884 = vunpack.c.l.b16 %v436
      %v885 = vunpack.c.l.b16 %v437
      %v886 = vunpack.c.l.b16 %v438
      %v887 = vunpack.c.l.b16 %v439
      %v888 = vunpack.c.l.b16 %v440
      %v889 = vunpack.c.l.b16 %v441
      %v890 = vpack.c.b16 %v827, %v826
      %v891 = vpack.c.b16 %v829, %v828
      %v892 = vpack.c.b16 %v831, %v830
      %v893 = vpack.c.b16 %v833, %v832
      %v894 = vpack.c.b16 %v835, %v834
      %v895 = vpack.c.b16 %v837, %v836
      %v896 = vpack.c.b16 %v839, %v838
      %v897 = vpack.c.b16 %v841, %v840
      %v898 = vpack.c.b16 %v843, %v842
      %v899 = vpack.c.b16 %v845, %v844
      %v900 = vpack.c.b16 %v847, %v846
      %v901 = vpack.c.b16 %v849, %v848
      %v902 = vpack.c.b16 %v851, %v850
      %v903 = vpack.c.b16 %v853, %v852
      %v904 = vpack.c.b16 %v855, %v854
      %v905 = vpack.c.b16 %v857, %v856
      %v906 = vpack.c.b16 %v859, %v858
      %v907 = vpack.c.b16 %v861, %v860
      %v908 = vpack.c.b16 %v863, %v862
      %v909 = vpack.c.b16 %v865, %v864
      %v910 = vpack.c.b16 %v867, %v866
      %v911 = vpack.c.b16 %v869, %v868
      %v912 = vpack.c.b16 %v871, %v870
      %v913 = vpack.c.b16 %v873, %v872
      %v914 = vpack.c.b16 %v875, %v874
      %v915 = vpack.c.b16 %v877, %v876
      %v916 = vpack.c.b16 %v879, %v878
      %v917 = vpack.c.b16 %v881, %v880
      %v918 = vpack.c.b16 %v883, %v882
      %v919 = vpack.c.b16 %v885, %v884
      %v920 = vpack.c.b16 %v887, %v886
      %v921 = vpack.c.b16 %v889, %v888
      %954 = vmatpush.bf16.msra.mxu0 %v897
      %955 = vmatpush.bf16.msra.mxu0 %v896
      %956 = vmatpush.bf16.msra.mxu0 %v895
      %957 = vmatpush.bf16.msra.mxu0 %v894
      %958 = vmatpush.bf16.msra.mxu0 %v893
      %959 = vmatpush.bf16.msra.mxu0 %v892
      %960 = vmatpush.bf16.msra.mxu0 %v891
      %961 = vmatpush.bf16.msra.mxu0 %v890
      %962 = vmatmul.bf16.gmra.mxu0 %v634
      %v963 = vpop.f32.mrf.mxu0
      %v964 = vadd.f32 0.0, %v963
      %v965 = vpop.f32.mrf.mxu0
      %v966 = vadd.f32 0.0, %v965
      %967 = vmatmul.bf16.gmra.mxu0 %v638
      %v968 = vpop.f32.mrf.mxu0
      %v969 = vadd.f32 0.0, %v968
      %v970 = vpop.f32.mrf.mxu0
      %v971 = vadd.f32 0.0, %v970
      %972 = vmatmul.bf16.gmra.mxu0 %v642
      %v973 = vpop.f32.mrf.mxu0
      %v974 = vadd.f32 0.0, %v973
      %v975 = vpop.f32.mrf.mxu0
      %v976 = vadd.f32 0.0, %v975
      %977 = vmatmul.bf16.gmra.mxu0 %v646
      %v978 = vpop.f32.mrf.mxu0
      %v979 = vadd.f32 0.0, %v978
      %v980 = vpop.f32.mrf.mxu0
      %v981 = vadd.f32 0.0, %v980
      %982 = vmatmul.bf16.gmra.mxu0 %v650
      %v983 = vpop.f32.mrf.mxu0
      %v984 = vadd.f32 0.0, %v983
      %v985 = vpop.f32.mrf.mxu0
      %v986 = vadd.f32 0.0, %v985
      %987 = vmatmul.bf16.gmra.mxu0 %v654
      %v988 = vpop.f32.mrf.mxu0
      %v989 = vadd.f32 0.0, %v988
      %v990 = vpop.f32.mrf.mxu0
      %v991 = vadd.f32 0.0, %v990
      %992 = vmatmul.bf16.gmra.mxu0 %v658
      %v993 = vpop.f32.mrf.mxu0
      %v994 = vadd.f32 0.0, %v993
      %v995 = vpop.f32.mrf.mxu0
      %v996 = vadd.f32 0.0, %v995
      %997 = vmatmul.bf16.gmra.mxu0 %v662
      %v998 = vpop.f32.mrf.mxu0
      %v999 = vadd.f32 0.0, %v998
      %v1000 = vpop.f32.mrf.mxu0
      %v1001 = vadd.f32 0.0, %v1000
      %1002 = vmatmul.bf16.gmra.mxu0 %v666
      %v1003 = vpop.f32.mrf.mxu0
      %v1004 = vadd.f32 0.0, %v1003
      %v1005 = vpop.f32.mrf.mxu0
      %v1006 = vadd.f32 0.0, %v1005
      %1007 = vmatmul.bf16.gmra.mxu0 %v670
      %v1008 = vpop.f32.mrf.mxu0
      %v1009 = vadd.f32 0.0, %v1008
      %v1010 = vpop.f32.mrf.mxu0
      %v1011 = vadd.f32 0.0, %v1010
      %1012 = vmatmul.bf16.gmra.mxu0 %v674
      %v1013 = vpop.f32.mrf.mxu0
      %v1014 = vadd.f32 0.0, %v1013
      %v1015 = vpop.f32.mrf.mxu0
      %v1016 = vadd.f32 0.0, %v1015
      %1017 = vmatmul.bf16.gmra.mxu0 %v678
      %v1018 = vpop.f32.mrf.mxu0
      %v1019 = vadd.f32 0.0, %v1018
      %v1020 = vpop.f32.mrf.mxu0
      %v1021 = vadd.f32 0.0, %v1020
      %1022 = vmatmul.bf16.gmra.mxu0 %v682
      %v1023 = vpop.f32.mrf.mxu0
      %v1024 = vadd.f32 0.0, %v1023
      %v1025 = vpop.f32.mrf.mxu0
      %v1026 = vadd.f32 0.0, %v1025
      %1027 = vmatmul.bf16.gmra.mxu0 %v686
      %v1028 = vpop.f32.mrf.mxu0
      %v1029 = vadd.f32 0.0, %v1028
      %v1030 = vpop.f32.mrf.mxu0
      %v1031 = vadd.f32 0.0, %v1030
      %1032 = vmatmul.bf16.gmra.mxu0 %v690
      %v1033 = vpop.f32.mrf.mxu0
      %v1034 = vadd.f32 0.0, %v1033
      %v1035 = vpop.f32.mrf.mxu0
      %v1036 = vadd.f32 0.0, %v1035
      %1037 = vmatmul.bf16.gmra.mxu0 %v694
      %v1038 = vpop.f32.mrf.mxu0
      %v1039 = vadd.f32 0.0, %v1038
      %v1040 = vpop.f32.mrf.mxu0
      %v1041 = vadd.f32 0.0, %v1040
      %1042 = vdwg.mxu0
      %1043 = vmatpush.bf16.msra.mxu0 %v905
      %1044 = vmatpush.bf16.msra.mxu0 %v904
      %1045 = vmatpush.bf16.msra.mxu0 %v903
      %1046 = vmatpush.bf16.msra.mxu0 %v902
      %1047 = vmatpush.bf16.msra.mxu0 %v901
      %1048 = vmatpush.bf16.msra.mxu0 %v900
      %1049 = vmatpush.bf16.msra.mxu0 %v899
      %1050 = vmatpush.bf16.msra.mxu0 %v898
      %1051 = vmatmul.bf16.gmra.mxu0 %v635
      %v1052 = vpop.f32.mrf.mxu0
      %v1053 = vadd.f32 %v964, %v1052
      %v1054 = vpop.f32.mrf.mxu0
      %v1055 = vadd.f32 %v966, %v1054
      %1056 = vmatmul.bf16.gmra.mxu0 %v639
      %v1057 = vpop.f32.mrf.mxu0
      %v1058 = vadd.f32 %v969, %v1057
      %v1059 = vpop.f32.mrf.mxu0
      %v1060 = vadd.f32 %v971, %v1059
      %1061 = vmatmul.bf16.gmra.mxu0 %v643
      %v1062 = vpop.f32.mrf.mxu0
      %v1063 = vadd.f32 %v974, %v1062
      %v1064 = vpop.f32.mrf.mxu0
      %v1065 = vadd.f32 %v976, %v1064
      %1066 = vmatmul.bf16.gmra.mxu0 %v647
      %v1067 = vpop.f32.mrf.mxu0
      %v1068 = vadd.f32 %v979, %v1067
      %v1069 = vpop.f32.mrf.mxu0
      %v1070 = vadd.f32 %v981, %v1069
      %1071 = vmatmul.bf16.gmra.mxu0 %v651
      %v1072 = vpop.f32.mrf.mxu0
      %v1073 = vadd.f32 %v984, %v1072
      %v1074 = vpop.f32.mrf.mxu0
      %v1075 = vadd.f32 %v986, %v1074
      %1076 = vmatmul.bf16.gmra.mxu0 %v655
      %v1077 = vpop.f32.mrf.mxu0
      %v1078 = vadd.f32 %v989, %v1077
      %v1079 = vpop.f32.mrf.mxu0
      %v1080 = vadd.f32 %v991, %v1079
      %1081 = vmatmul.bf16.gmra.mxu0 %v659
      %v1082 = vpop.f32.mrf.mxu0
      %v1083 = vadd.f32 %v994, %v1082
      %v1084 = vpop.f32.mrf.mxu0
      %v1085 = vadd.f32 %v996, %v1084
      %1086 = vmatmul.bf16.gmra.mxu0 %v663
      %v1087 = vpop.f32.mrf.mxu0
      %v1088 = vadd.f32 %v999, %v1087
      %v1089 = vpop.f32.mrf.mxu0
      %v1090 = vadd.f32 %v1001, %v1089
      %1091 = vmatmul.bf16.gmra.mxu0 %v667
      %v1092 = vpop.f32.mrf.mxu0
      %v1093 = vadd.f32 %v1004, %v1092
      %v1094 = vpop.f32.mrf.mxu0
      %v1095 = vadd.f32 %v1006, %v1094
      %1096 = vmatmul.bf16.gmra.mxu0 %v671
      %v1097 = vpop.f32.mrf.mxu0
      %v1098 = vadd.f32 %v1009, %v1097
      %v1099 = vpop.f32.mrf.mxu0
      %v1100 = vadd.f32 %v1011, %v1099
      %1101 = vmatmul.bf16.gmra.mxu0 %v675
      %v1102 = vpop.f32.mrf.mxu0
      %v1103 = vadd.f32 %v1014, %v1102
      %v1104 = vpop.f32.mrf.mxu0
      %v1105 = vadd.f32 %v1016, %v1104
      %1106 = vmatmul.bf16.gmra.mxu0 %v679
      %v1107 = vpop.f32.mrf.mxu0
      %v1108 = vadd.f32 %v1019, %v1107
      %v1109 = vpop.f32.mrf.mxu0
      %v1110 = vadd.f32 %v1021, %v1109
      %1111 = vmatmul.bf16.gmra.mxu0 %v683
      %v1112 = vpop.f32.mrf.mxu0
      %v1113 = vadd.f32 %v1024, %v1112
      %v1114 = vpop.f32.mrf.mxu0
      %v1115 = vadd.f32 %v1026, %v1114
      %1116 = vmatmul.bf16.gmra.mxu0 %v687
      %v1117 = vpop.f32.mrf.mxu0
      %v1118 = vadd.f32 %v1029, %v1117
      %v1119 = vpop.f32.mrf.mxu0
      %v1120 = vadd.f32 %v1031, %v1119
      %1121 = vmatmul.bf16.gmra.mxu0 %v691
      %v1122 = vpop.f32.mrf.mxu0
      %v1123 = vadd.f32 %v1034, %v1122
      %v1124 = vpop.f32.mrf.mxu0
      %v1125 = vadd.f32 %v1036, %v1124
      %1126 = vmatmul.bf16.gmra.mxu0 %v695
      %v1127 = vpop.f32.mrf.mxu0
      %v1128 = vadd.f32 %v1039, %v1127
      %v1129 = vpop.f32.mrf.mxu0
      %v1130 = vadd.f32 %v1041, %v1129
      %1131 = vdwg.mxu0
      %1132 = vmatpush.bf16.msra.mxu0 %v913
      %1133 = vmatpush.bf16.msra.mxu0 %v912
      %1134 = vmatpush.bf16.msra.mxu0 %v911
      %1135 = vmatpush.bf16.msra.mxu0 %v910
      %1136 = vmatpush.bf16.msra.mxu0 %v909
      %1137 = vmatpush.bf16.msra.mxu0 %v908
      %1138 = vmatpush.bf16.msra.mxu0 %v907
      %1139 = vmatpush.bf16.msra.mxu0 %v906
      %1140 = vmatmul.bf16.gmra.mxu0 %v636
      %v1141 = vpop.f32.mrf.mxu0
      %v1142 = vadd.f32 %v1053, %v1141
      %v1143 = vpop.f32.mrf.mxu0
      %v1144 = vadd.f32 %v1055, %v1143
      %1145 = vmatmul.bf16.gmra.mxu0 %v640
      %v1146 = vpop.f32.mrf.mxu0
      %v1147 = vadd.f32 %v1058, %v1146
      %v1148 = vpop.f32.mrf.mxu0
      %v1149 = vadd.f32 %v1060, %v1148
      %1150 = vmatmul.bf16.gmra.mxu0 %v644
      %v1151 = vpop.f32.mrf.mxu0
      %v1152 = vadd.f32 %v1063, %v1151
      %v1153 = vpop.f32.mrf.mxu0
      %v1154 = vadd.f32 %v1065, %v1153
      %1155 = vmatmul.bf16.gmra.mxu0 %v648
      %v1156 = vpop.f32.mrf.mxu0
      %v1157 = vadd.f32 %v1068, %v1156
      %v1158 = vpop.f32.mrf.mxu0
      %v1159 = vadd.f32 %v1070, %v1158
      %1160 = vmatmul.bf16.gmra.mxu0 %v652
      %v1161 = vpop.f32.mrf.mxu0
      %v1162 = vadd.f32 %v1073, %v1161
      %v1163 = vpop.f32.mrf.mxu0
      %v1164 = vadd.f32 %v1075, %v1163
      %1165 = vmatmul.bf16.gmra.mxu0 %v656
      %v1166 = vpop.f32.mrf.mxu0
      %v1167 = vadd.f32 %v1078, %v1166
      %v1168 = vpop.f32.mrf.mxu0
      %v1169 = vadd.f32 %v1080, %v1168
      %1170 = vmatmul.bf16.gmra.mxu0 %v660
      %v1171 = vpop.f32.mrf.mxu0
      %v1172 = vadd.f32 %v1083, %v1171
      %v1173 = vpop.f32.mrf.mxu0
      %v1174 = vadd.f32 %v1085, %v1173
      %1175 = vmatmul.bf16.gmra.mxu0 %v664
      %v1176 = vpop.f32.mrf.mxu0
      %v1177 = vadd.f32 %v1088, %v1176
      %v1178 = vpop.f32.mrf.mxu0
      %v1179 = vadd.f32 %v1090, %v1178
      %1180 = vmatmul.bf16.gmra.mxu0 %v668
      %v1181 = vpop.f32.mrf.mxu0
      %v1182 = vadd.f32 %v1093, %v1181
      %v1183 = vpop.f32.mrf.mxu0
      %v1184 = vadd.f32 %v1095, %v1183
      %1185 = vmatmul.bf16.gmra.mxu0 %v672
      %v1186 = vpop.f32.mrf.mxu0
      %v1187 = vadd.f32 %v1098, %v1186
      %v1188 = vpop.f32.mrf.mxu0
      %v1189 = vadd.f32 %v1100, %v1188
      %1190 = vmatmul.bf16.gmra.mxu0 %v676
      %v1191 = vpop.f32.mrf.mxu0
      %v1192 = vadd.f32 %v1103, %v1191
      %v1193 = vpop.f32.mrf.mxu0
      %v1194 = vadd.f32 %v1105, %v1193
      %1195 = vmatmul.bf16.gmra.mxu0 %v680
      %v1196 = vpop.f32.mrf.mxu0
      %v1197 = vadd.f32 %v1108, %v1196
      %v1198 = vpop.f32.mrf.mxu0
      %v1199 = vadd.f32 %v1110, %v1198
      %1200 = vmatmul.bf16.gmra.mxu0 %v684
      %v1201 = vpop.f32.mrf.mxu0
      %v1202 = vadd.f32 %v1113, %v1201
      %v1203 = vpop.f32.mrf.mxu0
      %v1204 = vadd.f32 %v1115, %v1203
      %1205 = vmatmul.bf16.gmra.mxu0 %v688
      %v1206 = vpop.f32.mrf.mxu0
      %v1207 = vadd.f32 %v1118, %v1206
      %v1208 = vpop.f32.mrf.mxu0
      %v1209 = vadd.f32 %v1120, %v1208
      %1210 = vmatmul.bf16.gmra.mxu0 %v692
      %v1211 = vpop.f32.mrf.mxu0
      %v1212 = vadd.f32 %v1123, %v1211
      %v1213 = vpop.f32.mrf.mxu0
      %v1214 = vadd.f32 %v1125, %v1213
      %1215 = vmatmul.bf16.gmra.mxu0 %v696
      %v1216 = vpop.f32.mrf.mxu0
      %v1217 = vadd.f32 %v1128, %v1216
      %v1218 = vpop.f32.mrf.mxu0
      %v1219 = vadd.f32 %v1130, %v1218
      %1220 = vdwg.mxu0
      %1221 = vmatpush.bf16.msra.mxu0 %v921
      %1222 = vmatpush.bf16.msra.mxu0 %v920
      %1223 = vmatpush.bf16.msra.mxu0 %v919
      %1224 = vmatpush.bf16.msra.mxu0 %v918
      %1225 = vmatpush.bf16.msra.mxu0 %v917
      %1226 = vmatpush.bf16.msra.mxu0 %v916
      %1227 = vmatpush.bf16.msra.mxu0 %v915
      %1228 = vmatpush.bf16.msra.mxu0 %v914
      %1229 = vmatmul.bf16.gmra.mxu0 %v637
      %v1230 = vpop.f32.mrf.mxu0
      %v1231 = vadd.f32 %v1142, %v1230
      %v1232 = vpop.f32.mrf.mxu0
      %v1233 = vadd.f32 %v1144, %v1232
      %1234 = vmatmul.bf16.gmra.mxu0 %v641
      %v1235 = vpop.f32.mrf.mxu0
      %v1236 = vadd.f32 %v1147, %v1235
      %v1237 = vpop.f32.mrf.mxu0
      %v1238 = vadd.f32 %v1149, %v1237
      %1239 = vmatmul.bf16.gmra.mxu0 %v645
      %v1240 = vpop.f32.mrf.mxu0
      %v1241 = vadd.f32 %v1152, %v1240
      %v1242 = vpop.f32.mrf.mxu0
      %v1243 = vadd.f32 %v1154, %v1242
      %1244 = vmatmul.bf16.gmra.mxu0 %v649
      %v1245 = vpop.f32.mrf.mxu0
      %v1246 = vadd.f32 %v1157, %v1245
      %v1247 = vpop.f32.mrf.mxu0
      %v1248 = vadd.f32 %v1159, %v1247
      %1249 = vmatmul.bf16.gmra.mxu0 %v653
      %v1250 = vpop.f32.mrf.mxu0
      %v1251 = vadd.f32 %v1162, %v1250
      %v1252 = vpop.f32.mrf.mxu0
      %v1253 = vadd.f32 %v1164, %v1252
      %1254 = vmatmul.bf16.gmra.mxu0 %v657
      %v1255 = vpop.f32.mrf.mxu0
      %v1256 = vadd.f32 %v1167, %v1255
      %v1257 = vpop.f32.mrf.mxu0
      %v1258 = vadd.f32 %v1169, %v1257
      %1259 = vmatmul.bf16.gmra.mxu0 %v661
      %v1260 = vpop.f32.mrf.mxu0
      %v1261 = vadd.f32 %v1172, %v1260
      %v1262 = vpop.f32.mrf.mxu0
      %v1263 = vadd.f32 %v1174, %v1262
      %1264 = vmatmul.bf16.gmra.mxu0 %v665
      %v1265 = vpop.f32.mrf.mxu0
      %v1266 = vadd.f32 %v1177, %v1265
      %v1267 = vpop.f32.mrf.mxu0
      %v1268 = vadd.f32 %v1179, %v1267
      %1269 = vmatmul.bf16.gmra.mxu0 %v669
      %v1270 = vpop.f32.mrf.mxu0
      %v1271 = vadd.f32 %v1182, %v1270
      %v1272 = vpop.f32.mrf.mxu0
      %v1273 = vadd.f32 %v1184, %v1272
      %1274 = vmatmul.bf16.gmra.mxu0 %v673
      %v1275 = vpop.f32.mrf.mxu0
      %v1276 = vadd.f32 %v1187, %v1275
      %v1277 = vpop.f32.mrf.mxu0
      %v1278 = vadd.f32 %v1189, %v1277
      %1279 = vmatmul.bf16.gmra.mxu0 %v677
      %v1280 = vpop.f32.mrf.mxu0
      %v1281 = vadd.f32 %v1192, %v1280
      %v1282 = vpop.f32.mrf.mxu0
      %v1283 = vadd.f32 %v1194, %v1282
      %1284 = vmatmul.bf16.gmra.mxu0 %v681
      %v1285 = vpop.f32.mrf.mxu0
      %v1286 = vadd.f32 %v1197, %v1285
      %v1287 = vpop.f32.mrf.mxu0
      %v1288 = vadd.f32 %v1199, %v1287
      %1289 = vmatmul.bf16.gmra.mxu0 %v685
      %v1290 = vpop.f32.mrf.mxu0
      %v1291 = vadd.f32 %v1202, %v1290
      %v1292 = vpop.f32.mrf.mxu0
      %v1293 = vadd.f32 %v1204, %v1292
      %1294 = vmatmul.bf16.gmra.mxu0 %v689
      %v1295 = vpop.f32.mrf.mxu0
      %v1296 = vadd.f32 %v1207, %v1295
      %v1297 = vpop.f32.mrf.mxu0
      %v1298 = vadd.f32 %v1209, %v1297
      %1299 = vmatmul.bf16.gmra.mxu0 %v693
      %v1300 = vpop.f32.mrf.mxu0
      %v1301 = vadd.f32 %v1212, %v1300
      %v1302 = vpop.f32.mrf.mxu0
      %v1303 = vadd.f32 %v1214, %v1302
      %1304 = vmatmul.bf16.gmra.mxu0 %v697
      %v1305 = vpop.f32.mrf.mxu0
      %v1306 = vadd.f32 %v1217, %v1305
      %v1307 = vpop.f32.mrf.mxu0
      %v1308 = vadd.f32 %v1219, %v1307
      %1309 = vdwg.mxu0
      %v1310 = vld [vmem:[%s297] sm:$0x1]
      %v1312 = vperm.slane %v1310, 0
      %v1314 = vmul.f32 %v1231, %v1312
      %v1315 = vmul.f32 %v1233, %v1312
      %v1316 = vmul.f32 %v1236, %v1312
      %v1317 = vmul.f32 %v1238, %v1312
      %v1318 = vmul.f32 %v1241, %v1312
      %v1319 = vmul.f32 %v1243, %v1312
      %v1320 = vmul.f32 %v1246, %v1312
      %v1321 = vmul.f32 %v1248, %v1312
      %v1322 = vmul.f32 %v1251, %v1312
      %v1323 = vmul.f32 %v1253, %v1312
      %v1324 = vmul.f32 %v1256, %v1312
      %v1325 = vmul.f32 %v1258, %v1312
      %v1326 = vmul.f32 %v1261, %v1312
      %v1327 = vmul.f32 %v1263, %v1312
      %v1328 = vmul.f32 %v1266, %v1312
      %v1329 = vmul.f32 %v1268, %v1312
      %v1330 = vmul.f32 %v1271, %v1312
      %v1331 = vmul.f32 %v1273, %v1312
      %v1332 = vmul.f32 %v1276, %v1312
      %v1333 = vmul.f32 %v1278, %v1312
      %v1334 = vmul.f32 %v1281, %v1312
      %v1335 = vmul.f32 %v1283, %v1312
      %v1336 = vmul.f32 %v1286, %v1312
      %v1337 = vmul.f32 %v1288, %v1312
      %v1338 = vmul.f32 %v1291, %v1312
      %v1339 = vmul.f32 %v1293, %v1312
      %v1340 = vmul.f32 %v1296, %v1312
      %v1341 = vmul.f32 %v1298, %v1312
      %v1342 = vmul.f32 %v1301, %v1312
      %v1343 = vmul.f32 %v1303, %v1312
      %v1344 = vmul.f32 %v1306, %v1312
      %v1345 = vmul.f32 %v1308, %v1312
      %v1346 = vld [vmem:[%s300] sm:$0x1]
      %v1348 = vperm.slane %v1346, 0
      %v1350 = vadd.f32 %v1314, %v1348
      %v1351 = vadd.f32 %v1315, %v1348
      %v1352 = vadd.f32 %v1316, %v1348
      %v1353 = vadd.f32 %v1317, %v1348
      %v1354 = vadd.f32 %v1318, %v1348
      %v1355 = vadd.f32 %v1319, %v1348
      %v1356 = vadd.f32 %v1320, %v1348
      %v1357 = vadd.f32 %v1321, %v1348
      %v1358 = vadd.f32 %v1322, %v1348
      %v1359 = vadd.f32 %v1323, %v1348
      %v1360 = vadd.f32 %v1324, %v1348
      %v1361 = vadd.f32 %v1325, %v1348
      %v1362 = vadd.f32 %v1326, %v1348
      %v1363 = vadd.f32 %v1327, %v1348
      %v1364 = vadd.f32 %v1328, %v1348
      %v1365 = vadd.f32 %v1329, %v1348
      %v1366 = vadd.f32 %v1330, %v1348
      %v1367 = vadd.f32 %v1331, %v1348
      %v1368 = vadd.f32 %v1332, %v1348
      %v1369 = vadd.f32 %v1333, %v1348
      %v1370 = vadd.f32 %v1334, %v1348
      %v1371 = vadd.f32 %v1335, %v1348
      %v1372 = vadd.f32 %v1336, %v1348
      %v1373 = vadd.f32 %v1337, %v1348
      %v1374 = vadd.f32 %v1338, %v1348
      %v1375 = vadd.f32 %v1339, %v1348
      %v1376 = vadd.f32 %v1340, %v1348
      %v1377 = vadd.f32 %v1341, %v1348
      %v1378 = vadd.f32 %v1342, %v1348
      %v1379 = vadd.f32 %v1343, %v1348
      %v1380 = vadd.f32 %v1344, %v1348
      %v1381 = vadd.f32 %v1345, %v1348
      %v1382 = vmax.f32 %v1350, 0.0
      %v1383 = vmax.f32 %v1351, 0.0
      %v1384 = vmax.f32 %v1352, 0.0
      %v1385 = vmax.f32 %v1353, 0.0
      %v1386 = vmax.f32 %v1354, 0.0
      %v1387 = vmax.f32 %v1355, 0.0
      %v1388 = vmax.f32 %v1356, 0.0
      %v1389 = vmax.f32 %v1357, 0.0
      %v1390 = vmax.f32 %v1358, 0.0
      %v1391 = vmax.f32 %v1359, 0.0
      %v1392 = vmax.f32 %v1360, 0.0
      %v1393 = vmax.f32 %v1361, 0.0
      %v1394 = vmax.f32 %v1362, 0.0
      %v1395 = vmax.f32 %v1363, 0.0
      %v1396 = vmax.f32 %v1364, 0.0
      %v1397 = vmax.f32 %v1365, 0.0
      %v1398 = vmax.f32 %v1366, 0.0
      %v1399 = vmax.f32 %v1367, 0.0
      %v1400 = vmax.f32 %v1368, 0.0
      %v1401 = vmax.f32 %v1369, 0.0
      %v1402 = vmax.f32 %v1370, 0.0
      %v1403 = vmax.f32 %v1371, 0.0
      %v1404 = vmax.f32 %v1372, 0.0
      %v1405 = vmax.f32 %v1373, 0.0
      %v1406 = vmax.f32 %v1374, 0.0
      %v1407 = vmax.f32 %v1375, 0.0
      %v1408 = vmax.f32 %v1376, 0.0
      %v1409 = vmax.f32 %v1377, 0.0
      %v1410 = vmax.f32 %v1378, 0.0
      %v1411 = vmax.f32 %v1379, 0.0
      %v1412 = vmax.f32 %v1380, 0.0
      %v1413 = vmax.f32 %v1381, 0.0
      %v1414 = vpack.c.bf16 %v1382, %v1382
      %v1415 = vpack.c.bf16 %v1383, %v1383
      %v1416 = vpack.c.bf16 %v1384, %v1384
      %v1417 = vpack.c.bf16 %v1385, %v1385
      %v1418 = vpack.c.bf16 %v1386, %v1386
      %v1419 = vpack.c.bf16 %v1387, %v1387
      %v1420 = vpack.c.bf16 %v1388, %v1388
      %v1421 = vpack.c.bf16 %v1389, %v1389
      %v1422 = vpack.c.bf16 %v1390, %v1390
      %v1423 = vpack.c.bf16 %v1391, %v1391
      %v1424 = vpack.c.bf16 %v1392, %v1392
      %v1425 = vpack.c.bf16 %v1393, %v1393
      %v1426 = vpack.c.bf16 %v1394, %v1394
      %v1427 = vpack.c.bf16 %v1395, %v1395
      %v1428 = vpack.c.bf16 %v1396, %v1396
      %v1429 = vpack.c.bf16 %v1397, %v1397
      %v1430 = vpack.c.bf16 %v1398, %v1398
      %v1431 = vpack.c.bf16 %v1399, %v1399
      %v1432 = vpack.c.bf16 %v1400, %v1400
      %v1433 = vpack.c.bf16 %v1401, %v1401
      %v1434 = vpack.c.bf16 %v1402, %v1402
      %v1435 = vpack.c.bf16 %v1403, %v1403
      %v1436 = vpack.c.bf16 %v1404, %v1404
      %v1437 = vpack.c.bf16 %v1405, %v1405
      %v1438 = vpack.c.bf16 %v1406, %v1406
      %v1439 = vpack.c.bf16 %v1407, %v1407
      %v1440 = vpack.c.bf16 %v1408, %v1408
      %v1441 = vpack.c.bf16 %v1409, %v1409
      %v1442 = vpack.c.bf16 %v1410, %v1410
      %v1443 = vpack.c.bf16 %v1411, %v1411
      %v1444 = vpack.c.bf16 %v1412, %v1412
      %v1445 = vpack.c.bf16 %v1413, %v1413
      %1446 = vst [vmem:[%s312] sm:$0xf] %v1414
      %1447 = vst [vmem:[%s312 + $0x4] sm:$0xf] %v1415
      %1448 = vst [vmem:[%s312 + $0x8] sm:$0xf] %v1416
      %1449 = vst [vmem:[%s312 + $0xc] sm:$0xf] %v1417
      %1450 = vst [vmem:[%s312 + $0x10] sm:$0xf] %v1418
      %1451 = vst [vmem:[%s312 + $0x14] sm:$0xf] %v1419
      %1452 = vst [vmem:[%s312 + $0x18] sm:$0xf] %v1420
      %1453 = vst [vmem:[%s312 + $0x1c] sm:$0xf] %v1421
      %1454 = vst [vmem:[%s312 + $0x20] sm:$0xf] %v1422
      %1455 = vst [vmem:[%s312 + $0x24] sm:$0xf] %v1423
      %1456 = vst [vmem:[%s312 + $0x28] sm:$0xf] %v1424
      %1457 = vst [vmem:[%s312 + $0x2c] sm:$0xf] %v1425
      %1458 = vst [vmem:[%s312 + $0x30] sm:$0xf] %v1426
      %1459 = vst [vmem:[%s312 + $0x34] sm:$0xf] %v1427
      %1460 = vst [vmem:[%s312 + $0x38] sm:$0xf] %v1428
      %1461 = vst [vmem:[%s312 + $0x3c] sm:$0xf] %v1429
      %1462 = vst [vmem:[%s312 + $0x40] sm:$0xf] %v1430
      %1463 = vst [vmem:[%s312 + $0x44] sm:$0xf] %v1431
      %1464 = vst [vmem:[%s312 + $0x48] sm:$0xf] %v1432
      %1465 = vst [vmem:[%s312 + $0x4c] sm:$0xf] %v1433
      %1466 = vst [vmem:[%s312 + $0x50] sm:$0xf] %v1434
      %1467 = vst [vmem:[%s312 + $0x54] sm:$0xf] %v1435
      %1468 = vst [vmem:[%s312 + $0x58] sm:$0xf] %v1436
      %1469 = vst [vmem:[%s312 + $0x5c] sm:$0xf] %v1437
      %1470 = vst [vmem:[%s312 + $0x60] sm:$0xf] %v1438
      %1471 = vst [vmem:[%s312 + $0x64] sm:$0xf] %v1439
      %1472 = vst [vmem:[%s312 + $0x68] sm:$0xf] %v1440
      %1473 = vst [vmem:[%s312 + $0x6c] sm:$0xf] %v1441
      %1474 = vst [vmem:[%s312 + $0x70] sm:$0xf] %v1442
      %1475 = vst [vmem:[%s312 + $0x74] sm:$0xf] %v1443
      %1476 = vst [vmem:[%s312 + $0x78] sm:$0xf] %v1444
      %1477 = vst [vmem:[%s312 + $0x7c] sm:$0xf] %v1445
      %s1478 = smul.u32 32, %s21
      %p1479 = scmp.lt.s32.totalorder %s20, 3
      %s1480 = scalar_select %p1479, %s20, 3
      %p1481 = scmp.lt.s32.totalorder %s1478, 63
      %s1482 = scalar_select %p1481, %s1478, 63
      %p1483 = scmp.lt.s32.totalorder %s22, 0
      %s1484 = scalar_select %p1483, %s22, 0
      %s1485 = sadd.s32 %s1484, %s1482
      %s1486 = smul.addr %s1480, 64
      %s1487 = sadd.s32 %s1485, %s1486
      %s1488 = smul.addr %s1487, 4
      %s1489 = scalar_lea.vmem %s4, %s1488
      // Predicated region
      $region37: #{generator_forward.8} parent=35 // pred_check
        %p1490 = pneg %p164
      $region38: #{generator_forward.8} parent=35 // pred_check_branch
        %1492 = sbr.rel (%p1490) target = $region40
      $region39: #{generator_forward.8} parent=35 // pred_region
        %s1493 = smul.u32 32, %s21
      $region40: #{generator_forward.8} parent=35 // pred_fallthru
        _
    $region36: #{generator_forward.8} parent=5 // pred_fallthru
      _
    %p1494 = scmp.le.s32.totalorder 2, %s10
    // Predicated region
    $region41: #{generator_forward.8} parent=5 // pred_check
      %p1495 = pneg %p1494
    $region42: #{generator_forward.8} parent=5 // pred_check_branch
      %1497 = sbr.rel (%p1495) target = $region44
    $region43: #{generator_forward.8} parent=5 // pred_region
      %s1498 = ssub.s32 %s10, 2
      // Predicated region
      $region45: #{generator_forward.8} parent=43 // pred_check
        %p1499 = pneg %p170
      $region46: #{generator_forward.8} parent=43 // pred_check_branch
        %1501 = sbr.rel (%p1499) target = $region48
      $region47: #{generator_forward.8} parent=43 // pred_region
        %s1502 = smul.u32 32, %s24
        %p1503 = scmp.lt.s32.totalorder %s23, 3
        %s1504 = scalar_select %p1503, %s23, 3
        %p1505 = scmp.lt.s32.totalorder %s1502, 63
        %s1506 = scalar_select %p1505, %s1502, 63
        %p1507 = scmp.lt.s32.totalorder %s25, 0
        %s1508 = scalar_select %p1507, %s25, 0
        %s1509 = sadd.s32 %s1508, %s1506
        %s1510 = smul.addr %s1504, 64
        %s1511 = sadd.s32 %s1509, %s1510
        %s1512 = smul.addr %s1511, 4
        %s1513 = scalar_lea.vmem %s4, %s1512
      $region48: #{generator_forward.8} parent=43 // pred_fallthru
        _
    $region44: #{generator_forward.8} parent=5 // pred_fallthru
      _
  $region6: #{generator_forward.8} parent=0 // loop_footer
    %s14 = sadd.s32 1, %s10
  $region7: #{generator_forward.8} parent=0 // loop_footer_branch
    %9 = sbr.rel target = $region3
  $region8: #{generator_forward.8} parent=0 // loop_exit
    _

// kernel: generator_forward.9
$region0: #{generator_forward.9}
  #allocation0 [shape = 'u32[]', space=smem, size = 0x4, offset = 0x4, fixed_abs, tag = 'smem constant byte address 0x4 - core index']
  #allocation1 [shape = 'u32[72,128]{1,0:T(1,128)}', space=vmem, size = 0x9000, scoped, tag = 'internal scratch']
  %s0 = inlined_call_operand.vmem [shape: bf16[4,2048,256], index: 0, kind: input, shape index: {}]
  %s1 = inlined_call_operand.vmem [shape: bf16[4,256,128], index: 1, kind: input, shape index: {}]
  %s2 = inlined_call_operand.vmem [shape: f32[1,128], index: 2, kind: input, shape index: {}]
  %s3 = inlined_call_operand.vmem [shape: f32[1,128], index: 3, kind: input, shape index: {}]
  %s4 = inlined_call_operand.vmem [shape: f32[4,2048,128], index: 4, kind: output, shape index: {}]
  %s5 = sld [smem:[#allocation0]]
  $region49: #{generator_forward.9} parent=0
    _
  %s7 = ssub.s32 1, %s5
  %s8 = scalar_select 0, %s7, %s5
  loop: start=0, step=1, limit=34
  $region2: #{generator_forward.9} parent=0 // loop_pre_header
    _
  $region3: #{generator_forward.9} parent=0 // loop_header
    %s10 = sphi 0, %s14
    %p11 = scmp.ge.s32.totalorder %s10, 34
    %s17 = sphi 0, %s36
    %s18 = sphi 0, %s32
    %s19 = sphi 0, %s28
    %s20 = sphi 0, %s17
    %s21 = sphi 0, %s18
    %s22 = sphi 0, %s19
    %s23 = sphi 0, %s20
    %s24 = sphi 0, %s21
    %s25 = sphi 0, %s22
    %s41 = sphi 0, %s43
    %s44 = sphi 0, %s41
    %s45 = sphi 0, %s44
    %s61 = sphi 0, %s45
    %s69 = sphi 0, %s71
    %s72 = sphi 0, %s69
    %s73 = sphi 0, %s72
    %s89 = sphi 0, %s73
    %s95 = sphi 0, %s97
    %s98 = sphi 0, %s95
    %s99 = sphi 0, %s98
    %s115 = sphi 0, %s99
    %s121 = sphi 0, %s123
    %s124 = sphi 0, %s121
    %s125 = sphi 0, %s124
    %s141 = sphi 0, %s125
    %s151 = sphi 0, %s153
    %s154 = sphi 0, %s151
    %s155 = sphi 0, %s154
    %s171 = sphi 0, %s155
  $region4: #{generator_forward.9} parent=0 // loop_header_branch
    %13 = sbr.rel (%p11) target = $region8
  $region5: #{generator_forward.9} parent=0 // loop_body
    %s15 = ssub.s32 %s10, 1
    %s16 = ssub.s32 %s10, 2
    %s26 = sadd.s32 1, %s19
    %p27 = scmp.ge.s32.totalorder %s26, 1
    %s28 = scalar_select %p27, 0, %s26
    %s29 = sadd.s32 1, %s18
    %s30 = scalar_select %p27, %s29, %s18
    %p31 = scmp.ge.s32.totalorder %s30, 8
    %s32 = scalar_select %p31, 0, %s30
    %s33 = sadd.s32 1, %s17
    %s34 = scalar_select %p31, %s33, %s17
    %p35 = scmp.ge.s32.totalorder %s34, 4
    %s36 = scalar_select %p35, 0, %s34
    %s37 = ssub.s32 %s17, %s36
    %s38 = ssub.s32 %s18, %s32
    %s39 = sor.u32 %s37, %s38
    %p40 = scmp.eq.s32.totalorder %s39, 0
    %s42 = sadd.s32 %s41, 1
    %s43 = scalar_select %p40, %s41, %s42
    %p46 = pneg %p40
    %p47 = scmp.eq.s32.totalorder %s10, 31
    %p48 = por %p46, %p47
    %p49 = scmp.ne.s32.totalorder %s41, %s44
    %p50 = scmp.eq.s32.totalorder %s10, 0
    %p51 = por %p49, %p50
    %p52 = scmp.ne.s32.totalorder %s41, %s44
    %p53 = scmp.eq.s32.totalorder %s15, 31
    %p54 = por %p52, %p53
    %p55 = scmp.ne.s32.totalorder %s44, %s45
    %p56 = scmp.eq.s32.totalorder %s15, 0
    %p57 = por %p55, %p56
    %p58 = scmp.ne.s32.totalorder %s44, %s45
    %p59 = scmp.eq.s32.totalorder %s16, 31
    %p60 = por %p58, %p59
    %p62 = scmp.ne.s32.totalorder %s45, %s61
    %p63 = scmp.eq.s32.totalorder %s16, 0
    %p64 = por %p62, %p63
    %s65 = ssub.s32 %s17, %s36
    %s66 = ssub.s32 %s19, %s28
    %s67 = sor.u32 %s65, %s66
    %p68 = scmp.eq.s32.totalorder %s67, 0
    %s70 = sadd.s32 %s69, 1
    %s71 = scalar_select %p68, %s69, %s70
    %p74 = pneg %p68
    %p75 = scmp.eq.s32.totalorder %s10, 31
    %p76 = por %p74, %p75
    %p77 = scmp.ne.s32.totalorder %s69, %s72
    %p78 = scmp.eq.s32.totalorder %s10, 0
    %p79 = por %p77, %p78
    %p80 = scmp.ne.s32.totalorder %s69, %s72
    %p81 = scmp.eq.s32.totalorder %s15, 31
    %p82 = por %p80, %p81
    %p83 = scmp.ne.s32.totalorder %s72, %s73
    %p84 = scmp.eq.s32.totalorder %s15, 0
    %p85 = por %p83, %p84
    %p86 = scmp.ne.s32.totalorder %s72, %s73
    %p87 = scmp.eq.s32.totalorder %s16, 31
    %p88 = por %p86, %p87
    %p90 = scmp.ne.s32.totalorder %s73, %s89
    %p91 = scmp.eq.s32.totalorder %s16, 0
    %p92 = por %p90, %p91
    %s93 = ssub.s32 %s19, %s28
    %p94 = scmp.eq.s32.totalorder %s93, 0
    %s96 = sadd.s32 %s95, 1
    %s97 = scalar_select %p94, %s95, %s96
    %p100 = pneg %p94
    %p101 = scmp.eq.s32.totalorder %s10, 31
    %p102 = por %p100, %p101
    %p103 = scmp.ne.s32.totalorder %s95, %s98
    %p104 = scmp.eq.s32.totalorder %s10, 0
    %p105 = por %p103, %p104
    %p106 = scmp.ne.s32.totalorder %s95, %s98
    %p107 = scmp.eq.s32.totalorder %s15, 31
    %p108 = por %p106, %p107
    %p109 = scmp.ne.s32.totalorder %s98, %s99
    %p110 = scmp.eq.s32.totalorder %s15, 0
    %p111 = por %p109, %p110
    %p112 = scmp.ne.s32.totalorder %s98, %s99
    %p113 = scmp.eq.s32.totalorder %s16, 31
    %p114 = por %p112, %p113
    %p116 = scmp.ne.s32.totalorder %s99, %s115
    %p117 = scmp.eq.s32.totalorder %s16, 0
    %p118 = por %p116, %p117
    %s119 = ssub.s32 %s19, %s28
    %p120 = scmp.eq.s32.totalorder %s119, 0
    %s122 = sadd.s32 %s121, 1
    %s123 = scalar_select %p120, %s121, %s122
    %p126 = pneg %p120
    %p127 = scmp.eq.s32.totalorder %s10, 31
    %p128 = por %p126, %p127
    %p129 = scmp.ne.s32.totalorder %s121, %s124
    %p130 = scmp.eq.s32.totalorder %s10, 0
    %p131 = por %p129, %p130
    %p132 = scmp.ne.s32.totalorder %s121, %s124
    %p133 = scmp.eq.s32.totalorder %s15, 31
    %p134 = por %p132, %p133
    %p135 = scmp.ne.s32.totalorder %s124, %s125
    %p136 = scmp.eq.s32.totalorder %s15, 0
    %p137 = por %p135, %p136
    %p138 = scmp.ne.s32.totalorder %s124, %s125
    %p139 = scmp.eq.s32.totalorder %s16, 31
    %p140 = por %p138, %p139
    %p142 = scmp.ne.s32.totalorder %s125, %s141
    %p143 = scmp.eq.s32.totalorder %s16, 0
    %p144 = por %p142, %p143
    %s145 = ssub.s32 %s17, %s36
    %s146 = ssub.s32 %s18, %s32
    %s147 = sor.u32 %s145, %s146
    %s148 = ssub.s32 %s19, %s28
    %s149 = sor.u32 %s147, %s148
    %p150 = scmp.eq.s32.totalorder %s149, 0
    %s152 = sadd.s32 %s151, 1
    %s153 = scalar_select %p150, %s151, %s152
    %p156 = pneg %p150
    %p157 = scmp.eq.s32.totalorder %s10, 31
    %p158 = por %p156, %p157
    %p159 = scmp.ne.s32.totalorder %s151, %s154
    %p160 = scmp.eq.s32.totalorder %s10, 0
    %p161 = por %p159, %p160
    %p162 = scmp.ne.s32.totalorder %s151, %s154
    %p163 = scmp.eq.s32.totalorder %s15, 31
    %p164 = por %p162, %p163
    %p165 = scmp.ne.s32.totalorder %s154, %s155
    %p166 = scmp.eq.s32.totalorder %s15, 0
    %p167 = por %p165, %p166
    %p168 = scmp.ne.s32.totalorder %s154, %s155
    %p169 = scmp.eq.s32.totalorder %s16, 31
    %p170 = por %p168, %p169
    %p172 = scmp.ne.s32.totalorder %s155, %s171
    %p173 = scmp.eq.s32.totalorder %s16, 0
    %p174 = por %p172, %p173
    %p175 = scmp.le.s32.totalorder 1, %s10
    %p176 = scmp.lt.s32.totalorder %s10, 33
    %p177 = pnand %p175, %p176
    %p178 = pneg %p177
    // Predicated region
    $region9: #{generator_forward.9} parent=5 // pred_check
      _
    $region10: #{generator_forward.9} parent=5 // pred_check_branch
      %180 = sbr.rel (%p177) target = $region12
    $region11: #{generator_forward.9} parent=5 // pred_region
      %s181 = ssub.s32 %s10, 1
      // Predicated region
      $region13: #{generator_forward.9} parent=11 // pred_check
        %p182 = pneg %p111
      $region14: #{generator_forward.9} parent=11 // pred_check_branch
        %184 = sbr.rel (%p182) target = $region16
      $region15: #{generator_forward.9} parent=11 // pred_region
        %p185 = scmp.lt.s32.totalorder %s22, 0
        %s186 = scalar_select %p185, %s22, 0
        %s187 = scalar_lea.vmem %s2, %s186
      $region16: #{generator_forward.9} parent=11 // pred_fallthru
        _
      // Predicated region
      $region17: #{generator_forward.9} parent=11 // pred_check
        %p188 = pneg %p137
      $region18: #{generator_forward.9} parent=11 // pred_check_branch
        %190 = sbr.rel (%p188) target = $region20
      $region19: #{generator_forward.9} parent=11 // pred_region
        %p191 = scmp.lt.s32.totalorder %s22, 0
        %s192 = scalar_select %p191, %s22, 0
        %s193 = scalar_lea.vmem %s3, %s192
      $region20: #{generator_forward.9} parent=11 // pred_fallthru
        _
    $region12: #{generator_forward.9} parent=5 // pred_fallthru
      _
    %p194 = scmp.lt.s32.totalorder %s10, 32
    // Predicated region
    $region21: #{generator_forward.9} parent=5 // pred_check
      %p195 = pneg %p194
    $region22: #{generator_forward.9} parent=5 // pred_check_branch
      %197 = sbr.rel (%p195) target = $region24
    $region23: #{generator_forward.9} parent=5 // pred_region
      // Predicated region
      $region25: #{generator_forward.9} parent=23 // pred_check
        %p198 = pneg %p51
      $region26: #{generator_forward.9} parent=23 // pred_check_branch
        %200 = sbr.rel (%p198) target = $region28
      $region27: #{generator_forward.9} parent=23 // pred_region
        %s201 = smul.u32 32, %s18
        %p202 = scmp.lt.s32.totalorder %s17, 3
        %s203 = scalar_select %p202, %s17, 3
        %p204 = scmp.lt.s32.totalorder %s201, 255
        %s205 = scalar_select %p204, %s201, 255
        %s206 = smul.addr %s205, 2
        %s207 = smul.addr %s203, 512
        %s208 = sadd.s32 %s206, %s207
        %s209 = smul.addr %s208, 4
        %s210 = scalar_lea.vmem %s0, %s209
        %s211 = smul.u32 32, %s18
      $region28: #{generator_forward.9} parent=23 // pred_fallthru
        _
      // Predicated region
      $region29: #{generator_forward.9} parent=23 // pred_check
        %p212 = pneg %p79
      $region30: #{generator_forward.9} parent=23 // pred_check_branch
        %214 = sbr.rel (%p212) target = $region32
      $region31: #{generator_forward.9} parent=23 // pred_region
        %p215 = scmp.lt.s32.totalorder %s17, 3
        %s216 = scalar_select %p215, %s17, 3
        %p217 = scmp.lt.s32.totalorder %s19, 0
        %s218 = scalar_select %p217, %s19, 0
        %s219 = smul.addr %s216, 32
        %s220 = sadd.s32 %s218, %s219
        %s221 = smul.addr %s220, 4
        %s222 = scalar_lea.vmem %s1, %s221
      $region32: #{generator_forward.9} parent=23 // pred_fallthru
        _
    $region24: #{generator_forward.9} parent=5 // pred_fallthru
      _
    %p223 = scmp.le.s32.totalorder 1, %s10
    %p224 = scmp.lt.s32.totalorder %s10, 33
    %p225 = pnand %p223, %p224
    %p226 = pneg %p225
    // Predicated region
    $region33: #{generator_forward.9} parent=5 // pred_check
      _
    $region34: #{generator_forward.9} parent=5 // pred_check_branch
      %228 = sbr.rel (%p225) target = $region36
    $region35: #{generator_forward.9} parent=5 // pred_region
      %s229 = ssub.s32 %s10, 1
      %s230 = smul.u32 32, %s21
      %p231 = scmp.lt.s32.totalorder %s20, 3
      %s232 = scalar_select %p231, %s20, 3
      %p233 = scmp.lt.s32.totalorder %s230, 255
      %s234 = scalar_select %p233, %s230, 255
      %s235 = smul.addr %s234, 2
      %s236 = smul.addr %s232, 512
      %s237 = sadd.s32 %s235, %s236
      %s238 = smul.addr %s237, 4
      %s239 = scalar_lea.vmem %s0, %s238
      %p240 = pneg %p57
      %p241 = pneg %p54
      %p242 = scmp.lt.s32.totalorder %s20, 3
      %s243 = scalar_select %p242, %s20, 3
      %p244 = scmp.lt.s32.totalorder %s22, 0
      %s245 = scalar_select %p244, %s22, 0
      %s246 = smul.addr %s243, 32
      %s247 = sadd.s32 %s245, %s246
      %s248 = smul.addr %s247, 4
      %s249 = scalar_lea.vmem %s1, %s248
      %p250 = pneg %p85
      %p251 = pneg %p82
      %p252 = scmp.lt.s32.totalorder %s22, 0
      %s253 = scalar_select %p252, %s22, 0
      %s254 = scalar_lea.vmem %s2, %s253
      %p255 = pneg %p111
      %p256 = pneg %p108
      %p257 = scmp.lt.s32.totalorder %s22, 0
      %s258 = scalar_select %p257, %s22, 0
      %s259 = scalar_lea.vmem %s3, %s258
      %p260 = pneg %p137
      %p261 = pneg %p134
      %p262 = pneg %p167
      %p263 = pneg %p164
      %s264 = smul.u32 32, %s21
      %p265 = scmp.lt.s32.totalorder %s20, 3
      %s266 = scalar_select %p265, %s20, 3
      %p267 = scmp.lt.s32.totalorder %s264, 255
      %s268 = scalar_select %p267, %s264, 255
      %p269 = scmp.lt.s32.totalorder %s22, 0
      %s270 = scalar_select %p269, %s22, 0
      %s271 = sadd.s32 %s270, %s268
      %s272 = smul.addr %s266, 256
      %s273 = sadd.s32 %s271, %s272
      %s274 = smul.addr %s273, 8
      %s275 = scalar_lea.vmem %s4, %s274
      %s276 = smul.u32 32, %s21
      %p277 = scmp.lt.s32.totalorder %s20, 3
      %s278 = scalar_select %p277, %s20, 3
      %p279 = scmp.lt.s32.totalorder %s276, 255
      %s280 = scalar_select %p279, %s276, 255
      %s281 = smul.addr %s280, 2
      %s282 = smul.addr %s278, 512
      %s283 = sadd.s32 %s281, %s282
      %s284 = smul.addr %s283, 4
      %s285 = scalar_lea.vmem %s0, %s284
      %s286 = smul.u32 32, %s21
      %p287 = scmp.lt.s32.totalorder %s20, 3
      %s288 = scalar_select %p287, %s20, 3
      %p289 = scmp.lt.s32.totalorder %s22, 0
      %s290 = scalar_select %p289, %s22, 0
      %s291 = smul.addr %s288, 32
      %s292 = sadd.s32 %s290, %s291
      %s293 = smul.addr %s292, 4
      %s294 = scalar_lea.vmem %s1, %s293
      %p295 = scmp.lt.s32.totalorder %s22, 0
      %s296 = scalar_select %p295, %s22, 0
      %s297 = scalar_lea.vmem %s2, %s296
      %p298 = scmp.lt.s32.totalorder %s22, 0
      %s299 = scalar_select %p298, %s22, 0
      %s300 = scalar_lea.vmem %s3, %s299
      %s301 = smul.u32 32, %s21
      %p302 = scmp.lt.s32.totalorder %s20, 3
      %s303 = scalar_select %p302, %s20, 3
      %p304 = scmp.lt.s32.totalorder %s301, 255
      %s305 = scalar_select %p304, %s301, 255
      %p306 = scmp.lt.s32.totalorder %s22, 0
      %s307 = scalar_select %p306, %s22, 0
      %s308 = sadd.s32 %s307, %s305
      %s309 = smul.addr %s303, 256
      %s310 = sadd.s32 %s308, %s309
      %s311 = smul.addr %s310, 8
      %s312 = scalar_lea.vmem %s4, %s311
      %s313 = smul.u32 32, %s21
      %v314 = vld [vmem:[%s285] sm:$0xff]
      %v315 = vld [vmem:[%s285 + $0x8] sm:$0xff]
      %v316 = vld [vmem:[%s285 + $0x10] sm:$0xff]
      %v317 = vld [vmem:[%s285 + $0x18] sm:$0xff]
      %v318 = vld [vmem:[%s285 + $0x20] sm:$0xff]
      %v319 = vld [vmem:[%s285 + $0x28] sm:$0xff]
      %v320 = vld [vmem:[%s285 + $0x30] sm:$0xff]
      %v321 = vld [vmem:[%s285 + $0x38] sm:$0xff]
      %v322 = vld [vmem:[%s285 + $0x40] sm:$0xff]
      %v323 = vld [vmem:[%s285 + $0x48] sm:$0xff]
      %v324 = vld [vmem:[%s285 + $0x50] sm:$0xff]
      %v325 = vld [vmem:[%s285 + $0x58] sm:$0xff]
      %v326 = vld [vmem:[%s285 + $0x60] sm:$0xff]
      %v327 = vld [vmem:[%s285 + $0x68] sm:$0xff]
      %v328 = vld [vmem:[%s285 + $0x70] sm:$0xff]
      %v329 = vld [vmem:[%s285 + $0x78] sm:$0xff]
      %v330 = vld [vmem:[%s285 + $0x80] sm:$0xff]
      %v331 = vld [vmem:[%s285 + $0x88] sm:$0xff]
      %v332 = vld [vmem:[%s285 + $0x90] sm:$0xff]
      %v333 = vld [vmem:[%s285 + $0x98] sm:$0xff]
      %v334 = vld [vmem:[%s285 + $0xa0] sm:$0xff]
      %v335 = vld [vmem:[%s285 + $0xa8] sm:$0xff]
      %v336 = vld [vmem:[%s285 + $0xb0] sm:$0xff]
      %v337 = vld [vmem:[%s285 + $0xb8] sm:$0xff]
      %v338 = vld [vmem:[%s285 + $0xc0] sm:$0xff]
      %v339 = vld [vmem:[%s285 + $0xc8] sm:$0xff]
      %v340 = vld [vmem:[%s285 + $0xd0] sm:$0xff]
      %v341 = vld [vmem:[%s285 + $0xd8] sm:$0xff]
      %v342 = vld [vmem:[%s285 + $0xe0] sm:$0xff]
      %v343 = vld [vmem:[%s285 + $0xe8] sm:$0xff]
      %v344 = vld [vmem:[%s285 + $0xf0] sm:$0xff]
      %v345 = vld [vmem:[%s285 + $0xf8] sm:$0xff]
      %v346 = vld [vmem:[%s294] sm:$0xf]
      %v347 = vld [vmem:[%s294 + $0x4] sm:$0xf]
      %v348 = vld [vmem:[%s294 + $0x8] sm:$0xf]
      %v349 = vld [vmem:[%s294 + $0xc] sm:$0xf]
      %v350 = vld [vmem:[%s294 + $0x10] sm:$0xf]
      %v351 = vld [vmem:[%s294 + $0x14] sm:$0xf]
      %v352 = vld [vmem:[%s294 + $0x18] sm:$0xf]
      %v353 = vld [vmem:[%s294 + $0x1c] sm:$0xf]
      %v354 = vld [vmem:[%s294 + $0x20] sm:$0xf]
      %v355 = vld [vmem:[%s294 + $0x24] sm:$0xf]
      %v356 = vld [vmem:[%s294 + $0x28] sm:$0xf]
      %v357 = vld [vmem:[%s294 + $0x2c] sm:$0xf]
      %v358 = vld [vmem:[%s294 + $0x30] sm:$0xf]
      %v359 = vld [vmem:[%s294 + $0x34] sm:$0xf]
      %v360 = vld [vmem:[%s294 + $0x38] sm:$0xf]
      %v361 = vld [vmem:[%s294 + $0x3c] sm:$0xf]
      %v362 = vld [vmem:[%s294 + $0x40] sm:$0xf]
      %v363 = vld [vmem:[%s294 + $0x44] sm:$0xf]
      %v364 = vld [vmem:[%s294 + $0x48] sm:$0xf]
      %v365 = vld [vmem:[%s294 + $0x4c] sm:$0xf]
      %v366 = vld [vmem:[%s294 + $0x50] sm:$0xf]
      %v367 = vld [vmem:[%s294 + $0x54] sm:$0xf]
      %v368 = vld [vmem:[%s294 + $0x58] sm:$0xf]
      %v369 = vld [vmem:[%s294 + $0x5c] sm:$0xf]
      %v370 = vld [vmem:[%s294 + $0x60] sm:$0xf]
      %v371 = vld [vmem:[%s294 + $0x64] sm:$0xf]
      %v372 = vld [vmem:[%s294 + $0x68] sm:$0xf]
      %v373 = vld [vmem:[%s294 + $0x6c] sm:$0xf]
      %v374 = vld [vmem:[%s294 + $0x70] sm:$0xf]
      %v375 = vld [vmem:[%s294 + $0x74] sm:$0xf]
      %v376 = vld [vmem:[%s294 + $0x78] sm:$0xf]
      %v377 = vld [vmem:[%s294 + $0x7c] sm:$0xf]
      %v410 = vunpack.c.l.b16 %v314
      %v411 = vunpack.c.h.b16 %v314
      %v412 = vunpack.c.l.b16 %v315
      %v413 = vunpack.c.h.b16 %v315
      %v414 = vunpack.c.l.b16 %v316
      %v415 = vunpack.c.h.b16 %v316
      %v416 = vunpack.c.l.b16 %v317
      %v417 = vunpack.c.h.b16 %v317
      %v418 = vunpack.c.l.b16 %v318
      %v419 = vunpack.c.h.b16 %v318
      %v420 = vunpack.c.l.b16 %v319
      %v421 = vunpack.c.h.b16 %v319
      %v422 = vunpack.c.l.b16 %v320
      %v423 = vunpack.c.h.b16 %v320
      %v424 = vunpack.c.l.b16 %v321
      %v425 = vunpack.c.h.b16 %v321
      %v426 = vunpack.c.l.b16 %v322
      %v427 = vunpack.c.h.b16 %v322
      %v428 = vunpack.c.l.b16 %v323
      %v429 = vunpack.c.h.b16 %v323
      %v430 = vunpack.c.l.b16 %v324
      %v431 = vunpack.c.h.b16 %v324
      %v432 = vunpack.c.l.b16 %v325
      %v433 = vunpack.c.h.b16 %v325
      %v434 = vunpack.c.l.b16 %v326
      %v435 = vunpack.c.h.b16 %v326
      %v436 = vunpack.c.l.b16 %v327
      %v437 = vunpack.c.h.b16 %v327
      %v438 = vunpack.c.l.b16 %v328
      %v439 = vunpack.c.h.b16 %v328
      %v440 = vunpack.c.l.b16 %v329
      %v441 = vunpack.c.h.b16 %v329
      %v442 = vunpack.c.l.b16 %v330
      %v443 = vunpack.c.h.b16 %v330
      %v444 = vunpack.c.l.b16 %v331
      %v445 = vunpack.c.h.b16 %v331
      %v446 = vunpack.c.l.b16 %v332
      %v447 = vunpack.c.h.b16 %v332
      %v448 = vunpack.c.l.b16 %v333
      %v449 = vunpack.c.h.b16 %v333
      %v450 = vunpack.c.l.b16 %v334
      %v451 = vunpack.c.h.b16 %v334
      %v452 = vunpack.c.l.b16 %v335
      %v453 = vunpack.c.h.b16 %v335
      %v454 = vunpack.c.l.b16 %v336
      %v455 = vunpack.c.h.b16 %v336
      %v456 = vunpack.c.l.b16 %v337
      %v457 = vunpack.c.h.b16 %v337
      %v458 = vunpack.c.l.b16 %v338
      %v459 = vunpack.c.h.b16 %v338
      %v460 = vunpack.c.l.b16 %v339
      %v461 = vunpack.c.h.b16 %v339
      %v462 = vunpack.c.l.b16 %v340
      %v463 = vunpack.c.h.b16 %v340
      %v464 = vunpack.c.l.b16 %v341
      %v465 = vunpack.c.h.b16 %v341
      %v466 = vunpack.c.l.b16 %v342
      %v467 = vunpack.c.h.b16 %v342
      %v468 = vunpack.c.l.b16 %v343
      %v469 = vunpack.c.h.b16 %v343
      %v470 = vunpack.c.l.b16 %v344
      %v471 = vunpack.c.h.b16 %v344
      %v472 = vunpack.c.l.b16 %v345
      %v473 = vunpack.c.h.b16 %v345
      %v474 = vpack.c.b16 %v412, %v410
      %v475 = vpack.c.b16 %v413, %v411
      %v476 = vpack.c.b16 %v416, %v414
      %v477 = vpack.c.b16 %v417, %v415
      %v478 = vpack.c.b16 %v420, %v418
      %v479 = vpack.c.b16 %v421, %v419
      %v480 = vpack.c.b16 %v424, %v422
      %v481 = vpack.c.b16 %v425, %v423
      %v482 = vpack.c.b16 %v428, %v426
      %v483 = vpack.c.b16 %v429, %v427
      %v484 = vpack.c.b16 %v432, %v430
      %v485 = vpack.c.b16 %v433, %v431
      %v486 = vpack.c.b16 %v436, %v434
      %v487 = vpack.c.b16 %v437, %v435
      %v488 = vpack.c.b16 %v440, %v438
      %v489 = vpack.c.b16 %v441, %v439
      %v490 = vpack.c.b16 %v444, %v442
      %v491 = vpack.c.b16 %v445, %v443
      %v492 = vpack.c.b16 %v448, %v446
      %v493 = vpack.c.b16 %v449, %v447
      %v494 = vpack.c.b16 %v452, %v450
      %v495 = vpack.c.b16 %v453, %v451
      %v496 = vpack.c.b16 %v456, %v454
      %v497 = vpack.c.b16 %v457, %v455
      %v498 = vpack.c.b16 %v460, %v458
      %v499 = vpack.c.b16 %v461, %v459
      %v500 = vpack.c.b16 %v464, %v462
      %v501 = vpack.c.b16 %v465, %v463
      %v502 = vpack.c.b16 %v468, %v466
      %v503 = vpack.c.b16 %v469, %v467
      %v504 = vpack.c.b16 %v472, %v470
      %v505 = vpack.c.b16 %v473, %v471
      %v570 = vunpack.c.l.b16 %v346
      %v571 = vunpack.c.l.b16 %v347
      %v572 = vunpack.c.l.b16 %v348
      %v573 = vunpack.c.l.b16 %v349
      %v574 = vunpack.c.l.b16 %v350
      %v575 = vunpack.c.l.b16 %v351
      %v576 = vunpack.c.l.b16 %v352
      %v577 = vunpack.c.l.b16 %v353
      %v578 = vunpack.c.l.b16 %v354
      %v579 = vunpack.c.l.b16 %v355
      %v580 = vunpack.c.l.b16 %v356
      %v581 = vunpack.c.l.b16 %v357
      %v582 = vunpack.c.l.b16 %v358
      %v583 = vunpack.c.l.b16 %v359
      %v584 = vunpack.c.l.b16 %v360
      %v585 = vunpack.c.l.b16 %v361
      %v586 = vunpack.c.l.b16 %v362
      %v587 = vunpack.c.l.b16 %v363
      %v588 = vunpack.c.l.b16 %v364
      %v589 = vunpack.c.l.b16 %v365
      %v590 = vunpack.c.l.b16 %v366
      %v591 = vunpack.c.l.b16 %v367
      %v592 = vunpack.c.l.b16 %v368
      %v593 = vunpack.c.l.b16 %v369
      %v594 = vunpack.c.l.b16 %v370
      %v595 = vunpack.c.l.b16 %v371
      %v596 = vunpack.c.l.b16 %v372
      %v597 = vunpack.c.l.b16 %v373
      %v598 = vunpack.c.l.b16 %v374
      %v599 = vunpack.c.l.b16 %v375
      %v600 = vunpack.c.l.b16 %v376
      %v601 = vunpack.c.l.b16 %v377
      %v602 = vpack.c.b16 %v571, %v570
      %v603 = vpack.c.b16 %v573, %v572
      %v604 = vpack.c.b16 %v575, %v574
      %v605 = vpack.c.b16 %v577, %v576
      %v606 = vpack.c.b16 %v579, %v578
      %v607 = vpack.c.b16 %v581, %v580
      %v608 = vpack.c.b16 %v583, %v582
      %v609 = vpack.c.b16 %v585, %v584
      %v610 = vpack.c.b16 %v587, %v586
      %v611 = vpack.c.b16 %v589, %v588
      %v612 = vpack.c.b16 %v591, %v590
      %v613 = vpack.c.b16 %v593, %v592
      %v614 = vpack.c.b16 %v595, %v594
      %v615 = vpack.c.b16 %v597, %v596
      %v616 = vpack.c.b16 %v599, %v598
      %v617 = vpack.c.b16 %v601, %v600
      %634 = vmatpush.bf16.msra.mxu0 %v609
      %635 = vmatpush.bf16.msra.mxu0 %v608
      %636 = vmatpush.bf16.msra.mxu0 %v607
      %637 = vmatpush.bf16.msra.mxu0 %v606
      %638 = vmatpush.bf16.msra.mxu0 %v605
      %639 = vmatpush.bf16.msra.mxu0 %v604
      %640 = vmatpush.bf16.msra.mxu0 %v603
      %641 = vmatpush.bf16.msra.mxu0 %v602
      %642 = vmatmul.bf16.gmra.mxu0 %v474
      %v643 = vpop.f32.mrf.mxu0
      %v644 = vadd.f32 0.0, %v643
      %v645 = vpop.f32.mrf.mxu0
      %v646 = vadd.f32 0.0, %v645
      %647 = vmatmul.bf16.gmra.mxu0 %v476
      %v648 = vpop.f32.mrf.mxu0
      %v649 = vadd.f32 0.0, %v648
      %v650 = vpop.f32.mrf.mxu0
      %v651 = vadd.f32 0.0, %v650
      %652 = vmatmul.bf16.gmra.mxu0 %v478
      %v653 = vpop.f32.mrf.mxu0
      %v654 = vadd.f32 0.0, %v653
      %v655 = vpop.f32.mrf.mxu0
      %v656 = vadd.f32 0.0, %v655
      %657 = vmatmul.bf16.gmra.mxu0 %v480
      %v658 = vpop.f32.mrf.mxu0
      %v659 = vadd.f32 0.0, %v658
      %v660 = vpop.f32.mrf.mxu0
      %v661 = vadd.f32 0.0, %v660
      %662 = vmatmul.bf16.gmra.mxu0 %v482
      %v663 = vpop.f32.mrf.mxu0
      %v664 = vadd.f32 0.0, %v663
      %v665 = vpop.f32.mrf.mxu0
      %v666 = vadd.f32 0.0, %v665
      %667 = vmatmul.bf16.gmra.mxu0 %v484
      %v668 = vpop.f32.mrf.mxu0
      %v669 = vadd.f32 0.0, %v668
      %v670 = vpop.f32.mrf.mxu0
      %v671 = vadd.f32 0.0, %v670
      %672 = vmatmul.bf16.gmra.mxu0 %v486
      %v673 = vpop.f32.mrf.mxu0
      %v674 = vadd.f32 0.0, %v673
      %v675 = vpop.f32.mrf.mxu0
      %v676 = vadd.f32 0.0, %v675
      %677 = vmatmul.bf16.gmra.mxu0 %v488
      %v678 = vpop.f32.mrf.mxu0
      %v679 = vadd.f32 0.0, %v678
      %v680 = vpop.f32.mrf.mxu0
      %v681 = vadd.f32 0.0, %v680
      %682 = vmatmul.bf16.gmra.mxu0 %v490
      %v683 = vpop.f32.mrf.mxu0
      %v684 = vadd.f32 0.0, %v683
      %v685 = vpop.f32.mrf.mxu0
      %v686 = vadd.f32 0.0, %v685
      %687 = vmatmul.bf16.gmra.mxu0 %v492
      %v688 = vpop.f32.mrf.mxu0
      %v689 = vadd.f32 0.0, %v688
      %v690 = vpop.f32.mrf.mxu0
      %v691 = vadd.f32 0.0, %v690
      %692 = vmatmul.bf16.gmra.mxu0 %v494
      %v693 = vpop.f32.mrf.mxu0
      %v694 = vadd.f32 0.0, %v693
      %v695 = vpop.f32.mrf.mxu0
      %v696 = vadd.f32 0.0, %v695
      %697 = vmatmul.bf16.gmra.mxu0 %v496
      %v698 = vpop.f32.mrf.mxu0
      %v699 = vadd.f32 0.0, %v698
      %v700 = vpop.f32.mrf.mxu0
      %v701 = vadd.f32 0.0, %v700
      %702 = vmatmul.bf16.gmra.mxu0 %v498
      %v703 = vpop.f32.mrf.mxu0
      %v704 = vadd.f32 0.0, %v703
      %v705 = vpop.f32.mrf.mxu0
      %v706 = vadd.f32 0.0, %v705
      %707 = vmatmul.bf16.gmra.mxu0 %v500
      %v708 = vpop.f32.mrf.mxu0
      %v709 = vadd.f32 0.0, %v708
      %v710 = vpop.f32.mrf.mxu0
      %v711 = vadd.f32 0.0, %v710
      %712 = vmatmul.bf16.gmra.mxu0 %v502
      %v713 = vpop.f32.mrf.mxu0
      %v714 = vadd.f32 0.0, %v713
      %v715 = vpop.f32.mrf.mxu0
      %v716 = vadd.f32 0.0, %v715
      %717 = vmatmul.bf16.gmra.mxu0 %v504
      %v718 = vpop.f32.mrf.mxu0
      %v719 = vadd.f32 0.0, %v718
      %v720 = vpop.f32.mrf.mxu0
      %v721 = vadd.f32 0.0, %v720
      %722 = vdwg.mxu0
      %723 = vmatpush.bf16.msra.mxu0 %v617
      %724 = vmatpush.bf16.msra.mxu0 %v616
      %725 = vmatpush.bf16.msra.mxu0 %v615
      %726 = vmatpush.bf16.msra.mxu0 %v614
      %727 = vmatpush.bf16.msra.mxu0 %v613
      %728 = vmatpush.bf16.msra.mxu0 %v612
      %729 = vmatpush.bf16.msra.mxu0 %v611
      %730 = vmatpush.bf16.msra.mxu0 %v610
      %731 = vmatmul.bf16.gmra.mxu0 %v475
      %v732 = vpop.f32.mrf.mxu0
      %v733 = vadd.f32 %v644, %v732
      %v734 = vpop.f32.mrf.mxu0
      %v735 = vadd.f32 %v646, %v734
      %736 = vmatmul.bf16.gmra.mxu0 %v477
      %v737 = vpop.f32.mrf.mxu0
      %v738 = vadd.f32 %v649, %v737
      %v739 = vpop.f32.mrf.mxu0
      %v740 = vadd.f32 %v651, %v739
      %741 = vmatmul.bf16.gmra.mxu0 %v479
      %v742 = vpop.f32.mrf.mxu0
      %v743 = vadd.f32 %v654, %v742
      %v744 = vpop.f32.mrf.mxu0
      %v745 = vadd.f32 %v656, %v744
      %746 = vmatmul.bf16.gmra.mxu0 %v481
      %v747 = vpop.f32.mrf.mxu0
      %v748 = vadd.f32 %v659, %v747
      %v749 = vpop.f32.mrf.mxu0
      %v750 = vadd.f32 %v661, %v749
      %751 = vmatmul.bf16.gmra.mxu0 %v483
      %v752 = vpop.f32.mrf.mxu0
      %v753 = vadd.f32 %v664, %v752
      %v754 = vpop.f32.mrf.mxu0
      %v755 = vadd.f32 %v666, %v754
      %756 = vmatmul.bf16.gmra.mxu0 %v485
      %v757 = vpop.f32.mrf.mxu0
      %v758 = vadd.f32 %v669, %v757
      %v759 = vpop.f32.mrf.mxu0
      %v760 = vadd.f32 %v671, %v759
      %761 = vmatmul.bf16.gmra.mxu0 %v487
      %v762 = vpop.f32.mrf.mxu0
      %v763 = vadd.f32 %v674, %v762
      %v764 = vpop.f32.mrf.mxu0
      %v765 = vadd.f32 %v676, %v764
      %766 = vmatmul.bf16.gmra.mxu0 %v489
      %v767 = vpop.f32.mrf.mxu0
      %v768 = vadd.f32 %v679, %v767
      %v769 = vpop.f32.mrf.mxu0
      %v770 = vadd.f32 %v681, %v769
      %771 = vmatmul.bf16.gmra.mxu0 %v491
      %v772 = vpop.f32.mrf.mxu0
      %v773 = vadd.f32 %v684, %v772
      %v774 = vpop.f32.mrf.mxu0
      %v775 = vadd.f32 %v686, %v774
      %776 = vmatmul.bf16.gmra.mxu0 %v493
      %v777 = vpop.f32.mrf.mxu0
      %v778 = vadd.f32 %v689, %v777
      %v779 = vpop.f32.mrf.mxu0
      %v780 = vadd.f32 %v691, %v779
      %781 = vmatmul.bf16.gmra.mxu0 %v495
      %v782 = vpop.f32.mrf.mxu0
      %v783 = vadd.f32 %v694, %v782
      %v784 = vpop.f32.mrf.mxu0
      %v785 = vadd.f32 %v696, %v784
      %786 = vmatmul.bf16.gmra.mxu0 %v497
      %v787 = vpop.f32.mrf.mxu0
      %v788 = vadd.f32 %v699, %v787
      %v789 = vpop.f32.mrf.mxu0
      %v790 = vadd.f32 %v701, %v789
      %791 = vmatmul.bf16.gmra.mxu0 %v499
      %v792 = vpop.f32.mrf.mxu0
      %v793 = vadd.f32 %v704, %v792
      %v794 = vpop.f32.mrf.mxu0
      %v795 = vadd.f32 %v706, %v794
      %796 = vmatmul.bf16.gmra.mxu0 %v501
      %v797 = vpop.f32.mrf.mxu0
      %v798 = vadd.f32 %v709, %v797
      %v799 = vpop.f32.mrf.mxu0
      %v800 = vadd.f32 %v711, %v799
      %801 = vmatmul.bf16.gmra.mxu0 %v503
      %v802 = vpop.f32.mrf.mxu0
      %v803 = vadd.f32 %v714, %v802
      %v804 = vpop.f32.mrf.mxu0
      %v805 = vadd.f32 %v716, %v804
      %806 = vmatmul.bf16.gmra.mxu0 %v505
      %v807 = vpop.f32.mrf.mxu0
      %v808 = vadd.f32 %v719, %v807
      %v809 = vpop.f32.mrf.mxu0
      %v810 = vadd.f32 %v721, %v809
      %811 = vdwg.mxu0
      %v812 = vld [vmem:[%s297] sm:$0x1]
      %v814 = vperm.slane %v812, 0
      %v816 = vmul.f32 %v733, %v814
      %v817 = vmul.f32 %v735, %v814
      %v818 = vmul.f32 %v738, %v814
      %v819 = vmul.f32 %v740, %v814
      %v820 = vmul.f32 %v743, %v814
      %v821 = vmul.f32 %v745, %v814
      %v822 = vmul.f32 %v748, %v814
      %v823 = vmul.f32 %v750, %v814
      %v824 = vmul.f32 %v753, %v814
      %v825 = vmul.f32 %v755, %v814
      %v826 = vmul.f32 %v758, %v814
      %v827 = vmul.f32 %v760, %v814
      %v828 = vmul.f32 %v763, %v814
      %v829 = vmul.f32 %v765, %v814
      %v830 = vmul.f32 %v768, %v814
      %v831 = vmul.f32 %v770, %v814
      %v832 = vmul.f32 %v773, %v814
      %v833 = vmul.f32 %v775, %v814
      %v834 = vmul.f32 %v778, %v814
      %v835 = vmul.f32 %v780, %v814
      %v836 = vmul.f32 %v783, %v814
      %v837 = vmul.f32 %v785, %v814
      %v838 = vmul.f32 %v788, %v814
      %v839 = vmul.f32 %v790, %v814
      %v840 = vmul.f32 %v793, %v814
      %v841 = vmul.f32 %v795, %v814
      %v842 = vmul.f32 %v798, %v814
      %v843 = vmul.f32 %v800, %v814
      %v844 = vmul.f32 %v803, %v814
      %v845 = vmul.f32 %v805, %v814
      %v846 = vmul.f32 %v808, %v814
      %v847 = vmul.f32 %v810, %v814
      %v848 = vld [vmem:[%s300] sm:$0x1]
      %v850 = vperm.slane %v848, 0
      %v852 = vadd.f32 %v816, %v850
      %v853 = vadd.f32 %v817, %v850
      %v854 = vadd.f32 %v818, %v850
      %v855 = vadd.f32 %v819, %v850
      %v856 = vadd.f32 %v820, %v850
      %v857 = vadd.f32 %v821, %v850
      %v858 = vadd.f32 %v822, %v850
      %v859 = vadd.f32 %v823, %v850
      %v860 = vadd.f32 %v824, %v850
      %v861 = vadd.f32 %v825, %v850
      %v862 = vadd.f32 %v826, %v850
      %v863 = vadd.f32 %v827, %v850
      %v864 = vadd.f32 %v828, %v850
      %v865 = vadd.f32 %v829, %v850
      %v866 = vadd.f32 %v830, %v850
      %v867 = vadd.f32 %v831, %v850
      %v868 = vadd.f32 %v832, %v850
      %v869 = vadd.f32 %v833, %v850
      %v870 = vadd.f32 %v834, %v850
      %v871 = vadd.f32 %v835, %v850
      %v872 = vadd.f32 %v836, %v850
      %v873 = vadd.f32 %v837, %v850
      %v874 = vadd.f32 %v838, %v850
      %v875 = vadd.f32 %v839, %v850
      %v876 = vadd.f32 %v840, %v850
      %v877 = vadd.f32 %v841, %v850
      %v878 = vadd.f32 %v842, %v850
      %v879 = vadd.f32 %v843, %v850
      %v880 = vadd.f32 %v844, %v850
      %v881 = vadd.f32 %v845, %v850
      %v882 = vadd.f32 %v846, %v850
      %v883 = vadd.f32 %v847, %v850
      %v884 = vtanh.pop %v852
      %v885 = vtanh.pop %v853
      %v886 = vtanh.pop %v854
      %v887 = vtanh.pop %v855
      %v888 = vtanh.pop %v856
      %v889 = vtanh.pop %v857
      %v890 = vtanh.pop %v858
      %v891 = vtanh.pop %v859
      %v892 = vtanh.pop %v860
      %v893 = vtanh.pop %v861
      %v894 = vtanh.pop %v862
      %v895 = vtanh.pop %v863
      %v896 = vtanh.pop %v864
      %v897 = vtanh.pop %v865
      %v898 = vtanh.pop %v866
      %v899 = vtanh.pop %v867
      %v900 = vtanh.pop %v868
      %v901 = vtanh.pop %v869
      %v902 = vtanh.pop %v870
      %v903 = vtanh.pop %v871
      %v904 = vtanh.pop %v872
      %v905 = vtanh.pop %v873
      %v906 = vtanh.pop %v874
      %v907 = vtanh.pop %v875
      %v908 = vtanh.pop %v876
      %v909 = vtanh.pop %v877
      %v910 = vtanh.pop %v878
      %v911 = vtanh.pop %v879
      %v912 = vtanh.pop %v880
      %v913 = vtanh.pop %v881
      %v914 = vtanh.pop %v882
      %v915 = vtanh.pop %v883
      %916 = vst [vmem:[%s312] sm:$0xff] %v884
      %917 = vst [vmem:[%s312 + $0x8] sm:$0xff] %v885
      %918 = vst [vmem:[%s312 + $0x10] sm:$0xff] %v886
      %919 = vst [vmem:[%s312 + $0x18] sm:$0xff] %v887
      %920 = vst [vmem:[%s312 + $0x20] sm:$0xff] %v888
      %921 = vst [vmem:[%s312 + $0x28] sm:$0xff] %v889
      %922 = vst [vmem:[%s312 + $0x30] sm:$0xff] %v890
      %923 = vst [vmem:[%s312 + $0x38] sm:$0xff] %v891
      %924 = vst [vmem:[%s312 + $0x40] sm:$0xff] %v892
      %925 = vst [vmem:[%s312 + $0x48] sm:$0xff] %v893
      %926 = vst [vmem:[%s312 + $0x50] sm:$0xff] %v894
      %927 = vst [vmem:[%s312 + $0x58] sm:$0xff] %v895
      %928 = vst [vmem:[%s312 + $0x60] sm:$0xff] %v896
      %929 = vst [vmem:[%s312 + $0x68] sm:$0xff] %v897
      %930 = vst [vmem:[%s312 + $0x70] sm:$0xff] %v898
      %931 = vst [vmem:[%s312 + $0x78] sm:$0xff] %v899
      %932 = vst [vmem:[%s312 + $0x80] sm:$0xff] %v900
      %933 = vst [vmem:[%s312 + $0x88] sm:$0xff] %v901
      %934 = vst [vmem:[%s312 + $0x90] sm:$0xff] %v902
      %935 = vst [vmem:[%s312 + $0x98] sm:$0xff] %v903
      %936 = vst [vmem:[%s312 + $0xa0] sm:$0xff] %v904
      %937 = vst [vmem:[%s312 + $0xa8] sm:$0xff] %v905
      %938 = vst [vmem:[%s312 + $0xb0] sm:$0xff] %v906
      %939 = vst [vmem:[%s312 + $0xb8] sm:$0xff] %v907
      %940 = vst [vmem:[%s312 + $0xc0] sm:$0xff] %v908
      %941 = vst [vmem:[%s312 + $0xc8] sm:$0xff] %v909
      %942 = vst [vmem:[%s312 + $0xd0] sm:$0xff] %v910
      %943 = vst [vmem:[%s312 + $0xd8] sm:$0xff] %v911
      %944 = vst [vmem:[%s312 + $0xe0] sm:$0xff] %v912
      %945 = vst [vmem:[%s312 + $0xe8] sm:$0xff] %v913
      %946 = vst [vmem:[%s312 + $0xf0] sm:$0xff] %v914
      %947 = vst [vmem:[%s312 + $0xf8] sm:$0xff] %v915
      %s948 = smul.u32 32, %s21
      %p949 = scmp.lt.s32.totalorder %s20, 3
      %s950 = scalar_select %p949, %s20, 3
      %p951 = scmp.lt.s32.totalorder %s948, 255
      %s952 = scalar_select %p951, %s948, 255
      %p953 = scmp.lt.s32.totalorder %s22, 0
      %s954 = scalar_select %p953, %s22, 0
      %s955 = sadd.s32 %s954, %s952
      %s956 = smul.addr %s950, 256
      %s957 = sadd.s32 %s955, %s956
      %s958 = smul.addr %s957, 8
      %s959 = scalar_lea.vmem %s4, %s958
      // Predicated region
      $region37: #{generator_forward.9} parent=35 // pred_check
        %p960 = pneg %p164
      $region38: #{generator_forward.9} parent=35 // pred_check_branch
        %962 = sbr.rel (%p960) target = $region40
      $region39: #{generator_forward.9} parent=35 // pred_region
        %s963 = smul.u32 32, %s21
      $region40: #{generator_forward.9} parent=35 // pred_fallthru
        _
    $region36: #{generator_forward.9} parent=5 // pred_fallthru
      _
    %p964 = scmp.le.s32.totalorder 2, %s10
    // Predicated region
    $region41: #{generator_forward.9} parent=5 // pred_check
      %p965 = pneg %p964
    $region42: #{generator_forward.9} parent=5 // pred_check_branch
      %967 = sbr.rel (%p965) target = $region44
    $region43: #{generator_forward.9} parent=5 // pred_region
      %s968 = ssub.s32 %s10, 2
      // Predicated region
      $region45: #{generator_forward.9} parent=43 // pred_check
        %p969 = pneg %p170
      $region46: #{generator_forward.9} parent=43 // pred_check_branch
        %971 = sbr.rel (%p969) target = $region48
      $region47: #{generator_forward.9} parent=43 // pred_region
        %s972 = smul.u32 32, %s24
        %p973 = scmp.lt.s32.totalorder %s23, 3
        %s974 = scalar_select %p973, %s23, 3
        %p975 = scmp.lt.s32.totalorder %s972, 255
        %s976 = scalar_select %p975, %s972, 255
        %p977 = scmp.lt.s32.totalorder %s25, 0
        %s978 = scalar_select %p977, %s25, 0
        %s979 = sadd.s32 %s978, %s976
        %s980 = smul.addr %s974, 256
        %s981 = sadd.s32 %s979, %s980
        %s982 = smul.addr %s981, 8
        %s983 = scalar_lea.vmem %s4, %s982
      $region48: #{generator_forward.9} parent=43 // pred_fallthru
        _
    $region44: #{generator_forward.9} parent=5 // pred_fallthru
      _
  $region6: #{generator_forward.9} parent=0 // loop_footer
    %s14 = sadd.s32 1, %s10
  $region7: #{generator_forward.9} parent=0 // loop_footer_branch
    %9 = sbr.rel target = $region3
  $region8: #{generator_forward.9} parent=0 // loop_exit
    _

</llo_original>
